<compile_context>
chip_gen: v7x
topology: tpu7x:2x2x1
jax: 0.10.0
libtpu: 0.0.40
codegen_flags: <defaults>
</compile_context>

<pallas_src>
import functools

import jax
import jax.numpy as jnp
from jax.experimental import pallas as pl
from jax.experimental.pallas import tpu as pltpu

BN_EPS = 1e-5


# ------------------------------- Pallas kernel --------------------------------


def _act(y, act):
    if act == "relu":
        return jnp.maximum(y, 0.0)
    if act == "tanh":
        return jnp.tanh(y)
    return y


def _rise_fused_kernel(*refs, n_blocks, act):
    """Fully fused RISEv3 forward (body + value head + policy head).

    Activations are (M, C) = (N*H*W, C) slabs so every 1x1 conv and every 3x3 conv
    (via an in-kernel im2col tap matrix) is a whole-batch MXU matmul with bf16
    operands and f32 accumulation.  BatchNorm is pre-folded into the weights.
    One shared zero-halo VMEM scratch provides the pad=1 windows for all 3x3 /
    depthwise convolutions; the PyTorch channel-major flatten for both heads is
    done in-kernel via a single (M, 128) transpose.
    """
    it = iter(refs)
    x_ref = next(it)                                   # (N, H, W, Cin) f32
    w_stem_ref, b_stem_ref = next(it), next(it)        # (9*Cin, C) bf16, (1, C) f32
    blocks = [tuple(next(it) for _ in range(6)) for _ in range(n_blocks)]
    wv_ref, bv_ref = next(it), next(it)                # (C, Cv) bf16, (1, Cv) f32
    wp1_ref, bp1_ref = next(it), next(it)              # (9*C, C) bf16, (1, C) f32
    wp2_ref = next(it)                                 # (9*C, Cp) bf16
    wfc1_ref, bfc1_ref = next(it), next(it)            # (Cv*H*W, F) bf16, (1, F) f32
    wfc2_ref, bfc2_ref = next(it), next(it)            # (F, 1) f32, (1, 1) f32
    v_out_ref, p_out_ref = next(it), next(it)          # (N, 1), (N, Cp*H*W)
    pad_ref, tap_ref, tp_ref, fc_ref = next(it), next(it), next(it), next(it)

    N, H, W, cin0 = x_ref.shape
    M, HW = N * H * W, H * W
    C = w_stem_ref.shape[-1]
    Cv = wv_ref.shape[-1]
    Cp = wp2_ref.shape[-1]
    cmax = pad_ref.shape[-1]
    f32, bf16 = jnp.float32, jnp.bfloat16

    # Zero only the 1-pixel halo of the shared padded scratch (covering all cmax
    # channels once).  Interiors are fully overwritten before every tap read, so
    # the zero border stays valid across all convs / channel widths.
    pad_ref[:, 0:1, :, :] = jnp.zeros((N, 1, W + 2, cmax), f32)
    pad_ref[:, H + 1:H + 2, :, :] = jnp.zeros((N, 1, W + 2, cmax), f32)
    pad_ref[:, :, 0:1, :] = jnp.zeros((N, H + 2, 1, cmax), f32)
    pad_ref[:, :, W + 1:W + 2, :] = jnp.zeros((N, H + 2, 1, cmax), f32)

    def conv3x3(src4d, cin, w_ref):
        """pad=1 3x3 conv as a single K=9*cin MXU matmul (in-kernel im2col)."""
        pad_ref[:, 1:H + 1, 1:W + 1, :cin] = src4d
        for k in range(9):
            dy, dx = k // 3, k % 3
            tap_ref[:, k * cin:(k + 1) * cin] = (
                pad_ref[:, dy:dy + H, dx:dx + W, :cin].reshape(M, cin))
        return jnp.dot(tap_ref[:, :9 * cin].astype(bf16), w_ref[...],
                       preferred_element_type=f32)

    # ---- _Stem: 3x3 conv (folded BN) + act -------------------------------------
    out2d = _act(conv3x3(x_ref[...], cin0, w_stem_ref) + b_stem_ref[...], act)

    # ---- _BottlekneckResidualBlock (mobile, depthwise) x n_blocks --------------
    # TODO(synk): a lane-fused (rows, W*c_op) depthwise layout with pltpu.roll taps
    # would fill the vregs better for narrow c_op; kept NHWC-window form for now.
    for (w1_ref, b1_ref, wd_ref, bd_ref, w2_ref, b2_ref) in blocks:
        c_op = w1_ref.shape[-1]
        # 1x1 expand + BN + act
        h2d = _act(jnp.dot(out2d.astype(bf16), w1_ref[...],
                           preferred_element_type=f32) + b1_ref[...], act)
        # depthwise 3x3 + BN + act: 9 shifted VPU multiply-accumulates (f32)
        pad_ref[:, 1:H + 1, 1:W + 1, :c_op] = h2d.reshape(N, H, W, c_op)
        wd = wd_ref[...]                                 # (9, c_op) f32
        acc = jnp.zeros((N, H, W, c_op), f32)
        for k in range(9):
            dy, dx = k // 3, k % 3
            acc = acc + pad_ref[:, dy:dy + H, dx:dx + W, :c_op] * wd[k]
        hdw = _act(acc + bd_ref[...], act).reshape(M, c_op)
        # 1x1 project + BN (no act) + residual (StochasticDepth = identity, eval)
        out2d = (jnp.dot(hdw.astype(bf16), w2_ref[...],
                         preferred_element_type=f32) + b2_ref[...] + out2d)

    # ---- _ValueHead conv and _PolicyHead convs ---------------------------------
    v_act = _act(jnp.dot(out2d.astype(bf16), wv_ref[...],
                         preferred_element_type=f32) + bv_ref[...], act)   # (M, Cv)
    p1 = _act(conv3x3(out2d.reshape(N, H, W, C), C, wp1_ref) + bp1_ref[...], act)
    p2 = conv3x3(p1.reshape(N, H, W, C), C, wp2_ref)                       # (M, Cp)

    # ---- in-kernel channel-major (NCHW) flatten for both heads -----------------
    # One canonical (M, 128) -> (128, M) transpose moves the head channels into
    # sublanes; small lane-sliced stores then emit lane-dense NCHW-ordered rows.
    tp_ref[...] = jnp.zeros_like(tp_ref)
    tp_ref[:, 0:Cv] = v_act
    tp_ref[:, Cv:Cv + Cp] = p2
    t = jnp.transpose(tp_ref[...])                       # (128, M) f32
    for n in range(N):
        for c in range(Cv):
            fc_ref[n:n + 1, c * HW:(c + 1) * HW] = t[c:c + 1, n * HW:(n + 1) * HW]
        for c in range(Cp):
            p_out_ref[n:n + 1, c * HW:(c + 1) * HW] = (
                t[Cv + c:Cv + c + 1, n * HW:(n + 1) * HW])

    # ---- _ValueHead FC stack (fused): FC + act -> FC -> tanh -------------------
    h = _act(jnp.dot(fc_ref[...].astype(bf16), wfc1_ref[...],
                     preferred_element_type=f32) + bfc1_ref[...], act)      # (N, F)
    v_out_ref[...] = jnp.tanh(
        jnp.dot(h, wfc2_ref[...], preferred_element_type=f32) + bfc2_ref[...])


# ------------------------------- forward wrapper ------------------------------


def rise_v3_forward(kparams, x_nchw, act_type="relu"):
    """Forward pass matching RiseV3.forward (eval mode) -> (value, policy)."""
    x = jnp.transpose(x_nchw, (0, 2, 3, 1)).astype(jnp.float32)      # NCHW -> NHWC
    N, H, W, cin = x.shape
    C = kparams["stem_w"].shape[-1]
    Cv = kparams["v_conv_w"].shape[-1]
    Cp = kparams["p_conv2_w"].shape[-1]
    M, HW = N * H * W, H * W
    c_ops = [blk["w1"].shape[-1] for blk in kparams["blocks"]]
    cmax = max([cin, C] + c_ops)
    kmax = 9 * max(cin, C)
    assert Cv + Cp <= 128, "head channels must fit one transpose tile"

    args = [x, kparams["stem_w"], kparams["stem_b"]]
    for blk in kparams["blocks"]:
        args += [blk["w1"], blk["b1"], blk["wd"], blk["bd"], blk["w2"], blk["b2"]]
    args += [kparams["v_conv_w"], kparams["v_conv_b"],
             kparams["p_conv1_w"], kparams["p_conv1_b"], kparams["p_conv2_w"],
             kparams["v_fc1_w"], kparams["v_fc1_b"],
             kparams["v_fc2_w"], kparams["v_fc2_b"]]

    scratch = [
        pltpu.VMEM((N, H + 2, W + 2, cmax), jnp.float32),  # shared zero-halo buffer
        pltpu.VMEM((M, kmax), jnp.float32),                # shared im2col tap matrix
        pltpu.VMEM((M, 128), jnp.float32),                 # head transpose staging
        pltpu.VMEM((N, Cv * HW), jnp.float32),             # value NCHW flatten
    ]

    # TODO(synk): for production batch/channel sizes, add a batch grid axis with
    # dimension_semantics=("parallel",) (2nd v7x TensorCore) and pipeline per-block
    # weights via BlockSpec; unnecessary at this toy size (single-shot VMEM fit).
    value, policy = pl.pallas_call(
        functools.partial(_rise_fused_kernel, n_blocks=len(kparams["blocks"]),
                          act=act_type),
        out_shape=(jax.ShapeDtypeStruct((N, 1), jnp.float32),
                   jax.ShapeDtypeStruct((N, Cp * HW), jnp.float32)),
        scratch_shapes=scratch,
    )(*args)
    return value, policy


# --------------------------- parameter construction ---------------------------


def fold_bn(gamma, beta, mean, var, eps=BN_EPS):
    scale = gamma / jnp.sqrt(var + eps)
    return scale, beta - mean * scale


def _init_bn(key, c):
    k1, k2, k3, k4 = jax.random.split(key, 4)
    gamma = 1.0 + 0.1 * jax.random.normal(k1, (c,), jnp.float32)
    beta = 0.1 * jax.random.normal(k2, (c,), jnp.float32)
    mean = 0.1 * jax.random.normal(k3, (c,), jnp.float32)
    var = 0.5 + jax.random.uniform(k4, (c,), jnp.float32)
    return gamma, beta, mean, var


def _conv_w(key, kh, kw, cin, cout):
    return jax.random.normal(key, (kh, kw, cin, cout), jnp.float32) / jnp.sqrt(kh * kw * cin)


def init_rise_v3_params(key, nb_input_channels, channels, channels_operating_init,
                        channel_expansion, kernels, channels_value_head,
                        channels_policy_head, value_fc_size, board_height, board_width):
    """Raw (PyTorch-structured) parameters: conv weights + BatchNorm stats + FC."""
    keys = iter(jax.random.split(key, 16 + 8 * len(kernels)))
    p = {"stem_w": _conv_w(next(keys), 3, 3, nb_input_channels, channels),
         "stem_bn": _init_bn(next(keys), channels)}
    blocks = []
    c_op = channels_operating_init
    for kernel in kernels:
        blocks.append({
            "w1": _conv_w(next(keys), 1, 1, channels, c_op)[0, 0],
            "bn1": _init_bn(next(keys), c_op),
            "wd": jax.random.normal(next(keys), (kernel, kernel, c_op), jnp.float32) / kernel,
            "bnd": _init_bn(next(keys), c_op),
            "w2": _conv_w(next(keys), 1, 1, c_op, channels)[0, 0],
            "bn2": _init_bn(next(keys), channels),
            "kernel": kernel,
        })
        c_op += channel_expansion
    p["blocks"] = blocks
    nb_flatten_v = channels_value_head * board_height * board_width
    p["v_conv_w"] = _conv_w(next(keys), 1, 1, channels, channels_value_head)[0, 0]
    p["v_bn"] = _init_bn(next(keys), channels_value_head)
    p["v_fc1_w"] = (jax.random.normal(next(keys), (nb_flatten_v, value_fc_size),
                                      jnp.float32) / jnp.sqrt(nb_flatten_v))
    p["v_fc1_b"] = 0.1 * jax.random.normal(next(keys), (value_fc_size,), jnp.float32)
    p["v_fc2_w"] = (jax.random.normal(next(keys), (value_fc_size, 1), jnp.float32)
                    / jnp.sqrt(value_fc_size))
    p["v_fc2_b"] = 0.1 * jax.random.normal(next(keys), (1,), jnp.float32)
    p["p_conv1_w"] = _conv_w(next(keys), 3, 3, channels, channels)
    p["p_bn1"] = _init_bn(next(keys), channels)
    p["p_conv2_w"] = _conv_w(next(keys), 3, 3, channels, channels_policy_head)
    return p


def prepare_kernel_params(raw):
    """Fold BatchNorm into the weights, reshape 3x3 weights to (9*Cin, Cout) im2col
    form, cast MXU weights to bfloat16 (biases / depthwise / tiny FC2 stay f32)."""
    bf16 = jnp.bfloat16
    kp = {}
    s, b = fold_bn(*raw["stem_bn"])
    cin = raw["stem_w"].shape[2]
    kp["stem_w"] = (raw["stem_w"] * s).reshape(9 * cin, -1).astype(bf16)
    kp["stem_b"] = b.reshape(1, -1)

    kp["blocks"] = []
    for blk in raw["blocks"]:
        # TODO(synk): only 3x3 depthwise kernels are implemented (config below uses
        # kernels=[3,3]); 5x5 blocks would need a 2-pixel halo + 25 taps.
        assert blk["kernel"] == 3, "only 3x3 depthwise kernels implemented"
        s1, b1 = fold_bn(*blk["bn1"])
        sd, bd = fold_bn(*blk["bnd"])
        s2, b2 = fold_bn(*blk["bn2"])
        kp["blocks"].append({
            "w1": (blk["w1"] * s1).astype(bf16), "b1": b1.reshape(1, -1),
            "wd": (blk["wd"] * sd).reshape(9, -1), "bd": bd.reshape(1, -1),
            "w2": (blk["w2"] * s2).astype(bf16), "b2": b2.reshape(1, -1),
        })

    sv, bv = fold_bn(*raw["v_bn"])
    kp["v_conv_w"] = (raw["v_conv_w"] * sv).astype(bf16)
    kp["v_conv_b"] = bv.reshape(1, -1)
    # FC1 rows are already in the PyTorch NCHW-flatten order, which the kernel
    # rebuilds in-kernel, so no row permutation is needed.
    kp["v_fc1_w"] = raw["v_fc1_w"].astype(bf16)
    kp["v_fc1_b"] = raw["v_fc1_b"].reshape(1, -1)
    kp["v_fc2_w"] = raw["v_fc2_w"]                      # (F, 1) tiny -> keep f32
    kp["v_fc2_b"] = raw["v_fc2_b"].reshape(1, 1)

    sp, bp = fold_bn(*raw["p_bn1"])
    c = raw["p_conv1_w"].shape[2]
    kp["p_conv1_w"] = (raw["p_conv1_w"] * sp).reshape(9 * c, -1).astype(bf16)
    kp["p_conv1_b"] = bp.reshape(1, -1)
    kp["p_conv2_w"] = raw["p_conv2_w"].reshape(9 * c, -1).astype(bf16)  # no bias/BN
    return kp


# ------------------------------------ main -------------------------------------


if __name__ == "__main__":
    key = jax.random.PRNGKey(0)
    k_params, k_x = jax.random.split(key)

    # Small, module-consistent config.
    nb_input_channels = 8
    board_height = board_width = 8
    channels = 32
    channels_operating_init = 16
    channel_expansion = 16
    kernels = [3, 3]                 # two mobile-bottleneck residual blocks
    channels_value_head = 8
    channels_policy_head = 8
    value_fc_size = 32
    batch = 2

    raw_params = init_rise_v3_params(
        k_params, nb_input_channels, channels, channels_operating_init,
        channel_expansion, kernels, channels_value_head, channels_policy_head,
        value_fc_size, board_height, board_width)
    kparams = prepare_kernel_params(raw_params)

    x = jax.random.normal(
        k_x, (batch, nb_input_channels, board_height, board_width), jnp.float32)  # NCHW

    fwd = jax.jit(functools.partial(rise_v3_forward, kparams))
    value, policy = fwd(x)
    jax.block_until_ready((value, policy))

    assert value.shape == (batch, 1)
    assert policy.shape == (batch, channels_policy_head * board_height * board_width)
    print("KERNEL_OK")
</pallas_src>

<mosaic_0001>
module attributes {stable_mosaic.version = 11 : i64} {
  func.func @_rise_fused_kernel(%arg0: memref<2x8x8x8xf32, #tpu.memory_space<vmem>>, %arg1: memref<72x32xbf16, #tpu.memory_space<vmem>>, %arg2: memref<1x32xf32, #tpu.memory_space<vmem>>, %arg3: memref<32x16xbf16, #tpu.memory_space<vmem>>, %arg4: memref<1x16xf32, #tpu.memory_space<vmem>>, %arg5: memref<9x16xf32, #tpu.memory_space<vmem>>, %arg6: memref<1x16xf32, #tpu.memory_space<vmem>>, %arg7: memref<16x32xbf16, #tpu.memory_space<vmem>>, %arg8: memref<1x32xf32, #tpu.memory_space<vmem>>, %arg9: memref<32x32xbf16, #tpu.memory_space<vmem>>, %arg10: memref<1x32xf32, #tpu.memory_space<vmem>>, %arg11: memref<9x32xf32, #tpu.memory_space<vmem>>, %arg12: memref<1x32xf32, #tpu.memory_space<vmem>>, %arg13: memref<32x32xbf16, #tpu.memory_space<vmem>>, %arg14: memref<1x32xf32, #tpu.memory_space<vmem>>, %arg15: memref<32x8xbf16, #tpu.memory_space<vmem>>, %arg16: memref<1x8xf32, #tpu.memory_space<vmem>>, %arg17: memref<288x32xbf16, #tpu.memory_space<vmem>>, %arg18: memref<1x32xf32, #tpu.memory_space<vmem>>, %arg19: memref<288x8xbf16, #tpu.memory_space<vmem>>, %arg20: memref<512x32xbf16, #tpu.memory_space<vmem>>, %arg21: memref<1x32xf32, #tpu.memory_space<vmem>>, %arg22: memref<32x1xf32, #tpu.memory_space<vmem>>, %arg23: memref<1x1xf32, #tpu.memory_space<vmem>>, %arg24: memref<2x1xf32, #tpu.memory_space<vmem>>, %arg25: memref<2x512xf32, #tpu.memory_space<vmem>>, %arg26: memref<2x10x10x32xf32, #tpu.memory_space<vmem>>, %arg27: memref<128x288xf32, #tpu.memory_space<vmem>>, %arg28: memref<128x128xf32, #tpu.memory_space<vmem>>, %arg29: memref<2x512xf32, #tpu.memory_space<vmem>>) attributes {dimension_semantics = [], scalar_prefetch = 0 : i64, scratch_operands = 4 : i64, tpu.core_type = #tpu.core_type<tc>} {
    %cst = arith.constant 0.000000e+00 : f32
    %0 = vector.broadcast %cst : f32 to vector<2x1x10x32xf32>
    %c0 = arith.constant 0 : index
    %c0_0 = arith.constant 0 : index
    %c0_1 = arith.constant 0 : index
    %c0_2 = arith.constant 0 : index
    %1 = vector.load %arg26[%c0, %c0_0, %c0_1, %c0_2] : memref<2x10x10x32xf32, #tpu.memory_space<vmem>>, vector<2x1x10x32xf32>
    tpu.vector_store %arg26[%c0, %c0_0, %c0_1, %c0_2], %0 {strides = array<i32>} : memref<2x10x10x32xf32, #tpu.memory_space<vmem>>, vector<2x1x10x32xf32>,
    %cst_3 = arith.constant 0.000000e+00 : f32
    %2 = vector.broadcast %cst_3 : f32 to vector<2x1x10x32xf32>
    %c0_4 = arith.constant 0 : index
    %c9 = arith.constant 9 : index
    %c0_5 = arith.constant 0 : index
    %c0_6 = arith.constant 0 : index
    %3 = vector.load %arg26[%c0_4, %c9, %c0_5, %c0_6] : memref<2x10x10x32xf32, #tpu.memory_space<vmem>>, vector<2x1x10x32xf32>
    tpu.vector_store %arg26[%c0_4, %c9, %c0_5, %c0_6], %2 {strides = array<i32>} : memref<2x10x10x32xf32, #tpu.memory_space<vmem>>, vector<2x1x10x32xf32>,
    %cst_7 = arith.constant 0.000000e+00 : f32
    %4 = vector.broadcast %cst_7 : f32 to vector<2x10x1x32xf32>
    %c0_8 = arith.constant 0 : index
    %c0_9 = arith.constant 0 : index
    %c0_10 = arith.constant 0 : index
    %c0_11 = arith.constant 0 : index
    %5 = vector.load %arg26[%c0_8, %c0_9, %c0_10, %c0_11] : memref<2x10x10x32xf32, #tpu.memory_space<vmem>>, vector<2x10x1x32xf32>
    tpu.vector_store %arg26[%c0_8, %c0_9, %c0_10, %c0_11], %4 {strides = array<i32>} : memref<2x10x10x32xf32, #tpu.memory_space<vmem>>, vector<2x10x1x32xf32>,
    %cst_12 = arith.constant 0.000000e+00 : f32
    %6 = vector.broadcast %cst_12 : f32 to vector<2x10x1x32xf32>
    %c0_13 = arith.constant 0 : index
    %c0_14 = arith.constant 0 : index
    %c9_15 = arith.constant 9 : index
    %c0_16 = arith.constant 0 : index
    %7 = vector.load %arg26[%c0_13, %c0_14, %c9_15, %c0_16] : memref<2x10x10x32xf32, #tpu.memory_space<vmem>>, vector<2x10x1x32xf32>
    tpu.vector_store %arg26[%c0_13, %c0_14, %c9_15, %c0_16], %6 {strides = array<i32>} : memref<2x10x10x32xf32, #tpu.memory_space<vmem>>, vector<2x10x1x32xf32>,
    %c0_17 = arith.constant 0 : index
    %c0_18 = arith.constant 0 : index
    %c0_19 = arith.constant 0 : index
    %c0_20 = arith.constant 0 : index
    %8 = vector.load %arg0[%c0_17, %c0_18, %c0_19, %c0_20] : memref<2x8x8x8xf32, #tpu.memory_space<vmem>>, vector<2x8x8x8xf32>
    %c0_21 = arith.constant 0 : index
    %c1 = arith.constant 1 : index
    %c1_22 = arith.constant 1 : index
    %c0_23 = arith.constant 0 : index
    %9 = vector.load %arg26[%c0_21, %c1, %c1_22, %c0_23] : memref<2x10x10x32xf32, #tpu.memory_space<vmem>>, vector<2x8x8x8xf32>
    tpu.vector_store %arg26[%c0_21, %c1, %c1_22, %c0_23], %8 {strides = array<i32>} : memref<2x10x10x32xf32, #tpu.memory_space<vmem>>, vector<2x8x8x8xf32>,
    %c0_24 = arith.constant 0 : index
    %c0_25 = arith.constant 0 : index
    %c0_26 = arith.constant 0 : index
    %c0_27 = arith.constant 0 : index
    %10 = vector.load %arg26[%c0_24, %c0_25, %c0_26, %c0_27] : memref<2x10x10x32xf32, #tpu.memory_space<vmem>>, vector<2x8x8x8xf32>
    %11 = vector.shape_cast %10 : vector<2x8x8x8xf32> to vector<128x8xf32>
    %c0_28 = arith.constant 0 : index
    %c0_29 = arith.constant 0 : index
    %12 = vector.load %arg27[%c0_28, %c0_29] : memref<128x288xf32, #tpu.memory_space<vmem>>, vector<128x8xf32>
    tpu.vector_store %arg27[%c0_28, %c0_29], %11 {strides = array<i32>} : memref<128x288xf32, #tpu.memory_space<vmem>>, vector<128x8xf32>,
    %c0_30 = arith.constant 0 : index
    %c0_31 = arith.constant 0 : index
    %c1_32 = arith.constant 1 : index
    %c0_33 = arith.constant 0 : index
    %13 = vector.load %arg26[%c0_30, %c0_31, %c1_32, %c0_33] : memref<2x10x10x32xf32, #tpu.memory_space<vmem>>, vector<2x8x8x8xf32>
    %14 = vector.shape_cast %13 : vector<2x8x8x8xf32> to vector<128x8xf32>
    %c0_34 = arith.constant 0 : index
    %c8 = arith.constant 8 : index
    %15 = vector.load %arg27[%c0_34, %c8] : memref<128x288xf32, #tpu.memory_space<vmem>>, vector<128x8xf32>
    tpu.vector_store %arg27[%c0_34, %c8], %14 {strides = array<i32>} : memref<128x288xf32, #tpu.memory_space<vmem>>, vector<128x8xf32>,
    %c0_35 = arith.constant 0 : index
    %c0_36 = arith.constant 0 : index
    %c2 = arith.constant 2 : index
    %c0_37 = arith.constant 0 : index
    %16 = vector.load %arg26[%c0_35, %c0_36, %c2, %c0_37] : memref<2x10x10x32xf32, #tpu.memory_space<vmem>>, vector<2x8x8x8xf32>
    %17 = vector.shape_cast %16 : vector<2x8x8x8xf32> to vector<128x8xf32>
    %c0_38 = arith.constant 0 : index
    %c16 = arith.constant 16 : index
    %18 = vector.load %arg27[%c0_38, %c16] : memref<128x288xf32, #tpu.memory_space<vmem>>, vector<128x8xf32>
    tpu.vector_store %arg27[%c0_38, %c16], %17 {strides = array<i32>} : memref<128x288xf32, #tpu.memory_space<vmem>>, vector<128x8xf32>,
    %c0_39 = arith.constant 0 : index
    %c1_40 = arith.constant 1 : index
    %c0_41 = arith.constant 0 : index
    %c0_42 = arith.constant 0 : index
    %19 = vector.load %arg26[%c0_39, %c1_40, %c0_41, %c0_42] : memref<2x10x10x32xf32, #tpu.memory_space<vmem>>, vector<2x8x8x8xf32>
    %20 = vector.shape_cast %19 : vector<2x8x8x8xf32> to vector<128x8xf32>
    %c0_43 = arith.constant 0 : index
    %c24 = arith.constant 24 : index
    %21 = vector.load %arg27[%c0_43, %c24] : memref<128x288xf32, #tpu.memory_space<vmem>>, vector<128x8xf32>
    tpu.vector_store %arg27[%c0_43, %c24], %20 {strides = array<i32>} : memref<128x288xf32, #tpu.memory_space<vmem>>, vector<128x8xf32>,
    %c0_44 = arith.constant 0 : index
    %c1_45 = arith.constant 1 : index
    %c1_46 = arith.constant 1 : index
    %c0_47 = arith.constant 0 : index
    %22 = vector.load %arg26[%c0_44, %c1_45, %c1_46, %c0_47] : memref<2x10x10x32xf32, #tpu.memory_space<vmem>>, vector<2x8x8x8xf32>
    %23 = vector.shape_cast %22 : vector<2x8x8x8xf32> to vector<128x8xf32>
    %c0_48 = arith.constant 0 : index
    %c32 = arith.constant 32 : index
    %24 = vector.load %arg27[%c0_48, %c32] : memref<128x288xf32, #tpu.memory_space<vmem>>, vector<128x8xf32>
    tpu.vector_store %arg27[%c0_48, %c32], %23 {strides = array<i32>} : memref<128x288xf32, #tpu.memory_space<vmem>>, vector<128x8xf32>,
    %c0_49 = arith.constant 0 : index
    %c1_50 = arith.constant 1 : index
    %c2_51 = arith.constant 2 : index
    %c0_52 = arith.constant 0 : index
    %25 = vector.load %arg26[%c0_49, %c1_50, %c2_51, %c0_52] : memref<2x10x10x32xf32, #tpu.memory_space<vmem>>, vector<2x8x8x8xf32>
    %26 = vector.shape_cast %25 : vector<2x8x8x8xf32> to vector<128x8xf32>
    %c0_53 = arith.constant 0 : index
    %c40 = arith.constant 40 : index
    %27 = vector.load %arg27[%c0_53, %c40] : memref<128x288xf32, #tpu.memory_space<vmem>>, vector<128x8xf32>
    tpu.vector_store %arg27[%c0_53, %c40], %26 {strides = array<i32>} : memref<128x288xf32, #tpu.memory_space<vmem>>, vector<128x8xf32>,
    %c0_54 = arith.constant 0 : index
    %c2_55 = arith.constant 2 : index
    %c0_56 = arith.constant 0 : index
    %c0_57 = arith.constant 0 : index
    %28 = vector.load %arg26[%c0_54, %c2_55, %c0_56, %c0_57] : memref<2x10x10x32xf32, #tpu.memory_space<vmem>>, vector<2x8x8x8xf32>
    %29 = vector.shape_cast %28 : vector<2x8x8x8xf32> to vector<128x8xf32>
    %c0_58 = arith.constant 0 : index
    %c48 = arith.constant 48 : index
    %30 = vector.load %arg27[%c0_58, %c48] : memref<128x288xf32, #tpu.memory_space<vmem>>, vector<128x8xf32>
    tpu.vector_store %arg27[%c0_58, %c48], %29 {strides = array<i32>} : memref<128x288xf32, #tpu.memory_space<vmem>>, vector<128x8xf32>,
    %c0_59 = arith.constant 0 : index
    %c2_60 = arith.constant 2 : index
    %c1_61 = arith.constant 1 : index
    %c0_62 = arith.constant 0 : index
    %31 = vector.load %arg26[%c0_59, %c2_60, %c1_61, %c0_62] : memref<2x10x10x32xf32, #tpu.memory_space<vmem>>, vector<2x8x8x8xf32>
    %32 = vector.shape_cast %31 : vector<2x8x8x8xf32> to vector<128x8xf32>
    %c0_63 = arith.constant 0 : index
    %c56 = arith.constant 56 : index
    %33 = vector.load %arg27[%c0_63, %c56] : memref<128x288xf32, #tpu.memory_space<vmem>>, vector<128x8xf32>
    tpu.vector_store %arg27[%c0_63, %c56], %32 {strides = array<i32>} : memref<128x288xf32, #tpu.memory_space<vmem>>, vector<128x8xf32>,
    %c0_64 = arith.constant 0 : index
    %c2_65 = arith.constant 2 : index
    %c2_66 = arith.constant 2 : index
    %c0_67 = arith.constant 0 : index
    %34 = vector.load %arg26[%c0_64, %c2_65, %c2_66, %c0_67] : memref<2x10x10x32xf32, #tpu.memory_space<vmem>>, vector<2x8x8x8xf32>
    %35 = vector.shape_cast %34 : vector<2x8x8x8xf32> to vector<128x8xf32>
    %c0_68 = arith.constant 0 : index
    %c64 = arith.constant 64 : index
    %36 = vector.load %arg27[%c0_68, %c64] : memref<128x288xf32, #tpu.memory_space<vmem>>, vector<128x8xf32>
    tpu.vector_store %arg27[%c0_68, %c64], %35 {strides = array<i32>} : memref<128x288xf32, #tpu.memory_space<vmem>>, vector<128x8xf32>,
    %c0_69 = arith.constant 0 : index
    %c0_70 = arith.constant 0 : index
    %37 = vector.load %arg27[%c0_69, %c0_70] : memref<128x288xf32, #tpu.memory_space<vmem>>, vector<128x72xf32>
    %38 = arith.truncf %37 : vector<128x72xf32> to vector<128x72xbf16>
    %c0_71 = arith.constant 0 : index
    %c0_72 = arith.constant 0 : index
    %39 = vector.load %arg1[%c0_71, %c0_72] : memref<72x32xbf16, #tpu.memory_space<vmem>>, vector<72x32xbf16>
    %cst_73 = arith.constant dense<0.000000e+00> : vector<128x32xf32>
    %40 = tpu.matmul %38, %39, %cst_73 {dimension_numbers = #tpu.dot_dimension_numbers<[1], [0], [0], [1], [0, 0, 1, 1], [], []>} : vector<128x72xbf16>, vector<72x32xbf16>, vector<128x32xf32> -> vector<128x32xf32>
    %c0_74 = arith.constant 0 : index
    %c0_75 = arith.constant 0 : index
    %41 = vector.load %arg2[%c0_74, %c0_75] : memref<1x32xf32, #tpu.memory_space<vmem>>, vector<1x32xf32>
    %42 = vector.broadcast %41 : vector<1x32xf32> to vector<128x32xf32>
    %43 = arith.addf %40, %42 : vector<128x32xf32>
    %cst_76 = arith.constant 0.000000e+00 : f32
    %44 = vector.broadcast %cst_76 : f32 to vector<128x32xf32>
    %45 = arith.maximumf %43, %44 : vector<128x32xf32>
    %46 = arith.truncf %45 : vector<128x32xf32> to vector<128x32xbf16>
    %c0_77 = arith.constant 0 : index
    %c0_78 = arith.constant 0 : index
    %47 = vector.load %arg3[%c0_77, %c0_78] : memref<32x16xbf16, #tpu.memory_space<vmem>>, vector<32x16xbf16>
    %cst_79 = arith.constant dense<0.000000e+00> : vector<128x16xf32>
    %48 = tpu.matmul %46, %47, %cst_79 {dimension_numbers = #tpu.dot_dimension_numbers<[1], [0], [0], [1], [0, 0, 1, 1], [], []>} : vector<128x32xbf16>, vector<32x16xbf16>, vector<128x16xf32> -> vector<128x16xf32>
    %c0_80 = arith.constant 0 : index
    %c0_81 = arith.constant 0 : index
    %49 = vector.load %arg4[%c0_80, %c0_81] : memref<1x16xf32, #tpu.memory_space<vmem>>, vector<1x16xf32>
    %50 = vector.broadcast %49 : vector<1x16xf32> to vector<128x16xf32>
    %51 = arith.addf %48, %50 : vector<128x16xf32>
    %cst_82 = arith.constant 0.000000e+00 : f32
    %52 = vector.broadcast %cst_82 : f32 to vector<128x16xf32>
    %53 = arith.maximumf %51, %52 : vector<128x16xf32>
    %54 = vector.shape_cast %53 : vector<128x16xf32> to vector<2x8x8x16xf32>
    %c0_83 = arith.constant 0 : index
    %c1_84 = arith.constant 1 : index
    %c1_85 = arith.constant 1 : index
    %c0_86 = arith.constant 0 : index
    %55 = vector.load %arg26[%c0_83, %c1_84, %c1_85, %c0_86] : memref<2x10x10x32xf32, #tpu.memory_space<vmem>>, vector<2x8x8x16xf32>
    tpu.vector_store %arg26[%c0_83, %c1_84, %c1_85, %c0_86], %54 {strides = array<i32>} : memref<2x10x10x32xf32, #tpu.memory_space<vmem>>, vector<2x8x8x16xf32>,
    %c0_87 = arith.constant 0 : index
    %c0_88 = arith.constant 0 : index
    %56 = vector.load %arg5[%c0_87, %c0_88] : memref<9x16xf32, #tpu.memory_space<vmem>>, vector<9x16xf32>
    %cst_89 = arith.constant 0.000000e+00 : f32
    %57 = vector.broadcast %cst_89 : f32 to vector<2x8x8x16xf32>
    %c0_90 = arith.constant 0 : index
    %c0_91 = arith.constant 0 : index
    %c0_92 = arith.constant 0 : index
    %c0_93 = arith.constant 0 : index
    %58 = vector.load %arg26[%c0_90, %c0_91, %c0_92, %c0_93] : memref<2x10x10x32xf32, #tpu.memory_space<vmem>>, vector<2x8x8x16xf32>
    %59 = vector.extract_strided_slice %56 {offsets = [0, 0], sizes = [1, 16], strides = [1, 1]} : vector<9x16xf32> to vector<1x16xf32>
    %60 = vector.shape_cast %59 : vector<1x16xf32> to vector<16xf32>
    %61 = vector.shape_cast %60 : vector<16xf32> to vector<1x1x1x16xf32>
    %62 = vector.broadcast %61 : vector<1x1x1x16xf32> to vector<2x8x8x16xf32>
    %63 = arith.mulf %58, %62 : vector<2x8x8x16xf32>
    %64 = arith.addf %57, %63 : vector<2x8x8x16xf32>
    %c0_94 = arith.constant 0 : index
    %c0_95 = arith.constant 0 : index
    %c1_96 = arith.constant 1 : index
    %c0_97 = arith.constant 0 : index
    %65 = vector.load %arg26[%c0_94, %c0_95, %c1_96, %c0_97] : memref<2x10x10x32xf32, #tpu.memory_space<vmem>>, vector<2x8x8x16xf32>
    %66 = vector.extract_strided_slice %56 {offsets = [1, 0], sizes = [1, 16], strides = [1, 1]} : vector<9x16xf32> to vector<1x16xf32>
    %67 = vector.shape_cast %66 : vector<1x16xf32> to vector<16xf32>
    %68 = vector.shape_cast %67 : vector<16xf32> to vector<1x1x1x16xf32>
    %69 = vector.broadcast %68 : vector<1x1x1x16xf32> to vector<2x8x8x16xf32>
    %70 = arith.mulf %65, %69 : vector<2x8x8x16xf32>
    %71 = arith.addf %64, %70 : vector<2x8x8x16xf32>
    %c0_98 = arith.constant 0 : index
    %c0_99 = arith.constant 0 : index
    %c2_100 = arith.constant 2 : index
    %c0_101 = arith.constant 0 : index
    %72 = vector.load %arg26[%c0_98, %c0_99, %c2_100, %c0_101] : memref<2x10x10x32xf32, #tpu.memory_space<vmem>>, vector<2x8x8x16xf32>
    %73 = vector.extract_strided_slice %56 {offsets = [2, 0], sizes = [1, 16], strides = [1, 1]} : vector<9x16xf32> to vector<1x16xf32>
    %74 = vector.shape_cast %73 : vector<1x16xf32> to vector<16xf32>
    %75 = vector.shape_cast %74 : vector<16xf32> to vector<1x1x1x16xf32>
    %76 = vector.broadcast %75 : vector<1x1x1x16xf32> to vector<2x8x8x16xf32>
    %77 = arith.mulf %72, %76 : vector<2x8x8x16xf32>
    %78 = arith.addf %71, %77 : vector<2x8x8x16xf32>
    %c0_102 = arith.constant 0 : index
    %c1_103 = arith.constant 1 : index
    %c0_104 = arith.constant 0 : index
    %c0_105 = arith.constant 0 : index
    %79 = vector.load %arg26[%c0_102, %c1_103, %c0_104, %c0_105] : memref<2x10x10x32xf32, #tpu.memory_space<vmem>>, vector<2x8x8x16xf32>
    %80 = vector.extract_strided_slice %56 {offsets = [3, 0], sizes = [1, 16], strides = [1, 1]} : vector<9x16xf32> to vector<1x16xf32>
    %81 = vector.shape_cast %80 : vector<1x16xf32> to vector<16xf32>
    %82 = vector.shape_cast %81 : vector<16xf32> to vector<1x1x1x16xf32>
    %83 = vector.broadcast %82 : vector<1x1x1x16xf32> to vector<2x8x8x16xf32>
    %84 = arith.mulf %79, %83 : vector<2x8x8x16xf32>
    %85 = arith.addf %78, %84 : vector<2x8x8x16xf32>
    %c0_106 = arith.constant 0 : index
    %c1_107 = arith.constant 1 : index
    %c1_108 = arith.constant 1 : index
    %c0_109 = arith.constant 0 : index
    %86 = vector.load %arg26[%c0_106, %c1_107, %c1_108, %c0_109] : memref<2x10x10x32xf32, #tpu.memory_space<vmem>>, vector<2x8x8x16xf32>
    %87 = vector.extract_strided_slice %56 {offsets = [4, 0], sizes = [1, 16], strides = [1, 1]} : vector<9x16xf32> to vector<1x16xf32>
    %88 = vector.shape_cast %87 : vector<1x16xf32> to vector<16xf32>
    %89 = vector.shape_cast %88 : vector<16xf32> to vector<1x1x1x16xf32>
    %90 = vector.broadcast %89 : vector<1x1x1x16xf32> to vector<2x8x8x16xf32>
    %91 = arith.mulf %86, %90 : vector<2x8x8x16xf32>
    %92 = arith.addf %85, %91 : vector<2x8x8x16xf32>
    %c0_110 = arith.constant 0 : index
    %c1_111 = arith.constant 1 : index
    %c2_112 = arith.constant 2 : index
    %c0_113 = arith.constant 0 : index
    %93 = vector.load %arg26[%c0_110, %c1_111, %c2_112, %c0_113] : memref<2x10x10x32xf32, #tpu.memory_space<vmem>>, vector<2x8x8x16xf32>
    %94 = vector.extract_strided_slice %56 {offsets = [5, 0], sizes = [1, 16], strides = [1, 1]} : vector<9x16xf32> to vector<1x16xf32>
    %95 = vector.shape_cast %94 : vector<1x16xf32> to vector<16xf32>
    %96 = vector.shape_cast %95 : vector<16xf32> to vector<1x1x1x16xf32>
    %97 = vector.broadcast %96 : vector<1x1x1x16xf32> to vector<2x8x8x16xf32>
    %98 = arith.mulf %93, %97 : vector<2x8x8x16xf32>
    %99 = arith.addf %92, %98 : vector<2x8x8x16xf32>
    %c0_114 = arith.constant 0 : index
    %c2_115 = arith.constant 2 : index
    %c0_116 = arith.constant 0 : index
    %c0_117 = arith.constant 0 : index
    %100 = vector.load %arg26[%c0_114, %c2_115, %c0_116, %c0_117] : memref<2x10x10x32xf32, #tpu.memory_space<vmem>>, vector<2x8x8x16xf32>
    %101 = vector.extract_strided_slice %56 {offsets = [6, 0], sizes = [1, 16], strides = [1, 1]} : vector<9x16xf32> to vector<1x16xf32>
    %102 = vector.shape_cast %101 : vector<1x16xf32> to vector<16xf32>
    %103 = vector.shape_cast %102 : vector<16xf32> to vector<1x1x1x16xf32>
    %104 = vector.broadcast %103 : vector<1x1x1x16xf32> to vector<2x8x8x16xf32>
    %105 = arith.mulf %100, %104 : vector<2x8x8x16xf32>
    %106 = arith.addf %99, %105 : vector<2x8x8x16xf32>
    %c0_118 = arith.constant 0 : index
    %c2_119 = arith.constant 2 : index
    %c1_120 = arith.constant 1 : index
    %c0_121 = arith.constant 0 : index
    %107 = vector.load %arg26[%c0_118, %c2_119, %c1_120, %c0_121] : memref<2x10x10x32xf32, #tpu.memory_space<vmem>>, vector<2x8x8x16xf32>
    %108 = vector.extract_strided_slice %56 {offsets = [7, 0], sizes = [1, 16], strides = [1, 1]} : vector<9x16xf32> to vector<1x16xf32>
    %109 = vector.shape_cast %108 : vector<1x16xf32> to vector<16xf32>
    %110 = vector.shape_cast %109 : vector<16xf32> to vector<1x1x1x16xf32>
    %111 = vector.broadcast %110 : vector<1x1x1x16xf32> to vector<2x8x8x16xf32>
    %112 = arith.mulf %107, %111 : vector<2x8x8x16xf32>
    %113 = arith.addf %106, %112 : vector<2x8x8x16xf32>
    %c0_122 = arith.constant 0 : index
    %c2_123 = arith.constant 2 : index
    %c2_124 = arith.constant 2 : index
    %c0_125 = arith.constant 0 : index
    %114 = vector.load %arg26[%c0_122, %c2_123, %c2_124, %c0_125] : memref<2x10x10x32xf32, #tpu.memory_space<vmem>>, vector<2x8x8x16xf32>
    %115 = vector.extract_strided_slice %56 {offsets = [8, 0], sizes = [1, 16], strides = [1, 1]} : vector<9x16xf32> to vector<1x16xf32>
    %116 = vector.shape_cast %115 : vector<1x16xf32> to vector<16xf32>
    %117 = vector.shape_cast %116 : vector<16xf32> to vector<1x1x1x16xf32>
    %118 = vector.broadcast %117 : vector<1x1x1x16xf32> to vector<2x8x8x16xf32>
    %119 = arith.mulf %114, %118 : vector<2x8x8x16xf32>
    %120 = arith.addf %113, %119 : vector<2x8x8x16xf32>
    %c0_126 = arith.constant 0 : index
    %c0_127 = arith.constant 0 : index
    %121 = vector.load %arg6[%c0_126, %c0_127] : memref<1x16xf32, #tpu.memory_space<vmem>>, vector<1x16xf32>
    %122 = vector.shape_cast %121 : vector<1x16xf32> to vector<1x1x1x16xf32>
    %123 = vector.broadcast %122 : vector<1x1x1x16xf32> to vector<2x8x8x16xf32>
    %124 = arith.addf %120, %123 : vector<2x8x8x16xf32>
    %cst_128 = arith.constant 0.000000e+00 : f32
    %125 = vector.broadcast %cst_128 : f32 to vector<2x8x8x16xf32>
    %126 = arith.maximumf %124, %125 : vector<2x8x8x16xf32>
    %127 = vector.shape_cast %126 : vector<2x8x8x16xf32> to vector<128x16xf32>
    %128 = arith.truncf %127 : vector<128x16xf32> to vector<128x16xbf16>
    %c0_129 = arith.constant 0 : index
    %c0_130 = arith.constant 0 : index
    %129 = vector.load %arg7[%c0_129, %c0_130] : memref<16x32xbf16, #tpu.memory_space<vmem>>, vector<16x32xbf16>
    %cst_131 = arith.constant dense<0.000000e+00> : vector<128x32xf32>
    %130 = tpu.matmul %128, %129, %cst_131 {dimension_numbers = #tpu.dot_dimension_numbers<[1], [0], [0], [1], [0, 0, 1, 1], [], []>} : vector<128x16xbf16>, vector<16x32xbf16>, vector<128x32xf32> -> vector<128x32xf32>
    %c0_132 = arith.constant 0 : index
    %c0_133 = arith.constant 0 : index
    %131 = vector.load %arg8[%c0_132, %c0_133] : memref<1x32xf32, #tpu.memory_space<vmem>>, vector<1x32xf32>
    %132 = vector.broadcast %131 : vector<1x32xf32> to vector<128x32xf32>
    %133 = arith.addf %130, %132 : vector<128x32xf32>
    %134 = arith.addf %133, %45 : vector<128x32xf32>
    %135 = arith.truncf %134 : vector<128x32xf32> to vector<128x32xbf16>
    %c0_134 = arith.constant 0 : index
    %c0_135 = arith.constant 0 : index
    %136 = vector.load %arg9[%c0_134, %c0_135] : memref<32x32xbf16, #tpu.memory_space<vmem>>, vector<32x32xbf16>
    %cst_136 = arith.constant dense<0.000000e+00> : vector<128x32xf32>
    %137 = tpu.matmul %135, %136, %cst_136 {dimension_numbers = #tpu.dot_dimension_numbers<[1], [0], [0], [1], [0, 0, 1, 1], [], []>} : vector<128x32xbf16>, vector<32x32xbf16>, vector<128x32xf32> -> vector<128x32xf32>
    %c0_137 = arith.constant 0 : index
    %c0_138 = arith.constant 0 : index
    %138 = vector.load %arg10[%c0_137, %c0_138] : memref<1x32xf32, #tpu.memory_space<vmem>>, vector<1x32xf32>
    %139 = vector.broadcast %138 : vector<1x32xf32> to vector<128x32xf32>
    %140 = arith.addf %137, %139 : vector<128x32xf32>
    %cst_139 = arith.constant 0.000000e+00 : f32
    %141 = vector.broadcast %cst_139 : f32 to vector<128x32xf32>
    %142 = arith.maximumf %140, %141 : vector<128x32xf32>
    %143 = vector.shape_cast %142 : vector<128x32xf32> to vector<2x8x8x32xf32>
    %c0_140 = arith.constant 0 : index
    %c1_141 = arith.constant 1 : index
    %c1_142 = arith.constant 1 : index
    %c0_143 = arith.constant 0 : index
    %144 = vector.load %arg26[%c0_140, %c1_141, %c1_142, %c0_143] : memref<2x10x10x32xf32, #tpu.memory_space<vmem>>, vector<2x8x8x32xf32>
    tpu.vector_store %arg26[%c0_140, %c1_141, %c1_142, %c0_143], %143 {strides = array<i32>} : memref<2x10x10x32xf32, #tpu.memory_space<vmem>>, vector<2x8x8x32xf32>,
    %c0_144 = arith.constant 0 : index
    %c0_145 = arith.constant 0 : index
    %145 = vector.load %arg11[%c0_144, %c0_145] : memref<9x32xf32, #tpu.memory_space<vmem>>, vector<9x32xf32>
    %cst_146 = arith.constant 0.000000e+00 : f32
    %146 = vector.broadcast %cst_146 : f32 to vector<2x8x8x32xf32>
    %c0_147 = arith.constant 0 : index
    %c0_148 = arith.constant 0 : index
    %c0_149 = arith.constant 0 : index
    %c0_150 = arith.constant 0 : index
    %147 = vector.load %arg26[%c0_147, %c0_148, %c0_149, %c0_150] : memref<2x10x10x32xf32, #tpu.memory_space<vmem>>, vector<2x8x8x32xf32>
    %148 = vector.extract_strided_slice %145 {offsets = [0, 0], sizes = [1, 32], strides = [1, 1]} : vector<9x32xf32> to vector<1x32xf32>
    %149 = vector.shape_cast %148 : vector<1x32xf32> to vector<32xf32>
    %150 = vector.shape_cast %149 : vector<32xf32> to vector<1x1x1x32xf32>
    %151 = vector.broadcast %150 : vector<1x1x1x32xf32> to vector<2x8x8x32xf32>
    %152 = arith.mulf %147, %151 : vector<2x8x8x32xf32>
    %153 = arith.addf %146, %152 : vector<2x8x8x32xf32>
    %c0_151 = arith.constant 0 : index
    %c0_152 = arith.constant 0 : index
    %c1_153 = arith.constant 1 : index
    %c0_154 = arith.constant 0 : index
    %154 = vector.load %arg26[%c0_151, %c0_152, %c1_153, %c0_154] : memref<2x10x10x32xf32, #tpu.memory_space<vmem>>, vector<2x8x8x32xf32>
    %155 = vector.extract_strided_slice %145 {offsets = [1, 0], sizes = [1, 32], strides = [1, 1]} : vector<9x32xf32> to vector<1x32xf32>
    %156 = vector.shape_cast %155 : vector<1x32xf32> to vector<32xf32>
    %157 = vector.shape_cast %156 : vector<32xf32> to vector<1x1x1x32xf32>
    %158 = vector.broadcast %157 : vector<1x1x1x32xf32> to vector<2x8x8x32xf32>
    %159 = arith.mulf %154, %158 : vector<2x8x8x32xf32>
    %160 = arith.addf %153, %159 : vector<2x8x8x32xf32>
    %c0_155 = arith.constant 0 : index
    %c0_156 = arith.constant 0 : index
    %c2_157 = arith.constant 2 : index
    %c0_158 = arith.constant 0 : index
    %161 = vector.load %arg26[%c0_155, %c0_156, %c2_157, %c0_158] : memref<2x10x10x32xf32, #tpu.memory_space<vmem>>, vector<2x8x8x32xf32>
    %162 = vector.extract_strided_slice %145 {offsets = [2, 0], sizes = [1, 32], strides = [1, 1]} : vector<9x32xf32> to vector<1x32xf32>
    %163 = vector.shape_cast %162 : vector<1x32xf32> to vector<32xf32>
    %164 = vector.shape_cast %163 : vector<32xf32> to vector<1x1x1x32xf32>
    %165 = vector.broadcast %164 : vector<1x1x1x32xf32> to vector<2x8x8x32xf32>
    %166 = arith.mulf %161, %165 : vector<2x8x8x32xf32>
    %167 = arith.addf %160, %166 : vector<2x8x8x32xf32>
    %c0_159 = arith.constant 0 : index
    %c1_160 = arith.constant 1 : index
    %c0_161 = arith.constant 0 : index
    %c0_162 = arith.constant 0 : index
    %168 = vector.load %arg26[%c0_159, %c1_160, %c0_161, %c0_162] : memref<2x10x10x32xf32, #tpu.memory_space<vmem>>, vector<2x8x8x32xf32>
    %169 = vector.extract_strided_slice %145 {offsets = [3, 0], sizes = [1, 32], strides = [1, 1]} : vector<9x32xf32> to vector<1x32xf32>
    %170 = vector.shape_cast %169 : vector<1x32xf32> to vector<32xf32>
    %171 = vector.shape_cast %170 : vector<32xf32> to vector<1x1x1x32xf32>
    %172 = vector.broadcast %171 : vector<1x1x1x32xf32> to vector<2x8x8x32xf32>
    %173 = arith.mulf %168, %172 : vector<2x8x8x32xf32>
    %174 = arith.addf %167, %173 : vector<2x8x8x32xf32>
    %c0_163 = arith.constant 0 : index
    %c1_164 = arith.constant 1 : index
    %c1_165 = arith.constant 1 : index
    %c0_166 = arith.constant 0 : index
    %175 = vector.load %arg26[%c0_163, %c1_164, %c1_165, %c0_166] : memref<2x10x10x32xf32, #tpu.memory_space<vmem>>, vector<2x8x8x32xf32>
    %176 = vector.extract_strided_slice %145 {offsets = [4, 0], sizes = [1, 32], strides = [1, 1]} : vector<9x32xf32> to vector<1x32xf32>
    %177 = vector.shape_cast %176 : vector<1x32xf32> to vector<32xf32>
    %178 = vector.shape_cast %177 : vector<32xf32> to vector<1x1x1x32xf32>
    %179 = vector.broadcast %178 : vector<1x1x1x32xf32> to vector<2x8x8x32xf32>
    %180 = arith.mulf %175, %179 : vector<2x8x8x32xf32>
    %181 = arith.addf %174, %180 : vector<2x8x8x32xf32>
    %c0_167 = arith.constant 0 : index
    %c1_168 = arith.constant 1 : index
    %c2_169 = arith.constant 2 : index
    %c0_170 = arith.constant 0 : index
    %182 = vector.load %arg26[%c0_167, %c1_168, %c2_169, %c0_170] : memref<2x10x10x32xf32, #tpu.memory_space<vmem>>, vector<2x8x8x32xf32>
    %183 = vector.extract_strided_slice %145 {offsets = [5, 0], sizes = [1, 32], strides = [1, 1]} : vector<9x32xf32> to vector<1x32xf32>
    %184 = vector.shape_cast %183 : vector<1x32xf32> to vector<32xf32>
    %185 = vector.shape_cast %184 : vector<32xf32> to vector<1x1x1x32xf32>
    %186 = vector.broadcast %185 : vector<1x1x1x32xf32> to vector<2x8x8x32xf32>
    %187 = arith.mulf %182, %186 : vector<2x8x8x32xf32>
    %188 = arith.addf %181, %187 : vector<2x8x8x32xf32>
    %c0_171 = arith.constant 0 : index
    %c2_172 = arith.constant 2 : index
    %c0_173 = arith.constant 0 : index
    %c0_174 = arith.constant 0 : index
    %189 = vector.load %arg26[%c0_171, %c2_172, %c0_173, %c0_174] : memref<2x10x10x32xf32, #tpu.memory_space<vmem>>, vector<2x8x8x32xf32>
    %190 = vector.extract_strided_slice %145 {offsets = [6, 0], sizes = [1, 32], strides = [1, 1]} : vector<9x32xf32> to vector<1x32xf32>
    %191 = vector.shape_cast %190 : vector<1x32xf32> to vector<32xf32>
    %192 = vector.shape_cast %191 : vector<32xf32> to vector<1x1x1x32xf32>
    %193 = vector.broadcast %192 : vector<1x1x1x32xf32> to vector<2x8x8x32xf32>
    %194 = arith.mulf %189, %193 : vector<2x8x8x32xf32>
    %195 = arith.addf %188, %194 : vector<2x8x8x32xf32>
    %c0_175 = arith.constant 0 : index
    %c2_176 = arith.constant 2 : index
    %c1_177 = arith.constant 1 : index
    %c0_178 = arith.constant 0 : index
    %196 = vector.load %arg26[%c0_175, %c2_176, %c1_177, %c0_178] : memref<2x10x10x32xf32, #tpu.memory_space<vmem>>, vector<2x8x8x32xf32>
    %197 = vector.extract_strided_slice %145 {offsets = [7, 0], sizes = [1, 32], strides = [1, 1]} : vector<9x32xf32> to vector<1x32xf32>
    %198 = vector.shape_cast %197 : vector<1x32xf32> to vector<32xf32>
    %199 = vector.shape_cast %198 : vector<32xf32> to vector<1x1x1x32xf32>
    %200 = vector.broadcast %199 : vector<1x1x1x32xf32> to vector<2x8x8x32xf32>
    %201 = arith.mulf %196, %200 : vector<2x8x8x32xf32>
    %202 = arith.addf %195, %201 : vector<2x8x8x32xf32>
    %c0_179 = arith.constant 0 : index
    %c2_180 = arith.constant 2 : index
    %c2_181 = arith.constant 2 : index
    %c0_182 = arith.constant 0 : index
    %203 = vector.load %arg26[%c0_179, %c2_180, %c2_181, %c0_182] : memref<2x10x10x32xf32, #tpu.memory_space<vmem>>, vector<2x8x8x32xf32>
    %204 = vector.extract_strided_slice %145 {offsets = [8, 0], sizes = [1, 32], strides = [1, 1]} : vector<9x32xf32> to vector<1x32xf32>
    %205 = vector.shape_cast %204 : vector<1x32xf32> to vector<32xf32>
    %206 = vector.shape_cast %205 : vector<32xf32> to vector<1x1x1x32xf32>
    %207 = vector.broadcast %206 : vector<1x1x1x32xf32> to vector<2x8x8x32xf32>
    %208 = arith.mulf %203, %207 : vector<2x8x8x32xf32>
    %209 = arith.addf %202, %208 : vector<2x8x8x32xf32>
    %c0_183 = arith.constant 0 : index
    %c0_184 = arith.constant 0 : index
    %210 = vector.load %arg12[%c0_183, %c0_184] : memref<1x32xf32, #tpu.memory_space<vmem>>, vector<1x32xf32>
    %211 = vector.shape_cast %210 : vector<1x32xf32> to vector<1x1x1x32xf32>
    %212 = vector.broadcast %211 : vector<1x1x1x32xf32> to vector<2x8x8x32xf32>
    %213 = arith.addf %209, %212 : vector<2x8x8x32xf32>
    %cst_185 = arith.constant 0.000000e+00 : f32
    %214 = vector.broadcast %cst_185 : f32 to vector<2x8x8x32xf32>
    %215 = arith.maximumf %213, %214 : vector<2x8x8x32xf32>
    %216 = vector.shape_cast %215 : vector<2x8x8x32xf32> to vector<128x32xf32>
    %217 = arith.truncf %216 : vector<128x32xf32> to vector<128x32xbf16>
    %c0_186 = arith.constant 0 : index
    %c0_187 = arith.constant 0 : index
    %218 = vector.load %arg13[%c0_186, %c0_187] : memref<32x32xbf16, #tpu.memory_space<vmem>>, vector<32x32xbf16>
    %cst_188 = arith.constant dense<0.000000e+00> : vector<128x32xf32>
    %219 = tpu.matmul %217, %218, %cst_188 {dimension_numbers = #tpu.dot_dimension_numbers<[1], [0], [0], [1], [0, 0, 1, 1], [], []>} : vector<128x32xbf16>, vector<32x32xbf16>, vector<128x32xf32> -> vector<128x32xf32>
    %c0_189 = arith.constant 0 : index
    %c0_190 = arith.constant 0 : index
    %220 = vector.load %arg14[%c0_189, %c0_190] : memref<1x32xf32, #tpu.memory_space<vmem>>, vector<1x32xf32>
    %221 = vector.broadcast %220 : vector<1x32xf32> to vector<128x32xf32>
    %222 = arith.addf %219, %221 : vector<128x32xf32>
    %223 = arith.addf %222, %134 : vector<128x32xf32>
    %224 = arith.truncf %223 : vector<128x32xf32> to vector<128x32xbf16>
    %c0_191 = arith.constant 0 : index
    %c0_192 = arith.constant 0 : index
    %225 = vector.load %arg15[%c0_191, %c0_192] : memref<32x8xbf16, #tpu.memory_space<vmem>>, vector<32x8xbf16>
    %cst_193 = arith.constant dense<0.000000e+00> : vector<128x8xf32>
    %226 = tpu.matmul %224, %225, %cst_193 {dimension_numbers = #tpu.dot_dimension_numbers<[1], [0], [0], [1], [0, 0, 1, 1], [], []>} : vector<128x32xbf16>, vector<32x8xbf16>, vector<128x8xf32> -> vector<128x8xf32>
    %c0_194 = arith.constant 0 : index
    %c0_195 = arith.constant 0 : index
    %227 = vector.load %arg16[%c0_194, %c0_195] : memref<1x8xf32, #tpu.memory_space<vmem>>, vector<1x8xf32>
    %228 = vector.broadcast %227 : vector<1x8xf32> to vector<128x8xf32>
    %229 = arith.addf %226, %228 : vector<128x8xf32>
    %cst_196 = arith.constant 0.000000e+00 : f32
    %230 = vector.broadcast %cst_196 : f32 to vector<128x8xf32>
    %231 = arith.maximumf %229, %230 : vector<128x8xf32>
    %232 = vector.shape_cast %223 : vector<128x32xf32> to vector<2x8x8x32xf32>
    %c0_197 = arith.constant 0 : index
    %c1_198 = arith.constant 1 : index
    %c1_199 = arith.constant 1 : index
    %c0_200 = arith.constant 0 : index
    %233 = vector.load %arg26[%c0_197, %c1_198, %c1_199, %c0_200] : memref<2x10x10x32xf32, #tpu.memory_space<vmem>>, vector<2x8x8x32xf32>
    tpu.vector_store %arg26[%c0_197, %c1_198, %c1_199, %c0_200], %232 {strides = array<i32>} : memref<2x10x10x32xf32, #tpu.memory_space<vmem>>, vector<2x8x8x32xf32>,
    %c0_201 = arith.constant 0 : index
    %c0_202 = arith.constant 0 : index
    %c0_203 = arith.constant 0 : index
    %c0_204 = arith.constant 0 : index
    %234 = vector.load %arg26[%c0_201, %c0_202, %c0_203, %c0_204] : memref<2x10x10x32xf32, #tpu.memory_space<vmem>>, vector<2x8x8x32xf32>
    %235 = vector.shape_cast %234 : vector<2x8x8x32xf32> to vector<128x32xf32>
    %c0_205 = arith.constant 0 : index
    %c0_206 = arith.constant 0 : index
    %236 = vector.load %arg27[%c0_205, %c0_206] : memref<128x288xf32, #tpu.memory_space<vmem>>, vector<128x32xf32>
    tpu.vector_store %arg27[%c0_205, %c0_206], %235 {strides = array<i32>} : memref<128x288xf32, #tpu.memory_space<vmem>>, vector<128x32xf32>,
    %c0_207 = arith.constant 0 : index
    %c0_208 = arith.constant 0 : index
    %c1_209 = arith.constant 1 : index
    %c0_210 = arith.constant 0 : index
    %237 = vector.load %arg26[%c0_207, %c0_208, %c1_209, %c0_210] : memref<2x10x10x32xf32, #tpu.memory_space<vmem>>, vector<2x8x8x32xf32>
    %238 = vector.shape_cast %237 : vector<2x8x8x32xf32> to vector<128x32xf32>
    %c0_211 = arith.constant 0 : index
    %c32_212 = arith.constant 32 : index
    %239 = vector.load %arg27[%c0_211, %c32_212] : memref<128x288xf32, #tpu.memory_space<vmem>>, vector<128x32xf32>
    tpu.vector_store %arg27[%c0_211, %c32_212], %238 {strides = array<i32>} : memref<128x288xf32, #tpu.memory_space<vmem>>, vector<128x32xf32>,
    %c0_213 = arith.constant 0 : index
    %c0_214 = arith.constant 0 : index
    %c2_215 = arith.constant 2 : index
    %c0_216 = arith.constant 0 : index
    %240 = vector.load %arg26[%c0_213, %c0_214, %c2_215, %c0_216] : memref<2x10x10x32xf32, #tpu.memory_space<vmem>>, vector<2x8x8x32xf32>
    %241 = vector.shape_cast %240 : vector<2x8x8x32xf32> to vector<128x32xf32>
    %c0_217 = arith.constant 0 : index
    %c64_218 = arith.constant 64 : index
    %242 = vector.load %arg27[%c0_217, %c64_218] : memref<128x288xf32, #tpu.memory_space<vmem>>, vector<128x32xf32>
    tpu.vector_store %arg27[%c0_217, %c64_218], %241 {strides = array<i32>} : memref<128x288xf32, #tpu.memory_space<vmem>>, vector<128x32xf32>,
    %c0_219 = arith.constant 0 : index
    %c1_220 = arith.constant 1 : index
    %c0_221 = arith.constant 0 : index
    %c0_222 = arith.constant 0 : index
    %243 = vector.load %arg26[%c0_219, %c1_220, %c0_221, %c0_222] : memref<2x10x10x32xf32, #tpu.memory_space<vmem>>, vector<2x8x8x32xf32>
    %244 = vector.shape_cast %243 : vector<2x8x8x32xf32> to vector<128x32xf32>
    %c0_223 = arith.constant 0 : index
    %c96 = arith.constant 96 : index
    %245 = vector.load %arg27[%c0_223, %c96] : memref<128x288xf32, #tpu.memory_space<vmem>>, vector<128x32xf32>
    tpu.vector_store %arg27[%c0_223, %c96], %244 {strides = array<i32>} : memref<128x288xf32, #tpu.memory_space<vmem>>, vector<128x32xf32>,
    %c0_224 = arith.constant 0 : index
    %c1_225 = arith.constant 1 : index
    %c1_226 = arith.constant 1 : index
    %c0_227 = arith.constant 0 : index
    %246 = vector.load %arg26[%c0_224, %c1_225, %c1_226, %c0_227] : memref<2x10x10x32xf32, #tpu.memory_space<vmem>>, vector<2x8x8x32xf32>
    %247 = vector.shape_cast %246 : vector<2x8x8x32xf32> to vector<128x32xf32>
    %c0_228 = arith.constant 0 : index
    %c128 = arith.constant 128 : index
    %248 = vector.load %arg27[%c0_228, %c128] : memref<128x288xf32, #tpu.memory_space<vmem>>, vector<128x32xf32>
    tpu.vector_store %arg27[%c0_228, %c128], %247 {strides = array<i32>} : memref<128x288xf32, #tpu.memory_space<vmem>>, vector<128x32xf32>,
    %c0_229 = arith.constant 0 : index
    %c1_230 = arith.constant 1 : index
    %c2_231 = arith.constant 2 : index
    %c0_232 = arith.constant 0 : index
    %249 = vector.load %arg26[%c0_229, %c1_230, %c2_231, %c0_232] : memref<2x10x10x32xf32, #tpu.memory_space<vmem>>, vector<2x8x8x32xf32>
    %250 = vector.shape_cast %249 : vector<2x8x8x32xf32> to vector<128x32xf32>
    %c0_233 = arith.constant 0 : index
    %c160 = arith.constant 160 : index
    %251 = vector.load %arg27[%c0_233, %c160] : memref<128x288xf32, #tpu.memory_space<vmem>>, vector<128x32xf32>
    tpu.vector_store %arg27[%c0_233, %c160], %250 {strides = array<i32>} : memref<128x288xf32, #tpu.memory_space<vmem>>, vector<128x32xf32>,
    %c0_234 = arith.constant 0 : index
    %c2_235 = arith.constant 2 : index
    %c0_236 = arith.constant 0 : index
    %c0_237 = arith.constant 0 : index
    %252 = vector.load %arg26[%c0_234, %c2_235, %c0_236, %c0_237] : memref<2x10x10x32xf32, #tpu.memory_space<vmem>>, vector<2x8x8x32xf32>
    %253 = vector.shape_cast %252 : vector<2x8x8x32xf32> to vector<128x32xf32>
    %c0_238 = arith.constant 0 : index
    %c192 = arith.constant 192 : index
    %254 = vector.load %arg27[%c0_238, %c192] : memref<128x288xf32, #tpu.memory_space<vmem>>, vector<128x32xf32>
    tpu.vector_store %arg27[%c0_238, %c192], %253 {strides = array<i32>} : memref<128x288xf32, #tpu.memory_space<vmem>>, vector<128x32xf32>,
    %c0_239 = arith.constant 0 : index
    %c2_240 = arith.constant 2 : index
    %c1_241 = arith.constant 1 : index
    %c0_242 = arith.constant 0 : index
    %255 = vector.load %arg26[%c0_239, %c2_240, %c1_241, %c0_242] : memref<2x10x10x32xf32, #tpu.memory_space<vmem>>, vector<2x8x8x32xf32>
    %256 = vector.shape_cast %255 : vector<2x8x8x32xf32> to vector<128x32xf32>
    %c0_243 = arith.constant 0 : index
    %c224 = arith.constant 224 : index
    %257 = vector.load %arg27[%c0_243, %c224] : memref<128x288xf32, #tpu.memory_space<vmem>>, vector<128x32xf32>
    tpu.vector_store %arg27[%c0_243, %c224], %256 {strides = array<i32>} : memref<128x288xf32, #tpu.memory_space<vmem>>, vector<128x32xf32>,
    %c0_244 = arith.constant 0 : index
    %c2_245 = arith.constant 2 : index
    %c2_246 = arith.constant 2 : index
    %c0_247 = arith.constant 0 : index
    %258 = vector.load %arg26[%c0_244, %c2_245, %c2_246, %c0_247] : memref<2x10x10x32xf32, #tpu.memory_space<vmem>>, vector<2x8x8x32xf32>
    %259 = vector.shape_cast %258 : vector<2x8x8x32xf32> to vector<128x32xf32>
    %c0_248 = arith.constant 0 : index
    %c256 = arith.constant 256 : index
    %260 = vector.load %arg27[%c0_248, %c256] : memref<128x288xf32, #tpu.memory_space<vmem>>, vector<128x32xf32>
    tpu.vector_store %arg27[%c0_248, %c256], %259 {strides = array<i32>} : memref<128x288xf32, #tpu.memory_space<vmem>>, vector<128x32xf32>,
    %c0_249 = arith.constant 0 : index
    %c0_250 = arith.constant 0 : index
    %261 = vector.load %arg27[%c0_249, %c0_250] : memref<128x288xf32, #tpu.memory_space<vmem>>, vector<128x288xf32>
    %262 = arith.truncf %261 : vector<128x288xf32> to vector<128x288xbf16>
    %c0_251 = arith.constant 0 : index
    %c0_252 = arith.constant 0 : index
    %263 = vector.load %arg17[%c0_251, %c0_252] : memref<288x32xbf16, #tpu.memory_space<vmem>>, vector<288x32xbf16>
    %cst_253 = arith.constant dense<0.000000e+00> : vector<128x32xf32>
    %264 = tpu.matmul %262, %263, %cst_253 {dimension_numbers = #tpu.dot_dimension_numbers<[1], [0], [0], [1], [0, 0, 1, 1], [], []>} : vector<128x288xbf16>, vector<288x32xbf16>, vector<128x32xf32> -> vector<128x32xf32>
    %c0_254 = arith.constant 0 : index
    %c0_255 = arith.constant 0 : index
    %265 = vector.load %arg18[%c0_254, %c0_255] : memref<1x32xf32, #tpu.memory_space<vmem>>, vector<1x32xf32>
    %266 = vector.broadcast %265 : vector<1x32xf32> to vector<128x32xf32>
    %267 = arith.addf %264, %266 : vector<128x32xf32>
    %cst_256 = arith.constant 0.000000e+00 : f32
    %268 = vector.broadcast %cst_256 : f32 to vector<128x32xf32>
    %269 = arith.maximumf %267, %268 : vector<128x32xf32>
    %270 = vector.shape_cast %269 : vector<128x32xf32> to vector<2x8x8x32xf32>
    %c0_257 = arith.constant 0 : index
    %c1_258 = arith.constant 1 : index
    %c1_259 = arith.constant 1 : index
    %c0_260 = arith.constant 0 : index
    %271 = vector.load %arg26[%c0_257, %c1_258, %c1_259, %c0_260] : memref<2x10x10x32xf32, #tpu.memory_space<vmem>>, vector<2x8x8x32xf32>
    tpu.vector_store %arg26[%c0_257, %c1_258, %c1_259, %c0_260], %270 {strides = array<i32>} : memref<2x10x10x32xf32, #tpu.memory_space<vmem>>, vector<2x8x8x32xf32>,
    %c0_261 = arith.constant 0 : index
    %c0_262 = arith.constant 0 : index
    %c0_263 = arith.constant 0 : index
    %c0_264 = arith.constant 0 : index
    %272 = vector.load %arg26[%c0_261, %c0_262, %c0_263, %c0_264] : memref<2x10x10x32xf32, #tpu.memory_space<vmem>>, vector<2x8x8x32xf32>
    %273 = vector.shape_cast %272 : vector<2x8x8x32xf32> to vector<128x32xf32>
    %c0_265 = arith.constant 0 : index
    %c0_266 = arith.constant 0 : index
    %274 = vector.load %arg27[%c0_265, %c0_266] : memref<128x288xf32, #tpu.memory_space<vmem>>, vector<128x32xf32>
    tpu.vector_store %arg27[%c0_265, %c0_266], %273 {strides = array<i32>} : memref<128x288xf32, #tpu.memory_space<vmem>>, vector<128x32xf32>,
    %c0_267 = arith.constant 0 : index
    %c0_268 = arith.constant 0 : index
    %c1_269 = arith.constant 1 : index
    %c0_270 = arith.constant 0 : index
    %275 = vector.load %arg26[%c0_267, %c0_268, %c1_269, %c0_270] : memref<2x10x10x32xf32, #tpu.memory_space<vmem>>, vector<2x8x8x32xf32>
    %276 = vector.shape_cast %275 : vector<2x8x8x32xf32> to vector<128x32xf32>
    %c0_271 = arith.constant 0 : index
    %c32_272 = arith.constant 32 : index
    %277 = vector.load %arg27[%c0_271, %c32_272] : memref<128x288xf32, #tpu.memory_space<vmem>>, vector<128x32xf32>
    tpu.vector_store %arg27[%c0_271, %c32_272], %276 {strides = array<i32>} : memref<128x288xf32, #tpu.memory_space<vmem>>, vector<128x32xf32>,
    %c0_273 = arith.constant 0 : index
    %c0_274 = arith.constant 0 : index
    %c2_275 = arith.constant 2 : index
    %c0_276 = arith.constant 0 : index
    %278 = vector.load %arg26[%c0_273, %c0_274, %c2_275, %c0_276] : memref<2x10x10x32xf32, #tpu.memory_space<vmem>>, vector<2x8x8x32xf32>
    %279 = vector.shape_cast %278 : vector<2x8x8x32xf32> to vector<128x32xf32>
    %c0_277 = arith.constant 0 : index
    %c64_278 = arith.constant 64 : index
    %280 = vector.load %arg27[%c0_277, %c64_278] : memref<128x288xf32, #tpu.memory_space<vmem>>, vector<128x32xf32>
    tpu.vector_store %arg27[%c0_277, %c64_278], %279 {strides = array<i32>} : memref<128x288xf32, #tpu.memory_space<vmem>>, vector<128x32xf32>,
    %c0_279 = arith.constant 0 : index
    %c1_280 = arith.constant 1 : index
    %c0_281 = arith.constant 0 : index
    %c0_282 = arith.constant 0 : index
    %281 = vector.load %arg26[%c0_279, %c1_280, %c0_281, %c0_282] : memref<2x10x10x32xf32, #tpu.memory_space<vmem>>, vector<2x8x8x32xf32>
    %282 = vector.shape_cast %281 : vector<2x8x8x32xf32> to vector<128x32xf32>
    %c0_283 = arith.constant 0 : index
    %c96_284 = arith.constant 96 : index
    %283 = vector.load %arg27[%c0_283, %c96_284] : memref<128x288xf32, #tpu.memory_space<vmem>>, vector<128x32xf32>
    tpu.vector_store %arg27[%c0_283, %c96_284], %282 {strides = array<i32>} : memref<128x288xf32, #tpu.memory_space<vmem>>, vector<128x32xf32>,
    %c0_285 = arith.constant 0 : index
    %c1_286 = arith.constant 1 : index
    %c1_287 = arith.constant 1 : index
    %c0_288 = arith.constant 0 : index
    %284 = vector.load %arg26[%c0_285, %c1_286, %c1_287, %c0_288] : memref<2x10x10x32xf32, #tpu.memory_space<vmem>>, vector<2x8x8x32xf32>
    %285 = vector.shape_cast %284 : vector<2x8x8x32xf32> to vector<128x32xf32>
    %c0_289 = arith.constant 0 : index
    %c128_290 = arith.constant 128 : index
    %286 = vector.load %arg27[%c0_289, %c128_290] : memref<128x288xf32, #tpu.memory_space<vmem>>, vector<128x32xf32>
    tpu.vector_store %arg27[%c0_289, %c128_290], %285 {strides = array<i32>} : memref<128x288xf32, #tpu.memory_space<vmem>>, vector<128x32xf32>,
    %c0_291 = arith.constant 0 : index
    %c1_292 = arith.constant 1 : index
    %c2_293 = arith.constant 2 : index
    %c0_294 = arith.constant 0 : index
    %287 = vector.load %arg26[%c0_291, %c1_292, %c2_293, %c0_294] : memref<2x10x10x32xf32, #tpu.memory_space<vmem>>, vector<2x8x8x32xf32>
    %288 = vector.shape_cast %287 : vector<2x8x8x32xf32> to vector<128x32xf32>
    %c0_295 = arith.constant 0 : index
    %c160_296 = arith.constant 160 : index
    %289 = vector.load %arg27[%c0_295, %c160_296] : memref<128x288xf32, #tpu.memory_space<vmem>>, vector<128x32xf32>
    tpu.vector_store %arg27[%c0_295, %c160_296], %288 {strides = array<i32>} : memref<128x288xf32, #tpu.memory_space<vmem>>, vector<128x32xf32>,
    %c0_297 = arith.constant 0 : index
    %c2_298 = arith.constant 2 : index
    %c0_299 = arith.constant 0 : index
    %c0_300 = arith.constant 0 : index
    %290 = vector.load %arg26[%c0_297, %c2_298, %c0_299, %c0_300] : memref<2x10x10x32xf32, #tpu.memory_space<vmem>>, vector<2x8x8x32xf32>
    %291 = vector.shape_cast %290 : vector<2x8x8x32xf32> to vector<128x32xf32>
    %c0_301 = arith.constant 0 : index
    %c192_302 = arith.constant 192 : index
    %292 = vector.load %arg27[%c0_301, %c192_302] : memref<128x288xf32, #tpu.memory_space<vmem>>, vector<128x32xf32>
    tpu.vector_store %arg27[%c0_301, %c192_302], %291 {strides = array<i32>} : memref<128x288xf32, #tpu.memory_space<vmem>>, vector<128x32xf32>,
    %c0_303 = arith.constant 0 : index
    %c2_304 = arith.constant 2 : index
    %c1_305 = arith.constant 1 : index
    %c0_306 = arith.constant 0 : index
    %293 = vector.load %arg26[%c0_303, %c2_304, %c1_305, %c0_306] : memref<2x10x10x32xf32, #tpu.memory_space<vmem>>, vector<2x8x8x32xf32>
    %294 = vector.shape_cast %293 : vector<2x8x8x32xf32> to vector<128x32xf32>
    %c0_307 = arith.constant 0 : index
    %c224_308 = arith.constant 224 : index
    %295 = vector.load %arg27[%c0_307, %c224_308] : memref<128x288xf32, #tpu.memory_space<vmem>>, vector<128x32xf32>
    tpu.vector_store %arg27[%c0_307, %c224_308], %294 {strides = array<i32>} : memref<128x288xf32, #tpu.memory_space<vmem>>, vector<128x32xf32>,
    %c0_309 = arith.constant 0 : index
    %c2_310 = arith.constant 2 : index
    %c2_311 = arith.constant 2 : index
    %c0_312 = arith.constant 0 : index
    %296 = vector.load %arg26[%c0_309, %c2_310, %c2_311, %c0_312] : memref<2x10x10x32xf32, #tpu.memory_space<vmem>>, vector<2x8x8x32xf32>
    %297 = vector.shape_cast %296 : vector<2x8x8x32xf32> to vector<128x32xf32>
    %c0_313 = arith.constant 0 : index
    %c256_314 = arith.constant 256 : index
    %298 = vector.load %arg27[%c0_313, %c256_314] : memref<128x288xf32, #tpu.memory_space<vmem>>, vector<128x32xf32>
    tpu.vector_store %arg27[%c0_313, %c256_314], %297 {strides = array<i32>} : memref<128x288xf32, #tpu.memory_space<vmem>>, vector<128x32xf32>,
    %c0_315 = arith.constant 0 : index
    %c0_316 = arith.constant 0 : index
    %299 = vector.load %arg27[%c0_315, %c0_316] : memref<128x288xf32, #tpu.memory_space<vmem>>, vector<128x288xf32>
    %300 = arith.truncf %299 : vector<128x288xf32> to vector<128x288xbf16>
    %c0_317 = arith.constant 0 : index
    %c0_318 = arith.constant 0 : index
    %301 = vector.load %arg19[%c0_317, %c0_318] : memref<288x8xbf16, #tpu.memory_space<vmem>>, vector<288x8xbf16>
    %cst_319 = arith.constant dense<0.000000e+00> : vector<128x8xf32>
    %302 = tpu.matmul %300, %301, %cst_319 {dimension_numbers = #tpu.dot_dimension_numbers<[1], [0], [0], [1], [0, 0, 1, 1], [], []>} : vector<128x288xbf16>, vector<288x8xbf16>, vector<128x8xf32> -> vector<128x8xf32>
    %cst_320 = arith.constant 0.000000e+00 : f32
    %303 = vector.broadcast %cst_320 : f32 to vector<128x128xf32>
    %c0_321 = arith.constant 0 : index
    %c0_322 = arith.constant 0 : index
    %304 = vector.load %arg28[%c0_321, %c0_322] : memref<128x128xf32, #tpu.memory_space<vmem>>, vector<128x128xf32>
    tpu.vector_store %arg28[%c0_321, %c0_322], %303 {strides = array<i32>} : memref<128x128xf32, #tpu.memory_space<vmem>>, vector<128x128xf32>,
    %c0_323 = arith.constant 0 : index
    %c0_324 = arith.constant 0 : index
    %305 = vector.load %arg28[%c0_323, %c0_324] : memref<128x128xf32, #tpu.memory_space<vmem>>, vector<128x8xf32>
    tpu.vector_store %arg28[%c0_323, %c0_324], %231 {strides = array<i32>} : memref<128x128xf32, #tpu.memory_space<vmem>>, vector<128x8xf32>,
    %c0_325 = arith.constant 0 : index
    %c8_326 = arith.constant 8 : index
    %306 = vector.load %arg28[%c0_325, %c8_326] : memref<128x128xf32, #tpu.memory_space<vmem>>, vector<128x8xf32>
    tpu.vector_store %arg28[%c0_325, %c8_326], %302 {strides = array<i32>} : memref<128x128xf32, #tpu.memory_space<vmem>>, vector<128x8xf32>,
    %c0_327 = arith.constant 0 : index
    %c0_328 = arith.constant 0 : index
    %307 = vector.load %arg28[%c0_327, %c0_328] : memref<128x128xf32, #tpu.memory_space<vmem>>, vector<128x128xf32>
    %308 = tpu.transpose %307, [1, 0] : vector<128x128xf32> -> vector<128x128xf32>
    %309 = vector.extract_strided_slice %308 {offsets = [0, 0], sizes = [1, 64], strides = [1, 1]} : vector<128x128xf32> to vector<1x64xf32>
    %c0_329 = arith.constant 0 : index
    %c0_330 = arith.constant 0 : index
    %310 = vector.load %arg29[%c0_329, %c0_330] : memref<2x512xf32, #tpu.memory_space<vmem>>, vector<1x64xf32>
    tpu.vector_store %arg29[%c0_329, %c0_330], %309 {strides = array<i32>} : memref<2x512xf32, #tpu.memory_space<vmem>>, vector<1x64xf32>,
    %311 = vector.extract_strided_slice %308 {offsets = [1, 0], sizes = [1, 64], strides = [1, 1]} : vector<128x128xf32> to vector<1x64xf32>
    %c0_331 = arith.constant 0 : index
    %c64_332 = arith.constant 64 : index
    %312 = vector.load %arg29[%c0_331, %c64_332] : memref<2x512xf32, #tpu.memory_space<vmem>>, vector<1x64xf32>
    tpu.vector_store %arg29[%c0_331, %c64_332], %311 {strides = array<i32>} : memref<2x512xf32, #tpu.memory_space<vmem>>, vector<1x64xf32>,
    %313 = vector.extract_strided_slice %308 {offsets = [2, 0], sizes = [1, 64], strides = [1, 1]} : vector<128x128xf32> to vector<1x64xf32>
    %c0_333 = arith.constant 0 : index
    %c128_334 = arith.constant 128 : index
    %314 = vector.load %arg29[%c0_333, %c128_334] : memref<2x512xf32, #tpu.memory_space<vmem>>, vector<1x64xf32>
    tpu.vector_store %arg29[%c0_333, %c128_334], %313 {strides = array<i32>} : memref<2x512xf32, #tpu.memory_space<vmem>>, vector<1x64xf32>,
    %315 = vector.extract_strided_slice %308 {offsets = [3, 0], sizes = [1, 64], strides = [1, 1]} : vector<128x128xf32> to vector<1x64xf32>
    %c0_335 = arith.constant 0 : index
    %c192_336 = arith.constant 192 : index
    %316 = vector.load %arg29[%c0_335, %c192_336] : memref<2x512xf32, #tpu.memory_space<vmem>>, vector<1x64xf32>
    tpu.vector_store %arg29[%c0_335, %c192_336], %315 {strides = array<i32>} : memref<2x512xf32, #tpu.memory_space<vmem>>, vector<1x64xf32>,
    %317 = vector.extract_strided_slice %308 {offsets = [4, 0], sizes = [1, 64], strides = [1, 1]} : vector<128x128xf32> to vector<1x64xf32>
    %c0_337 = arith.constant 0 : index
    %c256_338 = arith.constant 256 : index
    %318 = vector.load %arg29[%c0_337, %c256_338] : memref<2x512xf32, #tpu.memory_space<vmem>>, vector<1x64xf32>
    tpu.vector_store %arg29[%c0_337, %c256_338], %317 {strides = array<i32>} : memref<2x512xf32, #tpu.memory_space<vmem>>, vector<1x64xf32>,
    %319 = vector.extract_strided_slice %308 {offsets = [5, 0], sizes = [1, 64], strides = [1, 1]} : vector<128x128xf32> to vector<1x64xf32>
    %c0_339 = arith.constant 0 : index
    %c320 = arith.constant 320 : index
    %320 = vector.load %arg29[%c0_339, %c320] : memref<2x512xf32, #tpu.memory_space<vmem>>, vector<1x64xf32>
    tpu.vector_store %arg29[%c0_339, %c320], %319 {strides = array<i32>} : memref<2x512xf32, #tpu.memory_space<vmem>>, vector<1x64xf32>,
    %321 = vector.extract_strided_slice %308 {offsets = [6, 0], sizes = [1, 64], strides = [1, 1]} : vector<128x128xf32> to vector<1x64xf32>
    %c0_340 = arith.constant 0 : index
    %c384 = arith.constant 384 : index
    %322 = vector.load %arg29[%c0_340, %c384] : memref<2x512xf32, #tpu.memory_space<vmem>>, vector<1x64xf32>
    tpu.vector_store %arg29[%c0_340, %c384], %321 {strides = array<i32>} : memref<2x512xf32, #tpu.memory_space<vmem>>, vector<1x64xf32>,
    %323 = vector.extract_strided_slice %308 {offsets = [7, 0], sizes = [1, 64], strides = [1, 1]} : vector<128x128xf32> to vector<1x64xf32>
    %c0_341 = arith.constant 0 : index
    %c448 = arith.constant 448 : index
    %324 = vector.load %arg29[%c0_341, %c448] : memref<2x512xf32, #tpu.memory_space<vmem>>, vector<1x64xf32>
    tpu.vector_store %arg29[%c0_341, %c448], %323 {strides = array<i32>} : memref<2x512xf32, #tpu.memory_space<vmem>>, vector<1x64xf32>,
    %325 = vector.extract_strided_slice %308 {offsets = [8, 0], sizes = [1, 64], strides = [1, 1]} : vector<128x128xf32> to vector<1x64xf32>
    %c0_342 = arith.constant 0 : index
    %c0_343 = arith.constant 0 : index
    %326 = vector.load %arg25[%c0_342, %c0_343] : memref<2x512xf32, #tpu.memory_space<vmem>>, vector<1x64xf32>
    tpu.vector_store %arg25[%c0_342, %c0_343], %325 {strides = array<i32>} : memref<2x512xf32, #tpu.memory_space<vmem>>, vector<1x64xf32>,
    %327 = vector.extract_strided_slice %308 {offsets = [9, 0], sizes = [1, 64], strides = [1, 1]} : vector<128x128xf32> to vector<1x64xf32>
    %c0_344 = arith.constant 0 : index
    %c64_345 = arith.constant 64 : index
    %328 = vector.load %arg25[%c0_344, %c64_345] : memref<2x512xf32, #tpu.memory_space<vmem>>, vector<1x64xf32>
    tpu.vector_store %arg25[%c0_344, %c64_345], %327 {strides = array<i32>} : memref<2x512xf32, #tpu.memory_space<vmem>>, vector<1x64xf32>,
    %329 = vector.extract_strided_slice %308 {offsets = [10, 0], sizes = [1, 64], strides = [1, 1]} : vector<128x128xf32> to vector<1x64xf32>
    %c0_346 = arith.constant 0 : index
    %c128_347 = arith.constant 128 : index
    %330 = vector.load %arg25[%c0_346, %c128_347] : memref<2x512xf32, #tpu.memory_space<vmem>>, vector<1x64xf32>
    tpu.vector_store %arg25[%c0_346, %c128_347], %329 {strides = array<i32>} : memref<2x512xf32, #tpu.memory_space<vmem>>, vector<1x64xf32>,
    %331 = vector.extract_strided_slice %308 {offsets = [11, 0], sizes = [1, 64], strides = [1, 1]} : vector<128x128xf32> to vector<1x64xf32>
    %c0_348 = arith.constant 0 : index
    %c192_349 = arith.constant 192 : index
    %332 = vector.load %arg25[%c0_348, %c192_349] : memref<2x512xf32, #tpu.memory_space<vmem>>, vector<1x64xf32>
    tpu.vector_store %arg25[%c0_348, %c192_349], %331 {strides = array<i32>} : memref<2x512xf32, #tpu.memory_space<vmem>>, vector<1x64xf32>,
    %333 = vector.extract_strided_slice %308 {offsets = [12, 0], sizes = [1, 64], strides = [1, 1]} : vector<128x128xf32> to vector<1x64xf32>
    %c0_350 = arith.constant 0 : index
    %c256_351 = arith.constant 256 : index
    %334 = vector.load %arg25[%c0_350, %c256_351] : memref<2x512xf32, #tpu.memory_space<vmem>>, vector<1x64xf32>
    tpu.vector_store %arg25[%c0_350, %c256_351], %333 {strides = array<i32>} : memref<2x512xf32, #tpu.memory_space<vmem>>, vector<1x64xf32>,
    %335 = vector.extract_strided_slice %308 {offsets = [13, 0], sizes = [1, 64], strides = [1, 1]} : vector<128x128xf32> to vector<1x64xf32>
    %c0_352 = arith.constant 0 : index
    %c320_353 = arith.constant 320 : index
    %336 = vector.load %arg25[%c0_352, %c320_353] : memref<2x512xf32, #tpu.memory_space<vmem>>, vector<1x64xf32>
    tpu.vector_store %arg25[%c0_352, %c320_353], %335 {strides = array<i32>} : memref<2x512xf32, #tpu.memory_space<vmem>>, vector<1x64xf32>,
    %337 = vector.extract_strided_slice %308 {offsets = [14, 0], sizes = [1, 64], strides = [1, 1]} : vector<128x128xf32> to vector<1x64xf32>
    %c0_354 = arith.constant 0 : index
    %c384_355 = arith.constant 384 : index
    %338 = vector.load %arg25[%c0_354, %c384_355] : memref<2x512xf32, #tpu.memory_space<vmem>>, vector<1x64xf32>
    tpu.vector_store %arg25[%c0_354, %c384_355], %337 {strides = array<i32>} : memref<2x512xf32, #tpu.memory_space<vmem>>, vector<1x64xf32>,
    %339 = vector.extract_strided_slice %308 {offsets = [15, 0], sizes = [1, 64], strides = [1, 1]} : vector<128x128xf32> to vector<1x64xf32>
    %c0_356 = arith.constant 0 : index
    %c448_357 = arith.constant 448 : index
    %340 = vector.load %arg25[%c0_356, %c448_357] : memref<2x512xf32, #tpu.memory_space<vmem>>, vector<1x64xf32>
    tpu.vector_store %arg25[%c0_356, %c448_357], %339 {strides = array<i32>} : memref<2x512xf32, #tpu.memory_space<vmem>>, vector<1x64xf32>,
    %341 = vector.extract_strided_slice %308 {offsets = [0, 64], sizes = [1, 64], strides = [1, 1]} : vector<128x128xf32> to vector<1x64xf32>
    %c1_358 = arith.constant 1 : index
    %c0_359 = arith.constant 0 : index
    %342 = vector.load %arg29[%c1_358, %c0_359] : memref<2x512xf32, #tpu.memory_space<vmem>>, vector<1x64xf32>
    tpu.vector_store %arg29[%c1_358, %c0_359], %341 {strides = array<i32>} : memref<2x512xf32, #tpu.memory_space<vmem>>, vector<1x64xf32>,
    %343 = vector.extract_strided_slice %308 {offsets = [1, 64], sizes = [1, 64], strides = [1, 1]} : vector<128x128xf32> to vector<1x64xf32>
    %c1_360 = arith.constant 1 : index
    %c64_361 = arith.constant 64 : index
    %344 = vector.load %arg29[%c1_360, %c64_361] : memref<2x512xf32, #tpu.memory_space<vmem>>, vector<1x64xf32>
    tpu.vector_store %arg29[%c1_360, %c64_361], %343 {strides = array<i32>} : memref<2x512xf32, #tpu.memory_space<vmem>>, vector<1x64xf32>,
    %345 = vector.extract_strided_slice %308 {offsets = [2, 64], sizes = [1, 64], strides = [1, 1]} : vector<128x128xf32> to vector<1x64xf32>
    %c1_362 = arith.constant 1 : index
    %c128_363 = arith.constant 128 : index
    %346 = vector.load %arg29[%c1_362, %c128_363] : memref<2x512xf32, #tpu.memory_space<vmem>>, vector<1x64xf32>
    tpu.vector_store %arg29[%c1_362, %c128_363], %345 {strides = array<i32>} : memref<2x512xf32, #tpu.memory_space<vmem>>, vector<1x64xf32>,
    %347 = vector.extract_strided_slice %308 {offsets = [3, 64], sizes = [1, 64], strides = [1, 1]} : vector<128x128xf32> to vector<1x64xf32>
    %c1_364 = arith.constant 1 : index
    %c192_365 = arith.constant 192 : index
    %348 = vector.load %arg29[%c1_364, %c192_365] : memref<2x512xf32, #tpu.memory_space<vmem>>, vector<1x64xf32>
    tpu.vector_store %arg29[%c1_364, %c192_365], %347 {strides = array<i32>} : memref<2x512xf32, #tpu.memory_space<vmem>>, vector<1x64xf32>,
    %349 = vector.extract_strided_slice %308 {offsets = [4, 64], sizes = [1, 64], strides = [1, 1]} : vector<128x128xf32> to vector<1x64xf32>
    %c1_366 = arith.constant 1 : index
    %c256_367 = arith.constant 256 : index
    %350 = vector.load %arg29[%c1_366, %c256_367] : memref<2x512xf32, #tpu.memory_space<vmem>>, vector<1x64xf32>
    tpu.vector_store %arg29[%c1_366, %c256_367], %349 {strides = array<i32>} : memref<2x512xf32, #tpu.memory_space<vmem>>, vector<1x64xf32>,
    %351 = vector.extract_strided_slice %308 {offsets = [5, 64], sizes = [1, 64], strides = [1, 1]} : vector<128x128xf32> to vector<1x64xf32>
    %c1_368 = arith.constant 1 : index
    %c320_369 = arith.constant 320 : index
    %352 = vector.load %arg29[%c1_368, %c320_369] : memref<2x512xf32, #tpu.memory_space<vmem>>, vector<1x64xf32>
    tpu.vector_store %arg29[%c1_368, %c320_369], %351 {strides = array<i32>} : memref<2x512xf32, #tpu.memory_space<vmem>>, vector<1x64xf32>,
    %353 = vector.extract_strided_slice %308 {offsets = [6, 64], sizes = [1, 64], strides = [1, 1]} : vector<128x128xf32> to vector<1x64xf32>
    %c1_370 = arith.constant 1 : index
    %c384_371 = arith.constant 384 : index
    %354 = vector.load %arg29[%c1_370, %c384_371] : memref<2x512xf32, #tpu.memory_space<vmem>>, vector<1x64xf32>
    tpu.vector_store %arg29[%c1_370, %c384_371], %353 {strides = array<i32>} : memref<2x512xf32, #tpu.memory_space<vmem>>, vector<1x64xf32>,
    %355 = vector.extract_strided_slice %308 {offsets = [7, 64], sizes = [1, 64], strides = [1, 1]} : vector<128x128xf32> to vector<1x64xf32>
    %c1_372 = arith.constant 1 : index
    %c448_373 = arith.constant 448 : index
    %356 = vector.load %arg29[%c1_372, %c448_373] : memref<2x512xf32, #tpu.memory_space<vmem>>, vector<1x64xf32>
    tpu.vector_store %arg29[%c1_372, %c448_373], %355 {strides = array<i32>} : memref<2x512xf32, #tpu.memory_space<vmem>>, vector<1x64xf32>,
    %357 = vector.extract_strided_slice %308 {offsets = [8, 64], sizes = [1, 64], strides = [1, 1]} : vector<128x128xf32> to vector<1x64xf32>
    %c1_374 = arith.constant 1 : index
    %c0_375 = arith.constant 0 : index
    %358 = vector.load %arg25[%c1_374, %c0_375] : memref<2x512xf32, #tpu.memory_space<vmem>>, vector<1x64xf32>
    tpu.vector_store %arg25[%c1_374, %c0_375], %357 {strides = array<i32>} : memref<2x512xf32, #tpu.memory_space<vmem>>, vector<1x64xf32>,
    %359 = vector.extract_strided_slice %308 {offsets = [9, 64], sizes = [1, 64], strides = [1, 1]} : vector<128x128xf32> to vector<1x64xf32>
    %c1_376 = arith.constant 1 : index
    %c64_377 = arith.constant 64 : index
    %360 = vector.load %arg25[%c1_376, %c64_377] : memref<2x512xf32, #tpu.memory_space<vmem>>, vector<1x64xf32>
    tpu.vector_store %arg25[%c1_376, %c64_377], %359 {strides = array<i32>} : memref<2x512xf32, #tpu.memory_space<vmem>>, vector<1x64xf32>,
    %361 = vector.extract_strided_slice %308 {offsets = [10, 64], sizes = [1, 64], strides = [1, 1]} : vector<128x128xf32> to vector<1x64xf32>
    %c1_378 = arith.constant 1 : index
    %c128_379 = arith.constant 128 : index
    %362 = vector.load %arg25[%c1_378, %c128_379] : memref<2x512xf32, #tpu.memory_space<vmem>>, vector<1x64xf32>
    tpu.vector_store %arg25[%c1_378, %c128_379], %361 {strides = array<i32>} : memref<2x512xf32, #tpu.memory_space<vmem>>, vector<1x64xf32>,
    %363 = vector.extract_strided_slice %308 {offsets = [11, 64], sizes = [1, 64], strides = [1, 1]} : vector<128x128xf32> to vector<1x64xf32>
    %c1_380 = arith.constant 1 : index
    %c192_381 = arith.constant 192 : index
    %364 = vector.load %arg25[%c1_380, %c192_381] : memref<2x512xf32, #tpu.memory_space<vmem>>, vector<1x64xf32>
    tpu.vector_store %arg25[%c1_380, %c192_381], %363 {strides = array<i32>} : memref<2x512xf32, #tpu.memory_space<vmem>>, vector<1x64xf32>,
    %365 = vector.extract_strided_slice %308 {offsets = [12, 64], sizes = [1, 64], strides = [1, 1]} : vector<128x128xf32> to vector<1x64xf32>
    %c1_382 = arith.constant 1 : index
    %c256_383 = arith.constant 256 : index
    %366 = vector.load %arg25[%c1_382, %c256_383] : memref<2x512xf32, #tpu.memory_space<vmem>>, vector<1x64xf32>
    tpu.vector_store %arg25[%c1_382, %c256_383], %365 {strides = array<i32>} : memref<2x512xf32, #tpu.memory_space<vmem>>, vector<1x64xf32>,
    %367 = vector.extract_strided_slice %308 {offsets = [13, 64], sizes = [1, 64], strides = [1, 1]} : vector<128x128xf32> to vector<1x64xf32>
    %c1_384 = arith.constant 1 : index
    %c320_385 = arith.constant 320 : index
    %368 = vector.load %arg25[%c1_384, %c320_385] : memref<2x512xf32, #tpu.memory_space<vmem>>, vector<1x64xf32>
    tpu.vector_store %arg25[%c1_384, %c320_385], %367 {strides = array<i32>} : memref<2x512xf32, #tpu.memory_space<vmem>>, vector<1x64xf32>,
    %369 = vector.extract_strided_slice %308 {offsets = [14, 64], sizes = [1, 64], strides = [1, 1]} : vector<128x128xf32> to vector<1x64xf32>
    %c1_386 = arith.constant 1 : index
    %c384_387 = arith.constant 384 : index
    %370 = vector.load %arg25[%c1_386, %c384_387] : memref<2x512xf32, #tpu.memory_space<vmem>>, vector<1x64xf32>
    tpu.vector_store %arg25[%c1_386, %c384_387], %369 {strides = array<i32>} : memref<2x512xf32, #tpu.memory_space<vmem>>, vector<1x64xf32>,
    %371 = vector.extract_strided_slice %308 {offsets = [15, 64], sizes = [1, 64], strides = [1, 1]} : vector<128x128xf32> to vector<1x64xf32>
    %c1_388 = arith.constant 1 : index
    %c448_389 = arith.constant 448 : index
    %372 = vector.load %arg25[%c1_388, %c448_389] : memref<2x512xf32, #tpu.memory_space<vmem>>, vector<1x64xf32>
    tpu.vector_store %arg25[%c1_388, %c448_389], %371 {strides = array<i32>} : memref<2x512xf32, #tpu.memory_space<vmem>>, vector<1x64xf32>,
    %c0_390 = arith.constant 0 : index
    %c0_391 = arith.constant 0 : index
    %373 = vector.load %arg29[%c0_390, %c0_391] : memref<2x512xf32, #tpu.memory_space<vmem>>, vector<2x512xf32>
    %374 = arith.truncf %373 : vector<2x512xf32> to vector<2x512xbf16>
    %c0_392 = arith.constant 0 : index
    %c0_393 = arith.constant 0 : index
    %375 = vector.load %arg20[%c0_392, %c0_393] : memref<512x32xbf16, #tpu.memory_space<vmem>>, vector<512x32xbf16>
    %cst_394 = arith.constant dense<0.000000e+00> : vector<2x32xf32>
    %376 = tpu.matmul %374, %375, %cst_394 {dimension_numbers = #tpu.dot_dimension_numbers<[1], [0], [0], [1], [0, 0, 1, 1], [], []>} : vector<2x512xbf16>, vector<512x32xbf16>, vector<2x32xf32> -> vector<2x32xf32>
    %c0_395 = arith.constant 0 : index
    %c0_396 = arith.constant 0 : index
    %377 = vector.load %arg21[%c0_395, %c0_396] : memref<1x32xf32, #tpu.memory_space<vmem>>, vector<1x32xf32>
    %378 = vector.broadcast %377 : vector<1x32xf32> to vector<2x32xf32>
    %379 = arith.addf %376, %378 : vector<2x32xf32>
    %cst_397 = arith.constant 0.000000e+00 : f32
    %380 = vector.broadcast %cst_397 : f32 to vector<2x32xf32>
    %381 = arith.maximumf %379, %380 : vector<2x32xf32>
    %c0_398 = arith.constant 0 : index
    %c0_399 = arith.constant 0 : index
    %382 = vector.load %arg22[%c0_398, %c0_399] : memref<32x1xf32, #tpu.memory_space<vmem>>, vector<32x1xf32>
    %cst_400 = arith.constant dense<0.000000e+00> : vector<2x1xf32>
    %383 = tpu.matmul %381, %382, %cst_400 {dimension_numbers = #tpu.dot_dimension_numbers<[1], [0], [0], [1], [0, 0, 1, 1], [], []>} : vector<2x32xf32>, vector<32x1xf32>, vector<2x1xf32> -> vector<2x1xf32>
    %c0_401 = arith.constant 0 : index
    %c0_402 = arith.constant 0 : index
    %384 = vector.load %arg23[%c0_401, %c0_402] : memref<1x1xf32, #tpu.memory_space<vmem>>, vector<1x1xf32>
    %385 = vector.broadcast %384 : vector<1x1xf32> to vector<2x1xf32>
    %386 = arith.addf %383, %385 : vector<2x1xf32>
    %387 = math.tanh %386 : vector<2x1xf32>
    %c0_403 = arith.constant 0 : index
    %c0_404 = arith.constant 0 : index
    %388 = vector.load %arg24[%c0_403, %c0_404] : memref<2x1xf32, #tpu.memory_space<vmem>>, vector<2x1xf32>
    tpu.vector_store %arg24[%c0_403, %c0_404], %387 {strides = array<i32>} : memref<2x1xf32, #tpu.memory_space<vmem>>, vector<2x1xf32>,
    return
  }
}

</mosaic_0001>

<llo_original>
// kernel: rise_v3_forward.1
$region0: #{rise_v3_forward.1}
  #allocation0 [shape = 'u32[]', space=smem, size = 0x4, offset = 0x4, fixed_abs, tag = 'smem constant byte address 0x4 - core index']
  #allocation1 [shape = 'u32[144,128]{1,0:T(1,128)}', space=vmem, size = 0x12000, scoped, tag = 'internal scratch']
  #allocation2 [shape = 'f32[2,10,10,32]{3,2,1,0:T(8,128)}', space=vmem, size = 0x28000, scoped, tag = 'scratch operand']
  #allocation3 [shape = 'f32[128,288]{1,0:T(8,128)}', space=vmem, size = 0x30000, scoped, tag = 'scratch operand']
  #allocation4 [shape = 'f32[128,128]{1,0:T(8,128)}', space=vmem, size = 0x10000, scoped, tag = 'scratch operand']
  #allocation5 [shape = 'f32[2,512]{1,0:T(2,128)}', space=vmem, size = 0x1000, scoped, tag = 'scratch operand']
  #allocation6 [shape = 'f32[1,1]{1,0:T(1,128)S(1)}', space=vmem, size = 0x200, scoped, tag = 'scoped memory for rise_v3_forward.1']
  %s0 = inlined_call_operand.vmem [shape: f32[2,8,8,8], index: 0, kind: input, shape index: {}]
  %s1 = inlined_call_operand.vmem [shape: bf16[72,32], index: 1, kind: input, shape index: {}]
  %s2 = inlined_call_operand.hbm [shape: f32[1,32], index: 2, kind: input, shape index: {}]
  %s3 = inlined_call_operand.hbm [shape: bf16[32,16], index: 3, kind: input, shape index: {}]
  %s4 = inlined_call_operand.hbm [shape: f32[1,16], index: 4, kind: input, shape index: {}]
  %s5 = inlined_call_operand.hbm [shape: f32[9,16], index: 5, kind: input, shape index: {}]
  %s6 = inlined_call_operand.hbm [shape: f32[1,16], index: 6, kind: input, shape index: {}]
  %s7 = inlined_call_operand.hbm [shape: bf16[16,32], index: 7, kind: input, shape index: {}]
  %s8 = inlined_call_operand.hbm [shape: f32[1,32], index: 8, kind: input, shape index: {}]
  %s9 = inlined_call_operand.vmem [shape: bf16[32,32], index: 9, kind: input, shape index: {}]
  %s10 = inlined_call_operand.hbm [shape: f32[1,32], index: 10, kind: input, shape index: {}]
  %s11 = inlined_call_operand.hbm [shape: f32[9,32], index: 11, kind: input, shape index: {}]
  %s12 = inlined_call_operand.vmem [shape: f32[1,32], index: 12, kind: input, shape index: {}]
  %s13 = inlined_call_operand.vmem [shape: bf16[32,32], index: 13, kind: input, shape index: {}]
  %s14 = inlined_call_operand.vmem [shape: f32[1,32], index: 14, kind: input, shape index: {}]
  %s15 = inlined_call_operand.vmem [shape: bf16[32,8], index: 15, kind: input, shape index: {}]
  %s16 = inlined_call_operand.vmem [shape: f32[1,8], index: 16, kind: input, shape index: {}]
  %s17 = inlined_call_operand.hbm [shape: bf16[288,32], index: 17, kind: input, shape index: {}]
  %s18 = inlined_call_operand.vmem [shape: f32[1,32], index: 18, kind: input, shape index: {}]
  %s19 = inlined_call_operand.hbm [shape: bf16[288,8], index: 19, kind: input, shape index: {}]
  %s20 = inlined_call_operand.vmem [shape: bf16[512,32], index: 20, kind: input, shape index: {}]
  %s21 = inlined_call_operand.vmem [shape: f32[1,32], index: 21, kind: input, shape index: {}]
  %s22 = inlined_call_operand.vmem [shape: f32[32,1], index: 22, kind: input, shape index: {}]
  %s23 = inlined_call_operand.<no memory space> [shape: f32[1,1], index: 23, kind: input, shape index: {}]
  %s24 = inlined_call_operand.vmem [shape: f32[2,1], index: 24, kind: output, shape index: {0}]
  %s25 = inlined_call_operand.hbm [shape: f32[2,512], index: 25, kind: output, shape index: {1}]
  %26 = xla_tuple %s24, %s25
  %s27 = sld [smem:[#allocation0]]
  $region158: #{rise_v3_forward.1} parent=0
    _
  %s29 = ssub.s32 1, %s27
  %s30 = scalar_select 0, %s29, %s27
  %v31 = vstv %s23
  %32 = vst [vmem:[#allocation6] sm:$0x1] %v31
  $region1: #{rise_v3_forward.1} parent=0
    #allocation7 [shape = 'u8[512]{0}', space=vmem, size = 0x400, scoped, tag = 'input window, operand 2, single buffered']
    #allocation8 [shape = 's32[1]{0}', space=sflag, size = 0x4, scoped, tag = 'scoped memory for rise_v3_forward.1']
    #allocation9 [shape = 's32[1]{0}', space=sflag, size = 0x4, scoped, tag = 'scoped memory for rise_v3_forward.1']
    #allocation10 [shape = 'u8[8192]{0}', space=vmem, size = 0x2000, scoped, tag = 'input window, operand 3, single buffered']
    #allocation11 [shape = 's32[1]{0}', space=sflag, size = 0x4, scoped, tag = 'scoped memory for rise_v3_forward.1']
    #allocation12 [shape = 'u8[512]{0}', space=vmem, size = 0x400, scoped, tag = 'input window, operand 4, single buffered']
    #allocation13 [shape = 'u8[8192]{0}', space=vmem, size = 0x2000, scoped, tag = 'input window, operand 5, single buffered']
    #allocation14 [shape = 's32[1]{0}', space=sflag, size = 0x4, scoped, tag = 'scoped memory for rise_v3_forward.1']
    #allocation15 [shape = 'u8[512]{0}', space=vmem, size = 0x400, scoped, tag = 'input window, operand 6, single buffered']
    #allocation16 [shape = 'u8[4096]{0}', space=vmem, size = 0x1000, scoped, tag = 'input window, operand 7, single buffered']
    #allocation17 [shape = 's32[1]{0}', space=sflag, size = 0x4, scoped, tag = 'scoped memory for rise_v3_forward.1']
    #allocation18 [shape = 'u8[512]{0}', space=vmem, size = 0x400, scoped, tag = 'input window, operand 8, single buffered']
    #allocation19 [shape = 'u8[512]{0}', space=vmem, size = 0x400, scoped, tag = 'input window, operand 10, single buffered']
    #allocation20 [shape = 's32[1]{0}', space=sflag, size = 0x4, scoped, tag = 'scoped memory for rise_v3_forward.1']
    #allocation21 [shape = 'u8[8192]{0}', space=vmem, size = 0x2000, scoped, tag = 'input window, operand 11, single buffered']
    #allocation22 [shape = 'u8[73728]{0}', space=vmem, size = 0x12000, scoped, tag = 'input window, operand 17, single buffered']
    #allocation23 [shape = 's32[1]{0}', space=sflag, size = 0x4, scoped, tag = 'scoped memory for rise_v3_forward.1']
    #allocation24 [shape = 'u8[73728]{0}', space=vmem, size = 0x12000, scoped, tag = 'input window, operand 19, single buffered']
    #allocation25 [shape = 'u8[4096]{0}', space=vmem, size = 0x1000, scoped, tag = 'output window, operand 1, single buffered']
    %33 = vsyncpa [#allocation8], 0
    %34 = vsyncpa [#allocation11], 0
    %35 = vsyncpa [#allocation14], 0
    %36 = vsyncpa [#allocation17], 0
    %37 = vsyncpa [#allocation20], 0
    %38 = vsyncpa [#allocation23], 0
    %39 = vsyncpa [#allocation9], 0
    // Predicated region
    $region2: #{rise_v3_forward.1} parent=1 // pred_check
      _
    $region3: #{rise_v3_forward.1} parent=1 // pred_check_branch
      %41 = sbr.rel (0) target = $region5
    $region4: #{rise_v3_forward.1} parent=1 // pred_region
      _
    $region5: #{rise_v3_forward.1} parent=1 // pred_fallthru
      _
    // Predicated region
    $region6: #{rise_v3_forward.1} parent=1 // pred_check
      _
    $region7: #{rise_v3_forward.1} parent=1 // pred_check_branch
      %43 = sbr.rel (0) target = $region9
    $region8: #{rise_v3_forward.1} parent=1 // pred_region
      _
    $region9: #{rise_v3_forward.1} parent=1 // pred_fallthru
      _
    // Predicated region
    $region10: #{rise_v3_forward.1} parent=1 // pred_check
      _
    $region11: #{rise_v3_forward.1} parent=1 // pred_check_branch
      %45 = sbr.rel (0) target = $region13
    $region12: #{rise_v3_forward.1} parent=1 // pred_region
      %s47 = ssub.s32 16, 16
      %48 = vsyncadd [#allocation8], %s47
      %s50 = sshll.u32 [#allocation7], 4
      %s51 = int_to_ptr.vmem [resolvable:$true] %s50
      %53 = dma.hbm_to_vmem [thread:$0]  %s2, 16, %s51, [#allocation8]
    $region13: #{rise_v3_forward.1} parent=1 // pred_fallthru
      _
    // Predicated region
    $region14: #{rise_v3_forward.1} parent=1 // pred_check
      _
    $region15: #{rise_v3_forward.1} parent=1 // pred_check_branch
      %55 = sbr.rel (0) target = $region17
    $region16: #{rise_v3_forward.1} parent=1 // pred_region
      %s57 = ssub.s32 256, 256
      %58 = vsyncadd [#allocation11], %s57
      %s59 = sshll.u32 [#allocation10], 4
      %s60 = int_to_ptr.vmem [resolvable:$true] %s59
      %65 = dma.hbm_to_vmem [thread:$0]  %s3, 256, %s60, [#allocation11], 64, 64, 4
    $region17: #{rise_v3_forward.1} parent=1 // pred_fallthru
      _
    // Predicated region
    $region18: #{rise_v3_forward.1} parent=1 // pred_check
      _
    $region19: #{rise_v3_forward.1} parent=1 // pred_check_branch
      %67 = sbr.rel (0) target = $region21
    $region20: #{rise_v3_forward.1} parent=1 // pred_region
      %s69 = ssub.s32 16, 16
      %70 = vsyncadd [#allocation11], %s69
      %s72 = sshll.u32 [#allocation12], 4
      %s73 = int_to_ptr.vmem [resolvable:$true] %s72
      %75 = dma.hbm_to_vmem [thread:$0]  %s4, 16, %s73, [#allocation11]
    $region21: #{rise_v3_forward.1} parent=1 // pred_fallthru
      _
    // Predicated region
    $region22: #{rise_v3_forward.1} parent=1 // pred_check
      _
    $region23: #{rise_v3_forward.1} parent=1 // pred_check_branch
      %77 = sbr.rel (0) target = $region25
    $region24: #{rise_v3_forward.1} parent=1 // pred_region
      %s79 = ssub.s32 256, 256
      %80 = vsyncadd [#allocation14], %s79
      %s81 = sshll.u32 [#allocation13], 4
      %s82 = int_to_ptr.vmem [resolvable:$true] %s81
      %87 = dma.hbm_to_vmem [thread:$0]  %s5, 256, %s82, [#allocation14], 128, 128, 8
    $region25: #{rise_v3_forward.1} parent=1 // pred_fallthru
      _
    // Predicated region
    $region26: #{rise_v3_forward.1} parent=1 // pred_check
      _
    $region27: #{rise_v3_forward.1} parent=1 // pred_check_branch
      %89 = sbr.rel (0) target = $region29
    $region28: #{rise_v3_forward.1} parent=1 // pred_region
      %s91 = ssub.s32 16, 16
      %92 = vsyncadd [#allocation14], %s91
      %s94 = sshll.u32 [#allocation15], 4
      %s95 = int_to_ptr.vmem [resolvable:$true] %s94
      %97 = dma.hbm_to_vmem [thread:$0]  %s6, 16, %s95, [#allocation14]
    $region29: #{rise_v3_forward.1} parent=1 // pred_fallthru
      _
    // Predicated region
    $region30: #{rise_v3_forward.1} parent=1 // pred_check
      _
    $region31: #{rise_v3_forward.1} parent=1 // pred_check_branch
      %99 = sbr.rel (0) target = $region33
    $region32: #{rise_v3_forward.1} parent=1 // pred_region
      %s101 = ssub.s32 128, 128
      %102 = vsyncadd [#allocation17], %s101
      %s103 = sshll.u32 [#allocation16], 4
      %s104 = int_to_ptr.vmem [resolvable:$true] %s103
      %109 = dma.hbm_to_vmem [thread:$0]  %s7, 128, %s104, [#allocation17], 64, 64, 4
    $region33: #{rise_v3_forward.1} parent=1 // pred_fallthru
      _
    // Predicated region
    $region34: #{rise_v3_forward.1} parent=1 // pred_check
      _
    $region35: #{rise_v3_forward.1} parent=1 // pred_check_branch
      %111 = sbr.rel (0) target = $region37
    $region36: #{rise_v3_forward.1} parent=1 // pred_region
      %s113 = ssub.s32 16, 16
      %114 = vsyncadd [#allocation17], %s113
      %s116 = sshll.u32 [#allocation18], 4
      %s117 = int_to_ptr.vmem [resolvable:$true] %s116
      %119 = dma.hbm_to_vmem [thread:$0]  %s8, 16, %s117, [#allocation17]
    $region37: #{rise_v3_forward.1} parent=1 // pred_fallthru
      _
    // Predicated region
    $region38: #{rise_v3_forward.1} parent=1 // pred_check
      _
    $region39: #{rise_v3_forward.1} parent=1 // pred_check_branch
      %121 = sbr.rel (0) target = $region41
    $region40: #{rise_v3_forward.1} parent=1 // pred_region
      _
    $region41: #{rise_v3_forward.1} parent=1 // pred_fallthru
      _
    // Predicated region
    $region42: #{rise_v3_forward.1} parent=1 // pred_check
      _
    $region43: #{rise_v3_forward.1} parent=1 // pred_check_branch
      %123 = sbr.rel (0) target = $region45
    $region44: #{rise_v3_forward.1} parent=1 // pred_region
      %s125 = ssub.s32 16, 16
      %126 = vsyncadd [#allocation20], %s125
      %s128 = sshll.u32 [#allocation19], 4
      %s129 = int_to_ptr.vmem [resolvable:$true] %s128
      %131 = dma.hbm_to_vmem [thread:$0]  %s10, 16, %s129, [#allocation20]
    $region45: #{rise_v3_forward.1} parent=1 // pred_fallthru
      _
    // Predicated region
    $region46: #{rise_v3_forward.1} parent=1 // pred_check
      _
    $region47: #{rise_v3_forward.1} parent=1 // pred_check_branch
      %133 = sbr.rel (0) target = $region49
    $region48: #{rise_v3_forward.1} parent=1 // pred_region
      %s135 = ssub.s32 256, 256
      %136 = vsyncadd [#allocation20], %s135
      %s137 = sshll.u32 [#allocation21], 4
      %s138 = int_to_ptr.vmem [resolvable:$true] %s137
      %143 = dma.hbm_to_vmem [thread:$0]  %s11, 256, %s138, [#allocation20], 128, 128, 8
    $region49: #{rise_v3_forward.1} parent=1 // pred_fallthru
      _
    // Predicated region
    $region50: #{rise_v3_forward.1} parent=1 // pred_check
      _
    $region51: #{rise_v3_forward.1} parent=1 // pred_check_branch
      %145 = sbr.rel (0) target = $region53
    $region52: #{rise_v3_forward.1} parent=1 // pred_region
      _
    $region53: #{rise_v3_forward.1} parent=1 // pred_fallthru
      _
    // Predicated region
    $region54: #{rise_v3_forward.1} parent=1 // pred_check
      _
    $region55: #{rise_v3_forward.1} parent=1 // pred_check_branch
      %147 = sbr.rel (0) target = $region57
    $region56: #{rise_v3_forward.1} parent=1 // pred_region
      _
    $region57: #{rise_v3_forward.1} parent=1 // pred_fallthru
      _
    // Predicated region
    $region58: #{rise_v3_forward.1} parent=1 // pred_check
      _
    $region59: #{rise_v3_forward.1} parent=1 // pred_check_branch
      %149 = sbr.rel (0) target = $region61
    $region60: #{rise_v3_forward.1} parent=1 // pred_region
      _
    $region61: #{rise_v3_forward.1} parent=1 // pred_fallthru
      _
    // Predicated region
    $region62: #{rise_v3_forward.1} parent=1 // pred_check
      _
    $region63: #{rise_v3_forward.1} parent=1 // pred_check_branch
      %151 = sbr.rel (0) target = $region65
    $region64: #{rise_v3_forward.1} parent=1 // pred_region
      _
    $region65: #{rise_v3_forward.1} parent=1 // pred_fallthru
      _
    // Predicated region
    $region66: #{rise_v3_forward.1} parent=1 // pred_check
      _
    $region67: #{rise_v3_forward.1} parent=1 // pred_check_branch
      %153 = sbr.rel (0) target = $region69
    $region68: #{rise_v3_forward.1} parent=1 // pred_region
      _
    $region69: #{rise_v3_forward.1} parent=1 // pred_fallthru
      _
    // Predicated region
    $region70: #{rise_v3_forward.1} parent=1 // pred_check
      _
    $region71: #{rise_v3_forward.1} parent=1 // pred_check_branch
      %155 = sbr.rel (0) target = $region73
    $region72: #{rise_v3_forward.1} parent=1 // pred_region
      %s157 = ssub.s32 2304, 2304
      %158 = vsyncadd [#allocation23], %s157
      %s159 = sshll.u32 [#allocation22], 4
      %s160 = int_to_ptr.vmem [resolvable:$true] %s159
      %165 = dma.hbm_to_vmem [thread:$0]  %s17, 2304, %s160, [#allocation23], 64, 64, 4
    $region73: #{rise_v3_forward.1} parent=1 // pred_fallthru
      _
    // Predicated region
    $region74: #{rise_v3_forward.1} parent=1 // pred_check
      _
    $region75: #{rise_v3_forward.1} parent=1 // pred_check_branch
      %167 = sbr.rel (0) target = $region77
    $region76: #{rise_v3_forward.1} parent=1 // pred_region
      _
    $region77: #{rise_v3_forward.1} parent=1 // pred_fallthru
      _
    // Predicated region
    $region78: #{rise_v3_forward.1} parent=1 // pred_check
      _
    $region79: #{rise_v3_forward.1} parent=1 // pred_check_branch
      %169 = sbr.rel (0) target = $region81
    $region80: #{rise_v3_forward.1} parent=1 // pred_region
      %s171 = ssub.s32 2304, 2304
      %172 = vsyncadd [#allocation23], %s171
      %s173 = sshll.u32 [#allocation24], 4
      %s174 = int_to_ptr.vmem [resolvable:$true] %s173
      %179 = dma.hbm_to_vmem [thread:$0]  %s19, 2304, %s174, [#allocation23], 64, 64, 4
    $region81: #{rise_v3_forward.1} parent=1 // pred_fallthru
      _
    // Predicated region
    $region82: #{rise_v3_forward.1} parent=1 // pred_check
      _
    $region83: #{rise_v3_forward.1} parent=1 // pred_check_branch
      %181 = sbr.rel (0) target = $region85
    $region84: #{rise_v3_forward.1} parent=1 // pred_region
      _
    $region85: #{rise_v3_forward.1} parent=1 // pred_fallthru
      _
    // Predicated region
    $region86: #{rise_v3_forward.1} parent=1 // pred_check
      _
    $region87: #{rise_v3_forward.1} parent=1 // pred_check_branch
      %183 = sbr.rel (0) target = $region89
    $region88: #{rise_v3_forward.1} parent=1 // pred_region
      _
    $region89: #{rise_v3_forward.1} parent=1 // pred_fallthru
      _
    // Predicated region
    $region90: #{rise_v3_forward.1} parent=1 // pred_check
      _
    $region91: #{rise_v3_forward.1} parent=1 // pred_check_branch
      %185 = sbr.rel (0) target = $region93
    $region92: #{rise_v3_forward.1} parent=1 // pred_region
      _
    $region93: #{rise_v3_forward.1} parent=1 // pred_fallthru
      _
    // Predicated region
    $region94: #{rise_v3_forward.1} parent=1 // pred_check
      _
    $region95: #{rise_v3_forward.1} parent=1 // pred_check_branch
      %187 = sbr.rel (0) target = $region97
    $region96: #{rise_v3_forward.1} parent=1 // pred_region
      _
    $region97: #{rise_v3_forward.1} parent=1 // pred_fallthru
      _
    // Predicated region
    $region98: #{rise_v3_forward.1} parent=1 // pred_check
      _
    $region99: #{rise_v3_forward.1} parent=1 // pred_check_branch
      %189 = sbr.rel (0) target = $region101
    $region100: #{rise_v3_forward.1} parent=1 // pred_region
      %190 = dma.done [#allocation8], 16
    $region101: #{rise_v3_forward.1} parent=1 // pred_fallthru
      _
    // Predicated region
    $region102: #{rise_v3_forward.1} parent=1 // pred_check
      _
    $region103: #{rise_v3_forward.1} parent=1 // pred_check_branch
      %192 = sbr.rel (0) target = $region105
    $region104: #{rise_v3_forward.1} parent=1 // pred_region
      %193 = dma.done [#allocation11], 256
    $region105: #{rise_v3_forward.1} parent=1 // pred_fallthru
      _
    // Predicated region
    $region106: #{rise_v3_forward.1} parent=1 // pred_check
      _
    $region107: #{rise_v3_forward.1} parent=1 // pred_check_branch
      %195 = sbr.rel (0) target = $region109
    $region108: #{rise_v3_forward.1} parent=1 // pred_region
      %196 = dma.done [#allocation11], 16
    $region109: #{rise_v3_forward.1} parent=1 // pred_fallthru
      _
    // Predicated region
    $region110: #{rise_v3_forward.1} parent=1 // pred_check
      _
    $region111: #{rise_v3_forward.1} parent=1 // pred_check_branch
      %198 = sbr.rel (0) target = $region113
    $region112: #{rise_v3_forward.1} parent=1 // pred_region
      %199 = dma.done [#allocation14], 256
    $region113: #{rise_v3_forward.1} parent=1 // pred_fallthru
      _
    // Predicated region
    $region114: #{rise_v3_forward.1} parent=1 // pred_check
      _
    $region115: #{rise_v3_forward.1} parent=1 // pred_check_branch
      %201 = sbr.rel (0) target = $region117
    $region116: #{rise_v3_forward.1} parent=1 // pred_region
      %202 = dma.done [#allocation14], 16
    $region117: #{rise_v3_forward.1} parent=1 // pred_fallthru
      _
    // Predicated region
    $region118: #{rise_v3_forward.1} parent=1 // pred_check
      _
    $region119: #{rise_v3_forward.1} parent=1 // pred_check_branch
      %204 = sbr.rel (0) target = $region121
    $region120: #{rise_v3_forward.1} parent=1 // pred_region
      %205 = dma.done [#allocation17], 128
    $region121: #{rise_v3_forward.1} parent=1 // pred_fallthru
      _
    // Predicated region
    $region122: #{rise_v3_forward.1} parent=1 // pred_check
      _
    $region123: #{rise_v3_forward.1} parent=1 // pred_check_branch
      %207 = sbr.rel (0) target = $region125
    $region124: #{rise_v3_forward.1} parent=1 // pred_region
      %208 = dma.done [#allocation17], 16
    $region125: #{rise_v3_forward.1} parent=1 // pred_fallthru
      _
    // Predicated region
    $region126: #{rise_v3_forward.1} parent=1 // pred_check
      _
    $region127: #{rise_v3_forward.1} parent=1 // pred_check_branch
      %210 = sbr.rel (0) target = $region129
    $region128: #{rise_v3_forward.1} parent=1 // pred_region
      %211 = dma.done [#allocation20], 16
    $region129: #{rise_v3_forward.1} parent=1 // pred_fallthru
      _
    // Predicated region
    $region130: #{rise_v3_forward.1} parent=1 // pred_check
      _
    $region131: #{rise_v3_forward.1} parent=1 // pred_check_branch
      %213 = sbr.rel (0) target = $region133
    $region132: #{rise_v3_forward.1} parent=1 // pred_region
      %214 = dma.done [#allocation20], 256
    $region133: #{rise_v3_forward.1} parent=1 // pred_fallthru
      _
    // Predicated region
    $region134: #{rise_v3_forward.1} parent=1 // pred_check
      _
    $region135: #{rise_v3_forward.1} parent=1 // pred_check_branch
      %216 = sbr.rel (0) target = $region137
    $region136: #{rise_v3_forward.1} parent=1 // pred_region
      %217 = dma.done [#allocation23], 2304
    $region137: #{rise_v3_forward.1} parent=1 // pred_fallthru
      _
    // Predicated region
    $region138: #{rise_v3_forward.1} parent=1 // pred_check
      _
    $region139: #{rise_v3_forward.1} parent=1 // pred_check_branch
      %219 = sbr.rel (0) target = $region141
    $region140: #{rise_v3_forward.1} parent=1 // pred_region
      %220 = dma.done [#allocation23], 2304
    $region141: #{rise_v3_forward.1} parent=1 // pred_fallthru
      _
    %vm222 = vcmask 261120
    %223 = vst.msk [vmem:[#allocation2] sm:$0xff] %vm222, 0.0
    %vm224 = vcmask 254976
    %225 = vst.msk [vmem:[#allocation2 + $0x8] sm:$0x3] %vm224, 0.0
    %226 = vst.msk [vmem:[#allocation2 + $0xa0] sm:$0xff] %vm222, 0.0
    %227 = vst.msk [vmem:[#allocation2 + $0xa8] sm:$0x3] %vm224, 0.0
    %s228 = scalar_lea.vmem [#allocation2], 144
    %229 = vst.msk [vmem:[%s228] sm:$0xff] %vm222, 0.0
    %230 = vst.msk [vmem:[%s228 + $0x8] sm:$0x3] %vm224, 0.0
    %231 = vst.msk [vmem:[%s228 + $0xa0] sm:$0xff] %vm222, 0.0
    %232 = vst.msk [vmem:[%s228 + $0xa8] sm:$0x3] %vm224, 0.0
    %vm233 = vcmask 253952
    %234 = vst.msk [vmem:[#allocation2] sm:$0x1] %vm233, 0.0
    %235 = vst.msk [vmem:[#allocation2 + $0x10] sm:$0x1] %vm233, 0.0
    %236 = vst.msk [vmem:[#allocation2 + $0x20] sm:$0x1] %vm233, 0.0
    %237 = vst.msk [vmem:[#allocation2 + $0x30] sm:$0x1] %vm233, 0.0
    %238 = vst.msk [vmem:[#allocation2 + $0x40] sm:$0x1] %vm233, 0.0
    %239 = vst.msk [vmem:[#allocation2 + $0x50] sm:$0x1] %vm233, 0.0
    %240 = vst.msk [vmem:[#allocation2 + $0x60] sm:$0x1] %vm233, 0.0
    %241 = vst.msk [vmem:[#allocation2 + $0x70] sm:$0x1] %vm233, 0.0
    %242 = vst.msk [vmem:[#allocation2 + $0x80] sm:$0x1] %vm233, 0.0
    %243 = vst.msk [vmem:[#allocation2 + $0x90] sm:$0x1] %vm233, 0.0
    %244 = vst.msk [vmem:[#allocation2 + $0xa0] sm:$0x1] %vm233, 0.0
    %245 = vst.msk [vmem:[#allocation2 + $0xb0] sm:$0x1] %vm233, 0.0
    %246 = vst.msk [vmem:[#allocation2 + $0xc0] sm:$0x1] %vm233, 0.0
    %247 = vst.msk [vmem:[#allocation2 + $0xd0] sm:$0x1] %vm233, 0.0
    %248 = vst.msk [vmem:[#allocation2 + $0xe0] sm:$0x1] %vm233, 0.0
    %249 = vst.msk [vmem:[#allocation2 + $0xf0] sm:$0x1] %vm233, 0.0
    %250 = vst.msk [vmem:[#allocation2 + $0x100] sm:$0x1] %vm233, 0.0
    %251 = vst.msk [vmem:[#allocation2 + $0x110] sm:$0x1] %vm233, 0.0
    %252 = vst.msk [vmem:[#allocation2 + $0x120] sm:$0x1] %vm233, 0.0
    %253 = vst.msk [vmem:[#allocation2 + $0x130] sm:$0x1] %vm233, 0.0
    %254 = vst.msk [vmem:[#allocation2 + $0x9] sm:$0x1] %vm233, 0.0
    %255 = vst.msk [vmem:[#allocation2 + $0x19] sm:$0x1] %vm233, 0.0
    %256 = vst.msk [vmem:[#allocation2 + $0x29] sm:$0x1] %vm233, 0.0
    %257 = vst.msk [vmem:[#allocation2 + $0x39] sm:$0x1] %vm233, 0.0
    %258 = vst.msk [vmem:[#allocation2 + $0x49] sm:$0x1] %vm233, 0.0
    %259 = vst.msk [vmem:[#allocation2 + $0x59] sm:$0x1] %vm233, 0.0
    %260 = vst.msk [vmem:[#allocation2 + $0x69] sm:$0x1] %vm233, 0.0
    %261 = vst.msk [vmem:[#allocation2 + $0x79] sm:$0x1] %vm233, 0.0
    %262 = vst.msk [vmem:[#allocation2 + $0x89] sm:$0x1] %vm233, 0.0
    %263 = vst.msk [vmem:[#allocation2 + $0x99] sm:$0x1] %vm233, 0.0
    %264 = vst.msk [vmem:[#allocation2 + $0xa9] sm:$0x1] %vm233, 0.0
    %265 = vst.msk [vmem:[#allocation2 + $0xb9] sm:$0x1] %vm233, 0.0
    %266 = vst.msk [vmem:[#allocation2 + $0xc9] sm:$0x1] %vm233, 0.0
    %267 = vst.msk [vmem:[#allocation2 + $0xd9] sm:$0x1] %vm233, 0.0
    %268 = vst.msk [vmem:[#allocation2 + $0xe9] sm:$0x1] %vm233, 0.0
    %269 = vst.msk [vmem:[#allocation2 + $0xf9] sm:$0x1] %vm233, 0.0
    %270 = vst.msk [vmem:[#allocation2 + $0x109] sm:$0x1] %vm233, 0.0
    %271 = vst.msk [vmem:[#allocation2 + $0x119] sm:$0x1] %vm233, 0.0
    %272 = vst.msk [vmem:[#allocation2 + $0x129] sm:$0x1] %vm233, 0.0
    %273 = vst.msk [vmem:[#allocation2 + $0x139] sm:$0x1] %vm233, 0.0
    %v274 = vld [vmem:[%s0] sm:$0xff]
    %v275 = vld [vmem:[%s0 + $0x8] sm:$0xff]
    %v276 = vld [vmem:[%s0 + $0x10] sm:$0xff]
    %v277 = vld [vmem:[%s0 + $0x18] sm:$0xff]
    %v278 = vld [vmem:[%s0 + $0x20] sm:$0xff]
    %v279 = vld [vmem:[%s0 + $0x28] sm:$0xff]
    %v280 = vld [vmem:[%s0 + $0x30] sm:$0xff]
    %v281 = vld [vmem:[%s0 + $0x38] sm:$0xff]
    %v282 = vld [vmem:[%s0 + $0x40] sm:$0xff]
    %v283 = vld [vmem:[%s0 + $0x48] sm:$0xff]
    %v284 = vld [vmem:[%s0 + $0x50] sm:$0xff]
    %v285 = vld [vmem:[%s0 + $0x58] sm:$0xff]
    %v286 = vld [vmem:[%s0 + $0x60] sm:$0xff]
    %v287 = vld [vmem:[%s0 + $0x68] sm:$0xff]
    %v288 = vld [vmem:[%s0 + $0x70] sm:$0xff]
    %v289 = vld [vmem:[%s0 + $0x78] sm:$0xff]
    %s290 = scalar_lea.vmem [#allocation2], 16
    %vm291 = vcmask 64512
    %292 = vst.msk [vmem:[%s290 + $0x1] sm:$0xff] %vm291, %v274
    %293 = vst.msk [vmem:[%s290 + $0x11] sm:$0xff] %vm291, %v275
    %294 = vst.msk [vmem:[%s290 + $0x21] sm:$0xff] %vm291, %v276
    %295 = vst.msk [vmem:[%s290 + $0x31] sm:$0xff] %vm291, %v277
    %296 = vst.msk [vmem:[%s290 + $0x41] sm:$0xff] %vm291, %v278
    %297 = vst.msk [vmem:[%s290 + $0x51] sm:$0xff] %vm291, %v279
    %298 = vst.msk [vmem:[%s290 + $0x61] sm:$0xff] %vm291, %v280
    %299 = vst.msk [vmem:[%s290 + $0x71] sm:$0xff] %vm291, %v281
    %300 = vst.msk [vmem:[%s290 + $0xa1] sm:$0xff] %vm291, %v282
    %301 = vst.msk [vmem:[%s290 + $0xb1] sm:$0xff] %vm291, %v283
    %302 = vst.msk [vmem:[%s290 + $0xc1] sm:$0xff] %vm291, %v284
    %303 = vst.msk [vmem:[%s290 + $0xd1] sm:$0xff] %vm291, %v285
    %304 = vst.msk [vmem:[%s290 + $0xe1] sm:$0xff] %vm291, %v286
    %305 = vst.msk [vmem:[%s290 + $0xf1] sm:$0xff] %vm291, %v287
    %306 = vst.msk [vmem:[%s290 + $0x101] sm:$0xff] %vm291, %v288
    %307 = vst.msk [vmem:[%s290 + $0x111] sm:$0xff] %vm291, %v289
    %v308 = vld [vmem:[#allocation2] sm:$0xff]
    %v309 = vld [vmem:[#allocation2 + $0x10] sm:$0xff]
    %v310 = vld [vmem:[#allocation2 + $0x20] sm:$0xff]
    %v311 = vld [vmem:[#allocation2 + $0x30] sm:$0xff]
    %v312 = vld [vmem:[#allocation2 + $0x40] sm:$0xff]
    %v313 = vld [vmem:[#allocation2 + $0x50] sm:$0xff]
    %v314 = vld [vmem:[#allocation2 + $0x60] sm:$0xff]
    %v315 = vld [vmem:[#allocation2 + $0x70] sm:$0xff]
    %v316 = vld [vmem:[#allocation2 + $0xa0] sm:$0xff]
    %v317 = vld [vmem:[#allocation2 + $0xb0] sm:$0xff]
    %v318 = vld [vmem:[#allocation2 + $0xc0] sm:$0xff]
    %v319 = vld [vmem:[#allocation2 + $0xd0] sm:$0xff]
    %v320 = vld [vmem:[#allocation2 + $0xe0] sm:$0xff]
    %v321 = vld [vmem:[#allocation2 + $0xf0] sm:$0xff]
    %v322 = vld [vmem:[#allocation2 + $0x100] sm:$0xff]
    %v323 = vld [vmem:[#allocation2 + $0x110] sm:$0xff]
    %324 = vst.msk [vmem:[#allocation3] sm:$0xff] %vm291, %v308
    %325 = vst.msk [vmem:[#allocation3 + $0x18] sm:$0xff] %vm291, %v309
    %326 = vst.msk [vmem:[#allocation3 + $0x30] sm:$0xff] %vm291, %v310
    %327 = vst.msk [vmem:[#allocation3 + $0x48] sm:$0xff] %vm291, %v311
    %328 = vst.msk [vmem:[#allocation3 + $0x60] sm:$0xff] %vm291, %v312
    %329 = vst.msk [vmem:[#allocation3 + $0x78] sm:$0xff] %vm291, %v313
    %330 = vst.msk [vmem:[#allocation3 + $0x90] sm:$0xff] %vm291, %v314
    %331 = vst.msk [vmem:[#allocation3 + $0xa8] sm:$0xff] %vm291, %v315
    %332 = vst.msk [vmem:[#allocation3 + $0xc0] sm:$0xff] %vm291, %v316
    %333 = vst.msk [vmem:[#allocation3 + $0xd8] sm:$0xff] %vm291, %v317
    %334 = vst.msk [vmem:[#allocation3 + $0xf0] sm:$0xff] %vm291, %v318
    %335 = vst.msk [vmem:[#allocation3 + $0x108] sm:$0xff] %vm291, %v319
    %336 = vst.msk [vmem:[#allocation3 + $0x120] sm:$0xff] %vm291, %v320
    %337 = vst.msk [vmem:[#allocation3 + $0x138] sm:$0xff] %vm291, %v321
    %338 = vst.msk [vmem:[#allocation3 + $0x150] sm:$0xff] %vm291, %v322
    %339 = vst.msk [vmem:[#allocation3 + $0x168] sm:$0xff] %vm291, %v323
    %v340 = vld [vmem:[#allocation2 + $0x1] sm:$0xff]
    %v341 = vld [vmem:[#allocation2 + $0x11] sm:$0xff]
    %v342 = vld [vmem:[#allocation2 + $0x21] sm:$0xff]
    %v343 = vld [vmem:[#allocation2 + $0x31] sm:$0xff]
    %v344 = vld [vmem:[#allocation2 + $0x41] sm:$0xff]
    %v345 = vld [vmem:[#allocation2 + $0x51] sm:$0xff]
    %v346 = vld [vmem:[#allocation2 + $0x61] sm:$0xff]
    %v347 = vld [vmem:[#allocation2 + $0x71] sm:$0xff]
    %v348 = vld [vmem:[#allocation2 + $0xa1] sm:$0xff]
    %v349 = vld [vmem:[#allocation2 + $0xb1] sm:$0xff]
    %v350 = vld [vmem:[#allocation2 + $0xc1] sm:$0xff]
    %v351 = vld [vmem:[#allocation2 + $0xd1] sm:$0xff]
    %v352 = vld [vmem:[#allocation2 + $0xe1] sm:$0xff]
    %v353 = vld [vmem:[#allocation2 + $0xf1] sm:$0xff]
    %v354 = vld [vmem:[#allocation2 + $0x101] sm:$0xff]
    %v355 = vld [vmem:[#allocation2 + $0x111] sm:$0xff]
    %372 = vrot.lane.b32.xlu0 %v340, 8
    %v373 = vpop.permute.xlu0 %372
    %374 = vrot.lane.b32.xlu0 %v341, 8
    %v375 = vpop.permute.xlu0 %374
    %376 = vrot.lane.b32.xlu0 %v342, 8
    %v377 = vpop.permute.xlu0 %376
    %378 = vrot.lane.b32.xlu0 %v343, 8
    %v379 = vpop.permute.xlu0 %378
    %380 = vrot.lane.b32.xlu0 %v344, 8
    %v381 = vpop.permute.xlu0 %380
    %382 = vrot.lane.b32.xlu0 %v345, 8
    %v383 = vpop.permute.xlu0 %382
    %384 = vrot.lane.b32.xlu0 %v346, 8
    %v385 = vpop.permute.xlu0 %384
    %386 = vrot.lane.b32.xlu0 %v347, 8
    %v387 = vpop.permute.xlu0 %386
    %388 = vrot.lane.b32.xlu0 %v348, 8
    %v389 = vpop.permute.xlu0 %388
    %390 = vrot.lane.b32.xlu0 %v349, 8
    %v391 = vpop.permute.xlu0 %390
    %392 = vrot.lane.b32.xlu0 %v350, 8
    %v393 = vpop.permute.xlu0 %392
    %394 = vrot.lane.b32.xlu0 %v351, 8
    %v395 = vpop.permute.xlu0 %394
    %396 = vrot.lane.b32.xlu0 %v352, 8
    %v397 = vpop.permute.xlu0 %396
    %398 = vrot.lane.b32.xlu0 %v353, 8
    %v399 = vpop.permute.xlu0 %398
    %400 = vrot.lane.b32.xlu0 %v354, 8
    %v401 = vpop.permute.xlu0 %400
    %402 = vrot.lane.b32.xlu0 %v355, 8
    %v403 = vpop.permute.xlu0 %402
    %vm420 = vcmask 130112
    %421 = vst.msk [vmem:[#allocation3] sm:$0xff] %vm420, %v373
    %422 = vst.msk [vmem:[#allocation3 + $0x18] sm:$0xff] %vm420, %v375
    %423 = vst.msk [vmem:[#allocation3 + $0x30] sm:$0xff] %vm420, %v377
    %424 = vst.msk [vmem:[#allocation3 + $0x48] sm:$0xff] %vm420, %v379
    %425 = vst.msk [vmem:[#allocation3 + $0x60] sm:$0xff] %vm420, %v381
    %426 = vst.msk [vmem:[#allocation3 + $0x78] sm:$0xff] %vm420, %v383
    %427 = vst.msk [vmem:[#allocation3 + $0x90] sm:$0xff] %vm420, %v385
    %428 = vst.msk [vmem:[#allocation3 + $0xa8] sm:$0xff] %vm420, %v387
    %429 = vst.msk [vmem:[#allocation3 + $0xc0] sm:$0xff] %vm420, %v389
    %430 = vst.msk [vmem:[#allocation3 + $0xd8] sm:$0xff] %vm420, %v391
    %431 = vst.msk [vmem:[#allocation3 + $0xf0] sm:$0xff] %vm420, %v393
    %432 = vst.msk [vmem:[#allocation3 + $0x108] sm:$0xff] %vm420, %v395
    %433 = vst.msk [vmem:[#allocation3 + $0x120] sm:$0xff] %vm420, %v397
    %434 = vst.msk [vmem:[#allocation3 + $0x138] sm:$0xff] %vm420, %v399
    %435 = vst.msk [vmem:[#allocation3 + $0x150] sm:$0xff] %vm420, %v401
    %436 = vst.msk [vmem:[#allocation3 + $0x168] sm:$0xff] %vm420, %v403
    %v437 = vld [vmem:[#allocation2 + $0x2] sm:$0xff]
    %v438 = vld [vmem:[#allocation2 + $0x12] sm:$0xff]
    %v439 = vld [vmem:[#allocation2 + $0x22] sm:$0xff]
    %v440 = vld [vmem:[#allocation2 + $0x32] sm:$0xff]
    %v441 = vld [vmem:[#allocation2 + $0x42] sm:$0xff]
    %v442 = vld [vmem:[#allocation2 + $0x52] sm:$0xff]
    %v443 = vld [vmem:[#allocation2 + $0x62] sm:$0xff]
    %v444 = vld [vmem:[#allocation2 + $0x72] sm:$0xff]
    %v445 = vld [vmem:[#allocation2 + $0xa2] sm:$0xff]
    %v446 = vld [vmem:[#allocation2 + $0xb2] sm:$0xff]
    %v447 = vld [vmem:[#allocation2 + $0xc2] sm:$0xff]
    %v448 = vld [vmem:[#allocation2 + $0xd2] sm:$0xff]
    %v449 = vld [vmem:[#allocation2 + $0xe2] sm:$0xff]
    %v450 = vld [vmem:[#allocation2 + $0xf2] sm:$0xff]
    %v451 = vld [vmem:[#allocation2 + $0x102] sm:$0xff]
    %v452 = vld [vmem:[#allocation2 + $0x112] sm:$0xff]
    %469 = vrot.lane.b32.xlu0 %v437, 16
    %v470 = vpop.permute.xlu0 %469
    %471 = vrot.lane.b32.xlu0 %v438, 16
    %v472 = vpop.permute.xlu0 %471
    %473 = vrot.lane.b32.xlu0 %v439, 16
    %v474 = vpop.permute.xlu0 %473
    %475 = vrot.lane.b32.xlu0 %v440, 16
    %v476 = vpop.permute.xlu0 %475
    %477 = vrot.lane.b32.xlu0 %v441, 16
    %v478 = vpop.permute.xlu0 %477
    %479 = vrot.lane.b32.xlu0 %v442, 16
    %v480 = vpop.permute.xlu0 %479
    %481 = vrot.lane.b32.xlu0 %v443, 16
    %v482 = vpop.permute.xlu0 %481
    %483 = vrot.lane.b32.xlu0 %v444, 16
    %v484 = vpop.permute.xlu0 %483
    %485 = vrot.lane.b32.xlu0 %v445, 16
    %v486 = vpop.permute.xlu0 %485
    %487 = vrot.lane.b32.xlu0 %v446, 16
    %v488 = vpop.permute.xlu0 %487
    %489 = vrot.lane.b32.xlu0 %v447, 16
    %v490 = vpop.permute.xlu0 %489
    %491 = vrot.lane.b32.xlu0 %v448, 16
    %v492 = vpop.permute.xlu0 %491
    %493 = vrot.lane.b32.xlu0 %v449, 16
    %v494 = vpop.permute.xlu0 %493
    %495 = vrot.lane.b32.xlu0 %v450, 16
    %v496 = vpop.permute.xlu0 %495
    %497 = vrot.lane.b32.xlu0 %v451, 16
    %v498 = vpop.permute.xlu0 %497
    %499 = vrot.lane.b32.xlu0 %v452, 16
    %v500 = vpop.permute.xlu0 %499
    %vm517 = vcmask 195712
    %518 = vst.msk [vmem:[#allocation3] sm:$0xff] %vm517, %v470
    %519 = vst.msk [vmem:[#allocation3 + $0x18] sm:$0xff] %vm517, %v472
    %520 = vst.msk [vmem:[#allocation3 + $0x30] sm:$0xff] %vm517, %v474
    %521 = vst.msk [vmem:[#allocation3 + $0x48] sm:$0xff] %vm517, %v476
    %522 = vst.msk [vmem:[#allocation3 + $0x60] sm:$0xff] %vm517, %v478
    %523 = vst.msk [vmem:[#allocation3 + $0x78] sm:$0xff] %vm517, %v480
    %524 = vst.msk [vmem:[#allocation3 + $0x90] sm:$0xff] %vm517, %v482
    %525 = vst.msk [vmem:[#allocation3 + $0xa8] sm:$0xff] %vm517, %v484
    %526 = vst.msk [vmem:[#allocation3 + $0xc0] sm:$0xff] %vm517, %v486
    %527 = vst.msk [vmem:[#allocation3 + $0xd8] sm:$0xff] %vm517, %v488
    %528 = vst.msk [vmem:[#allocation3 + $0xf0] sm:$0xff] %vm517, %v490
    %529 = vst.msk [vmem:[#allocation3 + $0x108] sm:$0xff] %vm517, %v492
    %530 = vst.msk [vmem:[#allocation3 + $0x120] sm:$0xff] %vm517, %v494
    %531 = vst.msk [vmem:[#allocation3 + $0x138] sm:$0xff] %vm517, %v496
    %532 = vst.msk [vmem:[#allocation3 + $0x150] sm:$0xff] %vm517, %v498
    %533 = vst.msk [vmem:[#allocation3 + $0x168] sm:$0xff] %vm517, %v500
    %v534 = vld [vmem:[%s290] sm:$0xff]
    %v535 = vld [vmem:[%s290 + $0x10] sm:$0xff]
    %v536 = vld [vmem:[%s290 + $0x20] sm:$0xff]
    %v537 = vld [vmem:[%s290 + $0x30] sm:$0xff]
    %v538 = vld [vmem:[%s290 + $0x40] sm:$0xff]
    %v539 = vld [vmem:[%s290 + $0x50] sm:$0xff]
    %v540 = vld [vmem:[%s290 + $0x60] sm:$0xff]
    %v541 = vld [vmem:[%s290 + $0x70] sm:$0xff]
    %v542 = vld [vmem:[%s290 + $0xa0] sm:$0xff]
    %v543 = vld [vmem:[%s290 + $0xb0] sm:$0xff]
    %v544 = vld [vmem:[%s290 + $0xc0] sm:$0xff]
    %v545 = vld [vmem:[%s290 + $0xd0] sm:$0xff]
    %v546 = vld [vmem:[%s290 + $0xe0] sm:$0xff]
    %v547 = vld [vmem:[%s290 + $0xf0] sm:$0xff]
    %v548 = vld [vmem:[%s290 + $0x100] sm:$0xff]
    %v549 = vld [vmem:[%s290 + $0x110] sm:$0xff]
    %566 = vrot.lane.b32.xlu0 %v534, 24
    %v567 = vpop.permute.xlu0 %566
    %568 = vrot.lane.b32.xlu0 %v535, 24
    %v569 = vpop.permute.xlu0 %568
    %570 = vrot.lane.b32.xlu0 %v536, 24
    %v571 = vpop.permute.xlu0 %570
    %572 = vrot.lane.b32.xlu0 %v537, 24
    %v573 = vpop.permute.xlu0 %572
    %574 = vrot.lane.b32.xlu0 %v538, 24
    %v575 = vpop.permute.xlu0 %574
    %576 = vrot.lane.b32.xlu0 %v539, 24
    %v577 = vpop.permute.xlu0 %576
    %578 = vrot.lane.b32.xlu0 %v540, 24
    %v579 = vpop.permute.xlu0 %578
    %580 = vrot.lane.b32.xlu0 %v541, 24
    %v581 = vpop.permute.xlu0 %580
    %582 = vrot.lane.b32.xlu0 %v542, 24
    %v583 = vpop.permute.xlu0 %582
    %584 = vrot.lane.b32.xlu0 %v543, 24
    %v585 = vpop.permute.xlu0 %584
    %586 = vrot.lane.b32.xlu0 %v544, 24
    %v587 = vpop.permute.xlu0 %586
    %588 = vrot.lane.b32.xlu0 %v545, 24
    %v589 = vpop.permute.xlu0 %588
    %590 = vrot.lane.b32.xlu0 %v546, 24
    %v591 = vpop.permute.xlu0 %590
    %592 = vrot.lane.b32.xlu0 %v547, 24
    %v593 = vpop.permute.xlu0 %592
    %594 = vrot.lane.b32.xlu0 %v548, 24
    %v595 = vpop.permute.xlu0 %594
    %596 = vrot.lane.b32.xlu0 %v549, 24
    %v597 = vpop.permute.xlu0 %596
    %vm614 = vcmask 261312
    %615 = vst.msk [vmem:[#allocation3] sm:$0xff] %vm614, %v567
    %616 = vst.msk [vmem:[#allocation3 + $0x18] sm:$0xff] %vm614, %v569
    %617 = vst.msk [vmem:[#allocation3 + $0x30] sm:$0xff] %vm614, %v571
    %618 = vst.msk [vmem:[#allocation3 + $0x48] sm:$0xff] %vm614, %v573
    %619 = vst.msk [vmem:[#allocation3 + $0x60] sm:$0xff] %vm614, %v575
    %620 = vst.msk [vmem:[#allocation3 + $0x78] sm:$0xff] %vm614, %v577
    %621 = vst.msk [vmem:[#allocation3 + $0x90] sm:$0xff] %vm614, %v579
    %622 = vst.msk [vmem:[#allocation3 + $0xa8] sm:$0xff] %vm614, %v581
    %623 = vst.msk [vmem:[#allocation3 + $0xc0] sm:$0xff] %vm614, %v583
    %624 = vst.msk [vmem:[#allocation3 + $0xd8] sm:$0xff] %vm614, %v585
    %625 = vst.msk [vmem:[#allocation3 + $0xf0] sm:$0xff] %vm614, %v587
    %626 = vst.msk [vmem:[#allocation3 + $0x108] sm:$0xff] %vm614, %v589
    %627 = vst.msk [vmem:[#allocation3 + $0x120] sm:$0xff] %vm614, %v591
    %628 = vst.msk [vmem:[#allocation3 + $0x138] sm:$0xff] %vm614, %v593
    %629 = vst.msk [vmem:[#allocation3 + $0x150] sm:$0xff] %vm614, %v595
    %630 = vst.msk [vmem:[#allocation3 + $0x168] sm:$0xff] %vm614, %v597
    %v631 = vld [vmem:[%s290 + $0x1] sm:$0xff]
    %v632 = vld [vmem:[%s290 + $0x11] sm:$0xff]
    %v633 = vld [vmem:[%s290 + $0x21] sm:$0xff]
    %v634 = vld [vmem:[%s290 + $0x31] sm:$0xff]
    %v635 = vld [vmem:[%s290 + $0x41] sm:$0xff]
    %v636 = vld [vmem:[%s290 + $0x51] sm:$0xff]
    %v637 = vld [vmem:[%s290 + $0x61] sm:$0xff]
    %v638 = vld [vmem:[%s290 + $0x71] sm:$0xff]
    %v639 = vld [vmem:[%s290 + $0xa1] sm:$0xff]
    %v640 = vld [vmem:[%s290 + $0xb1] sm:$0xff]
    %v641 = vld [vmem:[%s290 + $0xc1] sm:$0xff]
    %v642 = vld [vmem:[%s290 + $0xd1] sm:$0xff]
    %v643 = vld [vmem:[%s290 + $0xe1] sm:$0xff]
    %v644 = vld [vmem:[%s290 + $0xf1] sm:$0xff]
    %v645 = vld [vmem:[%s290 + $0x101] sm:$0xff]
    %v646 = vld [vmem:[%s290 + $0x111] sm:$0xff]
    %663 = vrot.lane.b32.xlu0 %v631, 32
    %v664 = vpop.permute.xlu0 %663
    %665 = vrot.lane.b32.xlu0 %v632, 32
    %v666 = vpop.permute.xlu0 %665
    %667 = vrot.lane.b32.xlu0 %v633, 32
    %v668 = vpop.permute.xlu0 %667
    %669 = vrot.lane.b32.xlu0 %v634, 32
    %v670 = vpop.permute.xlu0 %669
    %671 = vrot.lane.b32.xlu0 %v635, 32
    %v672 = vpop.permute.xlu0 %671
    %673 = vrot.lane.b32.xlu0 %v636, 32
    %v674 = vpop.permute.xlu0 %673
    %675 = vrot.lane.b32.xlu0 %v637, 32
    %v676 = vpop.permute.xlu0 %675
    %677 = vrot.lane.b32.xlu0 %v638, 32
    %v678 = vpop.permute.xlu0 %677
    %679 = vrot.lane.b32.xlu0 %v639, 32
    %v680 = vpop.permute.xlu0 %679
    %681 = vrot.lane.b32.xlu0 %v640, 32
    %v682 = vpop.permute.xlu0 %681
    %683 = vrot.lane.b32.xlu0 %v641, 32
    %v684 = vpop.permute.xlu0 %683
    %685 = vrot.lane.b32.xlu0 %v642, 32
    %v686 = vpop.permute.xlu0 %685
    %687 = vrot.lane.b32.xlu0 %v643, 32
    %v688 = vpop.permute.xlu0 %687
    %689 = vrot.lane.b32.xlu0 %v644, 32
    %v690 = vpop.permute.xlu0 %689
    %691 = vrot.lane.b32.xlu0 %v645, 32
    %v692 = vpop.permute.xlu0 %691
    %693 = vrot.lane.b32.xlu0 %v646, 32
    %v694 = vpop.permute.xlu0 %693
    %vm711 = vcmask 326912
    %712 = vst.msk [vmem:[#allocation3] sm:$0xff] %vm711, %v664
    %713 = vst.msk [vmem:[#allocation3 + $0x18] sm:$0xff] %vm711, %v666
    %714 = vst.msk [vmem:[#allocation3 + $0x30] sm:$0xff] %vm711, %v668
    %715 = vst.msk [vmem:[#allocation3 + $0x48] sm:$0xff] %vm711, %v670
    %716 = vst.msk [vmem:[#allocation3 + $0x60] sm:$0xff] %vm711, %v672
    %717 = vst.msk [vmem:[#allocation3 + $0x78] sm:$0xff] %vm711, %v674
    %718 = vst.msk [vmem:[#allocation3 + $0x90] sm:$0xff] %vm711, %v676
    %719 = vst.msk [vmem:[#allocation3 + $0xa8] sm:$0xff] %vm711, %v678
    %720 = vst.msk [vmem:[#allocation3 + $0xc0] sm:$0xff] %vm711, %v680
    %721 = vst.msk [vmem:[#allocation3 + $0xd8] sm:$0xff] %vm711, %v682
    %722 = vst.msk [vmem:[#allocation3 + $0xf0] sm:$0xff] %vm711, %v684
    %723 = vst.msk [vmem:[#allocation3 + $0x108] sm:$0xff] %vm711, %v686
    %724 = vst.msk [vmem:[#allocation3 + $0x120] sm:$0xff] %vm711, %v688
    %725 = vst.msk [vmem:[#allocation3 + $0x138] sm:$0xff] %vm711, %v690
    %726 = vst.msk [vmem:[#allocation3 + $0x150] sm:$0xff] %vm711, %v692
    %727 = vst.msk [vmem:[#allocation3 + $0x168] sm:$0xff] %vm711, %v694
    %v728 = vld [vmem:[%s290 + $0x2] sm:$0xff]
    %v729 = vld [vmem:[%s290 + $0x12] sm:$0xff]
    %v730 = vld [vmem:[%s290 + $0x22] sm:$0xff]
    %v731 = vld [vmem:[%s290 + $0x32] sm:$0xff]
    %v732 = vld [vmem:[%s290 + $0x42] sm:$0xff]
    %v733 = vld [vmem:[%s290 + $0x52] sm:$0xff]
    %v734 = vld [vmem:[%s290 + $0x62] sm:$0xff]
    %v735 = vld [vmem:[%s290 + $0x72] sm:$0xff]
    %v736 = vld [vmem:[%s290 + $0xa2] sm:$0xff]
    %v737 = vld [vmem:[%s290 + $0xb2] sm:$0xff]
    %v738 = vld [vmem:[%s290 + $0xc2] sm:$0xff]
    %v739 = vld [vmem:[%s290 + $0xd2] sm:$0xff]
    %v740 = vld [vmem:[%s290 + $0xe2] sm:$0xff]
    %v741 = vld [vmem:[%s290 + $0xf2] sm:$0xff]
    %v742 = vld [vmem:[%s290 + $0x102] sm:$0xff]
    %v743 = vld [vmem:[%s290 + $0x112] sm:$0xff]
    %760 = vrot.lane.b32.xlu0 %v728, 40
    %v761 = vpop.permute.xlu0 %760
    %762 = vrot.lane.b32.xlu0 %v729, 40
    %v763 = vpop.permute.xlu0 %762
    %764 = vrot.lane.b32.xlu0 %v730, 40
    %v765 = vpop.permute.xlu0 %764
    %766 = vrot.lane.b32.xlu0 %v731, 40
    %v767 = vpop.permute.xlu0 %766
    %768 = vrot.lane.b32.xlu0 %v732, 40
    %v769 = vpop.permute.xlu0 %768
    %770 = vrot.lane.b32.xlu0 %v733, 40
    %v771 = vpop.permute.xlu0 %770
    %772 = vrot.lane.b32.xlu0 %v734, 40
    %v773 = vpop.permute.xlu0 %772
    %774 = vrot.lane.b32.xlu0 %v735, 40
    %v775 = vpop.permute.xlu0 %774
    %776 = vrot.lane.b32.xlu0 %v736, 40
    %v777 = vpop.permute.xlu0 %776
    %778 = vrot.lane.b32.xlu0 %v737, 40
    %v779 = vpop.permute.xlu0 %778
    %780 = vrot.lane.b32.xlu0 %v738, 40
    %v781 = vpop.permute.xlu0 %780
    %782 = vrot.lane.b32.xlu0 %v739, 40
    %v783 = vpop.permute.xlu0 %782
    %784 = vrot.lane.b32.xlu0 %v740, 40
    %v785 = vpop.permute.xlu0 %784
    %786 = vrot.lane.b32.xlu0 %v741, 40
    %v787 = vpop.permute.xlu0 %786
    %788 = vrot.lane.b32.xlu0 %v742, 40
    %v789 = vpop.permute.xlu0 %788
    %790 = vrot.lane.b32.xlu0 %v743, 40
    %v791 = vpop.permute.xlu0 %790
    %vm808 = vcmask 392512
    %809 = vst.msk [vmem:[#allocation3] sm:$0xff] %vm808, %v761
    %810 = vst.msk [vmem:[#allocation3 + $0x18] sm:$0xff] %vm808, %v763
    %811 = vst.msk [vmem:[#allocation3 + $0x30] sm:$0xff] %vm808, %v765
    %812 = vst.msk [vmem:[#allocation3 + $0x48] sm:$0xff] %vm808, %v767
    %813 = vst.msk [vmem:[#allocation3 + $0x60] sm:$0xff] %vm808, %v769
    %814 = vst.msk [vmem:[#allocation3 + $0x78] sm:$0xff] %vm808, %v771
    %815 = vst.msk [vmem:[#allocation3 + $0x90] sm:$0xff] %vm808, %v773
    %816 = vst.msk [vmem:[#allocation3 + $0xa8] sm:$0xff] %vm808, %v775
    %817 = vst.msk [vmem:[#allocation3 + $0xc0] sm:$0xff] %vm808, %v777
    %818 = vst.msk [vmem:[#allocation3 + $0xd8] sm:$0xff] %vm808, %v779
    %819 = vst.msk [vmem:[#allocation3 + $0xf0] sm:$0xff] %vm808, %v781
    %820 = vst.msk [vmem:[#allocation3 + $0x108] sm:$0xff] %vm808, %v783
    %821 = vst.msk [vmem:[#allocation3 + $0x120] sm:$0xff] %vm808, %v785
    %822 = vst.msk [vmem:[#allocation3 + $0x138] sm:$0xff] %vm808, %v787
    %823 = vst.msk [vmem:[#allocation3 + $0x150] sm:$0xff] %vm808, %v789
    %824 = vst.msk [vmem:[#allocation3 + $0x168] sm:$0xff] %vm808, %v791
    %s825 = scalar_lea.vmem [#allocation2], 32
    %v826 = vld [vmem:[%s825] sm:$0xff]
    %v827 = vld [vmem:[%s825 + $0x10] sm:$0xff]
    %v828 = vld [vmem:[%s825 + $0x20] sm:$0xff]
    %v829 = vld [vmem:[%s825 + $0x30] sm:$0xff]
    %v830 = vld [vmem:[%s825 + $0x40] sm:$0xff]
    %v831 = vld [vmem:[%s825 + $0x50] sm:$0xff]
    %v832 = vld [vmem:[%s825 + $0x60] sm:$0xff]
    %v833 = vld [vmem:[%s825 + $0x70] sm:$0xff]
    %v834 = vld [vmem:[%s825 + $0xa0] sm:$0xff]
    %v835 = vld [vmem:[%s825 + $0xb0] sm:$0xff]
    %v836 = vld [vmem:[%s825 + $0xc0] sm:$0xff]
    %v837 = vld [vmem:[%s825 + $0xd0] sm:$0xff]
    %v838 = vld [vmem:[%s825 + $0xe0] sm:$0xff]
    %v839 = vld [vmem:[%s825 + $0xf0] sm:$0xff]
    %v840 = vld [vmem:[%s825 + $0x100] sm:$0xff]
    %v841 = vld [vmem:[%s825 + $0x110] sm:$0xff]
    %858 = vrot.lane.b32.xlu0 %v826, 48
    %v859 = vpop.permute.xlu0 %858
    %860 = vrot.lane.b32.xlu0 %v827, 48
    %v861 = vpop.permute.xlu0 %860
    %862 = vrot.lane.b32.xlu0 %v828, 48
    %v863 = vpop.permute.xlu0 %862
    %864 = vrot.lane.b32.xlu0 %v829, 48
    %v865 = vpop.permute.xlu0 %864
    %866 = vrot.lane.b32.xlu0 %v830, 48
    %v867 = vpop.permute.xlu0 %866
    %868 = vrot.lane.b32.xlu0 %v831, 48
    %v869 = vpop.permute.xlu0 %868
    %870 = vrot.lane.b32.xlu0 %v832, 48
    %v871 = vpop.permute.xlu0 %870
    %872 = vrot.lane.b32.xlu0 %v833, 48
    %v873 = vpop.permute.xlu0 %872
    %874 = vrot.lane.b32.xlu0 %v834, 48
    %v875 = vpop.permute.xlu0 %874
    %876 = vrot.lane.b32.xlu0 %v835, 48
    %v877 = vpop.permute.xlu0 %876
    %878 = vrot.lane.b32.xlu0 %v836, 48
    %v879 = vpop.permute.xlu0 %878
    %880 = vrot.lane.b32.xlu0 %v837, 48
    %v881 = vpop.permute.xlu0 %880
    %882 = vrot.lane.b32.xlu0 %v838, 48
    %v883 = vpop.permute.xlu0 %882
    %884 = vrot.lane.b32.xlu0 %v839, 48
    %v885 = vpop.permute.xlu0 %884
    %886 = vrot.lane.b32.xlu0 %v840, 48
    %v887 = vpop.permute.xlu0 %886
    %888 = vrot.lane.b32.xlu0 %v841, 48
    %v889 = vpop.permute.xlu0 %888
    %vm906 = vcmask 458112
    %907 = vst.msk [vmem:[#allocation3] sm:$0xff] %vm906, %v859
    %908 = vst.msk [vmem:[#allocation3 + $0x18] sm:$0xff] %vm906, %v861
    %909 = vst.msk [vmem:[#allocation3 + $0x30] sm:$0xff] %vm906, %v863
    %910 = vst.msk [vmem:[#allocation3 + $0x48] sm:$0xff] %vm906, %v865
    %911 = vst.msk [vmem:[#allocation3 + $0x60] sm:$0xff] %vm906, %v867
    %912 = vst.msk [vmem:[#allocation3 + $0x78] sm:$0xff] %vm906, %v869
    %913 = vst.msk [vmem:[#allocation3 + $0x90] sm:$0xff] %vm906, %v871
    %914 = vst.msk [vmem:[#allocation3 + $0xa8] sm:$0xff] %vm906, %v873
    %915 = vst.msk [vmem:[#allocation3 + $0xc0] sm:$0xff] %vm906, %v875
    %916 = vst.msk [vmem:[#allocation3 + $0xd8] sm:$0xff] %vm906, %v877
    %917 = vst.msk [vmem:[#allocation3 + $0xf0] sm:$0xff] %vm906, %v879
    %918 = vst.msk [vmem:[#allocation3 + $0x108] sm:$0xff] %vm906, %v881
    %919 = vst.msk [vmem:[#allocation3 + $0x120] sm:$0xff] %vm906, %v883
    %920 = vst.msk [vmem:[#allocation3 + $0x138] sm:$0xff] %vm906, %v885
    %921 = vst.msk [vmem:[#allocation3 + $0x150] sm:$0xff] %vm906, %v887
    %922 = vst.msk [vmem:[#allocation3 + $0x168] sm:$0xff] %vm906, %v889
    %v923 = vld [vmem:[%s825 + $0x1] sm:$0xff]
    %v924 = vld [vmem:[%s825 + $0x11] sm:$0xff]
    %v925 = vld [vmem:[%s825 + $0x21] sm:$0xff]
    %v926 = vld [vmem:[%s825 + $0x31] sm:$0xff]
    %v927 = vld [vmem:[%s825 + $0x41] sm:$0xff]
    %v928 = vld [vmem:[%s825 + $0x51] sm:$0xff]
    %v929 = vld [vmem:[%s825 + $0x61] sm:$0xff]
    %v930 = vld [vmem:[%s825 + $0x71] sm:$0xff]
    %v931 = vld [vmem:[%s825 + $0xa1] sm:$0xff]
    %v932 = vld [vmem:[%s825 + $0xb1] sm:$0xff]
    %v933 = vld [vmem:[%s825 + $0xc1] sm:$0xff]
    %v934 = vld [vmem:[%s825 + $0xd1] sm:$0xff]
    %v935 = vld [vmem:[%s825 + $0xe1] sm:$0xff]
    %v936 = vld [vmem:[%s825 + $0xf1] sm:$0xff]
    %v937 = vld [vmem:[%s825 + $0x101] sm:$0xff]
    %v938 = vld [vmem:[%s825 + $0x111] sm:$0xff]
    %955 = vrot.lane.b32.xlu0 %v923, 56
    %v956 = vpop.permute.xlu0 %955
    %957 = vrot.lane.b32.xlu0 %v924, 56
    %v958 = vpop.permute.xlu0 %957
    %959 = vrot.lane.b32.xlu0 %v925, 56
    %v960 = vpop.permute.xlu0 %959
    %961 = vrot.lane.b32.xlu0 %v926, 56
    %v962 = vpop.permute.xlu0 %961
    %963 = vrot.lane.b32.xlu0 %v927, 56
    %v964 = vpop.permute.xlu0 %963
    %965 = vrot.lane.b32.xlu0 %v928, 56
    %v966 = vpop.permute.xlu0 %965
    %967 = vrot.lane.b32.xlu0 %v929, 56
    %v968 = vpop.permute.xlu0 %967
    %969 = vrot.lane.b32.xlu0 %v930, 56
    %v970 = vpop.permute.xlu0 %969
    %971 = vrot.lane.b32.xlu0 %v931, 56
    %v972 = vpop.permute.xlu0 %971
    %973 = vrot.lane.b32.xlu0 %v932, 56
    %v974 = vpop.permute.xlu0 %973
    %975 = vrot.lane.b32.xlu0 %v933, 56
    %v976 = vpop.permute.xlu0 %975
    %977 = vrot.lane.b32.xlu0 %v934, 56
    %v978 = vpop.permute.xlu0 %977
    %979 = vrot.lane.b32.xlu0 %v935, 56
    %v980 = vpop.permute.xlu0 %979
    %981 = vrot.lane.b32.xlu0 %v936, 56
    %v982 = vpop.permute.xlu0 %981
    %983 = vrot.lane.b32.xlu0 %v937, 56
    %v984 = vpop.permute.xlu0 %983
    %985 = vrot.lane.b32.xlu0 %v938, 56
    %v986 = vpop.permute.xlu0 %985
    %vm1003 = vcmask 523712
    %1004 = vst.msk [vmem:[#allocation3] sm:$0xff] %vm1003, %v956
    %1005 = vst.msk [vmem:[#allocation3 + $0x18] sm:$0xff] %vm1003, %v958
    %1006 = vst.msk [vmem:[#allocation3 + $0x30] sm:$0xff] %vm1003, %v960
    %1007 = vst.msk [vmem:[#allocation3 + $0x48] sm:$0xff] %vm1003, %v962
    %1008 = vst.msk [vmem:[#allocation3 + $0x60] sm:$0xff] %vm1003, %v964
    %1009 = vst.msk [vmem:[#allocation3 + $0x78] sm:$0xff] %vm1003, %v966
    %1010 = vst.msk [vmem:[#allocation3 + $0x90] sm:$0xff] %vm1003, %v968
    %1011 = vst.msk [vmem:[#allocation3 + $0xa8] sm:$0xff] %vm1003, %v970
    %1012 = vst.msk [vmem:[#allocation3 + $0xc0] sm:$0xff] %vm1003, %v972
    %1013 = vst.msk [vmem:[#allocation3 + $0xd8] sm:$0xff] %vm1003, %v974
    %1014 = vst.msk [vmem:[#allocation3 + $0xf0] sm:$0xff] %vm1003, %v976
    %1015 = vst.msk [vmem:[#allocation3 + $0x108] sm:$0xff] %vm1003, %v978
    %1016 = vst.msk [vmem:[#allocation3 + $0x120] sm:$0xff] %vm1003, %v980
    %1017 = vst.msk [vmem:[#allocation3 + $0x138] sm:$0xff] %vm1003, %v982
    %1018 = vst.msk [vmem:[#allocation3 + $0x150] sm:$0xff] %vm1003, %v984
    %1019 = vst.msk [vmem:[#allocation3 + $0x168] sm:$0xff] %vm1003, %v986
    %v1020 = vld [vmem:[%s825 + $0x2] sm:$0xff]
    %v1021 = vld [vmem:[%s825 + $0x12] sm:$0xff]
    %v1022 = vld [vmem:[%s825 + $0x22] sm:$0xff]
    %v1023 = vld [vmem:[%s825 + $0x32] sm:$0xff]
    %v1024 = vld [vmem:[%s825 + $0x42] sm:$0xff]
    %v1025 = vld [vmem:[%s825 + $0x52] sm:$0xff]
    %v1026 = vld [vmem:[%s825 + $0x62] sm:$0xff]
    %v1027 = vld [vmem:[%s825 + $0x72] sm:$0xff]
    %v1028 = vld [vmem:[%s825 + $0xa2] sm:$0xff]
    %v1029 = vld [vmem:[%s825 + $0xb2] sm:$0xff]
    %v1030 = vld [vmem:[%s825 + $0xc2] sm:$0xff]
    %v1031 = vld [vmem:[%s825 + $0xd2] sm:$0xff]
    %v1032 = vld [vmem:[%s825 + $0xe2] sm:$0xff]
    %v1033 = vld [vmem:[%s825 + $0xf2] sm:$0xff]
    %v1034 = vld [vmem:[%s825 + $0x102] sm:$0xff]
    %v1035 = vld [vmem:[%s825 + $0x112] sm:$0xff]
    %1052 = vrot.lane.b32.xlu0 %v1020, 64
    %v1053 = vpop.permute.xlu0 %1052
    %1054 = vrot.lane.b32.xlu0 %v1021, 64
    %v1055 = vpop.permute.xlu0 %1054
    %1056 = vrot.lane.b32.xlu0 %v1022, 64
    %v1057 = vpop.permute.xlu0 %1056
    %1058 = vrot.lane.b32.xlu0 %v1023, 64
    %v1059 = vpop.permute.xlu0 %1058
    %1060 = vrot.lane.b32.xlu0 %v1024, 64
    %v1061 = vpop.permute.xlu0 %1060
    %1062 = vrot.lane.b32.xlu0 %v1025, 64
    %v1063 = vpop.permute.xlu0 %1062
    %1064 = vrot.lane.b32.xlu0 %v1026, 64
    %v1065 = vpop.permute.xlu0 %1064
    %1066 = vrot.lane.b32.xlu0 %v1027, 64
    %v1067 = vpop.permute.xlu0 %1066
    %1068 = vrot.lane.b32.xlu0 %v1028, 64
    %v1069 = vpop.permute.xlu0 %1068
    %1070 = vrot.lane.b32.xlu0 %v1029, 64
    %v1071 = vpop.permute.xlu0 %1070
    %1072 = vrot.lane.b32.xlu0 %v1030, 64
    %v1073 = vpop.permute.xlu0 %1072
    %1074 = vrot.lane.b32.xlu0 %v1031, 64
    %v1075 = vpop.permute.xlu0 %1074
    %1076 = vrot.lane.b32.xlu0 %v1032, 64
    %v1077 = vpop.permute.xlu0 %1076
    %1078 = vrot.lane.b32.xlu0 %v1033, 64
    %v1079 = vpop.permute.xlu0 %1078
    %1080 = vrot.lane.b32.xlu0 %v1034, 64
    %v1081 = vpop.permute.xlu0 %1080
    %1082 = vrot.lane.b32.xlu0 %v1035, 64
    %v1083 = vpop.permute.xlu0 %1082
    %vm1100 = vcmask 589312
    %1101 = vst.msk [vmem:[#allocation3] sm:$0xff] %vm1100, %v1053
    %1102 = vst.msk [vmem:[#allocation3 + $0x18] sm:$0xff] %vm1100, %v1055
    %1103 = vst.msk [vmem:[#allocation3 + $0x30] sm:$0xff] %vm1100, %v1057
    %1104 = vst.msk [vmem:[#allocation3 + $0x48] sm:$0xff] %vm1100, %v1059
    %1105 = vst.msk [vmem:[#allocation3 + $0x60] sm:$0xff] %vm1100, %v1061
    %1106 = vst.msk [vmem:[#allocation3 + $0x78] sm:$0xff] %vm1100, %v1063
    %1107 = vst.msk [vmem:[#allocation3 + $0x90] sm:$0xff] %vm1100, %v1065
    %1108 = vst.msk [vmem:[#allocation3 + $0xa8] sm:$0xff] %vm1100, %v1067
    %1109 = vst.msk [vmem:[#allocation3 + $0xc0] sm:$0xff] %vm1100, %v1069
    %1110 = vst.msk [vmem:[#allocation3 + $0xd8] sm:$0xff] %vm1100, %v1071
    %1111 = vst.msk [vmem:[#allocation3 + $0xf0] sm:$0xff] %vm1100, %v1073
    %1112 = vst.msk [vmem:[#allocation3 + $0x108] sm:$0xff] %vm1100, %v1075
    %1113 = vst.msk [vmem:[#allocation3 + $0x120] sm:$0xff] %vm1100, %v1077
    %1114 = vst.msk [vmem:[#allocation3 + $0x138] sm:$0xff] %vm1100, %v1079
    %1115 = vst.msk [vmem:[#allocation3 + $0x150] sm:$0xff] %vm1100, %v1081
    %1116 = vst.msk [vmem:[#allocation3 + $0x168] sm:$0xff] %vm1100, %v1083
    %v1117 = vld [vmem:[#allocation3] sm:$0xff]
    %v1118 = vld [vmem:[#allocation3 + $0x18] sm:$0xff]
    %v1119 = vld [vmem:[#allocation3 + $0x30] sm:$0xff]
    %v1120 = vld [vmem:[#allocation3 + $0x48] sm:$0xff]
    %v1121 = vld [vmem:[#allocation3 + $0x60] sm:$0xff]
    %v1122 = vld [vmem:[#allocation3 + $0x78] sm:$0xff]
    %v1123 = vld [vmem:[#allocation3 + $0x90] sm:$0xff]
    %v1124 = vld [vmem:[#allocation3 + $0xa8] sm:$0xff]
    %v1125 = vld [vmem:[#allocation3 + $0xc0] sm:$0xff]
    %v1126 = vld [vmem:[#allocation3 + $0xd8] sm:$0xff]
    %v1127 = vld [vmem:[#allocation3 + $0xf0] sm:$0xff]
    %v1128 = vld [vmem:[#allocation3 + $0x108] sm:$0xff]
    %v1129 = vld [vmem:[#allocation3 + $0x120] sm:$0xff]
    %v1130 = vld [vmem:[#allocation3 + $0x138] sm:$0xff]
    %v1131 = vld [vmem:[#allocation3 + $0x150] sm:$0xff]
    %v1132 = vld [vmem:[#allocation3 + $0x168] sm:$0xff]
    %v1133 = vpack.c.bf16 %v1118, %v1117
    %v1134 = vpack.c.bf16 %v1120, %v1119
    %v1135 = vpack.c.bf16 %v1122, %v1121
    %v1136 = vpack.c.bf16 %v1124, %v1123
    %v1137 = vpack.c.bf16 %v1126, %v1125
    %v1138 = vpack.c.bf16 %v1128, %v1127
    %v1139 = vpack.c.bf16 %v1130, %v1129
    %v1140 = vpack.c.bf16 %v1132, %v1131
    %v1141 = vld [vmem:[%s1] sm:$0xf]
    %v1142 = vld [vmem:[%s1 + $0x4] sm:$0xf]
    %v1143 = vld [vmem:[%s1 + $0x8] sm:$0xf]
    %v1144 = vld [vmem:[%s1 + $0xc] sm:$0xf]
    %v1145 = vld [vmem:[%s1 + $0x10] sm:$0xf]
    %v1146 = vld [vmem:[%s1 + $0x14] sm:$0xf]
    %v1147 = vld [vmem:[%s1 + $0x18] sm:$0xf]
    %v1148 = vld [vmem:[%s1 + $0x1c] sm:$0xf]
    %v1149 = vld [vmem:[%s1 + $0x20] sm:$0xf]
    %v1150 = vld [vmem:[#allocation7] sm:$0x1]
    %v1152 = vlaneseq
    %v1153 = vshrl.u32 %v1152, 7
    %v1154 = vsub.s32 0, %v1153
    %v1155 = vrot.slane %v1150, %v1154
    %v1166 = vunpack.c.l.b16 %v1141
    %v1167 = vunpack.c.l.b16 %v1142
    %v1168 = vunpack.c.l.b16 %v1143
    %v1169 = vunpack.c.l.b16 %v1144
    %v1170 = vunpack.c.l.b16 %v1145
    %v1171 = vunpack.c.l.b16 %v1146
    %v1172 = vunpack.c.l.b16 %v1147
    %v1173 = vunpack.c.l.b16 %v1148
    %v1174 = vunpack.c.l.b16 %v1149
    %v1175 = vpack.c.b16 %v1167, %v1166
    %v1176 = vpack.c.b16 %v1169, %v1168
    %v1177 = vpack.c.b16 %v1171, %v1170
    %v1178 = vpack.c.b16 %v1173, %v1172
    %v1179 = vpack.c.b16 %v1174, %v1174
    %vm1184 = vcmask 588800
    %v1186 = vsel %vm1184, %v1133, 0
    %v1189 = vsel %vm1184, %v1134, 0
    %v1192 = vsel %vm1184, %v1135, 0
    %v1195 = vsel %vm1184, %v1136, 0
    %v1198 = vsel %vm1184, %v1137, 0
    %v1201 = vsel %vm1184, %v1138, 0
    %v1204 = vsel %vm1184, %v1139, 0
    %v1207 = vsel %vm1184, %v1140, 0
    %vm1209 = vcmask 1043456
    %v1211 = vsel %vm1209, %v1179, 0
    %1213 = vmatprep.subr.bf16.mxu0 0
    %1214 = vmatpush1.bf16.msra.mxu0 %v1175
    %1215 = vmatprep.subr.bf16.mxu0 0
    %1216 = vmatpush1.bf16.msra.mxu0 %v1176
    %1217 = vmatprep.subr.bf16.mxu0 0
    %1218 = vmatpush1.bf16.msra.mxu0 %v1177
    %1219 = vmatprep.subr.bf16.mxu0 0
    %1220 = vmatpush1.bf16.msra.mxu0 %v1178
    %1221 = vmatprep.subr.bf16.mxu0 0
    %1222 = vmatpush1.bf16.msra.mxu0 %v1211
    %1223 = vmatprep.subr.bf16.mxu0 0
    %1224 = vmatpush1.bf16.msra.mxu0 0
    %1225 = vmatprep.subr.bf16.mxu0 0
    %1226 = vmatpush1.bf16.msra.mxu0 0
    %1227 = vmatprep.subr.bf16.mxu0 0
    %1228 = vmatpush1.bf16.msra.mxu0 0
    %1229 = vmatprep.subr.bf16.mxu0 0
    %1230 = vmatpush1.bf16.msra.mxu0 0
    %1231 = vmatprep.subr.bf16.mxu0 0
    %1232 = vmatpush1.bf16.msra.mxu0 0
    %1233 = vmatprep.subr.bf16.mxu0 0
    %1234 = vmatpush1.bf16.msra.mxu0 0
    %1235 = vmatprep.subr.bf16.mxu0 0
    %1236 = vmatpush1.bf16.msra.mxu0 0
    %1237 = vmatprep.subr.bf16.mxu0 0
    %1238 = vmatpush1.bf16.msra.mxu0 0
    %1239 = vmatprep.subr.bf16.mxu0 0
    %1240 = vmatpush1.bf16.msra.mxu0 0
    %1241 = vmatprep.subr.bf16.mxu0 0
    %1242 = vmatpush1.bf16.msra.mxu0 0
    %1243 = vmatprep.subr.bf16.mxu0 0
    %1244 = vmatpush1.bf16.msra.mxu0 0
    %1245 = vmatprep.mubr.bf16.mxu0 0
    %1246 = vmatmul.mubr.bf16.gmra.mrb[0].mxu0 %v1186
    %v1247 = vpop.f32.mrb[0].mxu0
    %v1248 = vadd.f32 %v1155, %v1247
    %v1249 = vpop.f32.mrb[0].mxu0
    %v1250 = vpop.f32.mrb[0].mxu0
    %v1251 = vadd.f32 %v1155, %v1250
    %v1252 = vpop.f32.mrb[0].mxu0
    %1253 = vmatprep.mubr.bf16.mxu0 0
    %1254 = vmatmul.mubr.bf16.gmra.mrb[0].mxu0 %v1189
    %v1255 = vpop.f32.mrb[0].mxu0
    %v1256 = vadd.f32 %v1155, %v1255
    %v1257 = vpop.f32.mrb[0].mxu0
    %v1258 = vpop.f32.mrb[0].mxu0
    %v1259 = vadd.f32 %v1155, %v1258
    %v1260 = vpop.f32.mrb[0].mxu0
    %1261 = vmatprep.mubr.bf16.mxu0 0
    %1262 = vmatmul.mubr.bf16.gmra.mrb[0].mxu0 %v1192
    %v1263 = vpop.f32.mrb[0].mxu0
    %v1264 = vadd.f32 %v1155, %v1263
    %v1265 = vpop.f32.mrb[0].mxu0
    %v1266 = vpop.f32.mrb[0].mxu0
    %v1267 = vadd.f32 %v1155, %v1266
    %v1268 = vpop.f32.mrb[0].mxu0
    %1269 = vmatprep.mubr.bf16.mxu0 0
    %1270 = vmatmul.mubr.bf16.gmra.mrb[0].mxu0 %v1195
    %v1271 = vpop.f32.mrb[0].mxu0
    %v1272 = vadd.f32 %v1155, %v1271
    %v1273 = vpop.f32.mrb[0].mxu0
    %v1274 = vpop.f32.mrb[0].mxu0
    %v1275 = vadd.f32 %v1155, %v1274
    %v1276 = vpop.f32.mrb[0].mxu0
    %1277 = vmatprep.mubr.bf16.mxu0 0
    %1278 = vmatmul.mubr.bf16.gmra.mrb[0].mxu0 %v1198
    %v1279 = vpop.f32.mrb[0].mxu0
    %v1280 = vadd.f32 %v1155, %v1279
    %v1281 = vpop.f32.mrb[0].mxu0
    %v1282 = vpop.f32.mrb[0].mxu0
    %v1283 = vadd.f32 %v1155, %v1282
    %v1284 = vpop.f32.mrb[0].mxu0
    %1285 = vmatprep.mubr.bf16.mxu0 0
    %1286 = vmatmul.mubr.bf16.gmra.mrb[0].mxu0 %v1201
    %v1287 = vpop.f32.mrb[0].mxu0
    %v1288 = vadd.f32 %v1155, %v1287
    %v1289 = vpop.f32.mrb[0].mxu0
    %v1290 = vpop.f32.mrb[0].mxu0
    %v1291 = vadd.f32 %v1155, %v1290
    %v1292 = vpop.f32.mrb[0].mxu0
    %1293 = vmatprep.mubr.bf16.mxu0 0
    %1294 = vmatmul.mubr.bf16.gmra.mrb[0].mxu0 %v1204
    %v1295 = vpop.f32.mrb[0].mxu0
    %v1296 = vadd.f32 %v1155, %v1295
    %v1297 = vpop.f32.mrb[0].mxu0
    %v1298 = vpop.f32.mrb[0].mxu0
    %v1299 = vadd.f32 %v1155, %v1298
    %v1300 = vpop.f32.mrb[0].mxu0
    %1301 = vmatprep.mubr.bf16.mxu0 0
    %1302 = vmatmul.mubr.bf16.gmra.mrb[0].mxu0 %v1207
    %v1303 = vpop.f32.mrb[0].mxu0
    %v1304 = vadd.f32 %v1155, %v1303
    %v1305 = vpop.f32.mrb[0].mxu0
    %v1306 = vpop.f32.mrb[0].mxu0
    %v1307 = vadd.f32 %v1155, %v1306
    %v1308 = vpop.f32.mrb[0].mxu0
    %1309 = vdwg.mxu0
    %v1310 = vmax.f32 %v1248, 0.0
    %v1311 = vmax.f32 %v1251, 0.0
    %v1312 = vmax.f32 %v1256, 0.0
    %v1313 = vmax.f32 %v1259, 0.0
    %v1314 = vmax.f32 %v1264, 0.0
    %v1315 = vmax.f32 %v1267, 0.0
    %v1316 = vmax.f32 %v1272, 0.0
    %v1317 = vmax.f32 %v1275, 0.0
    %v1318 = vmax.f32 %v1280, 0.0
    %v1319 = vmax.f32 %v1283, 0.0
    %v1320 = vmax.f32 %v1288, 0.0
    %v1321 = vmax.f32 %v1291, 0.0
    %v1322 = vmax.f32 %v1296, 0.0
    %v1323 = vmax.f32 %v1299, 0.0
    %v1324 = vmax.f32 %v1304, 0.0
    %v1325 = vmax.f32 %v1307, 0.0
    %v1326 = vpack.c.bf16 %v1311, %v1310
    %v1327 = vpack.c.bf16 %v1313, %v1312
    %v1328 = vpack.c.bf16 %v1315, %v1314
    %v1329 = vpack.c.bf16 %v1317, %v1316
    %v1330 = vpack.c.bf16 %v1319, %v1318
    %v1331 = vpack.c.bf16 %v1321, %v1320
    %v1332 = vpack.c.bf16 %v1323, %v1322
    %v1333 = vpack.c.bf16 %v1325, %v1324
    %v1334 = vld [vmem:[#allocation10] sm:$0xf]
    %v1335 = vld [vmem:[#allocation10 + $0x4] sm:$0xf]
    %v1336 = vld [vmem:[#allocation10 + $0x8] sm:$0xf]
    %v1337 = vld [vmem:[#allocation10 + $0xc] sm:$0xf]
    %v1338 = vld [vmem:[#allocation12] sm:$0x1]
    %v1340 = vlaneseq
    %v1341 = vshrl.u32 %v1340, 7
    %v1342 = vsub.s32 0, %v1341
    %v1343 = vrot.slane %v1338, %v1342
    %v1349 = vunpack.c.l.b16 %v1334
    %v1350 = vunpack.c.l.b16 %v1335
    %v1351 = vunpack.c.l.b16 %v1336
    %v1352 = vunpack.c.l.b16 %v1337
    %v1353 = vpack.c.b16 %v1350, %v1349
    %v1354 = vpack.c.b16 %v1352, %v1351
    %v1358 = vsel %vm222, %v1326, 0
    %v1361 = vsel %vm222, %v1327, 0
    %v1364 = vsel %vm222, %v1328, 0
    %v1367 = vsel %vm222, %v1329, 0
    %v1370 = vsel %vm222, %v1330, 0
    %v1373 = vsel %vm222, %v1331, 0
    %v1376 = vsel %vm222, %v1332, 0
    %v1379 = vsel %vm222, %v1333, 0
    %1381 = vmatprep.subr.bf16.mxu0 0
    %1382 = vmatpush1.bf16.msra.mxu0 %v1353
    %1383 = vmatprep.subr.bf16.mxu0 0
    %1384 = vmatpush1.bf16.msra.mxu0 %v1354
    %1385 = vmatprep.subr.bf16.mxu0 0
    %1386 = vmatpush1.bf16.msra.mxu0 0
    %1387 = vmatprep.subr.bf16.mxu0 0
    %1388 = vmatpush1.bf16.msra.mxu0 0
    %1389 = vmatprep.subr.bf16.mxu0 0
    %1390 = vmatpush1.bf16.msra.mxu0 0
    %1391 = vmatprep.subr.bf16.mxu0 0
    %1392 = vmatpush1.bf16.msra.mxu0 0
    %1393 = vmatprep.subr.bf16.mxu0 0
    %1394 = vmatpush1.bf16.msra.mxu0 0
    %1395 = vmatprep.subr.bf16.mxu0 0
    %1396 = vmatpush1.bf16.msra.mxu0 0
    %1397 = vmatprep.subr.bf16.mxu0 0
    %1398 = vmatpush1.bf16.msra.mxu0 0
    %1399 = vmatprep.subr.bf16.mxu0 0
    %1400 = vmatpush1.bf16.msra.mxu0 0
    %1401 = vmatprep.subr.bf16.mxu0 0
    %1402 = vmatpush1.bf16.msra.mxu0 0
    %1403 = vmatprep.subr.bf16.mxu0 0
    %1404 = vmatpush1.bf16.msra.mxu0 0
    %1405 = vmatprep.subr.bf16.mxu0 0
    %1406 = vmatpush1.bf16.msra.mxu0 0
    %1407 = vmatprep.subr.bf16.mxu0 0
    %1408 = vmatpush1.bf16.msra.mxu0 0
    %1409 = vmatprep.subr.bf16.mxu0 0
    %1410 = vmatpush1.bf16.msra.mxu0 0
    %1411 = vmatprep.subr.bf16.mxu0 0
    %1412 = vmatpush1.bf16.msra.mxu0 0
    %1413 = vmatprep.mubr.bf16.mxu0 0
    %1414 = vmatmul.mubr.bf16.gmra.mrb[0].mxu0 %v1358
    %v1415 = vpop.f32.mrb[0].mxu0
    %v1416 = vadd.f32 %v1343, %v1415
    %v1417 = vpop.f32.mrb[0].mxu0
    %v1418 = vpop.f32.mrb[0].mxu0
    %v1419 = vadd.f32 %v1343, %v1418
    %v1420 = vpop.f32.mrb[0].mxu0
    %1421 = vmatprep.mubr.bf16.mxu0 0
    %1422 = vmatmul.mubr.bf16.gmra.mrb[0].mxu0 %v1361
    %v1423 = vpop.f32.mrb[0].mxu0
    %v1424 = vadd.f32 %v1343, %v1423
    %v1425 = vpop.f32.mrb[0].mxu0
    %v1426 = vpop.f32.mrb[0].mxu0
    %v1427 = vadd.f32 %v1343, %v1426
    %v1428 = vpop.f32.mrb[0].mxu0
    %1429 = vmatprep.mubr.bf16.mxu0 0
    %1430 = vmatmul.mubr.bf16.gmra.mrb[0].mxu0 %v1364
    %v1431 = vpop.f32.mrb[0].mxu0
    %v1432 = vadd.f32 %v1343, %v1431
    %v1433 = vpop.f32.mrb[0].mxu0
    %v1434 = vpop.f32.mrb[0].mxu0
    %v1435 = vadd.f32 %v1343, %v1434
    %v1436 = vpop.f32.mrb[0].mxu0
    %1437 = vmatprep.mubr.bf16.mxu0 0
    %1438 = vmatmul.mubr.bf16.gmra.mrb[0].mxu0 %v1367
    %v1439 = vpop.f32.mrb[0].mxu0
    %v1440 = vadd.f32 %v1343, %v1439
    %v1441 = vpop.f32.mrb[0].mxu0
    %v1442 = vpop.f32.mrb[0].mxu0
    %v1443 = vadd.f32 %v1343, %v1442
    %v1444 = vpop.f32.mrb[0].mxu0
    %1445 = vmatprep.mubr.bf16.mxu0 0
    %1446 = vmatmul.mubr.bf16.gmra.mrb[0].mxu0 %v1370
    %v1447 = vpop.f32.mrb[0].mxu0
    %v1448 = vadd.f32 %v1343, %v1447
    %v1449 = vpop.f32.mrb[0].mxu0
    %v1450 = vpop.f32.mrb[0].mxu0
    %v1451 = vadd.f32 %v1343, %v1450
    %v1452 = vpop.f32.mrb[0].mxu0
    %1453 = vmatprep.mubr.bf16.mxu0 0
    %1454 = vmatmul.mubr.bf16.gmra.mrb[0].mxu0 %v1373
    %v1455 = vpop.f32.mrb[0].mxu0
    %v1456 = vadd.f32 %v1343, %v1455
    %v1457 = vpop.f32.mrb[0].mxu0
    %v1458 = vpop.f32.mrb[0].mxu0
    %v1459 = vadd.f32 %v1343, %v1458
    %v1460 = vpop.f32.mrb[0].mxu0
    %1461 = vmatprep.mubr.bf16.mxu0 0
    %1462 = vmatmul.mubr.bf16.gmra.mrb[0].mxu0 %v1376
    %v1463 = vpop.f32.mrb[0].mxu0
    %v1464 = vadd.f32 %v1343, %v1463
    %v1465 = vpop.f32.mrb[0].mxu0
    %v1466 = vpop.f32.mrb[0].mxu0
    %v1467 = vadd.f32 %v1343, %v1466
    %v1468 = vpop.f32.mrb[0].mxu0
    %1469 = vmatprep.mubr.bf16.mxu0 0
    %1470 = vmatmul.mubr.bf16.gmra.mrb[0].mxu0 %v1379
    %v1471 = vpop.f32.mrb[0].mxu0
    %v1472 = vadd.f32 %v1343, %v1471
    %v1473 = vpop.f32.mrb[0].mxu0
    %v1474 = vpop.f32.mrb[0].mxu0
    %v1475 = vadd.f32 %v1343, %v1474
    %v1476 = vpop.f32.mrb[0].mxu0
    %1477 = vdwg.mxu0
    %v1478 = vmax.f32 %v1416, 0.0
    %v1479 = vmax.f32 %v1419, 0.0
    %v1480 = vmax.f32 %v1424, 0.0
    %v1481 = vmax.f32 %v1427, 0.0
    %v1482 = vmax.f32 %v1432, 0.0
    %v1483 = vmax.f32 %v1435, 0.0
    %v1484 = vmax.f32 %v1440, 0.0
    %v1485 = vmax.f32 %v1443, 0.0
    %v1486 = vmax.f32 %v1448, 0.0
    %v1487 = vmax.f32 %v1451, 0.0
    %v1488 = vmax.f32 %v1456, 0.0
    %v1489 = vmax.f32 %v1459, 0.0
    %v1490 = vmax.f32 %v1464, 0.0
    %v1491 = vmax.f32 %v1467, 0.0
    %v1492 = vmax.f32 %v1472, 0.0
    %v1493 = vmax.f32 %v1475, 0.0
    %vm1494 = vcmask 130048
    %1495 = vst.msk [vmem:[%s290 + $0x1] sm:$0xff] %vm1494, %v1478
    %1496 = vst.msk [vmem:[%s290 + $0x11] sm:$0xff] %vm1494, %v1479
    %1497 = vst.msk [vmem:[%s290 + $0x21] sm:$0xff] %vm1494, %v1480
    %1498 = vst.msk [vmem:[%s290 + $0x31] sm:$0xff] %vm1494, %v1481
    %1499 = vst.msk [vmem:[%s290 + $0x41] sm:$0xff] %vm1494, %v1482
    %1500 = vst.msk [vmem:[%s290 + $0x51] sm:$0xff] %vm1494, %v1483
    %1501 = vst.msk [vmem:[%s290 + $0x61] sm:$0xff] %vm1494, %v1484
    %1502 = vst.msk [vmem:[%s290 + $0x71] sm:$0xff] %vm1494, %v1485
    %1503 = vst.msk [vmem:[%s290 + $0xa1] sm:$0xff] %vm1494, %v1486
    %1504 = vst.msk [vmem:[%s290 + $0xb1] sm:$0xff] %vm1494, %v1487
    %1505 = vst.msk [vmem:[%s290 + $0xc1] sm:$0xff] %vm1494, %v1488
    %1506 = vst.msk [vmem:[%s290 + $0xd1] sm:$0xff] %vm1494, %v1489
    %1507 = vst.msk [vmem:[%s290 + $0xe1] sm:$0xff] %vm1494, %v1490
    %1508 = vst.msk [vmem:[%s290 + $0xf1] sm:$0xff] %vm1494, %v1491
    %1509 = vst.msk [vmem:[%s290 + $0x101] sm:$0xff] %vm1494, %v1492
    %1510 = vst.msk [vmem:[%s290 + $0x111] sm:$0xff] %vm1494, %v1493
    %v1511 = vld [vmem:[#allocation13] sm:$0xff]
    %v1512 = vld [vmem:[#allocation13 + $0x8] sm:$0x1]
    %v1513 = vld [vmem:[#allocation2] sm:$0xff]
    %v1514 = vld [vmem:[#allocation2 + $0x10] sm:$0xff]
    %v1515 = vld [vmem:[#allocation2 + $0x20] sm:$0xff]
    %v1516 = vld [vmem:[#allocation2 + $0x30] sm:$0xff]
    %v1517 = vld [vmem:[#allocation2 + $0x40] sm:$0xff]
    %v1518 = vld [vmem:[#allocation2 + $0x50] sm:$0xff]
    %v1519 = vld [vmem:[#allocation2 + $0x60] sm:$0xff]
    %v1520 = vld [vmem:[#allocation2 + $0x70] sm:$0xff]
    %v1521 = vld [vmem:[#allocation2 + $0xa0] sm:$0xff]
    %v1522 = vld [vmem:[#allocation2 + $0xb0] sm:$0xff]
    %v1523 = vld [vmem:[#allocation2 + $0xc0] sm:$0xff]
    %v1524 = vld [vmem:[#allocation2 + $0xd0] sm:$0xff]
    %v1525 = vld [vmem:[#allocation2 + $0xe0] sm:$0xff]
    %v1526 = vld [vmem:[#allocation2 + $0xf0] sm:$0xff]
    %v1527 = vld [vmem:[#allocation2 + $0x100] sm:$0xff]
    %v1528 = vld [vmem:[#allocation2 + $0x110] sm:$0xff]
    %v1529 = vlaneseq
    %v1530 = vshrl.u32 %v1529, 7
    %v1531 = vsub.s32 0, %v1530
    %v1532 = vrot.slane %v1511, %v1531
    %v1533 = vmul.f32 %v1513, %v1532
    %v1534 = vmul.f32 %v1514, %v1532
    %v1535 = vmul.f32 %v1515, %v1532
    %v1536 = vmul.f32 %v1516, %v1532
    %v1537 = vmul.f32 %v1517, %v1532
    %v1538 = vmul.f32 %v1518, %v1532
    %v1539 = vmul.f32 %v1519, %v1532
    %v1540 = vmul.f32 %v1520, %v1532
    %v1541 = vmul.f32 %v1521, %v1532
    %v1542 = vmul.f32 %v1522, %v1532
    %v1543 = vmul.f32 %v1523, %v1532
    %v1544 = vmul.f32 %v1524, %v1532
    %v1545 = vmul.f32 %v1525, %v1532
    %v1546 = vmul.f32 %v1526, %v1532
    %v1547 = vmul.f32 %v1527, %v1532
    %v1548 = vmul.f32 %v1528, %v1532
    %v1549 = vadd.f32 %v1533, 0.0
    %v1550 = vadd.f32 %v1534, 0.0
    %v1551 = vadd.f32 %v1535, 0.0
    %v1552 = vadd.f32 %v1536, 0.0
    %v1553 = vadd.f32 %v1537, 0.0
    %v1554 = vadd.f32 %v1538, 0.0
    %v1555 = vadd.f32 %v1539, 0.0
    %v1556 = vadd.f32 %v1540, 0.0
    %v1557 = vadd.f32 %v1541, 0.0
    %v1558 = vadd.f32 %v1542, 0.0
    %v1559 = vadd.f32 %v1543, 0.0
    %v1560 = vadd.f32 %v1544, 0.0
    %v1561 = vadd.f32 %v1545, 0.0
    %v1562 = vadd.f32 %v1546, 0.0
    %v1563 = vadd.f32 %v1547, 0.0
    %v1564 = vadd.f32 %v1548, 0.0
    %v1565 = vld [vmem:[#allocation2 + $0x1] sm:$0xff]
    %v1566 = vld [vmem:[#allocation2 + $0x11] sm:$0xff]
    %v1567 = vld [vmem:[#allocation2 + $0x21] sm:$0xff]
    %v1568 = vld [vmem:[#allocation2 + $0x31] sm:$0xff]
    %v1569 = vld [vmem:[#allocation2 + $0x41] sm:$0xff]
    %v1570 = vld [vmem:[#allocation2 + $0x51] sm:$0xff]
    %v1571 = vld [vmem:[#allocation2 + $0x61] sm:$0xff]
    %v1572 = vld [vmem:[#allocation2 + $0x71] sm:$0xff]
    %v1573 = vld [vmem:[#allocation2 + $0xa1] sm:$0xff]
    %v1574 = vld [vmem:[#allocation2 + $0xb1] sm:$0xff]
    %v1575 = vld [vmem:[#allocation2 + $0xc1] sm:$0xff]
    %v1576 = vld [vmem:[#allocation2 + $0xd1] sm:$0xff]
    %v1577 = vld [vmem:[#allocation2 + $0xe1] sm:$0xff]
    %v1578 = vld [vmem:[#allocation2 + $0xf1] sm:$0xff]
    %v1579 = vld [vmem:[#allocation2 + $0x101] sm:$0xff]
    %v1580 = vld [vmem:[#allocation2 + $0x111] sm:$0xff]
    %v1581 = vlaneseq
    %v1582 = vshrl.u32 %v1581, 7
    %v1583 = vsub.s32 1, %v1582
    %v1584 = vrot.slane %v1511, %v1583
    %v1585 = vmul.f32 %v1565, %v1584
    %v1586 = vmul.f32 %v1566, %v1584
    %v1587 = vmul.f32 %v1567, %v1584
    %v1588 = vmul.f32 %v1568, %v1584
    %v1589 = vmul.f32 %v1569, %v1584
    %v1590 = vmul.f32 %v1570, %v1584
    %v1591 = vmul.f32 %v1571, %v1584
    %v1592 = vmul.f32 %v1572, %v1584
    %v1593 = vmul.f32 %v1573, %v1584
    %v1594 = vmul.f32 %v1574, %v1584
    %v1595 = vmul.f32 %v1575, %v1584
    %v1596 = vmul.f32 %v1576, %v1584
    %v1597 = vmul.f32 %v1577, %v1584
    %v1598 = vmul.f32 %v1578, %v1584
    %v1599 = vmul.f32 %v1579, %v1584
    %v1600 = vmul.f32 %v1580, %v1584
    %v1601 = vadd.f32 %v1549, %v1585
    %v1602 = vadd.f32 %v1550, %v1586
    %v1603 = vadd.f32 %v1551, %v1587
    %v1604 = vadd.f32 %v1552, %v1588
    %v1605 = vadd.f32 %v1553, %v1589
    %v1606 = vadd.f32 %v1554, %v1590
    %v1607 = vadd.f32 %v1555, %v1591
    %v1608 = vadd.f32 %v1556, %v1592
    %v1609 = vadd.f32 %v1557, %v1593
    %v1610 = vadd.f32 %v1558, %v1594
    %v1611 = vadd.f32 %v1559, %v1595
    %v1612 = vadd.f32 %v1560, %v1596
    %v1613 = vadd.f32 %v1561, %v1597
    %v1614 = vadd.f32 %v1562, %v1598
    %v1615 = vadd.f32 %v1563, %v1599
    %v1616 = vadd.f32 %v1564, %v1600
    %v1617 = vld [vmem:[#allocation2 + $0x2] sm:$0xff]
    %v1618 = vld [vmem:[#allocation2 + $0x12] sm:$0xff]
    %v1619 = vld [vmem:[#allocation2 + $0x22] sm:$0xff]
    %v1620 = vld [vmem:[#allocation2 + $0x32] sm:$0xff]
    %v1621 = vld [vmem:[#allocation2 + $0x42] sm:$0xff]
    %v1622 = vld [vmem:[#allocation2 + $0x52] sm:$0xff]
    %v1623 = vld [vmem:[#allocation2 + $0x62] sm:$0xff]
    %v1624 = vld [vmem:[#allocation2 + $0x72] sm:$0xff]
    %v1625 = vld [vmem:[#allocation2 + $0xa2] sm:$0xff]
    %v1626 = vld [vmem:[#allocation2 + $0xb2] sm:$0xff]
    %v1627 = vld [vmem:[#allocation2 + $0xc2] sm:$0xff]
    %v1628 = vld [vmem:[#allocation2 + $0xd2] sm:$0xff]
    %v1629 = vld [vmem:[#allocation2 + $0xe2] sm:$0xff]
    %v1630 = vld [vmem:[#allocation2 + $0xf2] sm:$0xff]
    %v1631 = vld [vmem:[#allocation2 + $0x102] sm:$0xff]
    %v1632 = vld [vmem:[#allocation2 + $0x112] sm:$0xff]
    %v1633 = vlaneseq
    %v1634 = vshrl.u32 %v1633, 7
    %v1635 = vsub.s32 2, %v1634
    %v1636 = vrot.slane %v1511, %v1635
    %v1637 = vmul.f32 %v1617, %v1636
    %v1638 = vmul.f32 %v1618, %v1636
    %v1639 = vmul.f32 %v1619, %v1636
    %v1640 = vmul.f32 %v1620, %v1636
    %v1641 = vmul.f32 %v1621, %v1636
    %v1642 = vmul.f32 %v1622, %v1636
    %v1643 = vmul.f32 %v1623, %v1636
    %v1644 = vmul.f32 %v1624, %v1636
    %v1645 = vmul.f32 %v1625, %v1636
    %v1646 = vmul.f32 %v1626, %v1636
    %v1647 = vmul.f32 %v1627, %v1636
    %v1648 = vmul.f32 %v1628, %v1636
    %v1649 = vmul.f32 %v1629, %v1636
    %v1650 = vmul.f32 %v1630, %v1636
    %v1651 = vmul.f32 %v1631, %v1636
    %v1652 = vmul.f32 %v1632, %v1636
    %v1653 = vadd.f32 %v1601, %v1637
    %v1654 = vadd.f32 %v1602, %v1638
    %v1655 = vadd.f32 %v1603, %v1639
    %v1656 = vadd.f32 %v1604, %v1640
    %v1657 = vadd.f32 %v1605, %v1641
    %v1658 = vadd.f32 %v1606, %v1642
    %v1659 = vadd.f32 %v1607, %v1643
    %v1660 = vadd.f32 %v1608, %v1644
    %v1661 = vadd.f32 %v1609, %v1645
    %v1662 = vadd.f32 %v1610, %v1646
    %v1663 = vadd.f32 %v1611, %v1647
    %v1664 = vadd.f32 %v1612, %v1648
    %v1665 = vadd.f32 %v1613, %v1649
    %v1666 = vadd.f32 %v1614, %v1650
    %v1667 = vadd.f32 %v1615, %v1651
    %v1668 = vadd.f32 %v1616, %v1652
    %v1669 = vld [vmem:[%s290] sm:$0xff]
    %v1670 = vld [vmem:[%s290 + $0x10] sm:$0xff]
    %v1671 = vld [vmem:[%s290 + $0x20] sm:$0xff]
    %v1672 = vld [vmem:[%s290 + $0x30] sm:$0xff]
    %v1673 = vld [vmem:[%s290 + $0x40] sm:$0xff]
    %v1674 = vld [vmem:[%s290 + $0x50] sm:$0xff]
    %v1675 = vld [vmem:[%s290 + $0x60] sm:$0xff]
    %v1676 = vld [vmem:[%s290 + $0x70] sm:$0xff]
    %v1677 = vld [vmem:[%s290 + $0xa0] sm:$0xff]
    %v1678 = vld [vmem:[%s290 + $0xb0] sm:$0xff]
    %v1679 = vld [vmem:[%s290 + $0xc0] sm:$0xff]
    %v1680 = vld [vmem:[%s290 + $0xd0] sm:$0xff]
    %v1681 = vld [vmem:[%s290 + $0xe0] sm:$0xff]
    %v1682 = vld [vmem:[%s290 + $0xf0] sm:$0xff]
    %v1683 = vld [vmem:[%s290 + $0x100] sm:$0xff]
    %v1684 = vld [vmem:[%s290 + $0x110] sm:$0xff]
    %v1685 = vlaneseq
    %v1686 = vshrl.u32 %v1685, 7
    %v1687 = vsub.s32 3, %v1686
    %v1688 = vrot.slane %v1511, %v1687
    %v1689 = vmul.f32 %v1669, %v1688
    %v1690 = vmul.f32 %v1670, %v1688
    %v1691 = vmul.f32 %v1671, %v1688
    %v1692 = vmul.f32 %v1672, %v1688
    %v1693 = vmul.f32 %v1673, %v1688
    %v1694 = vmul.f32 %v1674, %v1688
    %v1695 = vmul.f32 %v1675, %v1688
    %v1696 = vmul.f32 %v1676, %v1688
    %v1697 = vmul.f32 %v1677, %v1688
    %v1698 = vmul.f32 %v1678, %v1688
    %v1699 = vmul.f32 %v1679, %v1688
    %v1700 = vmul.f32 %v1680, %v1688
    %v1701 = vmul.f32 %v1681, %v1688
    %v1702 = vmul.f32 %v1682, %v1688
    %v1703 = vmul.f32 %v1683, %v1688
    %v1704 = vmul.f32 %v1684, %v1688
    %v1705 = vadd.f32 %v1653, %v1689
    %v1706 = vadd.f32 %v1654, %v1690
    %v1707 = vadd.f32 %v1655, %v1691
    %v1708 = vadd.f32 %v1656, %v1692
    %v1709 = vadd.f32 %v1657, %v1693
    %v1710 = vadd.f32 %v1658, %v1694
    %v1711 = vadd.f32 %v1659, %v1695
    %v1712 = vadd.f32 %v1660, %v1696
    %v1713 = vadd.f32 %v1661, %v1697
    %v1714 = vadd.f32 %v1662, %v1698
    %v1715 = vadd.f32 %v1663, %v1699
    %v1716 = vadd.f32 %v1664, %v1700
    %v1717 = vadd.f32 %v1665, %v1701
    %v1718 = vadd.f32 %v1666, %v1702
    %v1719 = vadd.f32 %v1667, %v1703
    %v1720 = vadd.f32 %v1668, %v1704
    %v1721 = vld [vmem:[%s290 + $0x1] sm:$0xff]
    %v1722 = vld [vmem:[%s290 + $0x11] sm:$0xff]
    %v1723 = vld [vmem:[%s290 + $0x21] sm:$0xff]
    %v1724 = vld [vmem:[%s290 + $0x31] sm:$0xff]
    %v1725 = vld [vmem:[%s290 + $0x41] sm:$0xff]
    %v1726 = vld [vmem:[%s290 + $0x51] sm:$0xff]
    %v1727 = vld [vmem:[%s290 + $0x61] sm:$0xff]
    %v1728 = vld [vmem:[%s290 + $0x71] sm:$0xff]
    %v1729 = vld [vmem:[%s290 + $0xa1] sm:$0xff]
    %v1730 = vld [vmem:[%s290 + $0xb1] sm:$0xff]
    %v1731 = vld [vmem:[%s290 + $0xc1] sm:$0xff]
    %v1732 = vld [vmem:[%s290 + $0xd1] sm:$0xff]
    %v1733 = vld [vmem:[%s290 + $0xe1] sm:$0xff]
    %v1734 = vld [vmem:[%s290 + $0xf1] sm:$0xff]
    %v1735 = vld [vmem:[%s290 + $0x101] sm:$0xff]
    %v1736 = vld [vmem:[%s290 + $0x111] sm:$0xff]
    %v1737 = vlaneseq
    %v1738 = vshrl.u32 %v1737, 7
    %v1739 = vsub.s32 4, %v1738
    %v1740 = vrot.slane %v1511, %v1739
    %v1741 = vmul.f32 %v1721, %v1740
    %v1742 = vmul.f32 %v1722, %v1740
    %v1743 = vmul.f32 %v1723, %v1740
    %v1744 = vmul.f32 %v1724, %v1740
    %v1745 = vmul.f32 %v1725, %v1740
    %v1746 = vmul.f32 %v1726, %v1740
    %v1747 = vmul.f32 %v1727, %v1740
    %v1748 = vmul.f32 %v1728, %v1740
    %v1749 = vmul.f32 %v1729, %v1740
    %v1750 = vmul.f32 %v1730, %v1740
    %v1751 = vmul.f32 %v1731, %v1740
    %v1752 = vmul.f32 %v1732, %v1740
    %v1753 = vmul.f32 %v1733, %v1740
    %v1754 = vmul.f32 %v1734, %v1740
    %v1755 = vmul.f32 %v1735, %v1740
    %v1756 = vmul.f32 %v1736, %v1740
    %v1757 = vadd.f32 %v1705, %v1741
    %v1758 = vadd.f32 %v1706, %v1742
    %v1759 = vadd.f32 %v1707, %v1743
    %v1760 = vadd.f32 %v1708, %v1744
    %v1761 = vadd.f32 %v1709, %v1745
    %v1762 = vadd.f32 %v1710, %v1746
    %v1763 = vadd.f32 %v1711, %v1747
    %v1764 = vadd.f32 %v1712, %v1748
    %v1765 = vadd.f32 %v1713, %v1749
    %v1766 = vadd.f32 %v1714, %v1750
    %v1767 = vadd.f32 %v1715, %v1751
    %v1768 = vadd.f32 %v1716, %v1752
    %v1769 = vadd.f32 %v1717, %v1753
    %v1770 = vadd.f32 %v1718, %v1754
    %v1771 = vadd.f32 %v1719, %v1755
    %v1772 = vadd.f32 %v1720, %v1756
    %v1773 = vld [vmem:[%s290 + $0x2] sm:$0xff]
    %v1774 = vld [vmem:[%s290 + $0x12] sm:$0xff]
    %v1775 = vld [vmem:[%s290 + $0x22] sm:$0xff]
    %v1776 = vld [vmem:[%s290 + $0x32] sm:$0xff]
    %v1777 = vld [vmem:[%s290 + $0x42] sm:$0xff]
    %v1778 = vld [vmem:[%s290 + $0x52] sm:$0xff]
    %v1779 = vld [vmem:[%s290 + $0x62] sm:$0xff]
    %v1780 = vld [vmem:[%s290 + $0x72] sm:$0xff]
    %v1781 = vld [vmem:[%s290 + $0xa2] sm:$0xff]
    %v1782 = vld [vmem:[%s290 + $0xb2] sm:$0xff]
    %v1783 = vld [vmem:[%s290 + $0xc2] sm:$0xff]
    %v1784 = vld [vmem:[%s290 + $0xd2] sm:$0xff]
    %v1785 = vld [vmem:[%s290 + $0xe2] sm:$0xff]
    %v1786 = vld [vmem:[%s290 + $0xf2] sm:$0xff]
    %v1787 = vld [vmem:[%s290 + $0x102] sm:$0xff]
    %v1788 = vld [vmem:[%s290 + $0x112] sm:$0xff]
    %v1789 = vlaneseq
    %v1790 = vshrl.u32 %v1789, 7
    %v1791 = vsub.s32 5, %v1790
    %v1792 = vrot.slane %v1511, %v1791
    %v1793 = vmul.f32 %v1773, %v1792
    %v1794 = vmul.f32 %v1774, %v1792
    %v1795 = vmul.f32 %v1775, %v1792
    %v1796 = vmul.f32 %v1776, %v1792
    %v1797 = vmul.f32 %v1777, %v1792
    %v1798 = vmul.f32 %v1778, %v1792
    %v1799 = vmul.f32 %v1779, %v1792
    %v1800 = vmul.f32 %v1780, %v1792
    %v1801 = vmul.f32 %v1781, %v1792
    %v1802 = vmul.f32 %v1782, %v1792
    %v1803 = vmul.f32 %v1783, %v1792
    %v1804 = vmul.f32 %v1784, %v1792
    %v1805 = vmul.f32 %v1785, %v1792
    %v1806 = vmul.f32 %v1786, %v1792
    %v1807 = vmul.f32 %v1787, %v1792
    %v1808 = vmul.f32 %v1788, %v1792
    %v1809 = vadd.f32 %v1757, %v1793
    %v1810 = vadd.f32 %v1758, %v1794
    %v1811 = vadd.f32 %v1759, %v1795
    %v1812 = vadd.f32 %v1760, %v1796
    %v1813 = vadd.f32 %v1761, %v1797
    %v1814 = vadd.f32 %v1762, %v1798
    %v1815 = vadd.f32 %v1763, %v1799
    %v1816 = vadd.f32 %v1764, %v1800
    %v1817 = vadd.f32 %v1765, %v1801
    %v1818 = vadd.f32 %v1766, %v1802
    %v1819 = vadd.f32 %v1767, %v1803
    %v1820 = vadd.f32 %v1768, %v1804
    %v1821 = vadd.f32 %v1769, %v1805
    %v1822 = vadd.f32 %v1770, %v1806
    %v1823 = vadd.f32 %v1771, %v1807
    %v1824 = vadd.f32 %v1772, %v1808
    %v1825 = vld [vmem:[%s825] sm:$0xff]
    %v1826 = vld [vmem:[%s825 + $0x10] sm:$0xff]
    %v1827 = vld [vmem:[%s825 + $0x20] sm:$0xff]
    %v1828 = vld [vmem:[%s825 + $0x30] sm:$0xff]
    %v1829 = vld [vmem:[%s825 + $0x40] sm:$0xff]
    %v1830 = vld [vmem:[%s825 + $0x50] sm:$0xff]
    %v1831 = vld [vmem:[%s825 + $0x60] sm:$0xff]
    %v1832 = vld [vmem:[%s825 + $0x70] sm:$0xff]
    %v1833 = vld [vmem:[%s825 + $0xa0] sm:$0xff]
    %v1834 = vld [vmem:[%s825 + $0xb0] sm:$0xff]
    %v1835 = vld [vmem:[%s825 + $0xc0] sm:$0xff]
    %v1836 = vld [vmem:[%s825 + $0xd0] sm:$0xff]
    %v1837 = vld [vmem:[%s825 + $0xe0] sm:$0xff]
    %v1838 = vld [vmem:[%s825 + $0xf0] sm:$0xff]
    %v1839 = vld [vmem:[%s825 + $0x100] sm:$0xff]
    %v1840 = vld [vmem:[%s825 + $0x110] sm:$0xff]
    %v1841 = vlaneseq
    %v1842 = vshrl.u32 %v1841, 7
    %v1843 = vsub.s32 6, %v1842
    %v1844 = vrot.slane %v1511, %v1843
    %v1845 = vmul.f32 %v1825, %v1844
    %v1846 = vmul.f32 %v1826, %v1844
    %v1847 = vmul.f32 %v1827, %v1844
    %v1848 = vmul.f32 %v1828, %v1844
    %v1849 = vmul.f32 %v1829, %v1844
    %v1850 = vmul.f32 %v1830, %v1844
    %v1851 = vmul.f32 %v1831, %v1844
    %v1852 = vmul.f32 %v1832, %v1844
    %v1853 = vmul.f32 %v1833, %v1844
    %v1854 = vmul.f32 %v1834, %v1844
    %v1855 = vmul.f32 %v1835, %v1844
    %v1856 = vmul.f32 %v1836, %v1844
    %v1857 = vmul.f32 %v1837, %v1844
    %v1858 = vmul.f32 %v1838, %v1844
    %v1859 = vmul.f32 %v1839, %v1844
    %v1860 = vmul.f32 %v1840, %v1844
    %v1861 = vadd.f32 %v1809, %v1845
    %v1862 = vadd.f32 %v1810, %v1846
    %v1863 = vadd.f32 %v1811, %v1847
    %v1864 = vadd.f32 %v1812, %v1848
    %v1865 = vadd.f32 %v1813, %v1849
    %v1866 = vadd.f32 %v1814, %v1850
    %v1867 = vadd.f32 %v1815, %v1851
    %v1868 = vadd.f32 %v1816, %v1852
    %v1869 = vadd.f32 %v1817, %v1853
    %v1870 = vadd.f32 %v1818, %v1854
    %v1871 = vadd.f32 %v1819, %v1855
    %v1872 = vadd.f32 %v1820, %v1856
    %v1873 = vadd.f32 %v1821, %v1857
    %v1874 = vadd.f32 %v1822, %v1858
    %v1875 = vadd.f32 %v1823, %v1859
    %v1876 = vadd.f32 %v1824, %v1860
    %v1877 = vld [vmem:[%s825 + $0x1] sm:$0xff]
    %v1878 = vld [vmem:[%s825 + $0x11] sm:$0xff]
    %v1879 = vld [vmem:[%s825 + $0x21] sm:$0xff]
    %v1880 = vld [vmem:[%s825 + $0x31] sm:$0xff]
    %v1881 = vld [vmem:[%s825 + $0x41] sm:$0xff]
    %v1882 = vld [vmem:[%s825 + $0x51] sm:$0xff]
    %v1883 = vld [vmem:[%s825 + $0x61] sm:$0xff]
    %v1884 = vld [vmem:[%s825 + $0x71] sm:$0xff]
    %v1885 = vld [vmem:[%s825 + $0xa1] sm:$0xff]
    %v1886 = vld [vmem:[%s825 + $0xb1] sm:$0xff]
    %v1887 = vld [vmem:[%s825 + $0xc1] sm:$0xff]
    %v1888 = vld [vmem:[%s825 + $0xd1] sm:$0xff]
    %v1889 = vld [vmem:[%s825 + $0xe1] sm:$0xff]
    %v1890 = vld [vmem:[%s825 + $0xf1] sm:$0xff]
    %v1891 = vld [vmem:[%s825 + $0x101] sm:$0xff]
    %v1892 = vld [vmem:[%s825 + $0x111] sm:$0xff]
    %v1893 = vlaneseq
    %v1894 = vshrl.u32 %v1893, 7
    %v1895 = vsub.s32 7, %v1894
    %v1896 = vrot.slane %v1511, %v1895
    %v1897 = vmul.f32 %v1877, %v1896
    %v1898 = vmul.f32 %v1878, %v1896
    %v1899 = vmul.f32 %v1879, %v1896
    %v1900 = vmul.f32 %v1880, %v1896
    %v1901 = vmul.f32 %v1881, %v1896
    %v1902 = vmul.f32 %v1882, %v1896
    %v1903 = vmul.f32 %v1883, %v1896
    %v1904 = vmul.f32 %v1884, %v1896
    %v1905 = vmul.f32 %v1885, %v1896
    %v1906 = vmul.f32 %v1886, %v1896
    %v1907 = vmul.f32 %v1887, %v1896
    %v1908 = vmul.f32 %v1888, %v1896
    %v1909 = vmul.f32 %v1889, %v1896
    %v1910 = vmul.f32 %v1890, %v1896
    %v1911 = vmul.f32 %v1891, %v1896
    %v1912 = vmul.f32 %v1892, %v1896
    %v1913 = vadd.f32 %v1861, %v1897
    %v1914 = vadd.f32 %v1862, %v1898
    %v1915 = vadd.f32 %v1863, %v1899
    %v1916 = vadd.f32 %v1864, %v1900
    %v1917 = vadd.f32 %v1865, %v1901
    %v1918 = vadd.f32 %v1866, %v1902
    %v1919 = vadd.f32 %v1867, %v1903
    %v1920 = vadd.f32 %v1868, %v1904
    %v1921 = vadd.f32 %v1869, %v1905
    %v1922 = vadd.f32 %v1870, %v1906
    %v1923 = vadd.f32 %v1871, %v1907
    %v1924 = vadd.f32 %v1872, %v1908
    %v1925 = vadd.f32 %v1873, %v1909
    %v1926 = vadd.f32 %v1874, %v1910
    %v1927 = vadd.f32 %v1875, %v1911
    %v1928 = vadd.f32 %v1876, %v1912
    %v1929 = vld [vmem:[%s825 + $0x2] sm:$0xff]
    %v1930 = vld [vmem:[%s825 + $0x12] sm:$0xff]
    %v1931 = vld [vmem:[%s825 + $0x22] sm:$0xff]
    %v1932 = vld [vmem:[%s825 + $0x32] sm:$0xff]
    %v1933 = vld [vmem:[%s825 + $0x42] sm:$0xff]
    %v1934 = vld [vmem:[%s825 + $0x52] sm:$0xff]
    %v1935 = vld [vmem:[%s825 + $0x62] sm:$0xff]
    %v1936 = vld [vmem:[%s825 + $0x72] sm:$0xff]
    %v1937 = vld [vmem:[%s825 + $0xa2] sm:$0xff]
    %v1938 = vld [vmem:[%s825 + $0xb2] sm:$0xff]
    %v1939 = vld [vmem:[%s825 + $0xc2] sm:$0xff]
    %v1940 = vld [vmem:[%s825 + $0xd2] sm:$0xff]
    %v1941 = vld [vmem:[%s825 + $0xe2] sm:$0xff]
    %v1942 = vld [vmem:[%s825 + $0xf2] sm:$0xff]
    %v1943 = vld [vmem:[%s825 + $0x102] sm:$0xff]
    %v1944 = vld [vmem:[%s825 + $0x112] sm:$0xff]
    %v1945 = vlaneseq
    %v1946 = vshrl.u32 %v1945, 7
    %v1947 = vsub.s32 0, %v1946
    %v1948 = vrot.slane %v1512, %v1947
    %v1949 = vmul.f32 %v1929, %v1948
    %v1950 = vmul.f32 %v1930, %v1948
    %v1951 = vmul.f32 %v1931, %v1948
    %v1952 = vmul.f32 %v1932, %v1948
    %v1953 = vmul.f32 %v1933, %v1948
    %v1954 = vmul.f32 %v1934, %v1948
    %v1955 = vmul.f32 %v1935, %v1948
    %v1956 = vmul.f32 %v1936, %v1948
    %v1957 = vmul.f32 %v1937, %v1948
    %v1958 = vmul.f32 %v1938, %v1948
    %v1959 = vmul.f32 %v1939, %v1948
    %v1960 = vmul.f32 %v1940, %v1948
    %v1961 = vmul.f32 %v1941, %v1948
    %v1962 = vmul.f32 %v1942, %v1948
    %v1963 = vmul.f32 %v1943, %v1948
    %v1964 = vmul.f32 %v1944, %v1948
    %v1965 = vadd.f32 %v1913, %v1949
    %v1966 = vadd.f32 %v1914, %v1950
    %v1967 = vadd.f32 %v1915, %v1951
    %v1968 = vadd.f32 %v1916, %v1952
    %v1969 = vadd.f32 %v1917, %v1953
    %v1970 = vadd.f32 %v1918, %v1954
    %v1971 = vadd.f32 %v1919, %v1955
    %v1972 = vadd.f32 %v1920, %v1956
    %v1973 = vadd.f32 %v1921, %v1957
    %v1974 = vadd.f32 %v1922, %v1958
    %v1975 = vadd.f32 %v1923, %v1959
    %v1976 = vadd.f32 %v1924, %v1960
    %v1977 = vadd.f32 %v1925, %v1961
    %v1978 = vadd.f32 %v1926, %v1962
    %v1979 = vadd.f32 %v1927, %v1963
    %v1980 = vadd.f32 %v1928, %v1964
    %v1981 = vld [vmem:[#allocation15] sm:$0x1]
    %v1983 = vlaneseq
    %v1984 = vshrl.u32 %v1983, 7
    %v1985 = vsub.s32 0, %v1984
    %v1986 = vrot.slane %v1981, %v1985
    %v1988 = vadd.f32 %v1965, %v1986
    %v1989 = vadd.f32 %v1966, %v1986
    %v1990 = vadd.f32 %v1967, %v1986
    %v1991 = vadd.f32 %v1968, %v1986
    %v1992 = vadd.f32 %v1969, %v1986
    %v1993 = vadd.f32 %v1970, %v1986
    %v1994 = vadd.f32 %v1971, %v1986
    %v1995 = vadd.f32 %v1972, %v1986
    %v1996 = vadd.f32 %v1973, %v1986
    %v1997 = vadd.f32 %v1974, %v1986
    %v1998 = vadd.f32 %v1975, %v1986
    %v1999 = vadd.f32 %v1976, %v1986
    %v2000 = vadd.f32 %v1977, %v1986
    %v2001 = vadd.f32 %v1978, %v1986
    %v2002 = vadd.f32 %v1979, %v1986
    %v2003 = vadd.f32 %v1980, %v1986
    %v2004 = vmax.f32 %v1988, 0.0
    %v2005 = vmax.f32 %v1989, 0.0
    %v2006 = vmax.f32 %v1990, 0.0
    %v2007 = vmax.f32 %v1991, 0.0
    %v2008 = vmax.f32 %v1992, 0.0
    %v2009 = vmax.f32 %v1993, 0.0
    %v2010 = vmax.f32 %v1994, 0.0
    %v2011 = vmax.f32 %v1995, 0.0
    %v2012 = vmax.f32 %v1996, 0.0
    %v2013 = vmax.f32 %v1997, 0.0
    %v2014 = vmax.f32 %v1998, 0.0
    %v2015 = vmax.f32 %v1999, 0.0
    %v2016 = vmax.f32 %v2000, 0.0
    %v2017 = vmax.f32 %v2001, 0.0
    %v2018 = vmax.f32 %v2002, 0.0
    %v2019 = vmax.f32 %v2003, 0.0
    %v2020 = vpack.c.bf16 %v2005, %v2004
    %v2021 = vpack.c.bf16 %v2007, %v2006
    %v2022 = vpack.c.bf16 %v2009, %v2008
    %v2023 = vpack.c.bf16 %v2011, %v2010
    %v2024 = vpack.c.bf16 %v2013, %v2012
    %v2025 = vpack.c.bf16 %v2015, %v2014
    %v2026 = vpack.c.bf16 %v2017, %v2016
    %v2027 = vpack.c.bf16 %v2019, %v2018
    %v2028 = vld [vmem:[#allocation16] sm:$0xf]
    %v2029 = vld [vmem:[#allocation16 + $0x4] sm:$0xf]
    %v2030 = vld [vmem:[#allocation18] sm:$0x1]
    %v2032 = vlaneseq
    %v2033 = vshrl.u32 %v2032, 7
    %v2034 = vsub.s32 0, %v2033
    %v2035 = vrot.slane %v2030, %v2034
    %v2039 = vunpack.c.l.b16 %v2028
    %v2040 = vunpack.c.l.b16 %v2029
    %v2041 = vpack.c.b16 %v2040, %v2039
    %v2044 = vsel %vm1494, %v2020, 0
    %v2047 = vsel %vm1494, %v2021, 0
    %v2050 = vsel %vm1494, %v2022, 0
    %v2053 = vsel %vm1494, %v2023, 0
    %v2056 = vsel %vm1494, %v2024, 0
    %v2059 = vsel %vm1494, %v2025, 0
    %v2062 = vsel %vm1494, %v2026, 0
    %v2065 = vsel %vm1494, %v2027, 0
    %2067 = vmatprep.subr.bf16.mxu0 0
    %2068 = vmatpush1.bf16.msra.mxu0 %v2041
    %2069 = vmatprep.subr.bf16.mxu0 0
    %2070 = vmatpush1.bf16.msra.mxu0 0
    %2071 = vmatprep.subr.bf16.mxu0 0
    %2072 = vmatpush1.bf16.msra.mxu0 0
    %2073 = vmatprep.subr.bf16.mxu0 0
    %2074 = vmatpush1.bf16.msra.mxu0 0
    %2075 = vmatprep.subr.bf16.mxu0 0
    %2076 = vmatpush1.bf16.msra.mxu0 0
    %2077 = vmatprep.subr.bf16.mxu0 0
    %2078 = vmatpush1.bf16.msra.mxu0 0
    %2079 = vmatprep.subr.bf16.mxu0 0
    %2080 = vmatpush1.bf16.msra.mxu0 0
    %2081 = vmatprep.subr.bf16.mxu0 0
    %2082 = vmatpush1.bf16.msra.mxu0 0
    %2083 = vmatprep.subr.bf16.mxu0 0
    %2084 = vmatpush1.bf16.msra.mxu0 0
    %2085 = vmatprep.subr.bf16.mxu0 0
    %2086 = vmatpush1.bf16.msra.mxu0 0
    %2087 = vmatprep.subr.bf16.mxu0 0
    %2088 = vmatpush1.bf16.msra.mxu0 0
    %2089 = vmatprep.subr.bf16.mxu0 0
    %2090 = vmatpush1.bf16.msra.mxu0 0
    %2091 = vmatprep.subr.bf16.mxu0 0
    %2092 = vmatpush1.bf16.msra.mxu0 0
    %2093 = vmatprep.subr.bf16.mxu0 0
    %2094 = vmatpush1.bf16.msra.mxu0 0
    %2095 = vmatprep.subr.bf16.mxu0 0
    %2096 = vmatpush1.bf16.msra.mxu0 0
    %2097 = vmatprep.subr.bf16.mxu0 0
    %2098 = vmatpush1.bf16.msra.mxu0 0
    %2099 = vmatprep.mubr.bf16.mxu0 0
    %2100 = vmatmul.mubr.bf16.gmra.mrb[0].mxu0 %v2044
    %v2101 = vpop.f32.mrb[0].mxu0
    %v2102 = vadd.f32 %v2035, %v2101
    %v2103 = vpop.f32.mrb[0].mxu0
    %v2104 = vpop.f32.mrb[0].mxu0
    %v2105 = vadd.f32 %v2035, %v2104
    %v2106 = vpop.f32.mrb[0].mxu0
    %2107 = vmatprep.mubr.bf16.mxu0 0
    %2108 = vmatmul.mubr.bf16.gmra.mrb[0].mxu0 %v2047
    %v2109 = vpop.f32.mrb[0].mxu0
    %v2110 = vadd.f32 %v2035, %v2109
    %v2111 = vpop.f32.mrb[0].mxu0
    %v2112 = vpop.f32.mrb[0].mxu0
    %v2113 = vadd.f32 %v2035, %v2112
    %v2114 = vpop.f32.mrb[0].mxu0
    %2115 = vmatprep.mubr.bf16.mxu0 0
    %2116 = vmatmul.mubr.bf16.gmra.mrb[0].mxu0 %v2050
    %v2117 = vpop.f32.mrb[0].mxu0
    %v2118 = vadd.f32 %v2035, %v2117
    %v2119 = vpop.f32.mrb[0].mxu0
    %v2120 = vpop.f32.mrb[0].mxu0
    %v2121 = vadd.f32 %v2035, %v2120
    %v2122 = vpop.f32.mrb[0].mxu0
    %2123 = vmatprep.mubr.bf16.mxu0 0
    %2124 = vmatmul.mubr.bf16.gmra.mrb[0].mxu0 %v2053
    %v2125 = vpop.f32.mrb[0].mxu0
    %v2126 = vadd.f32 %v2035, %v2125
    %v2127 = vpop.f32.mrb[0].mxu0
    %v2128 = vpop.f32.mrb[0].mxu0
    %v2129 = vadd.f32 %v2035, %v2128
    %v2130 = vpop.f32.mrb[0].mxu0
    %2131 = vmatprep.mubr.bf16.mxu0 0
    %2132 = vmatmul.mubr.bf16.gmra.mrb[0].mxu0 %v2056
    %v2133 = vpop.f32.mrb[0].mxu0
    %v2134 = vadd.f32 %v2035, %v2133
    %v2135 = vpop.f32.mrb[0].mxu0
    %v2136 = vpop.f32.mrb[0].mxu0
    %v2137 = vadd.f32 %v2035, %v2136
    %v2138 = vpop.f32.mrb[0].mxu0
    %2139 = vmatprep.mubr.bf16.mxu0 0
    %2140 = vmatmul.mubr.bf16.gmra.mrb[0].mxu0 %v2059
    %v2141 = vpop.f32.mrb[0].mxu0
    %v2142 = vadd.f32 %v2035, %v2141
    %v2143 = vpop.f32.mrb[0].mxu0
    %v2144 = vpop.f32.mrb[0].mxu0
    %v2145 = vadd.f32 %v2035, %v2144
    %v2146 = vpop.f32.mrb[0].mxu0
    %2147 = vmatprep.mubr.bf16.mxu0 0
    %2148 = vmatmul.mubr.bf16.gmra.mrb[0].mxu0 %v2062
    %v2149 = vpop.f32.mrb[0].mxu0
    %v2150 = vadd.f32 %v2035, %v2149
    %v2151 = vpop.f32.mrb[0].mxu0
    %v2152 = vpop.f32.mrb[0].mxu0
    %v2153 = vadd.f32 %v2035, %v2152
    %v2154 = vpop.f32.mrb[0].mxu0
    %2155 = vmatprep.mubr.bf16.mxu0 0
    %2156 = vmatmul.mubr.bf16.gmra.mrb[0].mxu0 %v2065
    %v2157 = vpop.f32.mrb[0].mxu0
    %v2158 = vadd.f32 %v2035, %v2157
    %v2159 = vpop.f32.mrb[0].mxu0
    %v2160 = vpop.f32.mrb[0].mxu0
    %v2161 = vadd.f32 %v2035, %v2160
    %v2162 = vpop.f32.mrb[0].mxu0
    %2163 = vdwg.mxu0
    %v2164 = vadd.f32 %v2102, %v1310
    %v2165 = vadd.f32 %v2105, %v1311
    %v2166 = vadd.f32 %v2110, %v1312
    %v2167 = vadd.f32 %v2113, %v1313
    %v2168 = vadd.f32 %v2118, %v1314
    %v2169 = vadd.f32 %v2121, %v1315
    %v2170 = vadd.f32 %v2126, %v1316
    %v2171 = vadd.f32 %v2129, %v1317
    %v2172 = vadd.f32 %v2134, %v1318
    %v2173 = vadd.f32 %v2137, %v1319
    %v2174 = vadd.f32 %v2142, %v1320
    %v2175 = vadd.f32 %v2145, %v1321
    %v2176 = vadd.f32 %v2150, %v1322
    %v2177 = vadd.f32 %v2153, %v1323
    %v2178 = vadd.f32 %v2158, %v1324
    %v2179 = vadd.f32 %v2161, %v1325
    %v2180 = vpack.c.bf16 %v2165, %v2164
    %v2181 = vpack.c.bf16 %v2167, %v2166
    %v2182 = vpack.c.bf16 %v2169, %v2168
    %v2183 = vpack.c.bf16 %v2171, %v2170
    %v2184 = vpack.c.bf16 %v2173, %v2172
    %v2185 = vpack.c.bf16 %v2175, %v2174
    %v2186 = vpack.c.bf16 %v2177, %v2176
    %v2187 = vpack.c.bf16 %v2179, %v2178
    %v2188 = vld [vmem:[%s9] sm:$0xf]
    %v2189 = vld [vmem:[%s9 + $0x4] sm:$0xf]
    %v2190 = vld [vmem:[%s9 + $0x8] sm:$0xf]
    %v2191 = vld [vmem:[%s9 + $0xc] sm:$0xf]
    %v2192 = vld [vmem:[#allocation19] sm:$0x1]
    %v2194 = vlaneseq
    %v2195 = vshrl.u32 %v2194, 7
    %v2196 = vsub.s32 0, %v2195
    %v2197 = vrot.slane %v2192, %v2196
    %v2203 = vunpack.c.l.b16 %v2188
    %v2204 = vunpack.c.l.b16 %v2189
    %v2205 = vunpack.c.l.b16 %v2190
    %v2206 = vunpack.c.l.b16 %v2191
    %v2207 = vpack.c.b16 %v2204, %v2203
    %v2208 = vpack.c.b16 %v2206, %v2205
    %v2212 = vsel %vm222, %v2180, 0
    %v2215 = vsel %vm222, %v2181, 0
    %v2218 = vsel %vm222, %v2182, 0
    %v2221 = vsel %vm222, %v2183, 0
    %v2224 = vsel %vm222, %v2184, 0
    %v2227 = vsel %vm222, %v2185, 0
    %v2230 = vsel %vm222, %v2186, 0
    %v2233 = vsel %vm222, %v2187, 0
    %2235 = vmatprep.subr.bf16.mxu0 0
    %2236 = vmatpush1.bf16.msra.mxu0 %v2207
    %2237 = vmatprep.subr.bf16.mxu0 0
    %2238 = vmatpush1.bf16.msra.mxu0 %v2208
    %2239 = vmatprep.subr.bf16.mxu0 0
    %2240 = vmatpush1.bf16.msra.mxu0 0
    %2241 = vmatprep.subr.bf16.mxu0 0
    %2242 = vmatpush1.bf16.msra.mxu0 0
    %2243 = vmatprep.subr.bf16.mxu0 0
    %2244 = vmatpush1.bf16.msra.mxu0 0
    %2245 = vmatprep.subr.bf16.mxu0 0
    %2246 = vmatpush1.bf16.msra.mxu0 0
    %2247 = vmatprep.subr.bf16.mxu0 0
    %2248 = vmatpush1.bf16.msra.mxu0 0
    %2249 = vmatprep.subr.bf16.mxu0 0
    %2250 = vmatpush1.bf16.msra.mxu0 0
    %2251 = vmatprep.subr.bf16.mxu0 0
    %2252 = vmatpush1.bf16.msra.mxu0 0
    %2253 = vmatprep.subr.bf16.mxu0 0
    %2254 = vmatpush1.bf16.msra.mxu0 0
    %2255 = vmatprep.subr.bf16.mxu0 0
    %2256 = vmatpush1.bf16.msra.mxu0 0
    %2257 = vmatprep.subr.bf16.mxu0 0
    %2258 = vmatpush1.bf16.msra.mxu0 0
    %2259 = vmatprep.subr.bf16.mxu0 0
    %2260 = vmatpush1.bf16.msra.mxu0 0
    %2261 = vmatprep.subr.bf16.mxu0 0
    %2262 = vmatpush1.bf16.msra.mxu0 0
    %2263 = vmatprep.subr.bf16.mxu0 0
    %2264 = vmatpush1.bf16.msra.mxu0 0
    %2265 = vmatprep.subr.bf16.mxu0 0
    %2266 = vmatpush1.bf16.msra.mxu0 0
    %2267 = vmatprep.mubr.bf16.mxu0 0
    %2268 = vmatmul.mubr.bf16.gmra.mrb[0].mxu0 %v2212
    %v2269 = vpop.f32.mrb[0].mxu0
    %v2270 = vadd.f32 %v2197, %v2269
    %v2271 = vpop.f32.mrb[0].mxu0
    %v2272 = vpop.f32.mrb[0].mxu0
    %v2273 = vadd.f32 %v2197, %v2272
    %v2274 = vpop.f32.mrb[0].mxu0
    %2275 = vmatprep.mubr.bf16.mxu0 0
    %2276 = vmatmul.mubr.bf16.gmra.mrb[0].mxu0 %v2215
    %v2277 = vpop.f32.mrb[0].mxu0
    %v2278 = vadd.f32 %v2197, %v2277
    %v2279 = vpop.f32.mrb[0].mxu0
    %v2280 = vpop.f32.mrb[0].mxu0
    %v2281 = vadd.f32 %v2197, %v2280
    %v2282 = vpop.f32.mrb[0].mxu0
    %2283 = vmatprep.mubr.bf16.mxu0 0
    %2284 = vmatmul.mubr.bf16.gmra.mrb[0].mxu0 %v2218
    %v2285 = vpop.f32.mrb[0].mxu0
    %v2286 = vadd.f32 %v2197, %v2285
    %v2287 = vpop.f32.mrb[0].mxu0
    %v2288 = vpop.f32.mrb[0].mxu0
    %v2289 = vadd.f32 %v2197, %v2288
    %v2290 = vpop.f32.mrb[0].mxu0
    %2291 = vmatprep.mubr.bf16.mxu0 0
    %2292 = vmatmul.mubr.bf16.gmra.mrb[0].mxu0 %v2221
    %v2293 = vpop.f32.mrb[0].mxu0
    %v2294 = vadd.f32 %v2197, %v2293
    %v2295 = vpop.f32.mrb[0].mxu0
    %v2296 = vpop.f32.mrb[0].mxu0
    %v2297 = vadd.f32 %v2197, %v2296
    %v2298 = vpop.f32.mrb[0].mxu0
    %2299 = vmatprep.mubr.bf16.mxu0 0
    %2300 = vmatmul.mubr.bf16.gmra.mrb[0].mxu0 %v2224
    %v2301 = vpop.f32.mrb[0].mxu0
    %v2302 = vadd.f32 %v2197, %v2301
    %v2303 = vpop.f32.mrb[0].mxu0
    %v2304 = vpop.f32.mrb[0].mxu0
    %v2305 = vadd.f32 %v2197, %v2304
    %v2306 = vpop.f32.mrb[0].mxu0
    %2307 = vmatprep.mubr.bf16.mxu0 0
    %2308 = vmatmul.mubr.bf16.gmra.mrb[0].mxu0 %v2227
    %v2309 = vpop.f32.mrb[0].mxu0
    %v2310 = vadd.f32 %v2197, %v2309
    %v2311 = vpop.f32.mrb[0].mxu0
    %v2312 = vpop.f32.mrb[0].mxu0
    %v2313 = vadd.f32 %v2197, %v2312
    %v2314 = vpop.f32.mrb[0].mxu0
    %2315 = vmatprep.mubr.bf16.mxu0 0
    %2316 = vmatmul.mubr.bf16.gmra.mrb[0].mxu0 %v2230
    %v2317 = vpop.f32.mrb[0].mxu0
    %v2318 = vadd.f32 %v2197, %v2317
    %v2319 = vpop.f32.mrb[0].mxu0
    %v2320 = vpop.f32.mrb[0].mxu0
    %v2321 = vadd.f32 %v2197, %v2320
    %v2322 = vpop.f32.mrb[0].mxu0
    %2323 = vmatprep.mubr.bf16.mxu0 0
    %2324 = vmatmul.mubr.bf16.gmra.mrb[0].mxu0 %v2233
    %v2325 = vpop.f32.mrb[0].mxu0
    %v2326 = vadd.f32 %v2197, %v2325
    %v2327 = vpop.f32.mrb[0].mxu0
    %v2328 = vpop.f32.mrb[0].mxu0
    %v2329 = vadd.f32 %v2197, %v2328
    %v2330 = vpop.f32.mrb[0].mxu0
    %2331 = vdwg.mxu0
    %v2332 = vmax.f32 %v2270, 0.0
    %v2333 = vmax.f32 %v2273, 0.0
    %v2334 = vmax.f32 %v2278, 0.0
    %v2335 = vmax.f32 %v2281, 0.0
    %v2336 = vmax.f32 %v2286, 0.0
    %v2337 = vmax.f32 %v2289, 0.0
    %v2338 = vmax.f32 %v2294, 0.0
    %v2339 = vmax.f32 %v2297, 0.0
    %v2340 = vmax.f32 %v2302, 0.0
    %v2341 = vmax.f32 %v2305, 0.0
    %v2342 = vmax.f32 %v2310, 0.0
    %v2343 = vmax.f32 %v2313, 0.0
    %v2344 = vmax.f32 %v2318, 0.0
    %v2345 = vmax.f32 %v2321, 0.0
    %v2346 = vmax.f32 %v2326, 0.0
    %v2347 = vmax.f32 %v2329, 0.0
    %2348 = vst.msk [vmem:[%s290 + $0x1] sm:$0xff] %vm222, %v2332
    %2349 = vst.msk [vmem:[%s290 + $0x11] sm:$0xff] %vm222, %v2333
    %2350 = vst.msk [vmem:[%s290 + $0x21] sm:$0xff] %vm222, %v2334
    %2351 = vst.msk [vmem:[%s290 + $0x31] sm:$0xff] %vm222, %v2335
    %2352 = vst.msk [vmem:[%s290 + $0x41] sm:$0xff] %vm222, %v2336
    %2353 = vst.msk [vmem:[%s290 + $0x51] sm:$0xff] %vm222, %v2337
    %2354 = vst.msk [vmem:[%s290 + $0x61] sm:$0xff] %vm222, %v2338
    %2355 = vst.msk [vmem:[%s290 + $0x71] sm:$0xff] %vm222, %v2339
    %2356 = vst.msk [vmem:[%s290 + $0xa1] sm:$0xff] %vm222, %v2340
    %2357 = vst.msk [vmem:[%s290 + $0xb1] sm:$0xff] %vm222, %v2341
    %2358 = vst.msk [vmem:[%s290 + $0xc1] sm:$0xff] %vm222, %v2342
    %2359 = vst.msk [vmem:[%s290 + $0xd1] sm:$0xff] %vm222, %v2343
    %2360 = vst.msk [vmem:[%s290 + $0xe1] sm:$0xff] %vm222, %v2344
    %2361 = vst.msk [vmem:[%s290 + $0xf1] sm:$0xff] %vm222, %v2345
    %2362 = vst.msk [vmem:[%s290 + $0x101] sm:$0xff] %vm222, %v2346
    %2363 = vst.msk [vmem:[%s290 + $0x111] sm:$0xff] %vm222, %v2347
    %v2364 = vld [vmem:[#allocation21] sm:$0xff]
    %v2365 = vld [vmem:[#allocation21 + $0x8] sm:$0x1]
    %v2366 = vld [vmem:[#allocation2] sm:$0xff]
    %v2367 = vld [vmem:[#allocation2 + $0x10] sm:$0xff]
    %v2368 = vld [vmem:[#allocation2 + $0x20] sm:$0xff]
    %v2369 = vld [vmem:[#allocation2 + $0x30] sm:$0xff]
    %v2370 = vld [vmem:[#allocation2 + $0x40] sm:$0xff]
    %v2371 = vld [vmem:[#allocation2 + $0x50] sm:$0xff]
    %v2372 = vld [vmem:[#allocation2 + $0x60] sm:$0xff]
    %v2373 = vld [vmem:[#allocation2 + $0x70] sm:$0xff]
    %v2374 = vld [vmem:[#allocation2 + $0xa0] sm:$0xff]
    %v2375 = vld [vmem:[#allocation2 + $0xb0] sm:$0xff]
    %v2376 = vld [vmem:[#allocation2 + $0xc0] sm:$0xff]
    %v2377 = vld [vmem:[#allocation2 + $0xd0] sm:$0xff]
    %v2378 = vld [vmem:[#allocation2 + $0xe0] sm:$0xff]
    %v2379 = vld [vmem:[#allocation2 + $0xf0] sm:$0xff]
    %v2380 = vld [vmem:[#allocation2 + $0x100] sm:$0xff]
    %v2381 = vld [vmem:[#allocation2 + $0x110] sm:$0xff]
    %v2382 = vlaneseq
    %v2383 = vshrl.u32 %v2382, 7
    %v2384 = vsub.s32 0, %v2383
    %v2385 = vrot.slane %v2364, %v2384
    %v2386 = vmul.f32 %v2366, %v2385
    %v2387 = vmul.f32 %v2367, %v2385
    %v2388 = vmul.f32 %v2368, %v2385
    %v2389 = vmul.f32 %v2369, %v2385
    %v2390 = vmul.f32 %v2370, %v2385
    %v2391 = vmul.f32 %v2371, %v2385
    %v2392 = vmul.f32 %v2372, %v2385
    %v2393 = vmul.f32 %v2373, %v2385
    %v2394 = vmul.f32 %v2374, %v2385
    %v2395 = vmul.f32 %v2375, %v2385
    %v2396 = vmul.f32 %v2376, %v2385
    %v2397 = vmul.f32 %v2377, %v2385
    %v2398 = vmul.f32 %v2378, %v2385
    %v2399 = vmul.f32 %v2379, %v2385
    %v2400 = vmul.f32 %v2380, %v2385
    %v2401 = vmul.f32 %v2381, %v2385
    %v2402 = vadd.f32 %v2386, 0.0
    %v2403 = vadd.f32 %v2387, 0.0
    %v2404 = vadd.f32 %v2388, 0.0
    %v2405 = vadd.f32 %v2389, 0.0
    %v2406 = vadd.f32 %v2390, 0.0
    %v2407 = vadd.f32 %v2391, 0.0
    %v2408 = vadd.f32 %v2392, 0.0
    %v2409 = vadd.f32 %v2393, 0.0
    %v2410 = vadd.f32 %v2394, 0.0
    %v2411 = vadd.f32 %v2395, 0.0
    %v2412 = vadd.f32 %v2396, 0.0
    %v2413 = vadd.f32 %v2397, 0.0
    %v2414 = vadd.f32 %v2398, 0.0
    %v2415 = vadd.f32 %v2399, 0.0
    %v2416 = vadd.f32 %v2400, 0.0
    %v2417 = vadd.f32 %v2401, 0.0
    %v2418 = vld [vmem:[#allocation2 + $0x1] sm:$0xff]
    %v2419 = vld [vmem:[#allocation2 + $0x11] sm:$0xff]
    %v2420 = vld [vmem:[#allocation2 + $0x21] sm:$0xff]
    %v2421 = vld [vmem:[#allocation2 + $0x31] sm:$0xff]
    %v2422 = vld [vmem:[#allocation2 + $0x41] sm:$0xff]
    %v2423 = vld [vmem:[#allocation2 + $0x51] sm:$0xff]
    %v2424 = vld [vmem:[#allocation2 + $0x61] sm:$0xff]
    %v2425 = vld [vmem:[#allocation2 + $0x71] sm:$0xff]
    %v2426 = vld [vmem:[#allocation2 + $0xa1] sm:$0xff]
    %v2427 = vld [vmem:[#allocation2 + $0xb1] sm:$0xff]
    %v2428 = vld [vmem:[#allocation2 + $0xc1] sm:$0xff]
    %v2429 = vld [vmem:[#allocation2 + $0xd1] sm:$0xff]
    %v2430 = vld [vmem:[#allocation2 + $0xe1] sm:$0xff]
    %v2431 = vld [vmem:[#allocation2 + $0xf1] sm:$0xff]
    %v2432 = vld [vmem:[#allocation2 + $0x101] sm:$0xff]
    %v2433 = vld [vmem:[#allocation2 + $0x111] sm:$0xff]
    %v2434 = vlaneseq
    %v2435 = vshrl.u32 %v2434, 7
    %v2436 = vsub.s32 1, %v2435
    %v2437 = vrot.slane %v2364, %v2436
    %v2438 = vmul.f32 %v2418, %v2437
    %v2439 = vmul.f32 %v2419, %v2437
    %v2440 = vmul.f32 %v2420, %v2437
    %v2441 = vmul.f32 %v2421, %v2437
    %v2442 = vmul.f32 %v2422, %v2437
    %v2443 = vmul.f32 %v2423, %v2437
    %v2444 = vmul.f32 %v2424, %v2437
    %v2445 = vmul.f32 %v2425, %v2437
    %v2446 = vmul.f32 %v2426, %v2437
    %v2447 = vmul.f32 %v2427, %v2437
    %v2448 = vmul.f32 %v2428, %v2437
    %v2449 = vmul.f32 %v2429, %v2437
    %v2450 = vmul.f32 %v2430, %v2437
    %v2451 = vmul.f32 %v2431, %v2437
    %v2452 = vmul.f32 %v2432, %v2437
    %v2453 = vmul.f32 %v2433, %v2437
    %v2454 = vadd.f32 %v2402, %v2438
    %v2455 = vadd.f32 %v2403, %v2439
    %v2456 = vadd.f32 %v2404, %v2440
    %v2457 = vadd.f32 %v2405, %v2441
    %v2458 = vadd.f32 %v2406, %v2442
    %v2459 = vadd.f32 %v2407, %v2443
    %v2460 = vadd.f32 %v2408, %v2444
    %v2461 = vadd.f32 %v2409, %v2445
    %v2462 = vadd.f32 %v2410, %v2446
    %v2463 = vadd.f32 %v2411, %v2447
    %v2464 = vadd.f32 %v2412, %v2448
    %v2465 = vadd.f32 %v2413, %v2449
    %v2466 = vadd.f32 %v2414, %v2450
    %v2467 = vadd.f32 %v2415, %v2451
    %v2468 = vadd.f32 %v2416, %v2452
    %v2469 = vadd.f32 %v2417, %v2453
    %v2470 = vld [vmem:[#allocation2 + $0x2] sm:$0xff]
    %v2471 = vld [vmem:[#allocation2 + $0x12] sm:$0xff]
    %v2472 = vld [vmem:[#allocation2 + $0x22] sm:$0xff]
    %v2473 = vld [vmem:[#allocation2 + $0x32] sm:$0xff]
    %v2474 = vld [vmem:[#allocation2 + $0x42] sm:$0xff]
    %v2475 = vld [vmem:[#allocation2 + $0x52] sm:$0xff]
    %v2476 = vld [vmem:[#allocation2 + $0x62] sm:$0xff]
    %v2477 = vld [vmem:[#allocation2 + $0x72] sm:$0xff]
    %v2478 = vld [vmem:[#allocation2 + $0xa2] sm:$0xff]
    %v2479 = vld [vmem:[#allocation2 + $0xb2] sm:$0xff]
    %v2480 = vld [vmem:[#allocation2 + $0xc2] sm:$0xff]
    %v2481 = vld [vmem:[#allocation2 + $0xd2] sm:$0xff]
    %v2482 = vld [vmem:[#allocation2 + $0xe2] sm:$0xff]
    %v2483 = vld [vmem:[#allocation2 + $0xf2] sm:$0xff]
    %v2484 = vld [vmem:[#allocation2 + $0x102] sm:$0xff]
    %v2485 = vld [vmem:[#allocation2 + $0x112] sm:$0xff]
    %v2486 = vlaneseq
    %v2487 = vshrl.u32 %v2486, 7
    %v2488 = vsub.s32 2, %v2487
    %v2489 = vrot.slane %v2364, %v2488
    %v2490 = vmul.f32 %v2470, %v2489
    %v2491 = vmul.f32 %v2471, %v2489
    %v2492 = vmul.f32 %v2472, %v2489
    %v2493 = vmul.f32 %v2473, %v2489
    %v2494 = vmul.f32 %v2474, %v2489
    %v2495 = vmul.f32 %v2475, %v2489
    %v2496 = vmul.f32 %v2476, %v2489
    %v2497 = vmul.f32 %v2477, %v2489
    %v2498 = vmul.f32 %v2478, %v2489
    %v2499 = vmul.f32 %v2479, %v2489
    %v2500 = vmul.f32 %v2480, %v2489
    %v2501 = vmul.f32 %v2481, %v2489
    %v2502 = vmul.f32 %v2482, %v2489
    %v2503 = vmul.f32 %v2483, %v2489
    %v2504 = vmul.f32 %v2484, %v2489
    %v2505 = vmul.f32 %v2485, %v2489
    %v2506 = vadd.f32 %v2454, %v2490
    %v2507 = vadd.f32 %v2455, %v2491
    %v2508 = vadd.f32 %v2456, %v2492
    %v2509 = vadd.f32 %v2457, %v2493
    %v2510 = vadd.f32 %v2458, %v2494
    %v2511 = vadd.f32 %v2459, %v2495
    %v2512 = vadd.f32 %v2460, %v2496
    %v2513 = vadd.f32 %v2461, %v2497
    %v2514 = vadd.f32 %v2462, %v2498
    %v2515 = vadd.f32 %v2463, %v2499
    %v2516 = vadd.f32 %v2464, %v2500
    %v2517 = vadd.f32 %v2465, %v2501
    %v2518 = vadd.f32 %v2466, %v2502
    %v2519 = vadd.f32 %v2467, %v2503
    %v2520 = vadd.f32 %v2468, %v2504
    %v2521 = vadd.f32 %v2469, %v2505
    %v2522 = vld [vmem:[%s290] sm:$0xff]
    %v2523 = vld [vmem:[%s290 + $0x10] sm:$0xff]
    %v2524 = vld [vmem:[%s290 + $0x20] sm:$0xff]
    %v2525 = vld [vmem:[%s290 + $0x30] sm:$0xff]
    %v2526 = vld [vmem:[%s290 + $0x40] sm:$0xff]
    %v2527 = vld [vmem:[%s290 + $0x50] sm:$0xff]
    %v2528 = vld [vmem:[%s290 + $0x60] sm:$0xff]
    %v2529 = vld [vmem:[%s290 + $0x70] sm:$0xff]
    %v2530 = vld [vmem:[%s290 + $0xa0] sm:$0xff]
    %v2531 = vld [vmem:[%s290 + $0xb0] sm:$0xff]
    %v2532 = vld [vmem:[%s290 + $0xc0] sm:$0xff]
    %v2533 = vld [vmem:[%s290 + $0xd0] sm:$0xff]
    %v2534 = vld [vmem:[%s290 + $0xe0] sm:$0xff]
    %v2535 = vld [vmem:[%s290 + $0xf0] sm:$0xff]
    %v2536 = vld [vmem:[%s290 + $0x100] sm:$0xff]
    %v2537 = vld [vmem:[%s290 + $0x110] sm:$0xff]
    %v2538 = vlaneseq
    %v2539 = vshrl.u32 %v2538, 7
    %v2540 = vsub.s32 3, %v2539
    %v2541 = vrot.slane %v2364, %v2540
    %v2542 = vmul.f32 %v2522, %v2541
    %v2543 = vmul.f32 %v2523, %v2541
    %v2544 = vmul.f32 %v2524, %v2541
    %v2545 = vmul.f32 %v2525, %v2541
    %v2546 = vmul.f32 %v2526, %v2541
    %v2547 = vmul.f32 %v2527, %v2541
    %v2548 = vmul.f32 %v2528, %v2541
    %v2549 = vmul.f32 %v2529, %v2541
    %v2550 = vmul.f32 %v2530, %v2541
    %v2551 = vmul.f32 %v2531, %v2541
    %v2552 = vmul.f32 %v2532, %v2541
    %v2553 = vmul.f32 %v2533, %v2541
    %v2554 = vmul.f32 %v2534, %v2541
    %v2555 = vmul.f32 %v2535, %v2541
    %v2556 = vmul.f32 %v2536, %v2541
    %v2557 = vmul.f32 %v2537, %v2541
    %v2558 = vadd.f32 %v2506, %v2542
    %v2559 = vadd.f32 %v2507, %v2543
    %v2560 = vadd.f32 %v2508, %v2544
    %v2561 = vadd.f32 %v2509, %v2545
    %v2562 = vadd.f32 %v2510, %v2546
    %v2563 = vadd.f32 %v2511, %v2547
    %v2564 = vadd.f32 %v2512, %v2548
    %v2565 = vadd.f32 %v2513, %v2549
    %v2566 = vadd.f32 %v2514, %v2550
    %v2567 = vadd.f32 %v2515, %v2551
    %v2568 = vadd.f32 %v2516, %v2552
    %v2569 = vadd.f32 %v2517, %v2553
    %v2570 = vadd.f32 %v2518, %v2554
    %v2571 = vadd.f32 %v2519, %v2555
    %v2572 = vadd.f32 %v2520, %v2556
    %v2573 = vadd.f32 %v2521, %v2557
    %v2574 = vld [vmem:[%s290 + $0x1] sm:$0xff]
    %v2575 = vld [vmem:[%s290 + $0x11] sm:$0xff]
    %v2576 = vld [vmem:[%s290 + $0x21] sm:$0xff]
    %v2577 = vld [vmem:[%s290 + $0x31] sm:$0xff]
    %v2578 = vld [vmem:[%s290 + $0x41] sm:$0xff]
    %v2579 = vld [vmem:[%s290 + $0x51] sm:$0xff]
    %v2580 = vld [vmem:[%s290 + $0x61] sm:$0xff]
    %v2581 = vld [vmem:[%s290 + $0x71] sm:$0xff]
    %v2582 = vld [vmem:[%s290 + $0xa1] sm:$0xff]
    %v2583 = vld [vmem:[%s290 + $0xb1] sm:$0xff]
    %v2584 = vld [vmem:[%s290 + $0xc1] sm:$0xff]
    %v2585 = vld [vmem:[%s290 + $0xd1] sm:$0xff]
    %v2586 = vld [vmem:[%s290 + $0xe1] sm:$0xff]
    %v2587 = vld [vmem:[%s290 + $0xf1] sm:$0xff]
    %v2588 = vld [vmem:[%s290 + $0x101] sm:$0xff]
    %v2589 = vld [vmem:[%s290 + $0x111] sm:$0xff]
    %v2590 = vlaneseq
    %v2591 = vshrl.u32 %v2590, 7
    %v2592 = vsub.s32 4, %v2591
    %v2593 = vrot.slane %v2364, %v2592
    %v2594 = vmul.f32 %v2574, %v2593
    %v2595 = vmul.f32 %v2575, %v2593
    %v2596 = vmul.f32 %v2576, %v2593
    %v2597 = vmul.f32 %v2577, %v2593
    %v2598 = vmul.f32 %v2578, %v2593
    %v2599 = vmul.f32 %v2579, %v2593
    %v2600 = vmul.f32 %v2580, %v2593
    %v2601 = vmul.f32 %v2581, %v2593
    %v2602 = vmul.f32 %v2582, %v2593
    %v2603 = vmul.f32 %v2583, %v2593
    %v2604 = vmul.f32 %v2584, %v2593
    %v2605 = vmul.f32 %v2585, %v2593
    %v2606 = vmul.f32 %v2586, %v2593
    %v2607 = vmul.f32 %v2587, %v2593
    %v2608 = vmul.f32 %v2588, %v2593
    %v2609 = vmul.f32 %v2589, %v2593
    %v2610 = vadd.f32 %v2558, %v2594
    %v2611 = vadd.f32 %v2559, %v2595
    %v2612 = vadd.f32 %v2560, %v2596
    %v2613 = vadd.f32 %v2561, %v2597
    %v2614 = vadd.f32 %v2562, %v2598
    %v2615 = vadd.f32 %v2563, %v2599
    %v2616 = vadd.f32 %v2564, %v2600
    %v2617 = vadd.f32 %v2565, %v2601
    %v2618 = vadd.f32 %v2566, %v2602
    %v2619 = vadd.f32 %v2567, %v2603
    %v2620 = vadd.f32 %v2568, %v2604
    %v2621 = vadd.f32 %v2569, %v2605
    %v2622 = vadd.f32 %v2570, %v2606
    %v2623 = vadd.f32 %v2571, %v2607
    %v2624 = vadd.f32 %v2572, %v2608
    %v2625 = vadd.f32 %v2573, %v2609
    %v2626 = vld [vmem:[%s290 + $0x2] sm:$0xff]
    %v2627 = vld [vmem:[%s290 + $0x12] sm:$0xff]
    %v2628 = vld [vmem:[%s290 + $0x22] sm:$0xff]
    %v2629 = vld [vmem:[%s290 + $0x32] sm:$0xff]
    %v2630 = vld [vmem:[%s290 + $0x42] sm:$0xff]
    %v2631 = vld [vmem:[%s290 + $0x52] sm:$0xff]
    %v2632 = vld [vmem:[%s290 + $0x62] sm:$0xff]
    %v2633 = vld [vmem:[%s290 + $0x72] sm:$0xff]
    %v2634 = vld [vmem:[%s290 + $0xa2] sm:$0xff]
    %v2635 = vld [vmem:[%s290 + $0xb2] sm:$0xff]
    %v2636 = vld [vmem:[%s290 + $0xc2] sm:$0xff]
    %v2637 = vld [vmem:[%s290 + $0xd2] sm:$0xff]
    %v2638 = vld [vmem:[%s290 + $0xe2] sm:$0xff]
    %v2639 = vld [vmem:[%s290 + $0xf2] sm:$0xff]
    %v2640 = vld [vmem:[%s290 + $0x102] sm:$0xff]
    %v2641 = vld [vmem:[%s290 + $0x112] sm:$0xff]
    %v2642 = vlaneseq
    %v2643 = vshrl.u32 %v2642, 7
    %v2644 = vsub.s32 5, %v2643
    %v2645 = vrot.slane %v2364, %v2644
    %v2646 = vmul.f32 %v2626, %v2645
    %v2647 = vmul.f32 %v2627, %v2645
    %v2648 = vmul.f32 %v2628, %v2645
    %v2649 = vmul.f32 %v2629, %v2645
    %v2650 = vmul.f32 %v2630, %v2645
    %v2651 = vmul.f32 %v2631, %v2645
    %v2652 = vmul.f32 %v2632, %v2645
    %v2653 = vmul.f32 %v2633, %v2645
    %v2654 = vmul.f32 %v2634, %v2645
    %v2655 = vmul.f32 %v2635, %v2645
    %v2656 = vmul.f32 %v2636, %v2645
    %v2657 = vmul.f32 %v2637, %v2645
    %v2658 = vmul.f32 %v2638, %v2645
    %v2659 = vmul.f32 %v2639, %v2645
    %v2660 = vmul.f32 %v2640, %v2645
    %v2661 = vmul.f32 %v2641, %v2645
    %v2662 = vadd.f32 %v2610, %v2646
    %v2663 = vadd.f32 %v2611, %v2647
    %v2664 = vadd.f32 %v2612, %v2648
    %v2665 = vadd.f32 %v2613, %v2649
    %v2666 = vadd.f32 %v2614, %v2650
    %v2667 = vadd.f32 %v2615, %v2651
    %v2668 = vadd.f32 %v2616, %v2652
    %v2669 = vadd.f32 %v2617, %v2653
    %v2670 = vadd.f32 %v2618, %v2654
    %v2671 = vadd.f32 %v2619, %v2655
    %v2672 = vadd.f32 %v2620, %v2656
    %v2673 = vadd.f32 %v2621, %v2657
    %v2674 = vadd.f32 %v2622, %v2658
    %v2675 = vadd.f32 %v2623, %v2659
    %v2676 = vadd.f32 %v2624, %v2660
    %v2677 = vadd.f32 %v2625, %v2661
    %v2678 = vld [vmem:[%s825] sm:$0xff]
    %v2679 = vld [vmem:[%s825 + $0x10] sm:$0xff]
    %v2680 = vld [vmem:[%s825 + $0x20] sm:$0xff]
    %v2681 = vld [vmem:[%s825 + $0x30] sm:$0xff]
    %v2682 = vld [vmem:[%s825 + $0x40] sm:$0xff]
    %v2683 = vld [vmem:[%s825 + $0x50] sm:$0xff]
    %v2684 = vld [vmem:[%s825 + $0x60] sm:$0xff]
    %v2685 = vld [vmem:[%s825 + $0x70] sm:$0xff]
    %v2686 = vld [vmem:[%s825 + $0xa0] sm:$0xff]
    %v2687 = vld [vmem:[%s825 + $0xb0] sm:$0xff]
    %v2688 = vld [vmem:[%s825 + $0xc0] sm:$0xff]
    %v2689 = vld [vmem:[%s825 + $0xd0] sm:$0xff]
    %v2690 = vld [vmem:[%s825 + $0xe0] sm:$0xff]
    %v2691 = vld [vmem:[%s825 + $0xf0] sm:$0xff]
    %v2692 = vld [vmem:[%s825 + $0x100] sm:$0xff]
    %v2693 = vld [vmem:[%s825 + $0x110] sm:$0xff]
    %v2694 = vlaneseq
    %v2695 = vshrl.u32 %v2694, 7
    %v2696 = vsub.s32 6, %v2695
    %v2697 = vrot.slane %v2364, %v2696
    %v2698 = vmul.f32 %v2678, %v2697
    %v2699 = vmul.f32 %v2679, %v2697
    %v2700 = vmul.f32 %v2680, %v2697
    %v2701 = vmul.f32 %v2681, %v2697
    %v2702 = vmul.f32 %v2682, %v2697
    %v2703 = vmul.f32 %v2683, %v2697
    %v2704 = vmul.f32 %v2684, %v2697
    %v2705 = vmul.f32 %v2685, %v2697
    %v2706 = vmul.f32 %v2686, %v2697
    %v2707 = vmul.f32 %v2687, %v2697
    %v2708 = vmul.f32 %v2688, %v2697
    %v2709 = vmul.f32 %v2689, %v2697
    %v2710 = vmul.f32 %v2690, %v2697
    %v2711 = vmul.f32 %v2691, %v2697
    %v2712 = vmul.f32 %v2692, %v2697
    %v2713 = vmul.f32 %v2693, %v2697
    %v2714 = vadd.f32 %v2662, %v2698
    %v2715 = vadd.f32 %v2663, %v2699
    %v2716 = vadd.f32 %v2664, %v2700
    %v2717 = vadd.f32 %v2665, %v2701
    %v2718 = vadd.f32 %v2666, %v2702
    %v2719 = vadd.f32 %v2667, %v2703
    %v2720 = vadd.f32 %v2668, %v2704
    %v2721 = vadd.f32 %v2669, %v2705
    %v2722 = vadd.f32 %v2670, %v2706
    %v2723 = vadd.f32 %v2671, %v2707
    %v2724 = vadd.f32 %v2672, %v2708
    %v2725 = vadd.f32 %v2673, %v2709
    %v2726 = vadd.f32 %v2674, %v2710
    %v2727 = vadd.f32 %v2675, %v2711
    %v2728 = vadd.f32 %v2676, %v2712
    %v2729 = vadd.f32 %v2677, %v2713
    %v2730 = vld [vmem:[%s825 + $0x1] sm:$0xff]
    %v2731 = vld [vmem:[%s825 + $0x11] sm:$0xff]
    %v2732 = vld [vmem:[%s825 + $0x21] sm:$0xff]
    %v2733 = vld [vmem:[%s825 + $0x31] sm:$0xff]
    %v2734 = vld [vmem:[%s825 + $0x41] sm:$0xff]
    %v2735 = vld [vmem:[%s825 + $0x51] sm:$0xff]
    %v2736 = vld [vmem:[%s825 + $0x61] sm:$0xff]
    %v2737 = vld [vmem:[%s825 + $0x71] sm:$0xff]
    %v2738 = vld [vmem:[%s825 + $0xa1] sm:$0xff]
    %v2739 = vld [vmem:[%s825 + $0xb1] sm:$0xff]
    %v2740 = vld [vmem:[%s825 + $0xc1] sm:$0xff]
    %v2741 = vld [vmem:[%s825 + $0xd1] sm:$0xff]
    %v2742 = vld [vmem:[%s825 + $0xe1] sm:$0xff]
    %v2743 = vld [vmem:[%s825 + $0xf1] sm:$0xff]
    %v2744 = vld [vmem:[%s825 + $0x101] sm:$0xff]
    %v2745 = vld [vmem:[%s825 + $0x111] sm:$0xff]
    %v2746 = vlaneseq
    %v2747 = vshrl.u32 %v2746, 7
    %v2748 = vsub.s32 7, %v2747
    %v2749 = vrot.slane %v2364, %v2748
    %v2750 = vmul.f32 %v2730, %v2749
    %v2751 = vmul.f32 %v2731, %v2749
    %v2752 = vmul.f32 %v2732, %v2749
    %v2753 = vmul.f32 %v2733, %v2749
    %v2754 = vmul.f32 %v2734, %v2749
    %v2755 = vmul.f32 %v2735, %v2749
    %v2756 = vmul.f32 %v2736, %v2749
    %v2757 = vmul.f32 %v2737, %v2749
    %v2758 = vmul.f32 %v2738, %v2749
    %v2759 = vmul.f32 %v2739, %v2749
    %v2760 = vmul.f32 %v2740, %v2749
    %v2761 = vmul.f32 %v2741, %v2749
    %v2762 = vmul.f32 %v2742, %v2749
    %v2763 = vmul.f32 %v2743, %v2749
    %v2764 = vmul.f32 %v2744, %v2749
    %v2765 = vmul.f32 %v2745, %v2749
    %v2766 = vadd.f32 %v2714, %v2750
    %v2767 = vadd.f32 %v2715, %v2751
    %v2768 = vadd.f32 %v2716, %v2752
    %v2769 = vadd.f32 %v2717, %v2753
    %v2770 = vadd.f32 %v2718, %v2754
    %v2771 = vadd.f32 %v2719, %v2755
    %v2772 = vadd.f32 %v2720, %v2756
    %v2773 = vadd.f32 %v2721, %v2757
    %v2774 = vadd.f32 %v2722, %v2758
    %v2775 = vadd.f32 %v2723, %v2759
    %v2776 = vadd.f32 %v2724, %v2760
    %v2777 = vadd.f32 %v2725, %v2761
    %v2778 = vadd.f32 %v2726, %v2762
    %v2779 = vadd.f32 %v2727, %v2763
    %v2780 = vadd.f32 %v2728, %v2764
    %v2781 = vadd.f32 %v2729, %v2765
    %v2782 = vld [vmem:[%s825 + $0x2] sm:$0xff]
    %v2783 = vld [vmem:[%s825 + $0x12] sm:$0xff]
    %v2784 = vld [vmem:[%s825 + $0x22] sm:$0xff]
    %v2785 = vld [vmem:[%s825 + $0x32] sm:$0xff]
    %v2786 = vld [vmem:[%s825 + $0x42] sm:$0xff]
    %v2787 = vld [vmem:[%s825 + $0x52] sm:$0xff]
    %v2788 = vld [vmem:[%s825 + $0x62] sm:$0xff]
    %v2789 = vld [vmem:[%s825 + $0x72] sm:$0xff]
    %v2790 = vld [vmem:[%s825 + $0xa2] sm:$0xff]
    %v2791 = vld [vmem:[%s825 + $0xb2] sm:$0xff]
    %v2792 = vld [vmem:[%s825 + $0xc2] sm:$0xff]
    %v2793 = vld [vmem:[%s825 + $0xd2] sm:$0xff]
    %v2794 = vld [vmem:[%s825 + $0xe2] sm:$0xff]
    %v2795 = vld [vmem:[%s825 + $0xf2] sm:$0xff]
    %v2796 = vld [vmem:[%s825 + $0x102] sm:$0xff]
    %v2797 = vld [vmem:[%s825 + $0x112] sm:$0xff]
    %v2798 = vlaneseq
    %v2799 = vshrl.u32 %v2798, 7
    %v2800 = vsub.s32 0, %v2799
    %v2801 = vrot.slane %v2365, %v2800
    %v2802 = vmul.f32 %v2782, %v2801
    %v2803 = vmul.f32 %v2783, %v2801
    %v2804 = vmul.f32 %v2784, %v2801
    %v2805 = vmul.f32 %v2785, %v2801
    %v2806 = vmul.f32 %v2786, %v2801
    %v2807 = vmul.f32 %v2787, %v2801
    %v2808 = vmul.f32 %v2788, %v2801
    %v2809 = vmul.f32 %v2789, %v2801
    %v2810 = vmul.f32 %v2790, %v2801
    %v2811 = vmul.f32 %v2791, %v2801
    %v2812 = vmul.f32 %v2792, %v2801
    %v2813 = vmul.f32 %v2793, %v2801
    %v2814 = vmul.f32 %v2794, %v2801
    %v2815 = vmul.f32 %v2795, %v2801
    %v2816 = vmul.f32 %v2796, %v2801
    %v2817 = vmul.f32 %v2797, %v2801
    %v2818 = vadd.f32 %v2766, %v2802
    %v2819 = vadd.f32 %v2767, %v2803
    %v2820 = vadd.f32 %v2768, %v2804
    %v2821 = vadd.f32 %v2769, %v2805
    %v2822 = vadd.f32 %v2770, %v2806
    %v2823 = vadd.f32 %v2771, %v2807
    %v2824 = vadd.f32 %v2772, %v2808
    %v2825 = vadd.f32 %v2773, %v2809
    %v2826 = vadd.f32 %v2774, %v2810
    %v2827 = vadd.f32 %v2775, %v2811
    %v2828 = vadd.f32 %v2776, %v2812
    %v2829 = vadd.f32 %v2777, %v2813
    %v2830 = vadd.f32 %v2778, %v2814
    %v2831 = vadd.f32 %v2779, %v2815
    %v2832 = vadd.f32 %v2780, %v2816
    %v2833 = vadd.f32 %v2781, %v2817
    %v2834 = vld [vmem:[%s12] sm:$0x1]
    %v2836 = vlaneseq
    %v2837 = vshrl.u32 %v2836, 7
    %v2838 = vsub.s32 0, %v2837
    %v2839 = vrot.slane %v2834, %v2838
    %v2841 = vadd.f32 %v2818, %v2839
    %v2842 = vadd.f32 %v2819, %v2839
    %v2843 = vadd.f32 %v2820, %v2839
    %v2844 = vadd.f32 %v2821, %v2839
    %v2845 = vadd.f32 %v2822, %v2839
    %v2846 = vadd.f32 %v2823, %v2839
    %v2847 = vadd.f32 %v2824, %v2839
    %v2848 = vadd.f32 %v2825, %v2839
    %v2849 = vadd.f32 %v2826, %v2839
    %v2850 = vadd.f32 %v2827, %v2839
    %v2851 = vadd.f32 %v2828, %v2839
    %v2852 = vadd.f32 %v2829, %v2839
    %v2853 = vadd.f32 %v2830, %v2839
    %v2854 = vadd.f32 %v2831, %v2839
    %v2855 = vadd.f32 %v2832, %v2839
    %v2856 = vadd.f32 %v2833, %v2839
    %v2857 = vmax.f32 %v2841, 0.0
    %v2858 = vmax.f32 %v2842, 0.0
    %v2859 = vmax.f32 %v2843, 0.0
    %v2860 = vmax.f32 %v2844, 0.0
    %v2861 = vmax.f32 %v2845, 0.0
    %v2862 = vmax.f32 %v2846, 0.0
    %v2863 = vmax.f32 %v2847, 0.0
    %v2864 = vmax.f32 %v2848, 0.0
    %v2865 = vmax.f32 %v2849, 0.0
    %v2866 = vmax.f32 %v2850, 0.0
    %v2867 = vmax.f32 %v2851, 0.0
    %v2868 = vmax.f32 %v2852, 0.0
    %v2869 = vmax.f32 %v2853, 0.0
    %v2870 = vmax.f32 %v2854, 0.0
    %v2871 = vmax.f32 %v2855, 0.0
    %v2872 = vmax.f32 %v2856, 0.0
    %v2873 = vpack.c.bf16 %v2858, %v2857
    %v2874 = vpack.c.bf16 %v2860, %v2859
    %v2875 = vpack.c.bf16 %v2862, %v2861
    %v2876 = vpack.c.bf16 %v2864, %v2863
    %v2877 = vpack.c.bf16 %v2866, %v2865
    %v2878 = vpack.c.bf16 %v2868, %v2867
    %v2879 = vpack.c.bf16 %v2870, %v2869
    %v2880 = vpack.c.bf16 %v2872, %v2871
    %v2881 = vld [vmem:[%s13] sm:$0xf]
    %v2882 = vld [vmem:[%s13 + $0x4] sm:$0xf]
    %v2883 = vld [vmem:[%s13 + $0x8] sm:$0xf]
    %v2884 = vld [vmem:[%s13 + $0xc] sm:$0xf]
    %v2885 = vld [vmem:[%s14] sm:$0x1]
    %v2887 = vlaneseq
    %v2888 = vshrl.u32 %v2887, 7
    %v2889 = vsub.s32 0, %v2888
    %v2890 = vrot.slane %v2885, %v2889
    %v2896 = vunpack.c.l.b16 %v2881
    %v2897 = vunpack.c.l.b16 %v2882
    %v2898 = vunpack.c.l.b16 %v2883
    %v2899 = vunpack.c.l.b16 %v2884
    %v2900 = vpack.c.b16 %v2897, %v2896
    %v2901 = vpack.c.b16 %v2899, %v2898
    %v2905 = vsel %vm222, %v2873, 0
    %v2908 = vsel %vm222, %v2874, 0
    %v2911 = vsel %vm222, %v2875, 0
    %v2914 = vsel %vm222, %v2876, 0
    %v2917 = vsel %vm222, %v2877, 0
    %v2920 = vsel %vm222, %v2878, 0
    %v2923 = vsel %vm222, %v2879, 0
    %v2926 = vsel %vm222, %v2880, 0
    %2928 = vmatprep.subr.bf16.mxu0 0
    %2929 = vmatpush1.bf16.msra.mxu0 %v2900
    %2930 = vmatprep.subr.bf16.mxu0 0
    %2931 = vmatpush1.bf16.msra.mxu0 %v2901
    %2932 = vmatprep.subr.bf16.mxu0 0
    %2933 = vmatpush1.bf16.msra.mxu0 0
    %2934 = vmatprep.subr.bf16.mxu0 0
    %2935 = vmatpush1.bf16.msra.mxu0 0
    %2936 = vmatprep.subr.bf16.mxu0 0
    %2937 = vmatpush1.bf16.msra.mxu0 0
    %2938 = vmatprep.subr.bf16.mxu0 0
    %2939 = vmatpush1.bf16.msra.mxu0 0
    %2940 = vmatprep.subr.bf16.mxu0 0
    %2941 = vmatpush1.bf16.msra.mxu0 0
    %2942 = vmatprep.subr.bf16.mxu0 0
    %2943 = vmatpush1.bf16.msra.mxu0 0
    %2944 = vmatprep.subr.bf16.mxu0 0
    %2945 = vmatpush1.bf16.msra.mxu0 0
    %2946 = vmatprep.subr.bf16.mxu0 0
    %2947 = vmatpush1.bf16.msra.mxu0 0
    %2948 = vmatprep.subr.bf16.mxu0 0
    %2949 = vmatpush1.bf16.msra.mxu0 0
    %2950 = vmatprep.subr.bf16.mxu0 0
    %2951 = vmatpush1.bf16.msra.mxu0 0
    %2952 = vmatprep.subr.bf16.mxu0 0
    %2953 = vmatpush1.bf16.msra.mxu0 0
    %2954 = vmatprep.subr.bf16.mxu0 0
    %2955 = vmatpush1.bf16.msra.mxu0 0
    %2956 = vmatprep.subr.bf16.mxu0 0
    %2957 = vmatpush1.bf16.msra.mxu0 0
    %2958 = vmatprep.subr.bf16.mxu0 0
    %2959 = vmatpush1.bf16.msra.mxu0 0
    %2960 = vmatprep.mubr.bf16.mxu0 0
    %2961 = vmatmul.mubr.bf16.gmra.mrb[0].mxu0 %v2905
    %v2962 = vpop.f32.mrb[0].mxu0
    %v2963 = vadd.f32 %v2890, %v2962
    %v2964 = vpop.f32.mrb[0].mxu0
    %v2965 = vpop.f32.mrb[0].mxu0
    %v2966 = vadd.f32 %v2890, %v2965
    %v2967 = vpop.f32.mrb[0].mxu0
    %2968 = vmatprep.mubr.bf16.mxu0 0
    %2969 = vmatmul.mubr.bf16.gmra.mrb[0].mxu0 %v2908
    %v2970 = vpop.f32.mrb[0].mxu0
    %v2971 = vadd.f32 %v2890, %v2970
    %v2972 = vpop.f32.mrb[0].mxu0
    %v2973 = vpop.f32.mrb[0].mxu0
    %v2974 = vadd.f32 %v2890, %v2973
    %v2975 = vpop.f32.mrb[0].mxu0
    %2976 = vmatprep.mubr.bf16.mxu0 0
    %2977 = vmatmul.mubr.bf16.gmra.mrb[0].mxu0 %v2911
    %v2978 = vpop.f32.mrb[0].mxu0
    %v2979 = vadd.f32 %v2890, %v2978
    %v2980 = vpop.f32.mrb[0].mxu0
    %v2981 = vpop.f32.mrb[0].mxu0
    %v2982 = vadd.f32 %v2890, %v2981
    %v2983 = vpop.f32.mrb[0].mxu0
    %2984 = vmatprep.mubr.bf16.mxu0 0
    %2985 = vmatmul.mubr.bf16.gmra.mrb[0].mxu0 %v2914
    %v2986 = vpop.f32.mrb[0].mxu0
    %v2987 = vadd.f32 %v2890, %v2986
    %v2988 = vpop.f32.mrb[0].mxu0
    %v2989 = vpop.f32.mrb[0].mxu0
    %v2990 = vadd.f32 %v2890, %v2989
    %v2991 = vpop.f32.mrb[0].mxu0
    %2992 = vmatprep.mubr.bf16.mxu0 0
    %2993 = vmatmul.mubr.bf16.gmra.mrb[0].mxu0 %v2917
    %v2994 = vpop.f32.mrb[0].mxu0
    %v2995 = vadd.f32 %v2890, %v2994
    %v2996 = vpop.f32.mrb[0].mxu0
    %v2997 = vpop.f32.mrb[0].mxu0
    %v2998 = vadd.f32 %v2890, %v2997
    %v2999 = vpop.f32.mrb[0].mxu0
    %3000 = vmatprep.mubr.bf16.mxu0 0
    %3001 = vmatmul.mubr.bf16.gmra.mrb[0].mxu0 %v2920
    %v3002 = vpop.f32.mrb[0].mxu0
    %v3003 = vadd.f32 %v2890, %v3002
    %v3004 = vpop.f32.mrb[0].mxu0
    %v3005 = vpop.f32.mrb[0].mxu0
    %v3006 = vadd.f32 %v2890, %v3005
    %v3007 = vpop.f32.mrb[0].mxu0
    %3008 = vmatprep.mubr.bf16.mxu0 0
    %3009 = vmatmul.mubr.bf16.gmra.mrb[0].mxu0 %v2923
    %v3010 = vpop.f32.mrb[0].mxu0
    %v3011 = vadd.f32 %v2890, %v3010
    %v3012 = vpop.f32.mrb[0].mxu0
    %v3013 = vpop.f32.mrb[0].mxu0
    %v3014 = vadd.f32 %v2890, %v3013
    %v3015 = vpop.f32.mrb[0].mxu0
    %3016 = vmatprep.mubr.bf16.mxu0 0
    %3017 = vmatmul.mubr.bf16.gmra.mrb[0].mxu0 %v2926
    %v3018 = vpop.f32.mrb[0].mxu0
    %v3019 = vadd.f32 %v2890, %v3018
    %v3020 = vpop.f32.mrb[0].mxu0
    %v3021 = vpop.f32.mrb[0].mxu0
    %v3022 = vadd.f32 %v2890, %v3021
    %v3023 = vpop.f32.mrb[0].mxu0
    %3024 = vdwg.mxu0
    %v3025 = vadd.f32 %v2963, %v2164
    %v3026 = vadd.f32 %v2966, %v2165
    %v3027 = vadd.f32 %v2971, %v2166
    %v3028 = vadd.f32 %v2974, %v2167
    %v3029 = vadd.f32 %v2979, %v2168
    %v3030 = vadd.f32 %v2982, %v2169
    %v3031 = vadd.f32 %v2987, %v2170
    %v3032 = vadd.f32 %v2990, %v2171
    %v3033 = vadd.f32 %v2995, %v2172
    %v3034 = vadd.f32 %v2998, %v2173
    %v3035 = vadd.f32 %v3003, %v2174
    %v3036 = vadd.f32 %v3006, %v2175
    %v3037 = vadd.f32 %v3011, %v2176
    %v3038 = vadd.f32 %v3014, %v2177
    %v3039 = vadd.f32 %v3019, %v2178
    %v3040 = vadd.f32 %v3022, %v2179
    %v3041 = vpack.c.bf16 %v3026, %v3025
    %v3042 = vpack.c.bf16 %v3028, %v3027
    %v3043 = vpack.c.bf16 %v3030, %v3029
    %v3044 = vpack.c.bf16 %v3032, %v3031
    %v3045 = vpack.c.bf16 %v3034, %v3033
    %v3046 = vpack.c.bf16 %v3036, %v3035
    %v3047 = vpack.c.bf16 %v3038, %v3037
    %v3048 = vpack.c.bf16 %v3040, %v3039
    %v3049 = vld [vmem:[%s15] sm:$0xf]
    %v3050 = vld [vmem:[%s15 + $0x4] sm:$0xf]
    %v3051 = vld [vmem:[%s15 + $0x8] sm:$0xf]
    %v3052 = vld [vmem:[%s15 + $0xc] sm:$0xf]
    %v3053 = vld [vmem:[%s16] sm:$0x1]
    %v3055 = vlaneseq
    %v3056 = vshrl.u32 %v3055, 7
    %v3057 = vsub.s32 0, %v3056
    %v3058 = vrot.slane %v3053, %v3057
    %v3064 = vunpack.c.l.b16 %v3049
    %v3065 = vunpack.c.l.b16 %v3050
    %v3066 = vunpack.c.l.b16 %v3051
    %v3067 = vunpack.c.l.b16 %v3052
    %v3068 = vpack.c.b16 %v3065, %v3064
    %v3069 = vpack.c.b16 %v3067, %v3066
    %v3073 = vsel %vm222, %v3041, 0
    %v3076 = vsel %vm222, %v3042, 0
    %v3079 = vsel %vm222, %v3043, 0
    %v3082 = vsel %vm222, %v3044, 0
    %v3085 = vsel %vm222, %v3045, 0
    %v3088 = vsel %vm222, %v3046, 0
    %v3091 = vsel %vm222, %v3047, 0
    %v3094 = vsel %vm222, %v3048, 0
    %3096 = vmatprep.subr.bf16.mxu0 0
    %3097 = vmatpush1.bf16.msra.mxu0 %v3068
    %3098 = vmatprep.subr.bf16.mxu0 0
    %3099 = vmatpush1.bf16.msra.mxu0 %v3069
    %3100 = vmatprep.subr.bf16.mxu0 0
    %3101 = vmatpush1.bf16.msra.mxu0 0
    %3102 = vmatprep.subr.bf16.mxu0 0
    %3103 = vmatpush1.bf16.msra.mxu0 0
    %3104 = vmatprep.subr.bf16.mxu0 0
    %3105 = vmatpush1.bf16.msra.mxu0 0
    %3106 = vmatprep.subr.bf16.mxu0 0
    %3107 = vmatpush1.bf16.msra.mxu0 0
    %3108 = vmatprep.subr.bf16.mxu0 0
    %3109 = vmatpush1.bf16.msra.mxu0 0
    %3110 = vmatprep.subr.bf16.mxu0 0
    %3111 = vmatpush1.bf16.msra.mxu0 0
    %3112 = vmatprep.subr.bf16.mxu0 0
    %3113 = vmatpush1.bf16.msra.mxu0 0
    %3114 = vmatprep.subr.bf16.mxu0 0
    %3115 = vmatpush1.bf16.msra.mxu0 0
    %3116 = vmatprep.subr.bf16.mxu0 0
    %3117 = vmatpush1.bf16.msra.mxu0 0
    %3118 = vmatprep.subr.bf16.mxu0 0
    %3119 = vmatpush1.bf16.msra.mxu0 0
    %3120 = vmatprep.subr.bf16.mxu0 0
    %3121 = vmatpush1.bf16.msra.mxu0 0
    %3122 = vmatprep.subr.bf16.mxu0 0
    %3123 = vmatpush1.bf16.msra.mxu0 0
    %3124 = vmatprep.subr.bf16.mxu0 0
    %3125 = vmatpush1.bf16.msra.mxu0 0
    %3126 = vmatprep.subr.bf16.mxu0 0
    %3127 = vmatpush1.bf16.msra.mxu0 0
    %3128 = vmatprep.mubr.bf16.mxu0 0
    %3129 = vmatmul.mubr.bf16.gmra.mrb[0].mxu0 %v3073
    %v3130 = vpop.f32.mrb[0].mxu0
    %v3131 = vadd.f32 %v3058, %v3130
    %v3132 = vpop.f32.mrb[0].mxu0
    %v3133 = vpop.f32.mrb[0].mxu0
    %v3134 = vadd.f32 %v3058, %v3133
    %v3135 = vpop.f32.mrb[0].mxu0
    %3136 = vmatprep.mubr.bf16.mxu0 0
    %3137 = vmatmul.mubr.bf16.gmra.mrb[0].mxu0 %v3076
    %v3138 = vpop.f32.mrb[0].mxu0
    %v3139 = vadd.f32 %v3058, %v3138
    %v3140 = vpop.f32.mrb[0].mxu0
    %v3141 = vpop.f32.mrb[0].mxu0
    %v3142 = vadd.f32 %v3058, %v3141
    %v3143 = vpop.f32.mrb[0].mxu0
    %3144 = vmatprep.mubr.bf16.mxu0 0
    %3145 = vmatmul.mubr.bf16.gmra.mrb[0].mxu0 %v3079
    %v3146 = vpop.f32.mrb[0].mxu0
    %v3147 = vadd.f32 %v3058, %v3146
    %v3148 = vpop.f32.mrb[0].mxu0
    %v3149 = vpop.f32.mrb[0].mxu0
    %v3150 = vadd.f32 %v3058, %v3149
    %v3151 = vpop.f32.mrb[0].mxu0
    %3152 = vmatprep.mubr.bf16.mxu0 0
    %3153 = vmatmul.mubr.bf16.gmra.mrb[0].mxu0 %v3082
    %v3154 = vpop.f32.mrb[0].mxu0
    %v3155 = vadd.f32 %v3058, %v3154
    %v3156 = vpop.f32.mrb[0].mxu0
    %v3157 = vpop.f32.mrb[0].mxu0
    %v3158 = vadd.f32 %v3058, %v3157
    %v3159 = vpop.f32.mrb[0].mxu0
    %3160 = vmatprep.mubr.bf16.mxu0 0
    %3161 = vmatmul.mubr.bf16.gmra.mrb[0].mxu0 %v3085
    %v3162 = vpop.f32.mrb[0].mxu0
    %v3163 = vadd.f32 %v3058, %v3162
    %v3164 = vpop.f32.mrb[0].mxu0
    %v3165 = vpop.f32.mrb[0].mxu0
    %v3166 = vadd.f32 %v3058, %v3165
    %v3167 = vpop.f32.mrb[0].mxu0
    %3168 = vmatprep.mubr.bf16.mxu0 0
    %3169 = vmatmul.mubr.bf16.gmra.mrb[0].mxu0 %v3088
    %v3170 = vpop.f32.mrb[0].mxu0
    %v3171 = vadd.f32 %v3058, %v3170
    %v3172 = vpop.f32.mrb[0].mxu0
    %v3173 = vpop.f32.mrb[0].mxu0
    %v3174 = vadd.f32 %v3058, %v3173
    %v3175 = vpop.f32.mrb[0].mxu0
    %3176 = vmatprep.mubr.bf16.mxu0 0
    %3177 = vmatmul.mubr.bf16.gmra.mrb[0].mxu0 %v3091
    %v3178 = vpop.f32.mrb[0].mxu0
    %v3179 = vadd.f32 %v3058, %v3178
    %v3180 = vpop.f32.mrb[0].mxu0
    %v3181 = vpop.f32.mrb[0].mxu0
    %v3182 = vadd.f32 %v3058, %v3181
    %v3183 = vpop.f32.mrb[0].mxu0
    %3184 = vmatprep.mubr.bf16.mxu0 0
    %3185 = vmatmul.mubr.bf16.gmra.mrb[0].mxu0 %v3094
    %v3186 = vpop.f32.mrb[0].mxu0
    %v3187 = vadd.f32 %v3058, %v3186
    %v3188 = vpop.f32.mrb[0].mxu0
    %v3189 = vpop.f32.mrb[0].mxu0
    %v3190 = vadd.f32 %v3058, %v3189
    %v3191 = vpop.f32.mrb[0].mxu0
    %3192 = vdwg.mxu0
    %v3193 = vmax.f32 %v3131, 0.0
    %v3194 = vmax.f32 %v3134, 0.0
    %v3195 = vmax.f32 %v3139, 0.0
    %v3196 = vmax.f32 %v3142, 0.0
    %v3197 = vmax.f32 %v3147, 0.0
    %v3198 = vmax.f32 %v3150, 0.0
    %v3199 = vmax.f32 %v3155, 0.0
    %v3200 = vmax.f32 %v3158, 0.0
    %v3201 = vmax.f32 %v3163, 0.0
    %v3202 = vmax.f32 %v3166, 0.0
    %v3203 = vmax.f32 %v3171, 0.0
    %v3204 = vmax.f32 %v3174, 0.0
    %v3205 = vmax.f32 %v3179, 0.0
    %v3206 = vmax.f32 %v3182, 0.0
    %v3207 = vmax.f32 %v3187, 0.0
    %v3208 = vmax.f32 %v3190, 0.0
    %3209 = vst.msk [vmem:[%s290 + $0x1] sm:$0xff] %vm222, %v3025
    %3210 = vst.msk [vmem:[%s290 + $0x11] sm:$0xff] %vm222, %v3026
    %3211 = vst.msk [vmem:[%s290 + $0x21] sm:$0xff] %vm222, %v3027
    %3212 = vst.msk [vmem:[%s290 + $0x31] sm:$0xff] %vm222, %v3028
    %3213 = vst.msk [vmem:[%s290 + $0x41] sm:$0xff] %vm222, %v3029
    %3214 = vst.msk [vmem:[%s290 + $0x51] sm:$0xff] %vm222, %v3030
    %3215 = vst.msk [vmem:[%s290 + $0x61] sm:$0xff] %vm222, %v3031
    %3216 = vst.msk [vmem:[%s290 + $0x71] sm:$0xff] %vm222, %v3032
    %3217 = vst.msk [vmem:[%s290 + $0xa1] sm:$0xff] %vm222, %v3033
    %3218 = vst.msk [vmem:[%s290 + $0xb1] sm:$0xff] %vm222, %v3034
    %3219 = vst.msk [vmem:[%s290 + $0xc1] sm:$0xff] %vm222, %v3035
    %3220 = vst.msk [vmem:[%s290 + $0xd1] sm:$0xff] %vm222, %v3036
    %3221 = vst.msk [vmem:[%s290 + $0xe1] sm:$0xff] %vm222, %v3037
    %3222 = vst.msk [vmem:[%s290 + $0xf1] sm:$0xff] %vm222, %v3038
    %3223 = vst.msk [vmem:[%s290 + $0x101] sm:$0xff] %vm222, %v3039
    %3224 = vst.msk [vmem:[%s290 + $0x111] sm:$0xff] %vm222, %v3040
    %v3225 = vld [vmem:[#allocation2] sm:$0xff]
    %v3226 = vld [vmem:[#allocation2 + $0x10] sm:$0xff]
    %v3227 = vld [vmem:[#allocation2 + $0x20] sm:$0xff]
    %v3228 = vld [vmem:[#allocation2 + $0x30] sm:$0xff]
    %v3229 = vld [vmem:[#allocation2 + $0x40] sm:$0xff]
    %v3230 = vld [vmem:[#allocation2 + $0x50] sm:$0xff]
    %v3231 = vld [vmem:[#allocation2 + $0x60] sm:$0xff]
    %v3232 = vld [vmem:[#allocation2 + $0x70] sm:$0xff]
    %v3233 = vld [vmem:[#allocation2 + $0xa0] sm:$0xff]
    %v3234 = vld [vmem:[#allocation2 + $0xb0] sm:$0xff]
    %v3235 = vld [vmem:[#allocation2 + $0xc0] sm:$0xff]
    %v3236 = vld [vmem:[#allocation2 + $0xd0] sm:$0xff]
    %v3237 = vld [vmem:[#allocation2 + $0xe0] sm:$0xff]
    %v3238 = vld [vmem:[#allocation2 + $0xf0] sm:$0xff]
    %v3239 = vld [vmem:[#allocation2 + $0x100] sm:$0xff]
    %v3240 = vld [vmem:[#allocation2 + $0x110] sm:$0xff]
    %3241 = vst.msk [vmem:[#allocation3] sm:$0xff] %vm222, %v3225
    %3242 = vst.msk [vmem:[#allocation3 + $0x18] sm:$0xff] %vm222, %v3226
    %3243 = vst.msk [vmem:[#allocation3 + $0x30] sm:$0xff] %vm222, %v3227
    %3244 = vst.msk [vmem:[#allocation3 + $0x48] sm:$0xff] %vm222, %v3228
    %3245 = vst.msk [vmem:[#allocation3 + $0x60] sm:$0xff] %vm222, %v3229
    %3246 = vst.msk [vmem:[#allocation3 + $0x78] sm:$0xff] %vm222, %v3230
    %3247 = vst.msk [vmem:[#allocation3 + $0x90] sm:$0xff] %vm222, %v3231
    %3248 = vst.msk [vmem:[#allocation3 + $0xa8] sm:$0xff] %vm222, %v3232
    %3249 = vst.msk [vmem:[#allocation3 + $0xc0] sm:$0xff] %vm222, %v3233
    %3250 = vst.msk [vmem:[#allocation3 + $0xd8] sm:$0xff] %vm222, %v3234
    %3251 = vst.msk [vmem:[#allocation3 + $0xf0] sm:$0xff] %vm222, %v3235
    %3252 = vst.msk [vmem:[#allocation3 + $0x108] sm:$0xff] %vm222, %v3236
    %3253 = vst.msk [vmem:[#allocation3 + $0x120] sm:$0xff] %vm222, %v3237
    %3254 = vst.msk [vmem:[#allocation3 + $0x138] sm:$0xff] %vm222, %v3238
    %3255 = vst.msk [vmem:[#allocation3 + $0x150] sm:$0xff] %vm222, %v3239
    %3256 = vst.msk [vmem:[#allocation3 + $0x168] sm:$0xff] %vm222, %v3240
    %v3257 = vld [vmem:[#allocation2 + $0x1] sm:$0xff]
    %v3258 = vld [vmem:[#allocation2 + $0x11] sm:$0xff]
    %v3259 = vld [vmem:[#allocation2 + $0x21] sm:$0xff]
    %v3260 = vld [vmem:[#allocation2 + $0x31] sm:$0xff]
    %v3261 = vld [vmem:[#allocation2 + $0x41] sm:$0xff]
    %v3262 = vld [vmem:[#allocation2 + $0x51] sm:$0xff]
    %v3263 = vld [vmem:[#allocation2 + $0x61] sm:$0xff]
    %v3264 = vld [vmem:[#allocation2 + $0x71] sm:$0xff]
    %v3265 = vld [vmem:[#allocation2 + $0xa1] sm:$0xff]
    %v3266 = vld [vmem:[#allocation2 + $0xb1] sm:$0xff]
    %v3267 = vld [vmem:[#allocation2 + $0xc1] sm:$0xff]
    %v3268 = vld [vmem:[#allocation2 + $0xd1] sm:$0xff]
    %v3269 = vld [vmem:[#allocation2 + $0xe1] sm:$0xff]
    %v3270 = vld [vmem:[#allocation2 + $0xf1] sm:$0xff]
    %v3271 = vld [vmem:[#allocation2 + $0x101] sm:$0xff]
    %v3272 = vld [vmem:[#allocation2 + $0x111] sm:$0xff]
    %3289 = vrot.lane.b32.xlu0 %v3257, 32
    %v3290 = vpop.permute.xlu0 %3289
    %3291 = vrot.lane.b32.xlu0 %v3258, 32
    %v3292 = vpop.permute.xlu0 %3291
    %3293 = vrot.lane.b32.xlu0 %v3259, 32
    %v3294 = vpop.permute.xlu0 %3293
    %3295 = vrot.lane.b32.xlu0 %v3260, 32
    %v3296 = vpop.permute.xlu0 %3295
    %3297 = vrot.lane.b32.xlu0 %v3261, 32
    %v3298 = vpop.permute.xlu0 %3297
    %3299 = vrot.lane.b32.xlu0 %v3262, 32
    %v3300 = vpop.permute.xlu0 %3299
    %3301 = vrot.lane.b32.xlu0 %v3263, 32
    %v3302 = vpop.permute.xlu0 %3301
    %3303 = vrot.lane.b32.xlu0 %v3264, 32
    %v3304 = vpop.permute.xlu0 %3303
    %3305 = vrot.lane.b32.xlu0 %v3265, 32
    %v3306 = vpop.permute.xlu0 %3305
    %3307 = vrot.lane.b32.xlu0 %v3266, 32
    %v3308 = vpop.permute.xlu0 %3307
    %3309 = vrot.lane.b32.xlu0 %v3267, 32
    %v3310 = vpop.permute.xlu0 %3309
    %3311 = vrot.lane.b32.xlu0 %v3268, 32
    %v3312 = vpop.permute.xlu0 %3311
    %3313 = vrot.lane.b32.xlu0 %v3269, 32
    %v3314 = vpop.permute.xlu0 %3313
    %3315 = vrot.lane.b32.xlu0 %v3270, 32
    %v3316 = vpop.permute.xlu0 %3315
    %3317 = vrot.lane.b32.xlu0 %v3271, 32
    %v3318 = vpop.permute.xlu0 %3317
    %3319 = vrot.lane.b32.xlu0 %v3272, 32
    %v3320 = vpop.permute.xlu0 %3319
    %vm3337 = vcmask 523520
    %3338 = vst.msk [vmem:[#allocation3] sm:$0xff] %vm3337, %v3290
    %3339 = vst.msk [vmem:[#allocation3 + $0x18] sm:$0xff] %vm3337, %v3292
    %3340 = vst.msk [vmem:[#allocation3 + $0x30] sm:$0xff] %vm3337, %v3294
    %3341 = vst.msk [vmem:[#allocation3 + $0x48] sm:$0xff] %vm3337, %v3296
    %3342 = vst.msk [vmem:[#allocation3 + $0x60] sm:$0xff] %vm3337, %v3298
    %3343 = vst.msk [vmem:[#allocation3 + $0x78] sm:$0xff] %vm3337, %v3300
    %3344 = vst.msk [vmem:[#allocation3 + $0x90] sm:$0xff] %vm3337, %v3302
    %3345 = vst.msk [vmem:[#allocation3 + $0xa8] sm:$0xff] %vm3337, %v3304
    %3346 = vst.msk [vmem:[#allocation3 + $0xc0] sm:$0xff] %vm3337, %v3306
    %3347 = vst.msk [vmem:[#allocation3 + $0xd8] sm:$0xff] %vm3337, %v3308
    %3348 = vst.msk [vmem:[#allocation3 + $0xf0] sm:$0xff] %vm3337, %v3310
    %3349 = vst.msk [vmem:[#allocation3 + $0x108] sm:$0xff] %vm3337, %v3312
    %3350 = vst.msk [vmem:[#allocation3 + $0x120] sm:$0xff] %vm3337, %v3314
    %3351 = vst.msk [vmem:[#allocation3 + $0x138] sm:$0xff] %vm3337, %v3316
    %3352 = vst.msk [vmem:[#allocation3 + $0x150] sm:$0xff] %vm3337, %v3318
    %3353 = vst.msk [vmem:[#allocation3 + $0x168] sm:$0xff] %vm3337, %v3320
    %v3354 = vld [vmem:[#allocation2 + $0x2] sm:$0xff]
    %v3355 = vld [vmem:[#allocation2 + $0x12] sm:$0xff]
    %v3356 = vld [vmem:[#allocation2 + $0x22] sm:$0xff]
    %v3357 = vld [vmem:[#allocation2 + $0x32] sm:$0xff]
    %v3358 = vld [vmem:[#allocation2 + $0x42] sm:$0xff]
    %v3359 = vld [vmem:[#allocation2 + $0x52] sm:$0xff]
    %v3360 = vld [vmem:[#allocation2 + $0x62] sm:$0xff]
    %v3361 = vld [vmem:[#allocation2 + $0x72] sm:$0xff]
    %v3362 = vld [vmem:[#allocation2 + $0xa2] sm:$0xff]
    %v3363 = vld [vmem:[#allocation2 + $0xb2] sm:$0xff]
    %v3364 = vld [vmem:[#allocation2 + $0xc2] sm:$0xff]
    %v3365 = vld [vmem:[#allocation2 + $0xd2] sm:$0xff]
    %v3366 = vld [vmem:[#allocation2 + $0xe2] sm:$0xff]
    %v3367 = vld [vmem:[#allocation2 + $0xf2] sm:$0xff]
    %v3368 = vld [vmem:[#allocation2 + $0x102] sm:$0xff]
    %v3369 = vld [vmem:[#allocation2 + $0x112] sm:$0xff]
    %3386 = vrot.lane.b32.xlu0 %v3354, 64
    %v3387 = vpop.permute.xlu0 %3386
    %3388 = vrot.lane.b32.xlu0 %v3355, 64
    %v3389 = vpop.permute.xlu0 %3388
    %3390 = vrot.lane.b32.xlu0 %v3356, 64
    %v3391 = vpop.permute.xlu0 %3390
    %3392 = vrot.lane.b32.xlu0 %v3357, 64
    %v3393 = vpop.permute.xlu0 %3392
    %3394 = vrot.lane.b32.xlu0 %v3358, 64
    %v3395 = vpop.permute.xlu0 %3394
    %3396 = vrot.lane.b32.xlu0 %v3359, 64
    %v3397 = vpop.permute.xlu0 %3396
    %3398 = vrot.lane.b32.xlu0 %v3360, 64
    %v3399 = vpop.permute.xlu0 %3398
    %3400 = vrot.lane.b32.xlu0 %v3361, 64
    %v3401 = vpop.permute.xlu0 %3400
    %3402 = vrot.lane.b32.xlu0 %v3362, 64
    %v3403 = vpop.permute.xlu0 %3402
    %3404 = vrot.lane.b32.xlu0 %v3363, 64
    %v3405 = vpop.permute.xlu0 %3404
    %3406 = vrot.lane.b32.xlu0 %v3364, 64
    %v3407 = vpop.permute.xlu0 %3406
    %3408 = vrot.lane.b32.xlu0 %v3365, 64
    %v3409 = vpop.permute.xlu0 %3408
    %3410 = vrot.lane.b32.xlu0 %v3366, 64
    %v3411 = vpop.permute.xlu0 %3410
    %3412 = vrot.lane.b32.xlu0 %v3367, 64
    %v3413 = vpop.permute.xlu0 %3412
    %3414 = vrot.lane.b32.xlu0 %v3368, 64
    %v3415 = vpop.permute.xlu0 %3414
    %3416 = vrot.lane.b32.xlu0 %v3369, 64
    %v3417 = vpop.permute.xlu0 %3416
    %vm3434 = vcmask 785920
    %3435 = vst.msk [vmem:[#allocation3] sm:$0xff] %vm3434, %v3387
    %3436 = vst.msk [vmem:[#allocation3 + $0x18] sm:$0xff] %vm3434, %v3389
    %3437 = vst.msk [vmem:[#allocation3 + $0x30] sm:$0xff] %vm3434, %v3391
    %3438 = vst.msk [vmem:[#allocation3 + $0x48] sm:$0xff] %vm3434, %v3393
    %3439 = vst.msk [vmem:[#allocation3 + $0x60] sm:$0xff] %vm3434, %v3395
    %3440 = vst.msk [vmem:[#allocation3 + $0x78] sm:$0xff] %vm3434, %v3397
    %3441 = vst.msk [vmem:[#allocation3 + $0x90] sm:$0xff] %vm3434, %v3399
    %3442 = vst.msk [vmem:[#allocation3 + $0xa8] sm:$0xff] %vm3434, %v3401
    %3443 = vst.msk [vmem:[#allocation3 + $0xc0] sm:$0xff] %vm3434, %v3403
    %3444 = vst.msk [vmem:[#allocation3 + $0xd8] sm:$0xff] %vm3434, %v3405
    %3445 = vst.msk [vmem:[#allocation3 + $0xf0] sm:$0xff] %vm3434, %v3407
    %3446 = vst.msk [vmem:[#allocation3 + $0x108] sm:$0xff] %vm3434, %v3409
    %3447 = vst.msk [vmem:[#allocation3 + $0x120] sm:$0xff] %vm3434, %v3411
    %3448 = vst.msk [vmem:[#allocation3 + $0x138] sm:$0xff] %vm3434, %v3413
    %3449 = vst.msk [vmem:[#allocation3 + $0x150] sm:$0xff] %vm3434, %v3415
    %3450 = vst.msk [vmem:[#allocation3 + $0x168] sm:$0xff] %vm3434, %v3417
    %v3451 = vld [vmem:[%s290] sm:$0xff]
    %v3452 = vld [vmem:[%s290 + $0x10] sm:$0xff]
    %v3453 = vld [vmem:[%s290 + $0x20] sm:$0xff]
    %v3454 = vld [vmem:[%s290 + $0x30] sm:$0xff]
    %v3455 = vld [vmem:[%s290 + $0x40] sm:$0xff]
    %v3456 = vld [vmem:[%s290 + $0x50] sm:$0xff]
    %v3457 = vld [vmem:[%s290 + $0x60] sm:$0xff]
    %v3458 = vld [vmem:[%s290 + $0x70] sm:$0xff]
    %v3459 = vld [vmem:[%s290 + $0xa0] sm:$0xff]
    %v3460 = vld [vmem:[%s290 + $0xb0] sm:$0xff]
    %v3461 = vld [vmem:[%s290 + $0xc0] sm:$0xff]
    %v3462 = vld [vmem:[%s290 + $0xd0] sm:$0xff]
    %v3463 = vld [vmem:[%s290 + $0xe0] sm:$0xff]
    %v3464 = vld [vmem:[%s290 + $0xf0] sm:$0xff]
    %v3465 = vld [vmem:[%s290 + $0x100] sm:$0xff]
    %v3466 = vld [vmem:[%s290 + $0x110] sm:$0xff]
    %3483 = vrot.lane.b32.xlu0 %v3451, 96
    %v3484 = vpop.permute.xlu0 %3483
    %3485 = vrot.lane.b32.xlu0 %v3452, 96
    %v3486 = vpop.permute.xlu0 %3485
    %3487 = vrot.lane.b32.xlu0 %v3453, 96
    %v3488 = vpop.permute.xlu0 %3487
    %3489 = vrot.lane.b32.xlu0 %v3454, 96
    %v3490 = vpop.permute.xlu0 %3489
    %3491 = vrot.lane.b32.xlu0 %v3455, 96
    %v3492 = vpop.permute.xlu0 %3491
    %3493 = vrot.lane.b32.xlu0 %v3456, 96
    %v3494 = vpop.permute.xlu0 %3493
    %3495 = vrot.lane.b32.xlu0 %v3457, 96
    %v3496 = vpop.permute.xlu0 %3495
    %3497 = vrot.lane.b32.xlu0 %v3458, 96
    %v3498 = vpop.permute.xlu0 %3497
    %3499 = vrot.lane.b32.xlu0 %v3459, 96
    %v3500 = vpop.permute.xlu0 %3499
    %3501 = vrot.lane.b32.xlu0 %v3460, 96
    %v3502 = vpop.permute.xlu0 %3501
    %3503 = vrot.lane.b32.xlu0 %v3461, 96
    %v3504 = vpop.permute.xlu0 %3503
    %3505 = vrot.lane.b32.xlu0 %v3462, 96
    %v3506 = vpop.permute.xlu0 %3505
    %3507 = vrot.lane.b32.xlu0 %v3463, 96
    %v3508 = vpop.permute.xlu0 %3507
    %3509 = vrot.lane.b32.xlu0 %v3464, 96
    %v3510 = vpop.permute.xlu0 %3509
    %3511 = vrot.lane.b32.xlu0 %v3465, 96
    %v3512 = vpop.permute.xlu0 %3511
    %3513 = vrot.lane.b32.xlu0 %v3466, 96
    %v3514 = vpop.permute.xlu0 %3513
    %vm3531 = vcmask 1048320
    %3532 = vst.msk [vmem:[#allocation3] sm:$0xff] %vm3531, %v3484
    %3533 = vst.msk [vmem:[#allocation3 + $0x18] sm:$0xff] %vm3531, %v3486
    %3534 = vst.msk [vmem:[#allocation3 + $0x30] sm:$0xff] %vm3531, %v3488
    %3535 = vst.msk [vmem:[#allocation3 + $0x48] sm:$0xff] %vm3531, %v3490
    %3536 = vst.msk [vmem:[#allocation3 + $0x60] sm:$0xff] %vm3531, %v3492
    %3537 = vst.msk [vmem:[#allocation3 + $0x78] sm:$0xff] %vm3531, %v3494
    %3538 = vst.msk [vmem:[#allocation3 + $0x90] sm:$0xff] %vm3531, %v3496
    %3539 = vst.msk [vmem:[#allocation3 + $0xa8] sm:$0xff] %vm3531, %v3498
    %3540 = vst.msk [vmem:[#allocation3 + $0xc0] sm:$0xff] %vm3531, %v3500
    %3541 = vst.msk [vmem:[#allocation3 + $0xd8] sm:$0xff] %vm3531, %v3502
    %3542 = vst.msk [vmem:[#allocation3 + $0xf0] sm:$0xff] %vm3531, %v3504
    %3543 = vst.msk [vmem:[#allocation3 + $0x108] sm:$0xff] %vm3531, %v3506
    %3544 = vst.msk [vmem:[#allocation3 + $0x120] sm:$0xff] %vm3531, %v3508
    %3545 = vst.msk [vmem:[#allocation3 + $0x138] sm:$0xff] %vm3531, %v3510
    %3546 = vst.msk [vmem:[#allocation3 + $0x150] sm:$0xff] %vm3531, %v3512
    %3547 = vst.msk [vmem:[#allocation3 + $0x168] sm:$0xff] %vm3531, %v3514
    %v3548 = vld [vmem:[%s290 + $0x1] sm:$0xff]
    %v3549 = vld [vmem:[%s290 + $0x11] sm:$0xff]
    %v3550 = vld [vmem:[%s290 + $0x21] sm:$0xff]
    %v3551 = vld [vmem:[%s290 + $0x31] sm:$0xff]
    %v3552 = vld [vmem:[%s290 + $0x41] sm:$0xff]
    %v3553 = vld [vmem:[%s290 + $0x51] sm:$0xff]
    %v3554 = vld [vmem:[%s290 + $0x61] sm:$0xff]
    %v3555 = vld [vmem:[%s290 + $0x71] sm:$0xff]
    %v3556 = vld [vmem:[%s290 + $0xa1] sm:$0xff]
    %v3557 = vld [vmem:[%s290 + $0xb1] sm:$0xff]
    %v3558 = vld [vmem:[%s290 + $0xc1] sm:$0xff]
    %v3559 = vld [vmem:[%s290 + $0xd1] sm:$0xff]
    %v3560 = vld [vmem:[%s290 + $0xe1] sm:$0xff]
    %v3561 = vld [vmem:[%s290 + $0xf1] sm:$0xff]
    %v3562 = vld [vmem:[%s290 + $0x101] sm:$0xff]
    %v3563 = vld [vmem:[%s290 + $0x111] sm:$0xff]
    %3564 = vst.msk [vmem:[#allocation3 + $0x8] sm:$0xff] %vm222, %v3548
    %3565 = vst.msk [vmem:[#allocation3 + $0x20] sm:$0xff] %vm222, %v3549
    %3566 = vst.msk [vmem:[#allocation3 + $0x38] sm:$0xff] %vm222, %v3550
    %3567 = vst.msk [vmem:[#allocation3 + $0x50] sm:$0xff] %vm222, %v3551
    %3568 = vst.msk [vmem:[#allocation3 + $0x68] sm:$0xff] %vm222, %v3552
    %3569 = vst.msk [vmem:[#allocation3 + $0x80] sm:$0xff] %vm222, %v3553
    %3570 = vst.msk [vmem:[#allocation3 + $0x98] sm:$0xff] %vm222, %v3554
    %3571 = vst.msk [vmem:[#allocation3 + $0xb0] sm:$0xff] %vm222, %v3555
    %3572 = vst.msk [vmem:[#allocation3 + $0xc8] sm:$0xff] %vm222, %v3556
    %3573 = vst.msk [vmem:[#allocation3 + $0xe0] sm:$0xff] %vm222, %v3557
    %3574 = vst.msk [vmem:[#allocation3 + $0xf8] sm:$0xff] %vm222, %v3558
    %3575 = vst.msk [vmem:[#allocation3 + $0x110] sm:$0xff] %vm222, %v3559
    %3576 = vst.msk [vmem:[#allocation3 + $0x128] sm:$0xff] %vm222, %v3560
    %3577 = vst.msk [vmem:[#allocation3 + $0x140] sm:$0xff] %vm222, %v3561
    %3578 = vst.msk [vmem:[#allocation3 + $0x158] sm:$0xff] %vm222, %v3562
    %3579 = vst.msk [vmem:[#allocation3 + $0x170] sm:$0xff] %vm222, %v3563
    %v3580 = vld [vmem:[%s290 + $0x2] sm:$0xff]
    %v3581 = vld [vmem:[%s290 + $0x12] sm:$0xff]
    %v3582 = vld [vmem:[%s290 + $0x22] sm:$0xff]
    %v3583 = vld [vmem:[%s290 + $0x32] sm:$0xff]
    %v3584 = vld [vmem:[%s290 + $0x42] sm:$0xff]
    %v3585 = vld [vmem:[%s290 + $0x52] sm:$0xff]
    %v3586 = vld [vmem:[%s290 + $0x62] sm:$0xff]
    %v3587 = vld [vmem:[%s290 + $0x72] sm:$0xff]
    %v3588 = vld [vmem:[%s290 + $0xa2] sm:$0xff]
    %v3589 = vld [vmem:[%s290 + $0xb2] sm:$0xff]
    %v3590 = vld [vmem:[%s290 + $0xc2] sm:$0xff]
    %v3591 = vld [vmem:[%s290 + $0xd2] sm:$0xff]
    %v3592 = vld [vmem:[%s290 + $0xe2] sm:$0xff]
    %v3593 = vld [vmem:[%s290 + $0xf2] sm:$0xff]
    %v3594 = vld [vmem:[%s290 + $0x102] sm:$0xff]
    %v3595 = vld [vmem:[%s290 + $0x112] sm:$0xff]
    %3612 = vrot.lane.b32.xlu0 %v3580, 32
    %v3613 = vpop.permute.xlu0 %3612
    %3614 = vrot.lane.b32.xlu0 %v3581, 32
    %v3615 = vpop.permute.xlu0 %3614
    %3616 = vrot.lane.b32.xlu0 %v3582, 32
    %v3617 = vpop.permute.xlu0 %3616
    %3618 = vrot.lane.b32.xlu0 %v3583, 32
    %v3619 = vpop.permute.xlu0 %3618
    %3620 = vrot.lane.b32.xlu0 %v3584, 32
    %v3621 = vpop.permute.xlu0 %3620
    %3622 = vrot.lane.b32.xlu0 %v3585, 32
    %v3623 = vpop.permute.xlu0 %3622
    %3624 = vrot.lane.b32.xlu0 %v3586, 32
    %v3625 = vpop.permute.xlu0 %3624
    %3626 = vrot.lane.b32.xlu0 %v3587, 32
    %v3627 = vpop.permute.xlu0 %3626
    %3628 = vrot.lane.b32.xlu0 %v3588, 32
    %v3629 = vpop.permute.xlu0 %3628
    %3630 = vrot.lane.b32.xlu0 %v3589, 32
    %v3631 = vpop.permute.xlu0 %3630
    %3632 = vrot.lane.b32.xlu0 %v3590, 32
    %v3633 = vpop.permute.xlu0 %3632
    %3634 = vrot.lane.b32.xlu0 %v3591, 32
    %v3635 = vpop.permute.xlu0 %3634
    %3636 = vrot.lane.b32.xlu0 %v3592, 32
    %v3637 = vpop.permute.xlu0 %3636
    %3638 = vrot.lane.b32.xlu0 %v3593, 32
    %v3639 = vpop.permute.xlu0 %3638
    %3640 = vrot.lane.b32.xlu0 %v3594, 32
    %v3641 = vpop.permute.xlu0 %3640
    %3642 = vrot.lane.b32.xlu0 %v3595, 32
    %v3643 = vpop.permute.xlu0 %3642
    %3660 = vst.msk [vmem:[#allocation3 + $0x8] sm:$0xff] %vm3337, %v3613
    %3661 = vst.msk [vmem:[#allocation3 + $0x20] sm:$0xff] %vm3337, %v3615
    %3662 = vst.msk [vmem:[#allocation3 + $0x38] sm:$0xff] %vm3337, %v3617
    %3663 = vst.msk [vmem:[#allocation3 + $0x50] sm:$0xff] %vm3337, %v3619
    %3664 = vst.msk [vmem:[#allocation3 + $0x68] sm:$0xff] %vm3337, %v3621
    %3665 = vst.msk [vmem:[#allocation3 + $0x80] sm:$0xff] %vm3337, %v3623
    %3666 = vst.msk [vmem:[#allocation3 + $0x98] sm:$0xff] %vm3337, %v3625
    %3667 = vst.msk [vmem:[#allocation3 + $0xb0] sm:$0xff] %vm3337, %v3627
    %3668 = vst.msk [vmem:[#allocation3 + $0xc8] sm:$0xff] %vm3337, %v3629
    %3669 = vst.msk [vmem:[#allocation3 + $0xe0] sm:$0xff] %vm3337, %v3631
    %3670 = vst.msk [vmem:[#allocation3 + $0xf8] sm:$0xff] %vm3337, %v3633
    %3671 = vst.msk [vmem:[#allocation3 + $0x110] sm:$0xff] %vm3337, %v3635
    %3672 = vst.msk [vmem:[#allocation3 + $0x128] sm:$0xff] %vm3337, %v3637
    %3673 = vst.msk [vmem:[#allocation3 + $0x140] sm:$0xff] %vm3337, %v3639
    %3674 = vst.msk [vmem:[#allocation3 + $0x158] sm:$0xff] %vm3337, %v3641
    %3675 = vst.msk [vmem:[#allocation3 + $0x170] sm:$0xff] %vm3337, %v3643
    %v3676 = vld [vmem:[%s825] sm:$0xff]
    %v3677 = vld [vmem:[%s825 + $0x10] sm:$0xff]
    %v3678 = vld [vmem:[%s825 + $0x20] sm:$0xff]
    %v3679 = vld [vmem:[%s825 + $0x30] sm:$0xff]
    %v3680 = vld [vmem:[%s825 + $0x40] sm:$0xff]
    %v3681 = vld [vmem:[%s825 + $0x50] sm:$0xff]
    %v3682 = vld [vmem:[%s825 + $0x60] sm:$0xff]
    %v3683 = vld [vmem:[%s825 + $0x70] sm:$0xff]
    %v3684 = vld [vmem:[%s825 + $0xa0] sm:$0xff]
    %v3685 = vld [vmem:[%s825 + $0xb0] sm:$0xff]
    %v3686 = vld [vmem:[%s825 + $0xc0] sm:$0xff]
    %v3687 = vld [vmem:[%s825 + $0xd0] sm:$0xff]
    %v3688 = vld [vmem:[%s825 + $0xe0] sm:$0xff]
    %v3689 = vld [vmem:[%s825 + $0xf0] sm:$0xff]
    %v3690 = vld [vmem:[%s825 + $0x100] sm:$0xff]
    %v3691 = vld [vmem:[%s825 + $0x110] sm:$0xff]
    %3708 = vrot.lane.b32.xlu0 %v3676, 64
    %v3709 = vpop.permute.xlu0 %3708
    %3710 = vrot.lane.b32.xlu0 %v3677, 64
    %v3711 = vpop.permute.xlu0 %3710
    %3712 = vrot.lane.b32.xlu0 %v3678, 64
    %v3713 = vpop.permute.xlu0 %3712
    %3714 = vrot.lane.b32.xlu0 %v3679, 64
    %v3715 = vpop.permute.xlu0 %3714
    %3716 = vrot.lane.b32.xlu0 %v3680, 64
    %v3717 = vpop.permute.xlu0 %3716
    %3718 = vrot.lane.b32.xlu0 %v3681, 64
    %v3719 = vpop.permute.xlu0 %3718
    %3720 = vrot.lane.b32.xlu0 %v3682, 64
    %v3721 = vpop.permute.xlu0 %3720
    %3722 = vrot.lane.b32.xlu0 %v3683, 64
    %v3723 = vpop.permute.xlu0 %3722
    %3724 = vrot.lane.b32.xlu0 %v3684, 64
    %v3725 = vpop.permute.xlu0 %3724
    %3726 = vrot.lane.b32.xlu0 %v3685, 64
    %v3727 = vpop.permute.xlu0 %3726
    %3728 = vrot.lane.b32.xlu0 %v3686, 64
    %v3729 = vpop.permute.xlu0 %3728
    %3730 = vrot.lane.b32.xlu0 %v3687, 64
    %v3731 = vpop.permute.xlu0 %3730
    %3732 = vrot.lane.b32.xlu0 %v3688, 64
    %v3733 = vpop.permute.xlu0 %3732
    %3734 = vrot.lane.b32.xlu0 %v3689, 64
    %v3735 = vpop.permute.xlu0 %3734
    %3736 = vrot.lane.b32.xlu0 %v3690, 64
    %v3737 = vpop.permute.xlu0 %3736
    %3738 = vrot.lane.b32.xlu0 %v3691, 64
    %v3739 = vpop.permute.xlu0 %3738
    %3756 = vst.msk [vmem:[#allocation3 + $0x8] sm:$0xff] %vm3434, %v3709
    %3757 = vst.msk [vmem:[#allocation3 + $0x20] sm:$0xff] %vm3434, %v3711
    %3758 = vst.msk [vmem:[#allocation3 + $0x38] sm:$0xff] %vm3434, %v3713
    %3759 = vst.msk [vmem:[#allocation3 + $0x50] sm:$0xff] %vm3434, %v3715
    %3760 = vst.msk [vmem:[#allocation3 + $0x68] sm:$0xff] %vm3434, %v3717
    %3761 = vst.msk [vmem:[#allocation3 + $0x80] sm:$0xff] %vm3434, %v3719
    %3762 = vst.msk [vmem:[#allocation3 + $0x98] sm:$0xff] %vm3434, %v3721
    %3763 = vst.msk [vmem:[#allocation3 + $0xb0] sm:$0xff] %vm3434, %v3723
    %3764 = vst.msk [vmem:[#allocation3 + $0xc8] sm:$0xff] %vm3434, %v3725
    %3765 = vst.msk [vmem:[#allocation3 + $0xe0] sm:$0xff] %vm3434, %v3727
    %3766 = vst.msk [vmem:[#allocation3 + $0xf8] sm:$0xff] %vm3434, %v3729
    %3767 = vst.msk [vmem:[#allocation3 + $0x110] sm:$0xff] %vm3434, %v3731
    %3768 = vst.msk [vmem:[#allocation3 + $0x128] sm:$0xff] %vm3434, %v3733
    %3769 = vst.msk [vmem:[#allocation3 + $0x140] sm:$0xff] %vm3434, %v3735
    %3770 = vst.msk [vmem:[#allocation3 + $0x158] sm:$0xff] %vm3434, %v3737
    %3771 = vst.msk [vmem:[#allocation3 + $0x170] sm:$0xff] %vm3434, %v3739
    %v3772 = vld [vmem:[%s825 + $0x1] sm:$0xff]
    %v3773 = vld [vmem:[%s825 + $0x11] sm:$0xff]
    %v3774 = vld [vmem:[%s825 + $0x21] sm:$0xff]
    %v3775 = vld [vmem:[%s825 + $0x31] sm:$0xff]
    %v3776 = vld [vmem:[%s825 + $0x41] sm:$0xff]
    %v3777 = vld [vmem:[%s825 + $0x51] sm:$0xff]
    %v3778 = vld [vmem:[%s825 + $0x61] sm:$0xff]
    %v3779 = vld [vmem:[%s825 + $0x71] sm:$0xff]
    %v3780 = vld [vmem:[%s825 + $0xa1] sm:$0xff]
    %v3781 = vld [vmem:[%s825 + $0xb1] sm:$0xff]
    %v3782 = vld [vmem:[%s825 + $0xc1] sm:$0xff]
    %v3783 = vld [vmem:[%s825 + $0xd1] sm:$0xff]
    %v3784 = vld [vmem:[%s825 + $0xe1] sm:$0xff]
    %v3785 = vld [vmem:[%s825 + $0xf1] sm:$0xff]
    %v3786 = vld [vmem:[%s825 + $0x101] sm:$0xff]
    %v3787 = vld [vmem:[%s825 + $0x111] sm:$0xff]
    %3804 = vrot.lane.b32.xlu0 %v3772, 96
    %v3805 = vpop.permute.xlu0 %3804
    %3806 = vrot.lane.b32.xlu0 %v3773, 96
    %v3807 = vpop.permute.xlu0 %3806
    %3808 = vrot.lane.b32.xlu0 %v3774, 96
    %v3809 = vpop.permute.xlu0 %3808
    %3810 = vrot.lane.b32.xlu0 %v3775, 96
    %v3811 = vpop.permute.xlu0 %3810
    %3812 = vrot.lane.b32.xlu0 %v3776, 96
    %v3813 = vpop.permute.xlu0 %3812
    %3814 = vrot.lane.b32.xlu0 %v3777, 96
    %v3815 = vpop.permute.xlu0 %3814
    %3816 = vrot.lane.b32.xlu0 %v3778, 96
    %v3817 = vpop.permute.xlu0 %3816
    %3818 = vrot.lane.b32.xlu0 %v3779, 96
    %v3819 = vpop.permute.xlu0 %3818
    %3820 = vrot.lane.b32.xlu0 %v3780, 96
    %v3821 = vpop.permute.xlu0 %3820
    %3822 = vrot.lane.b32.xlu0 %v3781, 96
    %v3823 = vpop.permute.xlu0 %3822
    %3824 = vrot.lane.b32.xlu0 %v3782, 96
    %v3825 = vpop.permute.xlu0 %3824
    %3826 = vrot.lane.b32.xlu0 %v3783, 96
    %v3827 = vpop.permute.xlu0 %3826
    %3828 = vrot.lane.b32.xlu0 %v3784, 96
    %v3829 = vpop.permute.xlu0 %3828
    %3830 = vrot.lane.b32.xlu0 %v3785, 96
    %v3831 = vpop.permute.xlu0 %3830
    %3832 = vrot.lane.b32.xlu0 %v3786, 96
    %v3833 = vpop.permute.xlu0 %3832
    %3834 = vrot.lane.b32.xlu0 %v3787, 96
    %v3835 = vpop.permute.xlu0 %3834
    %3852 = vst.msk [vmem:[#allocation3 + $0x8] sm:$0xff] %vm3531, %v3805
    %3853 = vst.msk [vmem:[#allocation3 + $0x20] sm:$0xff] %vm3531, %v3807
    %3854 = vst.msk [vmem:[#allocation3 + $0x38] sm:$0xff] %vm3531, %v3809
    %3855 = vst.msk [vmem:[#allocation3 + $0x50] sm:$0xff] %vm3531, %v3811
    %3856 = vst.msk [vmem:[#allocation3 + $0x68] sm:$0xff] %vm3531, %v3813
    %3857 = vst.msk [vmem:[#allocation3 + $0x80] sm:$0xff] %vm3531, %v3815
    %3858 = vst.msk [vmem:[#allocation3 + $0x98] sm:$0xff] %vm3531, %v3817
    %3859 = vst.msk [vmem:[#allocation3 + $0xb0] sm:$0xff] %vm3531, %v3819
    %3860 = vst.msk [vmem:[#allocation3 + $0xc8] sm:$0xff] %vm3531, %v3821
    %3861 = vst.msk [vmem:[#allocation3 + $0xe0] sm:$0xff] %vm3531, %v3823
    %3862 = vst.msk [vmem:[#allocation3 + $0xf8] sm:$0xff] %vm3531, %v3825
    %3863 = vst.msk [vmem:[#allocation3 + $0x110] sm:$0xff] %vm3531, %v3827
    %3864 = vst.msk [vmem:[#allocation3 + $0x128] sm:$0xff] %vm3531, %v3829
    %3865 = vst.msk [vmem:[#allocation3 + $0x140] sm:$0xff] %vm3531, %v3831
    %3866 = vst.msk [vmem:[#allocation3 + $0x158] sm:$0xff] %vm3531, %v3833
    %3867 = vst.msk [vmem:[#allocation3 + $0x170] sm:$0xff] %vm3531, %v3835
    %v3868 = vld [vmem:[%s825 + $0x2] sm:$0xff]
    %v3869 = vld [vmem:[%s825 + $0x12] sm:$0xff]
    %v3870 = vld [vmem:[%s825 + $0x22] sm:$0xff]
    %v3871 = vld [vmem:[%s825 + $0x32] sm:$0xff]
    %v3872 = vld [vmem:[%s825 + $0x42] sm:$0xff]
    %v3873 = vld [vmem:[%s825 + $0x52] sm:$0xff]
    %v3874 = vld [vmem:[%s825 + $0x62] sm:$0xff]
    %v3875 = vld [vmem:[%s825 + $0x72] sm:$0xff]
    %v3876 = vld [vmem:[%s825 + $0xa2] sm:$0xff]
    %v3877 = vld [vmem:[%s825 + $0xb2] sm:$0xff]
    %v3878 = vld [vmem:[%s825 + $0xc2] sm:$0xff]
    %v3879 = vld [vmem:[%s825 + $0xd2] sm:$0xff]
    %v3880 = vld [vmem:[%s825 + $0xe2] sm:$0xff]
    %v3881 = vld [vmem:[%s825 + $0xf2] sm:$0xff]
    %v3882 = vld [vmem:[%s825 + $0x102] sm:$0xff]
    %v3883 = vld [vmem:[%s825 + $0x112] sm:$0xff]
    %3884 = vst.msk [vmem:[#allocation3 + $0x10] sm:$0xff] %vm222, %v3868
    %3885 = vst.msk [vmem:[#allocation3 + $0x28] sm:$0xff] %vm222, %v3869
    %3886 = vst.msk [vmem:[#allocation3 + $0x40] sm:$0xff] %vm222, %v3870
    %3887 = vst.msk [vmem:[#allocation3 + $0x58] sm:$0xff] %vm222, %v3871
    %3888 = vst.msk [vmem:[#allocation3 + $0x70] sm:$0xff] %vm222, %v3872
    %3889 = vst.msk [vmem:[#allocation3 + $0x88] sm:$0xff] %vm222, %v3873
    %3890 = vst.msk [vmem:[#allocation3 + $0xa0] sm:$0xff] %vm222, %v3874
    %3891 = vst.msk [vmem:[#allocation3 + $0xb8] sm:$0xff] %vm222, %v3875
    %3892 = vst.msk [vmem:[#allocation3 + $0xd0] sm:$0xff] %vm222, %v3876
    %3893 = vst.msk [vmem:[#allocation3 + $0xe8] sm:$0xff] %vm222, %v3877
    %3894 = vst.msk [vmem:[#allocation3 + $0x100] sm:$0xff] %vm222, %v3878
    %3895 = vst.msk [vmem:[#allocation3 + $0x118] sm:$0xff] %vm222, %v3879
    %3896 = vst.msk [vmem:[#allocation3 + $0x130] sm:$0xff] %vm222, %v3880
    %3897 = vst.msk [vmem:[#allocation3 + $0x148] sm:$0xff] %vm222, %v3881
    %3898 = vst.msk [vmem:[#allocation3 + $0x160] sm:$0xff] %vm222, %v3882
    %3899 = vst.msk [vmem:[#allocation3 + $0x178] sm:$0xff] %vm222, %v3883
    %v3900 = vld [vmem:[#allocation3] sm:$0xff]
    %v3901 = vld [vmem:[#allocation3 + $0x8] sm:$0xff]
    %v3902 = vld [vmem:[#allocation3 + $0x10] sm:$0xff]
    %v3903 = vld [vmem:[#allocation3 + $0x18] sm:$0xff]
    %v3904 = vld [vmem:[#allocation3 + $0x20] sm:$0xff]
    %v3905 = vld [vmem:[#allocation3 + $0x28] sm:$0xff]
    %v3906 = vld [vmem:[#allocation3 + $0x30] sm:$0xff]
    %v3907 = vld [vmem:[#allocation3 + $0x38] sm:$0xff]
    %v3908 = vld [vmem:[#allocation3 + $0x40] sm:$0xff]
    %v3909 = vld [vmem:[#allocation3 + $0x48] sm:$0xff]
    %v3910 = vld [vmem:[#allocation3 + $0x50] sm:$0xff]
    %v3911 = vld [vmem:[#allocation3 + $0x58] sm:$0xff]
    %v3912 = vld [vmem:[#allocation3 + $0x60] sm:$0xff]
    %v3913 = vld [vmem:[#allocation3 + $0x68] sm:$0xff]
    %v3914 = vld [vmem:[#allocation3 + $0x70] sm:$0xff]
    %v3915 = vld [vmem:[#allocation3 + $0x78] sm:$0xff]
    %v3916 = vld [vmem:[#allocation3 + $0x80] sm:$0xff]
    %v3917 = vld [vmem:[#allocation3 + $0x88] sm:$0xff]
    %v3918 = vld [vmem:[#allocation3 + $0x90] sm:$0xff]
    %v3919 = vld [vmem:[#allocation3 + $0x98] sm:$0xff]
    %v3920 = vld [vmem:[#allocation3 + $0xa0] sm:$0xff]
    %v3921 = vld [vmem:[#allocation3 + $0xa8] sm:$0xff]
    %v3922 = vld [vmem:[#allocation3 + $0xb0] sm:$0xff]
    %v3923 = vld [vmem:[#allocation3 + $0xb8] sm:$0xff]
    %v3924 = vld [vmem:[#allocation3 + $0xc0] sm:$0xff]
    %v3925 = vld [vmem:[#allocation3 + $0xc8] sm:$0xff]
    %v3926 = vld [vmem:[#allocation3 + $0xd0] sm:$0xff]
    %v3927 = vld [vmem:[#allocation3 + $0xd8] sm:$0xff]
    %v3928 = vld [vmem:[#allocation3 + $0xe0] sm:$0xff]
    %v3929 = vld [vmem:[#allocation3 + $0xe8] sm:$0xff]
    %v3930 = vld [vmem:[#allocation3 + $0xf0] sm:$0xff]
    %v3931 = vld [vmem:[#allocation3 + $0xf8] sm:$0xff]
    %v3932 = vld [vmem:[#allocation3 + $0x100] sm:$0xff]
    %v3933 = vld [vmem:[#allocation3 + $0x108] sm:$0xff]
    %v3934 = vld [vmem:[#allocation3 + $0x110] sm:$0xff]
    %v3935 = vld [vmem:[#allocation3 + $0x118] sm:$0xff]
    %v3936 = vld [vmem:[#allocation3 + $0x120] sm:$0xff]
    %v3937 = vld [vmem:[#allocation3 + $0x128] sm:$0xff]
    %v3938 = vld [vmem:[#allocation3 + $0x130] sm:$0xff]
    %v3939 = vld [vmem:[#allocation3 + $0x138] sm:$0xff]
    %v3940 = vld [vmem:[#allocation3 + $0x140] sm:$0xff]
    %v3941 = vld [vmem:[#allocation3 + $0x148] sm:$0xff]
    %v3942 = vld [vmem:[#allocation3 + $0x150] sm:$0xff]
    %v3943 = vld [vmem:[#allocation3 + $0x158] sm:$0xff]
    %v3944 = vld [vmem:[#allocation3 + $0x160] sm:$0xff]
    %v3945 = vld [vmem:[#allocation3 + $0x168] sm:$0xff]
    %v3946 = vld [vmem:[#allocation3 + $0x170] sm:$0xff]
    %v3947 = vld [vmem:[#allocation3 + $0x178] sm:$0xff]
    %v3948 = vpack.c.bf16 %v3903, %v3900
    %v3949 = vpack.c.bf16 %v3904, %v3901
    %v3950 = vpack.c.bf16 %v3905, %v3902
    %v3951 = vpack.c.bf16 %v3909, %v3906
    %v3952 = vpack.c.bf16 %v3910, %v3907
    %v3953 = vpack.c.bf16 %v3911, %v3908
    %v3954 = vpack.c.bf16 %v3915, %v3912
    %v3955 = vpack.c.bf16 %v3916, %v3913
    %v3956 = vpack.c.bf16 %v3917, %v3914
    %v3957 = vpack.c.bf16 %v3921, %v3918
    %v3958 = vpack.c.bf16 %v3922, %v3919
    %v3959 = vpack.c.bf16 %v3923, %v3920
    %v3960 = vpack.c.bf16 %v3927, %v3924
    %v3961 = vpack.c.bf16 %v3928, %v3925
    %v3962 = vpack.c.bf16 %v3929, %v3926
    %v3963 = vpack.c.bf16 %v3933, %v3930
    %v3964 = vpack.c.bf16 %v3934, %v3931
    %v3965 = vpack.c.bf16 %v3935, %v3932
    %v3966 = vpack.c.bf16 %v3939, %v3936
    %v3967 = vpack.c.bf16 %v3940, %v3937
    %v3968 = vpack.c.bf16 %v3941, %v3938
    %v3969 = vpack.c.bf16 %v3945, %v3942
    %v3970 = vpack.c.bf16 %v3946, %v3943
    %v3971 = vpack.c.bf16 %v3947, %v3944
    %v3972 = vld [vmem:[#allocation22] sm:$0xf]
    %v3973 = vld [vmem:[#allocation22 + $0x4] sm:$0xf]
    %v3974 = vld [vmem:[#allocation22 + $0x8] sm:$0xf]
    %v3975 = vld [vmem:[#allocation22 + $0xc] sm:$0xf]
    %v3976 = vld [vmem:[#allocation22 + $0x10] sm:$0xf]
    %v3977 = vld [vmem:[#allocation22 + $0x14] sm:$0xf]
    %v3978 = vld [vmem:[#allocation22 + $0x18] sm:$0xf]
    %v3979 = vld [vmem:[#allocation22 + $0x1c] sm:$0xf]
    %v3980 = vld [vmem:[#allocation22 + $0x20] sm:$0xf]
    %v3981 = vld [vmem:[#allocation22 + $0x24] sm:$0xf]
    %v3982 = vld [vmem:[#allocation22 + $0x28] sm:$0xf]
    %v3983 = vld [vmem:[#allocation22 + $0x2c] sm:$0xf]
    %v3984 = vld [vmem:[#allocation22 + $0x30] sm:$0xf]
    %v3985 = vld [vmem:[#allocation22 + $0x34] sm:$0xf]
    %v3986 = vld [vmem:[#allocation22 + $0x38] sm:$0xf]
    %v3987 = vld [vmem:[#allocation22 + $0x3c] sm:$0xf]
    %v3988 = vld [vmem:[#allocation22 + $0x40] sm:$0xf]
    %v3989 = vld [vmem:[#allocation22 + $0x44] sm:$0xf]
    %v3990 = vld [vmem:[#allocation22 + $0x48] sm:$0xf]
    %v3991 = vld [vmem:[#allocation22 + $0x4c] sm:$0xf]
    %v3992 = vld [vmem:[#allocation22 + $0x50] sm:$0xf]
    %v3993 = vld [vmem:[#allocation22 + $0x54] sm:$0xf]
    %v3994 = vld [vmem:[#allocation22 + $0x58] sm:$0xf]
    %v3995 = vld [vmem:[#allocation22 + $0x5c] sm:$0xf]
    %v3996 = vld [vmem:[#allocation22 + $0x60] sm:$0xf]
    %v3997 = vld [vmem:[#allocation22 + $0x64] sm:$0xf]
    %v3998 = vld [vmem:[#allocation22 + $0x68] sm:$0xf]
    %v3999 = vld [vmem:[#allocation22 + $0x6c] sm:$0xf]
    %v4000 = vld [vmem:[#allocation22 + $0x70] sm:$0xf]
    %v4001 = vld [vmem:[#allocation22 + $0x74] sm:$0xf]
    %v4002 = vld [vmem:[#allocation22 + $0x78] sm:$0xf]
    %v4003 = vld [vmem:[#allocation22 + $0x7c] sm:$0xf]
    %v4004 = vld [vmem:[#allocation22 + $0x80] sm:$0xf]
    %v4005 = vld [vmem:[#allocation22 + $0x84] sm:$0xf]
    %v4006 = vld [vmem:[#allocation22 + $0x88] sm:$0xf]
    %v4007 = vld [vmem:[#allocation22 + $0x8c] sm:$0xf]
    %v4008 = vld [vmem:[%s18] sm:$0x1]
    %v4010 = vlaneseq
    %v4011 = vshrl.u32 %v4010, 7
    %v4012 = vsub.s32 0, %v4011
    %v4013 = vrot.slane %v4008, %v4012
    %v4051 = vunpack.c.l.b16 %v3972
    %v4052 = vunpack.c.l.b16 %v3973
    %v4053 = vunpack.c.l.b16 %v3974
    %v4054 = vunpack.c.l.b16 %v3975
    %v4055 = vunpack.c.l.b16 %v3976
    %v4056 = vunpack.c.l.b16 %v3977
    %v4057 = vunpack.c.l.b16 %v3978
    %v4058 = vunpack.c.l.b16 %v3979
    %v4059 = vunpack.c.l.b16 %v3980
    %v4060 = vunpack.c.l.b16 %v3981
    %v4061 = vunpack.c.l.b16 %v3982
    %v4062 = vunpack.c.l.b16 %v3983
    %v4063 = vunpack.c.l.b16 %v3984
    %v4064 = vunpack.c.l.b16 %v3985
    %v4065 = vunpack.c.l.b16 %v3986
    %v4066 = vunpack.c.l.b16 %v3987
    %v4067 = vunpack.c.l.b16 %v3988
    %v4068 = vunpack.c.l.b16 %v3989
    %v4069 = vunpack.c.l.b16 %v3990
    %v4070 = vunpack.c.l.b16 %v3991
    %v4071 = vunpack.c.l.b16 %v3992
    %v4072 = vunpack.c.l.b16 %v3993
    %v4073 = vunpack.c.l.b16 %v3994
    %v4074 = vunpack.c.l.b16 %v3995
    %v4075 = vunpack.c.l.b16 %v3996
    %v4076 = vunpack.c.l.b16 %v3997
    %v4077 = vunpack.c.l.b16 %v3998
    %v4078 = vunpack.c.l.b16 %v3999
    %v4079 = vunpack.c.l.b16 %v4000
    %v4080 = vunpack.c.l.b16 %v4001
    %v4081 = vunpack.c.l.b16 %v4002
    %v4082 = vunpack.c.l.b16 %v4003
    %v4083 = vunpack.c.l.b16 %v4004
    %v4084 = vunpack.c.l.b16 %v4005
    %v4085 = vunpack.c.l.b16 %v4006
    %v4086 = vunpack.c.l.b16 %v4007
    %v4087 = vpack.c.b16 %v4052, %v4051
    %v4088 = vpack.c.b16 %v4054, %v4053
    %v4089 = vpack.c.b16 %v4056, %v4055
    %v4090 = vpack.c.b16 %v4058, %v4057
    %v4091 = vpack.c.b16 %v4060, %v4059
    %v4092 = vpack.c.b16 %v4062, %v4061
    %v4093 = vpack.c.b16 %v4064, %v4063
    %v4094 = vpack.c.b16 %v4066, %v4065
    %v4095 = vpack.c.b16 %v4068, %v4067
    %v4096 = vpack.c.b16 %v4070, %v4069
    %v4097 = vpack.c.b16 %v4072, %v4071
    %v4098 = vpack.c.b16 %v4074, %v4073
    %v4099 = vpack.c.b16 %v4076, %v4075
    %v4100 = vpack.c.b16 %v4078, %v4077
    %v4101 = vpack.c.b16 %v4080, %v4079
    %v4102 = vpack.c.b16 %v4082, %v4081
    %v4103 = vpack.c.b16 %v4084, %v4083
    %v4104 = vpack.c.b16 %v4086, %v4085
    %v4124 = vsel %vm222, %v3950, 0
    %v4127 = vsel %vm222, %v3953, 0
    %v4130 = vsel %vm222, %v3956, 0
    %v4133 = vsel %vm222, %v3959, 0
    %v4136 = vsel %vm222, %v3962, 0
    %v4139 = vsel %vm222, %v3965, 0
    %v4142 = vsel %vm222, %v3968, 0
    %v4145 = vsel %vm222, %v3971, 0
    %4147 = vmatprep.subr.bf16.mxu0 0
    %4148 = vmatpush1.bf16.msra.mxu0 %v4087
    %4149 = vmatprep.subr.bf16.mxu0 0
    %4150 = vmatpush1.bf16.msra.mxu0 %v4088
    %4151 = vmatprep.subr.bf16.mxu0 0
    %4152 = vmatpush1.bf16.msra.mxu0 %v4089
    %4153 = vmatprep.subr.bf16.mxu0 0
    %4154 = vmatpush1.bf16.msra.mxu0 %v4090
    %4155 = vmatprep.subr.bf16.mxu0 0
    %4156 = vmatpush1.bf16.msra.mxu0 %v4091
    %4157 = vmatprep.subr.bf16.mxu0 0
    %4158 = vmatpush1.bf16.msra.mxu0 %v4092
    %4159 = vmatprep.subr.bf16.mxu0 0
    %4160 = vmatpush1.bf16.msra.mxu0 %v4093
    %4161 = vmatprep.subr.bf16.mxu0 0
    %4162 = vmatpush1.bf16.msra.mxu0 %v4094
    %4163 = vmatprep.subr.bf16.mxu0 0
    %4164 = vmatpush1.bf16.msra.mxu0 %v4095
    %4165 = vmatprep.subr.bf16.mxu0 0
    %4166 = vmatpush1.bf16.msra.mxu0 %v4096
    %4167 = vmatprep.subr.bf16.mxu0 0
    %4168 = vmatpush1.bf16.msra.mxu0 %v4097
    %4169 = vmatprep.subr.bf16.mxu0 0
    %4170 = vmatpush1.bf16.msra.mxu0 %v4098
    %4171 = vmatprep.subr.bf16.mxu0 0
    %4172 = vmatpush1.bf16.msra.mxu0 %v4099
    %4173 = vmatprep.subr.bf16.mxu0 0
    %4174 = vmatpush1.bf16.msra.mxu0 %v4100
    %4175 = vmatprep.subr.bf16.mxu0 0
    %4176 = vmatpush1.bf16.msra.mxu0 %v4101
    %4177 = vmatprep.subr.bf16.mxu0 0
    %4178 = vmatpush1.bf16.msra.mxu0 %v4102
    %4179 = vmatprep.mubr.bf16.mxu0 %v3949
    %4180 = vmatmul.mubr.bf16.gmra.mrb[0].mxu0 %v3948
    %v4181 = vpop.f32.mrb[0].mxu0
    %v4182 = vadd.f32 %v4013, %v4181
    %v4183 = vpop.f32.mrb[0].mxu0
    %v4184 = vpop.f32.mrb[0].mxu0
    %v4185 = vadd.f32 %v4013, %v4184
    %v4186 = vpop.f32.mrb[0].mxu0
    %4187 = vmatprep.mubr.bf16.mxu0 %v3952
    %4188 = vmatmul.mubr.bf16.gmra.mrb[0].mxu0 %v3951
    %v4189 = vpop.f32.mrb[0].mxu0
    %v4190 = vadd.f32 %v4013, %v4189
    %v4191 = vpop.f32.mrb[0].mxu0
    %v4192 = vpop.f32.mrb[0].mxu0
    %v4193 = vadd.f32 %v4013, %v4192
    %v4194 = vpop.f32.mrb[0].mxu0
    %4195 = vmatprep.mubr.bf16.mxu0 %v3955
    %4196 = vmatmul.mubr.bf16.gmra.mrb[0].mxu0 %v3954
    %v4197 = vpop.f32.mrb[0].mxu0
    %v4198 = vadd.f32 %v4013, %v4197
    %v4199 = vpop.f32.mrb[0].mxu0
    %v4200 = vpop.f32.mrb[0].mxu0
    %v4201 = vadd.f32 %v4013, %v4200
    %v4202 = vpop.f32.mrb[0].mxu0
    %4203 = vmatprep.mubr.bf16.mxu0 %v3958
    %4204 = vmatmul.mubr.bf16.gmra.mrb[0].mxu0 %v3957
    %v4205 = vpop.f32.mrb[0].mxu0
    %v4206 = vadd.f32 %v4013, %v4205
    %v4207 = vpop.f32.mrb[0].mxu0
    %v4208 = vpop.f32.mrb[0].mxu0
    %v4209 = vadd.f32 %v4013, %v4208
    %v4210 = vpop.f32.mrb[0].mxu0
    %4211 = vmatprep.mubr.bf16.mxu0 %v3961
    %4212 = vmatmul.mubr.bf16.gmra.mrb[0].mxu0 %v3960
    %v4213 = vpop.f32.mrb[0].mxu0
    %v4214 = vadd.f32 %v4013, %v4213
    %v4215 = vpop.f32.mrb[0].mxu0
    %v4216 = vpop.f32.mrb[0].mxu0
    %v4217 = vadd.f32 %v4013, %v4216
    %v4218 = vpop.f32.mrb[0].mxu0
    %4219 = vmatprep.mubr.bf16.mxu0 %v3964
    %4220 = vmatmul.mubr.bf16.gmra.mrb[0].mxu0 %v3963
    %v4221 = vpop.f32.mrb[0].mxu0
    %v4222 = vadd.f32 %v4013, %v4221
    %v4223 = vpop.f32.mrb[0].mxu0
    %v4224 = vpop.f32.mrb[0].mxu0
    %v4225 = vadd.f32 %v4013, %v4224
    %v4226 = vpop.f32.mrb[0].mxu0
    %4227 = vmatprep.mubr.bf16.mxu0 %v3967
    %4228 = vmatmul.mubr.bf16.gmra.mrb[0].mxu0 %v3966
    %v4229 = vpop.f32.mrb[0].mxu0
    %v4230 = vadd.f32 %v4013, %v4229
    %v4231 = vpop.f32.mrb[0].mxu0
    %v4232 = vpop.f32.mrb[0].mxu0
    %v4233 = vadd.f32 %v4013, %v4232
    %v4234 = vpop.f32.mrb[0].mxu0
    %4235 = vmatprep.mubr.bf16.mxu0 %v3970
    %4236 = vmatmul.mubr.bf16.gmra.mrb[0].mxu0 %v3969
    %v4237 = vpop.f32.mrb[0].mxu0
    %v4238 = vadd.f32 %v4013, %v4237
    %v4239 = vpop.f32.mrb[0].mxu0
    %v4240 = vpop.f32.mrb[0].mxu0
    %v4241 = vadd.f32 %v4013, %v4240
    %v4242 = vpop.f32.mrb[0].mxu0
    %4243 = vdwg.mxu0
    %4244 = vmatprep.subr.bf16.mxu0 0
    %4245 = vmatpush1.bf16.msra.mxu0 %v4103
    %4246 = vmatprep.subr.bf16.mxu0 0
    %4247 = vmatpush1.bf16.msra.mxu0 %v4104
    %4248 = vmatprep.subr.bf16.mxu0 0
    %4249 = vmatpush1.bf16.msra.mxu0 0
    %4250 = vmatprep.subr.bf16.mxu0 0
    %4251 = vmatpush1.bf16.msra.mxu0 0
    %4252 = vmatprep.subr.bf16.mxu0 0
    %4253 = vmatpush1.bf16.msra.mxu0 0
    %4254 = vmatprep.subr.bf16.mxu0 0
    %4255 = vmatpush1.bf16.msra.mxu0 0
    %4256 = vmatprep.subr.bf16.mxu0 0
    %4257 = vmatpush1.bf16.msra.mxu0 0
    %4258 = vmatprep.subr.bf16.mxu0 0
    %4259 = vmatpush1.bf16.msra.mxu0 0
    %4260 = vmatprep.subr.bf16.mxu0 0
    %4261 = vmatpush1.bf16.msra.mxu0 0
    %4262 = vmatprep.subr.bf16.mxu0 0
    %4263 = vmatpush1.bf16.msra.mxu0 0
    %4264 = vmatprep.subr.bf16.mxu0 0
    %4265 = vmatpush1.bf16.msra.mxu0 0
    %4266 = vmatprep.subr.bf16.mxu0 0
    %4267 = vmatpush1.bf16.msra.mxu0 0
    %4268 = vmatprep.subr.bf16.mxu0 0
    %4269 = vmatpush1.bf16.msra.mxu0 0
    %4270 = vmatprep.subr.bf16.mxu0 0
    %4271 = vmatpush1.bf16.msra.mxu0 0
    %4272 = vmatprep.subr.bf16.mxu0 0
    %4273 = vmatpush1.bf16.msra.mxu0 0
    %4274 = vmatprep.subr.bf16.mxu0 0
    %4275 = vmatpush1.bf16.msra.mxu0 0
    %4276 = vmatprep.mubr.bf16.mxu0 0
    %4277 = vmatmul.mubr.bf16.gmra.mrb[0].mxu0 %v4124
    %v4278 = vpop.f32.mrb[0].mxu0
    %v4279 = vadd.f32 %v4182, %v4278
    %v4280 = vpop.f32.mrb[0].mxu0
    %v4281 = vpop.f32.mrb[0].mxu0
    %v4282 = vadd.f32 %v4185, %v4281
    %v4283 = vpop.f32.mrb[0].mxu0
    %4284 = vmatprep.mubr.bf16.mxu0 0
    %4285 = vmatmul.mubr.bf16.gmra.mrb[0].mxu0 %v4127
    %v4286 = vpop.f32.mrb[0].mxu0
    %v4287 = vadd.f32 %v4190, %v4286
    %v4288 = vpop.f32.mrb[0].mxu0
    %v4289 = vpop.f32.mrb[0].mxu0
    %v4290 = vadd.f32 %v4193, %v4289
    %v4291 = vpop.f32.mrb[0].mxu0
    %4292 = vmatprep.mubr.bf16.mxu0 0
    %4293 = vmatmul.mubr.bf16.gmra.mrb[0].mxu0 %v4130
    %v4294 = vpop.f32.mrb[0].mxu0
    %v4295 = vadd.f32 %v4198, %v4294
    %v4296 = vpop.f32.mrb[0].mxu0
    %v4297 = vpop.f32.mrb[0].mxu0
    %v4298 = vadd.f32 %v4201, %v4297
    %v4299 = vpop.f32.mrb[0].mxu0
    %4300 = vmatprep.mubr.bf16.mxu0 0
    %4301 = vmatmul.mubr.bf16.gmra.mrb[0].mxu0 %v4133
    %v4302 = vpop.f32.mrb[0].mxu0
    %v4303 = vadd.f32 %v4206, %v4302
    %v4304 = vpop.f32.mrb[0].mxu0
    %v4305 = vpop.f32.mrb[0].mxu0
    %v4306 = vadd.f32 %v4209, %v4305
    %v4307 = vpop.f32.mrb[0].mxu0
    %4308 = vmatprep.mubr.bf16.mxu0 0
    %4309 = vmatmul.mubr.bf16.gmra.mrb[0].mxu0 %v4136
    %v4310 = vpop.f32.mrb[0].mxu0
    %v4311 = vadd.f32 %v4214, %v4310
    %v4312 = vpop.f32.mrb[0].mxu0
    %v4313 = vpop.f32.mrb[0].mxu0
    %v4314 = vadd.f32 %v4217, %v4313
    %v4315 = vpop.f32.mrb[0].mxu0
    %4316 = vmatprep.mubr.bf16.mxu0 0
    %4317 = vmatmul.mubr.bf16.gmra.mrb[0].mxu0 %v4139
    %v4318 = vpop.f32.mrb[0].mxu0
    %v4319 = vadd.f32 %v4222, %v4318
    %v4320 = vpop.f32.mrb[0].mxu0
    %v4321 = vpop.f32.mrb[0].mxu0
    %v4322 = vadd.f32 %v4225, %v4321
    %v4323 = vpop.f32.mrb[0].mxu0
    %4324 = vmatprep.mubr.bf16.mxu0 0
    %4325 = vmatmul.mubr.bf16.gmra.mrb[0].mxu0 %v4142
    %v4326 = vpop.f32.mrb[0].mxu0
    %v4327 = vadd.f32 %v4230, %v4326
    %v4328 = vpop.f32.mrb[0].mxu0
    %v4329 = vpop.f32.mrb[0].mxu0
    %v4330 = vadd.f32 %v4233, %v4329
    %v4331 = vpop.f32.mrb[0].mxu0
    %4332 = vmatprep.mubr.bf16.mxu0 0
    %4333 = vmatmul.mubr.bf16.gmra.mrb[0].mxu0 %v4145
    %v4334 = vpop.f32.mrb[0].mxu0
    %v4335 = vadd.f32 %v4238, %v4334
    %v4336 = vpop.f32.mrb[0].mxu0
    %v4337 = vpop.f32.mrb[0].mxu0
    %v4338 = vadd.f32 %v4241, %v4337
    %v4339 = vpop.f32.mrb[0].mxu0
    %4340 = vdwg.mxu0
    %v4341 = vmax.f32 %v4279, 0.0
    %v4342 = vmax.f32 %v4282, 0.0
    %v4343 = vmax.f32 %v4287, 0.0
    %v4344 = vmax.f32 %v4290, 0.0
    %v4345 = vmax.f32 %v4295, 0.0
    %v4346 = vmax.f32 %v4298, 0.0
    %v4347 = vmax.f32 %v4303, 0.0
    %v4348 = vmax.f32 %v4306, 0.0
    %v4349 = vmax.f32 %v4311, 0.0
    %v4350 = vmax.f32 %v4314, 0.0
    %v4351 = vmax.f32 %v4319, 0.0
    %v4352 = vmax.f32 %v4322, 0.0
    %v4353 = vmax.f32 %v4327, 0.0
    %v4354 = vmax.f32 %v4330, 0.0
    %v4355 = vmax.f32 %v4335, 0.0
    %v4356 = vmax.f32 %v4338, 0.0
    %4357 = vst.msk [vmem:[%s290 + $0x1] sm:$0xff] %vm222, %v4341
    %4358 = vst.msk [vmem:[%s290 + $0x11] sm:$0xff] %vm222, %v4342
    %4359 = vst.msk [vmem:[%s290 + $0x21] sm:$0xff] %vm222, %v4343
    %4360 = vst.msk [vmem:[%s290 + $0x31] sm:$0xff] %vm222, %v4344
    %4361 = vst.msk [vmem:[%s290 + $0x41] sm:$0xff] %vm222, %v4345
    %4362 = vst.msk [vmem:[%s290 + $0x51] sm:$0xff] %vm222, %v4346
    %4363 = vst.msk [vmem:[%s290 + $0x61] sm:$0xff] %vm222, %v4347
    %4364 = vst.msk [vmem:[%s290 + $0x71] sm:$0xff] %vm222, %v4348
    %4365 = vst.msk [vmem:[%s290 + $0xa1] sm:$0xff] %vm222, %v4349
    %4366 = vst.msk [vmem:[%s290 + $0xb1] sm:$0xff] %vm222, %v4350
    %4367 = vst.msk [vmem:[%s290 + $0xc1] sm:$0xff] %vm222, %v4351
    %4368 = vst.msk [vmem:[%s290 + $0xd1] sm:$0xff] %vm222, %v4352
    %4369 = vst.msk [vmem:[%s290 + $0xe1] sm:$0xff] %vm222, %v4353
    %4370 = vst.msk [vmem:[%s290 + $0xf1] sm:$0xff] %vm222, %v4354
    %4371 = vst.msk [vmem:[%s290 + $0x101] sm:$0xff] %vm222, %v4355
    %4372 = vst.msk [vmem:[%s290 + $0x111] sm:$0xff] %vm222, %v4356
    %v4373 = vld [vmem:[#allocation2] sm:$0xff]
    %v4374 = vld [vmem:[#allocation2 + $0x10] sm:$0xff]
    %v4375 = vld [vmem:[#allocation2 + $0x20] sm:$0xff]
    %v4376 = vld [vmem:[#allocation2 + $0x30] sm:$0xff]
    %v4377 = vld [vmem:[#allocation2 + $0x40] sm:$0xff]
    %v4378 = vld [vmem:[#allocation2 + $0x50] sm:$0xff]
    %v4379 = vld [vmem:[#allocation2 + $0x60] sm:$0xff]
    %v4380 = vld [vmem:[#allocation2 + $0x70] sm:$0xff]
    %v4381 = vld [vmem:[#allocation2 + $0xa0] sm:$0xff]
    %v4382 = vld [vmem:[#allocation2 + $0xb0] sm:$0xff]
    %v4383 = vld [vmem:[#allocation2 + $0xc0] sm:$0xff]
    %v4384 = vld [vmem:[#allocation2 + $0xd0] sm:$0xff]
    %v4385 = vld [vmem:[#allocation2 + $0xe0] sm:$0xff]
    %v4386 = vld [vmem:[#allocation2 + $0xf0] sm:$0xff]
    %v4387 = vld [vmem:[#allocation2 + $0x100] sm:$0xff]
    %v4388 = vld [vmem:[#allocation2 + $0x110] sm:$0xff]
    %4389 = vst.msk [vmem:[#allocation3] sm:$0xff] %vm222, %v4373
    %4390 = vst.msk [vmem:[#allocation3 + $0x18] sm:$0xff] %vm222, %v4374
    %4391 = vst.msk [vmem:[#allocation3 + $0x30] sm:$0xff] %vm222, %v4375
    %4392 = vst.msk [vmem:[#allocation3 + $0x48] sm:$0xff] %vm222, %v4376
    %4393 = vst.msk [vmem:[#allocation3 + $0x60] sm:$0xff] %vm222, %v4377
    %4394 = vst.msk [vmem:[#allocation3 + $0x78] sm:$0xff] %vm222, %v4378
    %4395 = vst.msk [vmem:[#allocation3 + $0x90] sm:$0xff] %vm222, %v4379
    %4396 = vst.msk [vmem:[#allocation3 + $0xa8] sm:$0xff] %vm222, %v4380
    %4397 = vst.msk [vmem:[#allocation3 + $0xc0] sm:$0xff] %vm222, %v4381
    %4398 = vst.msk [vmem:[#allocation3 + $0xd8] sm:$0xff] %vm222, %v4382
    %4399 = vst.msk [vmem:[#allocation3 + $0xf0] sm:$0xff] %vm222, %v4383
    %4400 = vst.msk [vmem:[#allocation3 + $0x108] sm:$0xff] %vm222, %v4384
    %4401 = vst.msk [vmem:[#allocation3 + $0x120] sm:$0xff] %vm222, %v4385
    %4402 = vst.msk [vmem:[#allocation3 + $0x138] sm:$0xff] %vm222, %v4386
    %4403 = vst.msk [vmem:[#allocation3 + $0x150] sm:$0xff] %vm222, %v4387
    %4404 = vst.msk [vmem:[#allocation3 + $0x168] sm:$0xff] %vm222, %v4388
    %v4405 = vld [vmem:[#allocation2 + $0x1] sm:$0xff]
    %v4406 = vld [vmem:[#allocation2 + $0x11] sm:$0xff]
    %v4407 = vld [vmem:[#allocation2 + $0x21] sm:$0xff]
    %v4408 = vld [vmem:[#allocation2 + $0x31] sm:$0xff]
    %v4409 = vld [vmem:[#allocation2 + $0x41] sm:$0xff]
    %v4410 = vld [vmem:[#allocation2 + $0x51] sm:$0xff]
    %v4411 = vld [vmem:[#allocation2 + $0x61] sm:$0xff]
    %v4412 = vld [vmem:[#allocation2 + $0x71] sm:$0xff]
    %v4413 = vld [vmem:[#allocation2 + $0xa1] sm:$0xff]
    %v4414 = vld [vmem:[#allocation2 + $0xb1] sm:$0xff]
    %v4415 = vld [vmem:[#allocation2 + $0xc1] sm:$0xff]
    %v4416 = vld [vmem:[#allocation2 + $0xd1] sm:$0xff]
    %v4417 = vld [vmem:[#allocation2 + $0xe1] sm:$0xff]
    %v4418 = vld [vmem:[#allocation2 + $0xf1] sm:$0xff]
    %v4419 = vld [vmem:[#allocation2 + $0x101] sm:$0xff]
    %v4420 = vld [vmem:[#allocation2 + $0x111] sm:$0xff]
    %4437 = vrot.lane.b32.xlu0 %v4405, 32
    %v4438 = vpop.permute.xlu0 %4437
    %4439 = vrot.lane.b32.xlu0 %v4406, 32
    %v4440 = vpop.permute.xlu0 %4439
    %4441 = vrot.lane.b32.xlu0 %v4407, 32
    %v4442 = vpop.permute.xlu0 %4441
    %4443 = vrot.lane.b32.xlu0 %v4408, 32
    %v4444 = vpop.permute.xlu0 %4443
    %4445 = vrot.lane.b32.xlu0 %v4409, 32
    %v4446 = vpop.permute.xlu0 %4445
    %4447 = vrot.lane.b32.xlu0 %v4410, 32
    %v4448 = vpop.permute.xlu0 %4447
    %4449 = vrot.lane.b32.xlu0 %v4411, 32
    %v4450 = vpop.permute.xlu0 %4449
    %4451 = vrot.lane.b32.xlu0 %v4412, 32
    %v4452 = vpop.permute.xlu0 %4451
    %4453 = vrot.lane.b32.xlu0 %v4413, 32
    %v4454 = vpop.permute.xlu0 %4453
    %4455 = vrot.lane.b32.xlu0 %v4414, 32
    %v4456 = vpop.permute.xlu0 %4455
    %4457 = vrot.lane.b32.xlu0 %v4415, 32
    %v4458 = vpop.permute.xlu0 %4457
    %4459 = vrot.lane.b32.xlu0 %v4416, 32
    %v4460 = vpop.permute.xlu0 %4459
    %4461 = vrot.lane.b32.xlu0 %v4417, 32
    %v4462 = vpop.permute.xlu0 %4461
    %4463 = vrot.lane.b32.xlu0 %v4418, 32
    %v4464 = vpop.permute.xlu0 %4463
    %4465 = vrot.lane.b32.xlu0 %v4419, 32
    %v4466 = vpop.permute.xlu0 %4465
    %4467 = vrot.lane.b32.xlu0 %v4420, 32
    %v4468 = vpop.permute.xlu0 %4467
    %4485 = vst.msk [vmem:[#allocation3] sm:$0xff] %vm3337, %v4438
    %4486 = vst.msk [vmem:[#allocation3 + $0x18] sm:$0xff] %vm3337, %v4440
    %4487 = vst.msk [vmem:[#allocation3 + $0x30] sm:$0xff] %vm3337, %v4442
    %4488 = vst.msk [vmem:[#allocation3 + $0x48] sm:$0xff] %vm3337, %v4444
    %4489 = vst.msk [vmem:[#allocation3 + $0x60] sm:$0xff] %vm3337, %v4446
    %4490 = vst.msk [vmem:[#allocation3 + $0x78] sm:$0xff] %vm3337, %v4448
    %4491 = vst.msk [vmem:[#allocation3 + $0x90] sm:$0xff] %vm3337, %v4450
    %4492 = vst.msk [vmem:[#allocation3 + $0xa8] sm:$0xff] %vm3337, %v4452
    %4493 = vst.msk [vmem:[#allocation3 + $0xc0] sm:$0xff] %vm3337, %v4454
    %4494 = vst.msk [vmem:[#allocation3 + $0xd8] sm:$0xff] %vm3337, %v4456
    %4495 = vst.msk [vmem:[#allocation3 + $0xf0] sm:$0xff] %vm3337, %v4458
    %4496 = vst.msk [vmem:[#allocation3 + $0x108] sm:$0xff] %vm3337, %v4460
    %4497 = vst.msk [vmem:[#allocation3 + $0x120] sm:$0xff] %vm3337, %v4462
    %4498 = vst.msk [vmem:[#allocation3 + $0x138] sm:$0xff] %vm3337, %v4464
    %4499 = vst.msk [vmem:[#allocation3 + $0x150] sm:$0xff] %vm3337, %v4466
    %4500 = vst.msk [vmem:[#allocation3 + $0x168] sm:$0xff] %vm3337, %v4468
    %v4501 = vld [vmem:[#allocation2 + $0x2] sm:$0xff]
    %v4502 = vld [vmem:[#allocation2 + $0x12] sm:$0xff]
    %v4503 = vld [vmem:[#allocation2 + $0x22] sm:$0xff]
    %v4504 = vld [vmem:[#allocation2 + $0x32] sm:$0xff]
    %v4505 = vld [vmem:[#allocation2 + $0x42] sm:$0xff]
    %v4506 = vld [vmem:[#allocation2 + $0x52] sm:$0xff]
    %v4507 = vld [vmem:[#allocation2 + $0x62] sm:$0xff]
    %v4508 = vld [vmem:[#allocation2 + $0x72] sm:$0xff]
    %v4509 = vld [vmem:[#allocation2 + $0xa2] sm:$0xff]
    %v4510 = vld [vmem:[#allocation2 + $0xb2] sm:$0xff]
    %v4511 = vld [vmem:[#allocation2 + $0xc2] sm:$0xff]
    %v4512 = vld [vmem:[#allocation2 + $0xd2] sm:$0xff]
    %v4513 = vld [vmem:[#allocation2 + $0xe2] sm:$0xff]
    %v4514 = vld [vmem:[#allocation2 + $0xf2] sm:$0xff]
    %v4515 = vld [vmem:[#allocation2 + $0x102] sm:$0xff]
    %v4516 = vld [vmem:[#allocation2 + $0x112] sm:$0xff]
    %4533 = vrot.lane.b32.xlu0 %v4501, 64
    %v4534 = vpop.permute.xlu0 %4533
    %4535 = vrot.lane.b32.xlu0 %v4502, 64
    %v4536 = vpop.permute.xlu0 %4535
    %4537 = vrot.lane.b32.xlu0 %v4503, 64
    %v4538 = vpop.permute.xlu0 %4537
    %4539 = vrot.lane.b32.xlu0 %v4504, 64
    %v4540 = vpop.permute.xlu0 %4539
    %4541 = vrot.lane.b32.xlu0 %v4505, 64
    %v4542 = vpop.permute.xlu0 %4541
    %4543 = vrot.lane.b32.xlu0 %v4506, 64
    %v4544 = vpop.permute.xlu0 %4543
    %4545 = vrot.lane.b32.xlu0 %v4507, 64
    %v4546 = vpop.permute.xlu0 %4545
    %4547 = vrot.lane.b32.xlu0 %v4508, 64
    %v4548 = vpop.permute.xlu0 %4547
    %4549 = vrot.lane.b32.xlu0 %v4509, 64
    %v4550 = vpop.permute.xlu0 %4549
    %4551 = vrot.lane.b32.xlu0 %v4510, 64
    %v4552 = vpop.permute.xlu0 %4551
    %4553 = vrot.lane.b32.xlu0 %v4511, 64
    %v4554 = vpop.permute.xlu0 %4553
    %4555 = vrot.lane.b32.xlu0 %v4512, 64
    %v4556 = vpop.permute.xlu0 %4555
    %4557 = vrot.lane.b32.xlu0 %v4513, 64
    %v4558 = vpop.permute.xlu0 %4557
    %4559 = vrot.lane.b32.xlu0 %v4514, 64
    %v4560 = vpop.permute.xlu0 %4559
    %4561 = vrot.lane.b32.xlu0 %v4515, 64
    %v4562 = vpop.permute.xlu0 %4561
    %4563 = vrot.lane.b32.xlu0 %v4516, 64
    %v4564 = vpop.permute.xlu0 %4563
    %4581 = vst.msk [vmem:[#allocation3] sm:$0xff] %vm3434, %v4534
    %4582 = vst.msk [vmem:[#allocation3 + $0x18] sm:$0xff] %vm3434, %v4536
    %4583 = vst.msk [vmem:[#allocation3 + $0x30] sm:$0xff] %vm3434, %v4538
    %4584 = vst.msk [vmem:[#allocation3 + $0x48] sm:$0xff] %vm3434, %v4540
    %4585 = vst.msk [vmem:[#allocation3 + $0x60] sm:$0xff] %vm3434, %v4542
    %4586 = vst.msk [vmem:[#allocation3 + $0x78] sm:$0xff] %vm3434, %v4544
    %4587 = vst.msk [vmem:[#allocation3 + $0x90] sm:$0xff] %vm3434, %v4546
    %4588 = vst.msk [vmem:[#allocation3 + $0xa8] sm:$0xff] %vm3434, %v4548
    %4589 = vst.msk [vmem:[#allocation3 + $0xc0] sm:$0xff] %vm3434, %v4550
    %4590 = vst.msk [vmem:[#allocation3 + $0xd8] sm:$0xff] %vm3434, %v4552
    %4591 = vst.msk [vmem:[#allocation3 + $0xf0] sm:$0xff] %vm3434, %v4554
    %4592 = vst.msk [vmem:[#allocation3 + $0x108] sm:$0xff] %vm3434, %v4556
    %4593 = vst.msk [vmem:[#allocation3 + $0x120] sm:$0xff] %vm3434, %v4558
    %4594 = vst.msk [vmem:[#allocation3 + $0x138] sm:$0xff] %vm3434, %v4560
    %4595 = vst.msk [vmem:[#allocation3 + $0x150] sm:$0xff] %vm3434, %v4562
    %4596 = vst.msk [vmem:[#allocation3 + $0x168] sm:$0xff] %vm3434, %v4564
    %v4597 = vld [vmem:[%s290] sm:$0xff]
    %v4598 = vld [vmem:[%s290 + $0x10] sm:$0xff]
    %v4599 = vld [vmem:[%s290 + $0x20] sm:$0xff]
    %v4600 = vld [vmem:[%s290 + $0x30] sm:$0xff]
    %v4601 = vld [vmem:[%s290 + $0x40] sm:$0xff]
    %v4602 = vld [vmem:[%s290 + $0x50] sm:$0xff]
    %v4603 = vld [vmem:[%s290 + $0x60] sm:$0xff]
    %v4604 = vld [vmem:[%s290 + $0x70] sm:$0xff]
    %v4605 = vld [vmem:[%s290 + $0xa0] sm:$0xff]
    %v4606 = vld [vmem:[%s290 + $0xb0] sm:$0xff]
    %v4607 = vld [vmem:[%s290 + $0xc0] sm:$0xff]
    %v4608 = vld [vmem:[%s290 + $0xd0] sm:$0xff]
    %v4609 = vld [vmem:[%s290 + $0xe0] sm:$0xff]
    %v4610 = vld [vmem:[%s290 + $0xf0] sm:$0xff]
    %v4611 = vld [vmem:[%s290 + $0x100] sm:$0xff]
    %v4612 = vld [vmem:[%s290 + $0x110] sm:$0xff]
    %4629 = vrot.lane.b32.xlu0 %v4597, 96
    %v4630 = vpop.permute.xlu0 %4629
    %4631 = vrot.lane.b32.xlu0 %v4598, 96
    %v4632 = vpop.permute.xlu0 %4631
    %4633 = vrot.lane.b32.xlu0 %v4599, 96
    %v4634 = vpop.permute.xlu0 %4633
    %4635 = vrot.lane.b32.xlu0 %v4600, 96
    %v4636 = vpop.permute.xlu0 %4635
    %4637 = vrot.lane.b32.xlu0 %v4601, 96
    %v4638 = vpop.permute.xlu0 %4637
    %4639 = vrot.lane.b32.xlu0 %v4602, 96
    %v4640 = vpop.permute.xlu0 %4639
    %4641 = vrot.lane.b32.xlu0 %v4603, 96
    %v4642 = vpop.permute.xlu0 %4641
    %4643 = vrot.lane.b32.xlu0 %v4604, 96
    %v4644 = vpop.permute.xlu0 %4643
    %4645 = vrot.lane.b32.xlu0 %v4605, 96
    %v4646 = vpop.permute.xlu0 %4645
    %4647 = vrot.lane.b32.xlu0 %v4606, 96
    %v4648 = vpop.permute.xlu0 %4647
    %4649 = vrot.lane.b32.xlu0 %v4607, 96
    %v4650 = vpop.permute.xlu0 %4649
    %4651 = vrot.lane.b32.xlu0 %v4608, 96
    %v4652 = vpop.permute.xlu0 %4651
    %4653 = vrot.lane.b32.xlu0 %v4609, 96
    %v4654 = vpop.permute.xlu0 %4653
    %4655 = vrot.lane.b32.xlu0 %v4610, 96
    %v4656 = vpop.permute.xlu0 %4655
    %4657 = vrot.lane.b32.xlu0 %v4611, 96
    %v4658 = vpop.permute.xlu0 %4657
    %4659 = vrot.lane.b32.xlu0 %v4612, 96
    %v4660 = vpop.permute.xlu0 %4659
    %4677 = vst.msk [vmem:[#allocation3] sm:$0xff] %vm3531, %v4630
    %4678 = vst.msk [vmem:[#allocation3 + $0x18] sm:$0xff] %vm3531, %v4632
    %4679 = vst.msk [vmem:[#allocation3 + $0x30] sm:$0xff] %vm3531, %v4634
    %4680 = vst.msk [vmem:[#allocation3 + $0x48] sm:$0xff] %vm3531, %v4636
    %4681 = vst.msk [vmem:[#allocation3 + $0x60] sm:$0xff] %vm3531, %v4638
    %4682 = vst.msk [vmem:[#allocation3 + $0x78] sm:$0xff] %vm3531, %v4640
    %4683 = vst.msk [vmem:[#allocation3 + $0x90] sm:$0xff] %vm3531, %v4642
    %4684 = vst.msk [vmem:[#allocation3 + $0xa8] sm:$0xff] %vm3531, %v4644
    %4685 = vst.msk [vmem:[#allocation3 + $0xc0] sm:$0xff] %vm3531, %v4646
    %4686 = vst.msk [vmem:[#allocation3 + $0xd8] sm:$0xff] %vm3531, %v4648
    %4687 = vst.msk [vmem:[#allocation3 + $0xf0] sm:$0xff] %vm3531, %v4650
    %4688 = vst.msk [vmem:[#allocation3 + $0x108] sm:$0xff] %vm3531, %v4652
    %4689 = vst.msk [vmem:[#allocation3 + $0x120] sm:$0xff] %vm3531, %v4654
    %4690 = vst.msk [vmem:[#allocation3 + $0x138] sm:$0xff] %vm3531, %v4656
    %4691 = vst.msk [vmem:[#allocation3 + $0x150] sm:$0xff] %vm3531, %v4658
    %4692 = vst.msk [vmem:[#allocation3 + $0x168] sm:$0xff] %vm3531, %v4660
    %v4693 = vld [vmem:[%s290 + $0x1] sm:$0xff]
    %v4694 = vld [vmem:[%s290 + $0x11] sm:$0xff]
    %v4695 = vld [vmem:[%s290 + $0x21] sm:$0xff]
    %v4696 = vld [vmem:[%s290 + $0x31] sm:$0xff]
    %v4697 = vld [vmem:[%s290 + $0x41] sm:$0xff]
    %v4698 = vld [vmem:[%s290 + $0x51] sm:$0xff]
    %v4699 = vld [vmem:[%s290 + $0x61] sm:$0xff]
    %v4700 = vld [vmem:[%s290 + $0x71] sm:$0xff]
    %v4701 = vld [vmem:[%s290 + $0xa1] sm:$0xff]
    %v4702 = vld [vmem:[%s290 + $0xb1] sm:$0xff]
    %v4703 = vld [vmem:[%s290 + $0xc1] sm:$0xff]
    %v4704 = vld [vmem:[%s290 + $0xd1] sm:$0xff]
    %v4705 = vld [vmem:[%s290 + $0xe1] sm:$0xff]
    %v4706 = vld [vmem:[%s290 + $0xf1] sm:$0xff]
    %v4707 = vld [vmem:[%s290 + $0x101] sm:$0xff]
    %v4708 = vld [vmem:[%s290 + $0x111] sm:$0xff]
    %4709 = vst.msk [vmem:[#allocation3 + $0x8] sm:$0xff] %vm222, %v4693
    %4710 = vst.msk [vmem:[#allocation3 + $0x20] sm:$0xff] %vm222, %v4694
    %4711 = vst.msk [vmem:[#allocation3 + $0x38] sm:$0xff] %vm222, %v4695
    %4712 = vst.msk [vmem:[#allocation3 + $0x50] sm:$0xff] %vm222, %v4696
    %4713 = vst.msk [vmem:[#allocation3 + $0x68] sm:$0xff] %vm222, %v4697
    %4714 = vst.msk [vmem:[#allocation3 + $0x80] sm:$0xff] %vm222, %v4698
    %4715 = vst.msk [vmem:[#allocation3 + $0x98] sm:$0xff] %vm222, %v4699
    %4716 = vst.msk [vmem:[#allocation3 + $0xb0] sm:$0xff] %vm222, %v4700
    %4717 = vst.msk [vmem:[#allocation3 + $0xc8] sm:$0xff] %vm222, %v4701
    %4718 = vst.msk [vmem:[#allocation3 + $0xe0] sm:$0xff] %vm222, %v4702
    %4719 = vst.msk [vmem:[#allocation3 + $0xf8] sm:$0xff] %vm222, %v4703
    %4720 = vst.msk [vmem:[#allocation3 + $0x110] sm:$0xff] %vm222, %v4704
    %4721 = vst.msk [vmem:[#allocation3 + $0x128] sm:$0xff] %vm222, %v4705
    %4722 = vst.msk [vmem:[#allocation3 + $0x140] sm:$0xff] %vm222, %v4706
    %4723 = vst.msk [vmem:[#allocation3 + $0x158] sm:$0xff] %vm222, %v4707
    %4724 = vst.msk [vmem:[#allocation3 + $0x170] sm:$0xff] %vm222, %v4708
    %v4725 = vld [vmem:[%s290 + $0x2] sm:$0xff]
    %v4726 = vld [vmem:[%s290 + $0x12] sm:$0xff]
    %v4727 = vld [vmem:[%s290 + $0x22] sm:$0xff]
    %v4728 = vld [vmem:[%s290 + $0x32] sm:$0xff]
    %v4729 = vld [vmem:[%s290 + $0x42] sm:$0xff]
    %v4730 = vld [vmem:[%s290 + $0x52] sm:$0xff]
    %v4731 = vld [vmem:[%s290 + $0x62] sm:$0xff]
    %v4732 = vld [vmem:[%s290 + $0x72] sm:$0xff]
    %v4733 = vld [vmem:[%s290 + $0xa2] sm:$0xff]
    %v4734 = vld [vmem:[%s290 + $0xb2] sm:$0xff]
    %v4735 = vld [vmem:[%s290 + $0xc2] sm:$0xff]
    %v4736 = vld [vmem:[%s290 + $0xd2] sm:$0xff]
    %v4737 = vld [vmem:[%s290 + $0xe2] sm:$0xff]
    %v4738 = vld [vmem:[%s290 + $0xf2] sm:$0xff]
    %v4739 = vld [vmem:[%s290 + $0x102] sm:$0xff]
    %v4740 = vld [vmem:[%s290 + $0x112] sm:$0xff]
    %4757 = vrot.lane.b32.xlu0 %v4725, 32
    %v4758 = vpop.permute.xlu0 %4757
    %4759 = vrot.lane.b32.xlu0 %v4726, 32
    %v4760 = vpop.permute.xlu0 %4759
    %4761 = vrot.lane.b32.xlu0 %v4727, 32
    %v4762 = vpop.permute.xlu0 %4761
    %4763 = vrot.lane.b32.xlu0 %v4728, 32
    %v4764 = vpop.permute.xlu0 %4763
    %4765 = vrot.lane.b32.xlu0 %v4729, 32
    %v4766 = vpop.permute.xlu0 %4765
    %4767 = vrot.lane.b32.xlu0 %v4730, 32
    %v4768 = vpop.permute.xlu0 %4767
    %4769 = vrot.lane.b32.xlu0 %v4731, 32
    %v4770 = vpop.permute.xlu0 %4769
    %4771 = vrot.lane.b32.xlu0 %v4732, 32
    %v4772 = vpop.permute.xlu0 %4771
    %4773 = vrot.lane.b32.xlu0 %v4733, 32
    %v4774 = vpop.permute.xlu0 %4773
    %4775 = vrot.lane.b32.xlu0 %v4734, 32
    %v4776 = vpop.permute.xlu0 %4775
    %4777 = vrot.lane.b32.xlu0 %v4735, 32
    %v4778 = vpop.permute.xlu0 %4777
    %4779 = vrot.lane.b32.xlu0 %v4736, 32
    %v4780 = vpop.permute.xlu0 %4779
    %4781 = vrot.lane.b32.xlu0 %v4737, 32
    %v4782 = vpop.permute.xlu0 %4781
    %4783 = vrot.lane.b32.xlu0 %v4738, 32
    %v4784 = vpop.permute.xlu0 %4783
    %4785 = vrot.lane.b32.xlu0 %v4739, 32
    %v4786 = vpop.permute.xlu0 %4785
    %4787 = vrot.lane.b32.xlu0 %v4740, 32
    %v4788 = vpop.permute.xlu0 %4787
    %4805 = vst.msk [vmem:[#allocation3 + $0x8] sm:$0xff] %vm3337, %v4758
    %4806 = vst.msk [vmem:[#allocation3 + $0x20] sm:$0xff] %vm3337, %v4760
    %4807 = vst.msk [vmem:[#allocation3 + $0x38] sm:$0xff] %vm3337, %v4762
    %4808 = vst.msk [vmem:[#allocation3 + $0x50] sm:$0xff] %vm3337, %v4764
    %4809 = vst.msk [vmem:[#allocation3 + $0x68] sm:$0xff] %vm3337, %v4766
    %4810 = vst.msk [vmem:[#allocation3 + $0x80] sm:$0xff] %vm3337, %v4768
    %4811 = vst.msk [vmem:[#allocation3 + $0x98] sm:$0xff] %vm3337, %v4770
    %4812 = vst.msk [vmem:[#allocation3 + $0xb0] sm:$0xff] %vm3337, %v4772
    %4813 = vst.msk [vmem:[#allocation3 + $0xc8] sm:$0xff] %vm3337, %v4774
    %4814 = vst.msk [vmem:[#allocation3 + $0xe0] sm:$0xff] %vm3337, %v4776
    %4815 = vst.msk [vmem:[#allocation3 + $0xf8] sm:$0xff] %vm3337, %v4778
    %4816 = vst.msk [vmem:[#allocation3 + $0x110] sm:$0xff] %vm3337, %v4780
    %4817 = vst.msk [vmem:[#allocation3 + $0x128] sm:$0xff] %vm3337, %v4782
    %4818 = vst.msk [vmem:[#allocation3 + $0x140] sm:$0xff] %vm3337, %v4784
    %4819 = vst.msk [vmem:[#allocation3 + $0x158] sm:$0xff] %vm3337, %v4786
    %4820 = vst.msk [vmem:[#allocation3 + $0x170] sm:$0xff] %vm3337, %v4788
    %v4821 = vld [vmem:[%s825] sm:$0xff]
    %v4822 = vld [vmem:[%s825 + $0x10] sm:$0xff]
    %v4823 = vld [vmem:[%s825 + $0x20] sm:$0xff]
    %v4824 = vld [vmem:[%s825 + $0x30] sm:$0xff]
    %v4825 = vld [vmem:[%s825 + $0x40] sm:$0xff]
    %v4826 = vld [vmem:[%s825 + $0x50] sm:$0xff]
    %v4827 = vld [vmem:[%s825 + $0x60] sm:$0xff]
    %v4828 = vld [vmem:[%s825 + $0x70] sm:$0xff]
    %v4829 = vld [vmem:[%s825 + $0xa0] sm:$0xff]
    %v4830 = vld [vmem:[%s825 + $0xb0] sm:$0xff]
    %v4831 = vld [vmem:[%s825 + $0xc0] sm:$0xff]
    %v4832 = vld [vmem:[%s825 + $0xd0] sm:$0xff]
    %v4833 = vld [vmem:[%s825 + $0xe0] sm:$0xff]
    %v4834 = vld [vmem:[%s825 + $0xf0] sm:$0xff]
    %v4835 = vld [vmem:[%s825 + $0x100] sm:$0xff]
    %v4836 = vld [vmem:[%s825 + $0x110] sm:$0xff]
    %4853 = vrot.lane.b32.xlu0 %v4821, 64
    %v4854 = vpop.permute.xlu0 %4853
    %4855 = vrot.lane.b32.xlu0 %v4822, 64
    %v4856 = vpop.permute.xlu0 %4855
    %4857 = vrot.lane.b32.xlu0 %v4823, 64
    %v4858 = vpop.permute.xlu0 %4857
    %4859 = vrot.lane.b32.xlu0 %v4824, 64
    %v4860 = vpop.permute.xlu0 %4859
    %4861 = vrot.lane.b32.xlu0 %v4825, 64
    %v4862 = vpop.permute.xlu0 %4861
    %4863 = vrot.lane.b32.xlu0 %v4826, 64
    %v4864 = vpop.permute.xlu0 %4863
    %4865 = vrot.lane.b32.xlu0 %v4827, 64
    %v4866 = vpop.permute.xlu0 %4865
    %4867 = vrot.lane.b32.xlu0 %v4828, 64
    %v4868 = vpop.permute.xlu0 %4867
    %4869 = vrot.lane.b32.xlu0 %v4829, 64
    %v4870 = vpop.permute.xlu0 %4869
    %4871 = vrot.lane.b32.xlu0 %v4830, 64
    %v4872 = vpop.permute.xlu0 %4871
    %4873 = vrot.lane.b32.xlu0 %v4831, 64
    %v4874 = vpop.permute.xlu0 %4873
    %4875 = vrot.lane.b32.xlu0 %v4832, 64
    %v4876 = vpop.permute.xlu0 %4875
    %4877 = vrot.lane.b32.xlu0 %v4833, 64
    %v4878 = vpop.permute.xlu0 %4877
    %4879 = vrot.lane.b32.xlu0 %v4834, 64
    %v4880 = vpop.permute.xlu0 %4879
    %4881 = vrot.lane.b32.xlu0 %v4835, 64
    %v4882 = vpop.permute.xlu0 %4881
    %4883 = vrot.lane.b32.xlu0 %v4836, 64
    %v4884 = vpop.permute.xlu0 %4883
    %4901 = vst.msk [vmem:[#allocation3 + $0x8] sm:$0xff] %vm3434, %v4854
    %4902 = vst.msk [vmem:[#allocation3 + $0x20] sm:$0xff] %vm3434, %v4856
    %4903 = vst.msk [vmem:[#allocation3 + $0x38] sm:$0xff] %vm3434, %v4858
    %4904 = vst.msk [vmem:[#allocation3 + $0x50] sm:$0xff] %vm3434, %v4860
    %4905 = vst.msk [vmem:[#allocation3 + $0x68] sm:$0xff] %vm3434, %v4862
    %4906 = vst.msk [vmem:[#allocation3 + $0x80] sm:$0xff] %vm3434, %v4864
    %4907 = vst.msk [vmem:[#allocation3 + $0x98] sm:$0xff] %vm3434, %v4866
    %4908 = vst.msk [vmem:[#allocation3 + $0xb0] sm:$0xff] %vm3434, %v4868
    %4909 = vst.msk [vmem:[#allocation3 + $0xc8] sm:$0xff] %vm3434, %v4870
    %4910 = vst.msk [vmem:[#allocation3 + $0xe0] sm:$0xff] %vm3434, %v4872
    %4911 = vst.msk [vmem:[#allocation3 + $0xf8] sm:$0xff] %vm3434, %v4874
    %4912 = vst.msk [vmem:[#allocation3 + $0x110] sm:$0xff] %vm3434, %v4876
    %4913 = vst.msk [vmem:[#allocation3 + $0x128] sm:$0xff] %vm3434, %v4878
    %4914 = vst.msk [vmem:[#allocation3 + $0x140] sm:$0xff] %vm3434, %v4880
    %4915 = vst.msk [vmem:[#allocation3 + $0x158] sm:$0xff] %vm3434, %v4882
    %4916 = vst.msk [vmem:[#allocation3 + $0x170] sm:$0xff] %vm3434, %v4884
    %v4917 = vld [vmem:[%s825 + $0x1] sm:$0xff]
    %v4918 = vld [vmem:[%s825 + $0x11] sm:$0xff]
    %v4919 = vld [vmem:[%s825 + $0x21] sm:$0xff]
    %v4920 = vld [vmem:[%s825 + $0x31] sm:$0xff]
    %v4921 = vld [vmem:[%s825 + $0x41] sm:$0xff]
    %v4922 = vld [vmem:[%s825 + $0x51] sm:$0xff]
    %v4923 = vld [vmem:[%s825 + $0x61] sm:$0xff]
    %v4924 = vld [vmem:[%s825 + $0x71] sm:$0xff]
    %v4925 = vld [vmem:[%s825 + $0xa1] sm:$0xff]
    %v4926 = vld [vmem:[%s825 + $0xb1] sm:$0xff]
    %v4927 = vld [vmem:[%s825 + $0xc1] sm:$0xff]
    %v4928 = vld [vmem:[%s825 + $0xd1] sm:$0xff]
    %v4929 = vld [vmem:[%s825 + $0xe1] sm:$0xff]
    %v4930 = vld [vmem:[%s825 + $0xf1] sm:$0xff]
    %v4931 = vld [vmem:[%s825 + $0x101] sm:$0xff]
    %v4932 = vld [vmem:[%s825 + $0x111] sm:$0xff]
    %4949 = vrot.lane.b32.xlu0 %v4917, 96
    %v4950 = vpop.permute.xlu0 %4949
    %4951 = vrot.lane.b32.xlu0 %v4918, 96
    %v4952 = vpop.permute.xlu0 %4951
    %4953 = vrot.lane.b32.xlu0 %v4919, 96
    %v4954 = vpop.permute.xlu0 %4953
    %4955 = vrot.lane.b32.xlu0 %v4920, 96
    %v4956 = vpop.permute.xlu0 %4955
    %4957 = vrot.lane.b32.xlu0 %v4921, 96
    %v4958 = vpop.permute.xlu0 %4957
    %4959 = vrot.lane.b32.xlu0 %v4922, 96
    %v4960 = vpop.permute.xlu0 %4959
    %4961 = vrot.lane.b32.xlu0 %v4923, 96
    %v4962 = vpop.permute.xlu0 %4961
    %4963 = vrot.lane.b32.xlu0 %v4924, 96
    %v4964 = vpop.permute.xlu0 %4963
    %4965 = vrot.lane.b32.xlu0 %v4925, 96
    %v4966 = vpop.permute.xlu0 %4965
    %4967 = vrot.lane.b32.xlu0 %v4926, 96
    %v4968 = vpop.permute.xlu0 %4967
    %4969 = vrot.lane.b32.xlu0 %v4927, 96
    %v4970 = vpop.permute.xlu0 %4969
    %4971 = vrot.lane.b32.xlu0 %v4928, 96
    %v4972 = vpop.permute.xlu0 %4971
    %4973 = vrot.lane.b32.xlu0 %v4929, 96
    %v4974 = vpop.permute.xlu0 %4973
    %4975 = vrot.lane.b32.xlu0 %v4930, 96
    %v4976 = vpop.permute.xlu0 %4975
    %4977 = vrot.lane.b32.xlu0 %v4931, 96
    %v4978 = vpop.permute.xlu0 %4977
    %4979 = vrot.lane.b32.xlu0 %v4932, 96
    %v4980 = vpop.permute.xlu0 %4979
    %4997 = vst.msk [vmem:[#allocation3 + $0x8] sm:$0xff] %vm3531, %v4950
    %4998 = vst.msk [vmem:[#allocation3 + $0x20] sm:$0xff] %vm3531, %v4952
    %4999 = vst.msk [vmem:[#allocation3 + $0x38] sm:$0xff] %vm3531, %v4954
    %5000 = vst.msk [vmem:[#allocation3 + $0x50] sm:$0xff] %vm3531, %v4956
    %5001 = vst.msk [vmem:[#allocation3 + $0x68] sm:$0xff] %vm3531, %v4958
    %5002 = vst.msk [vmem:[#allocation3 + $0x80] sm:$0xff] %vm3531, %v4960
    %5003 = vst.msk [vmem:[#allocation3 + $0x98] sm:$0xff] %vm3531, %v4962
    %5004 = vst.msk [vmem:[#allocation3 + $0xb0] sm:$0xff] %vm3531, %v4964
    %5005 = vst.msk [vmem:[#allocation3 + $0xc8] sm:$0xff] %vm3531, %v4966
    %5006 = vst.msk [vmem:[#allocation3 + $0xe0] sm:$0xff] %vm3531, %v4968
    %5007 = vst.msk [vmem:[#allocation3 + $0xf8] sm:$0xff] %vm3531, %v4970
    %5008 = vst.msk [vmem:[#allocation3 + $0x110] sm:$0xff] %vm3531, %v4972
    %5009 = vst.msk [vmem:[#allocation3 + $0x128] sm:$0xff] %vm3531, %v4974
    %5010 = vst.msk [vmem:[#allocation3 + $0x140] sm:$0xff] %vm3531, %v4976
    %5011 = vst.msk [vmem:[#allocation3 + $0x158] sm:$0xff] %vm3531, %v4978
    %5012 = vst.msk [vmem:[#allocation3 + $0x170] sm:$0xff] %vm3531, %v4980
    %v5013 = vld [vmem:[%s825 + $0x2] sm:$0xff]
    %v5014 = vld [vmem:[%s825 + $0x12] sm:$0xff]
    %v5015 = vld [vmem:[%s825 + $0x22] sm:$0xff]
    %v5016 = vld [vmem:[%s825 + $0x32] sm:$0xff]
    %v5017 = vld [vmem:[%s825 + $0x42] sm:$0xff]
    %v5018 = vld [vmem:[%s825 + $0x52] sm:$0xff]
    %v5019 = vld [vmem:[%s825 + $0x62] sm:$0xff]
    %v5020 = vld [vmem:[%s825 + $0x72] sm:$0xff]
    %v5021 = vld [vmem:[%s825 + $0xa2] sm:$0xff]
    %v5022 = vld [vmem:[%s825 + $0xb2] sm:$0xff]
    %v5023 = vld [vmem:[%s825 + $0xc2] sm:$0xff]
    %v5024 = vld [vmem:[%s825 + $0xd2] sm:$0xff]
    %v5025 = vld [vmem:[%s825 + $0xe2] sm:$0xff]
    %v5026 = vld [vmem:[%s825 + $0xf2] sm:$0xff]
    %v5027 = vld [vmem:[%s825 + $0x102] sm:$0xff]
    %v5028 = vld [vmem:[%s825 + $0x112] sm:$0xff]
    %5029 = vst.msk [vmem:[#allocation3 + $0x10] sm:$0xff] %vm222, %v5013
    %5030 = vst.msk [vmem:[#allocation3 + $0x28] sm:$0xff] %vm222, %v5014
    %5031 = vst.msk [vmem:[#allocation3 + $0x40] sm:$0xff] %vm222, %v5015
    %5032 = vst.msk [vmem:[#allocation3 + $0x58] sm:$0xff] %vm222, %v5016
    %5033 = vst.msk [vmem:[#allocation3 + $0x70] sm:$0xff] %vm222, %v5017
    %5034 = vst.msk [vmem:[#allocation3 + $0x88] sm:$0xff] %vm222, %v5018
    %5035 = vst.msk [vmem:[#allocation3 + $0xa0] sm:$0xff] %vm222, %v5019
    %5036 = vst.msk [vmem:[#allocation3 + $0xb8] sm:$0xff] %vm222, %v5020
    %5037 = vst.msk [vmem:[#allocation3 + $0xd0] sm:$0xff] %vm222, %v5021
    %5038 = vst.msk [vmem:[#allocation3 + $0xe8] sm:$0xff] %vm222, %v5022
    %5039 = vst.msk [vmem:[#allocation3 + $0x100] sm:$0xff] %vm222, %v5023
    %5040 = vst.msk [vmem:[#allocation3 + $0x118] sm:$0xff] %vm222, %v5024
    %5041 = vst.msk [vmem:[#allocation3 + $0x130] sm:$0xff] %vm222, %v5025
    %5042 = vst.msk [vmem:[#allocation3 + $0x148] sm:$0xff] %vm222, %v5026
    %5043 = vst.msk [vmem:[#allocation3 + $0x160] sm:$0xff] %vm222, %v5027
    %5044 = vst.msk [vmem:[#allocation3 + $0x178] sm:$0xff] %vm222, %v5028
    %v5045 = vld [vmem:[#allocation3] sm:$0xff]
    %v5046 = vld [vmem:[#allocation3 + $0x8] sm:$0xff]
    %v5047 = vld [vmem:[#allocation3 + $0x10] sm:$0xff]
    %v5048 = vld [vmem:[#allocation3 + $0x18] sm:$0xff]
    %v5049 = vld [vmem:[#allocation3 + $0x20] sm:$0xff]
    %v5050 = vld [vmem:[#allocation3 + $0x28] sm:$0xff]
    %v5051 = vld [vmem:[#allocation3 + $0x30] sm:$0xff]
    %v5052 = vld [vmem:[#allocation3 + $0x38] sm:$0xff]
    %v5053 = vld [vmem:[#allocation3 + $0x40] sm:$0xff]
    %v5054 = vld [vmem:[#allocation3 + $0x48] sm:$0xff]
    %v5055 = vld [vmem:[#allocation3 + $0x50] sm:$0xff]
    %v5056 = vld [vmem:[#allocation3 + $0x58] sm:$0xff]
    %v5057 = vld [vmem:[#allocation3 + $0x60] sm:$0xff]
    %v5058 = vld [vmem:[#allocation3 + $0x68] sm:$0xff]
    %v5059 = vld [vmem:[#allocation3 + $0x70] sm:$0xff]
    %v5060 = vld [vmem:[#allocation3 + $0x78] sm:$0xff]
    %v5061 = vld [vmem:[#allocation3 + $0x80] sm:$0xff]
    %v5062 = vld [vmem:[#allocation3 + $0x88] sm:$0xff]
    %v5063 = vld [vmem:[#allocation3 + $0x90] sm:$0xff]
    %v5064 = vld [vmem:[#allocation3 + $0x98] sm:$0xff]
    %v5065 = vld [vmem:[#allocation3 + $0xa0] sm:$0xff]
    %v5066 = vld [vmem:[#allocation3 + $0xa8] sm:$0xff]
    %v5067 = vld [vmem:[#allocation3 + $0xb0] sm:$0xff]
    %v5068 = vld [vmem:[#allocation3 + $0xb8] sm:$0xff]
    %v5069 = vld [vmem:[#allocation3 + $0xc0] sm:$0xff]
    %v5070 = vld [vmem:[#allocation3 + $0xc8] sm:$0xff]
    %v5071 = vld [vmem:[#allocation3 + $0xd0] sm:$0xff]
    %v5072 = vld [vmem:[#allocation3 + $0xd8] sm:$0xff]
    %v5073 = vld [vmem:[#allocation3 + $0xe0] sm:$0xff]
    %v5074 = vld [vmem:[#allocation3 + $0xe8] sm:$0xff]
    %v5075 = vld [vmem:[#allocation3 + $0xf0] sm:$0xff]
    %v5076 = vld [vmem:[#allocation3 + $0xf8] sm:$0xff]
    %v5077 = vld [vmem:[#allocation3 + $0x100] sm:$0xff]
    %v5078 = vld [vmem:[#allocation3 + $0x108] sm:$0xff]
    %v5079 = vld [vmem:[#allocation3 + $0x110] sm:$0xff]
    %v5080 = vld [vmem:[#allocation3 + $0x118] sm:$0xff]
    %v5081 = vld [vmem:[#allocation3 + $0x120] sm:$0xff]
    %v5082 = vld [vmem:[#allocation3 + $0x128] sm:$0xff]
    %v5083 = vld [vmem:[#allocation3 + $0x130] sm:$0xff]
    %v5084 = vld [vmem:[#allocation3 + $0x138] sm:$0xff]
    %v5085 = vld [vmem:[#allocation3 + $0x140] sm:$0xff]
    %v5086 = vld [vmem:[#allocation3 + $0x148] sm:$0xff]
    %v5087 = vld [vmem:[#allocation3 + $0x150] sm:$0xff]
    %v5088 = vld [vmem:[#allocation3 + $0x158] sm:$0xff]
    %v5089 = vld [vmem:[#allocation3 + $0x160] sm:$0xff]
    %v5090 = vld [vmem:[#allocation3 + $0x168] sm:$0xff]
    %v5091 = vld [vmem:[#allocation3 + $0x170] sm:$0xff]
    %v5092 = vld [vmem:[#allocation3 + $0x178] sm:$0xff]
    %v5093 = vpack.c.bf16 %v5048, %v5045
    %v5094 = vpack.c.bf16 %v5049, %v5046
    %v5095 = vpack.c.bf16 %v5050, %v5047
    %v5096 = vpack.c.bf16 %v5054, %v5051
    %v5097 = vpack.c.bf16 %v5055, %v5052
    %v5098 = vpack.c.bf16 %v5056, %v5053
    %v5099 = vpack.c.bf16 %v5060, %v5057
    %v5100 = vpack.c.bf16 %v5061, %v5058
    %v5101 = vpack.c.bf16 %v5062, %v5059
    %v5102 = vpack.c.bf16 %v5066, %v5063
    %v5103 = vpack.c.bf16 %v5067, %v5064
    %v5104 = vpack.c.bf16 %v5068, %v5065
    %v5105 = vpack.c.bf16 %v5072, %v5069
    %v5106 = vpack.c.bf16 %v5073, %v5070
    %v5107 = vpack.c.bf16 %v5074, %v5071
    %v5108 = vpack.c.bf16 %v5078, %v5075
    %v5109 = vpack.c.bf16 %v5079, %v5076
    %v5110 = vpack.c.bf16 %v5080, %v5077
    %v5111 = vpack.c.bf16 %v5084, %v5081
    %v5112 = vpack.c.bf16 %v5085, %v5082
    %v5113 = vpack.c.bf16 %v5086, %v5083
    %v5114 = vpack.c.bf16 %v5090, %v5087
    %v5115 = vpack.c.bf16 %v5091, %v5088
    %v5116 = vpack.c.bf16 %v5092, %v5089
    %v5117 = vld [vmem:[#allocation24] sm:$0xf]
    %v5118 = vld [vmem:[#allocation24 + $0x4] sm:$0xf]
    %v5119 = vld [vmem:[#allocation24 + $0x8] sm:$0xf]
    %v5120 = vld [vmem:[#allocation24 + $0xc] sm:$0xf]
    %v5121 = vld [vmem:[#allocation24 + $0x10] sm:$0xf]
    %v5122 = vld [vmem:[#allocation24 + $0x14] sm:$0xf]
    %v5123 = vld [vmem:[#allocation24 + $0x18] sm:$0xf]
    %v5124 = vld [vmem:[#allocation24 + $0x1c] sm:$0xf]
    %v5125 = vld [vmem:[#allocation24 + $0x20] sm:$0xf]
    %v5126 = vld [vmem:[#allocation24 + $0x24] sm:$0xf]
    %v5127 = vld [vmem:[#allocation24 + $0x28] sm:$0xf]
    %v5128 = vld [vmem:[#allocation24 + $0x2c] sm:$0xf]
    %v5129 = vld [vmem:[#allocation24 + $0x30] sm:$0xf]
    %v5130 = vld [vmem:[#allocation24 + $0x34] sm:$0xf]
    %v5131 = vld [vmem:[#allocation24 + $0x38] sm:$0xf]
    %v5132 = vld [vmem:[#allocation24 + $0x3c] sm:$0xf]
    %v5133 = vld [vmem:[#allocation24 + $0x40] sm:$0xf]
    %v5134 = vld [vmem:[#allocation24 + $0x44] sm:$0xf]
    %v5135 = vld [vmem:[#allocation24 + $0x48] sm:$0xf]
    %v5136 = vld [vmem:[#allocation24 + $0x4c] sm:$0xf]
    %v5137 = vld [vmem:[#allocation24 + $0x50] sm:$0xf]
    %v5138 = vld [vmem:[#allocation24 + $0x54] sm:$0xf]
    %v5139 = vld [vmem:[#allocation24 + $0x58] sm:$0xf]
    %v5140 = vld [vmem:[#allocation24 + $0x5c] sm:$0xf]
    %v5141 = vld [vmem:[#allocation24 + $0x60] sm:$0xf]
    %v5142 = vld [vmem:[#allocation24 + $0x64] sm:$0xf]
    %v5143 = vld [vmem:[#allocation24 + $0x68] sm:$0xf]
    %v5144 = vld [vmem:[#allocation24 + $0x6c] sm:$0xf]
    %v5145 = vld [vmem:[#allocation24 + $0x70] sm:$0xf]
    %v5146 = vld [vmem:[#allocation24 + $0x74] sm:$0xf]
    %v5147 = vld [vmem:[#allocation24 + $0x78] sm:$0xf]
    %v5148 = vld [vmem:[#allocation24 + $0x7c] sm:$0xf]
    %v5149 = vld [vmem:[#allocation24 + $0x80] sm:$0xf]
    %v5150 = vld [vmem:[#allocation24 + $0x84] sm:$0xf]
    %v5151 = vld [vmem:[#allocation24 + $0x88] sm:$0xf]
    %v5152 = vld [vmem:[#allocation24 + $0x8c] sm:$0xf]
    %v5189 = vunpack.c.l.b16 %v5117
    %v5190 = vunpack.c.l.b16 %v5118
    %v5191 = vunpack.c.l.b16 %v5119
    %v5192 = vunpack.c.l.b16 %v5120
    %v5193 = vunpack.c.l.b16 %v5121
    %v5194 = vunpack.c.l.b16 %v5122
    %v5195 = vunpack.c.l.b16 %v5123
    %v5196 = vunpack.c.l.b16 %v5124
    %v5197 = vunpack.c.l.b16 %v5125
    %v5198 = vunpack.c.l.b16 %v5126
    %v5199 = vunpack.c.l.b16 %v5127
    %v5200 = vunpack.c.l.b16 %v5128
    %v5201 = vunpack.c.l.b16 %v5129
    %v5202 = vunpack.c.l.b16 %v5130
    %v5203 = vunpack.c.l.b16 %v5131
    %v5204 = vunpack.c.l.b16 %v5132
    %v5205 = vunpack.c.l.b16 %v5133
    %v5206 = vunpack.c.l.b16 %v5134
    %v5207 = vunpack.c.l.b16 %v5135
    %v5208 = vunpack.c.l.b16 %v5136
    %v5209 = vunpack.c.l.b16 %v5137
    %v5210 = vunpack.c.l.b16 %v5138
    %v5211 = vunpack.c.l.b16 %v5139
    %v5212 = vunpack.c.l.b16 %v5140
    %v5213 = vunpack.c.l.b16 %v5141
    %v5214 = vunpack.c.l.b16 %v5142
    %v5215 = vunpack.c.l.b16 %v5143
    %v5216 = vunpack.c.l.b16 %v5144
    %v5217 = vunpack.c.l.b16 %v5145
    %v5218 = vunpack.c.l.b16 %v5146
    %v5219 = vunpack.c.l.b16 %v5147
    %v5220 = vunpack.c.l.b16 %v5148
    %v5221 = vunpack.c.l.b16 %v5149
    %v5222 = vunpack.c.l.b16 %v5150
    %v5223 = vunpack.c.l.b16 %v5151
    %v5224 = vunpack.c.l.b16 %v5152
    %v5225 = vpack.c.b16 %v5190, %v5189
    %v5226 = vpack.c.b16 %v5192, %v5191
    %v5227 = vpack.c.b16 %v5194, %v5193
    %v5228 = vpack.c.b16 %v5196, %v5195
    %v5229 = vpack.c.b16 %v5198, %v5197
    %v5230 = vpack.c.b16 %v5200, %v5199
    %v5231 = vpack.c.b16 %v5202, %v5201
    %v5232 = vpack.c.b16 %v5204, %v5203
    %v5233 = vpack.c.b16 %v5206, %v5205
    %v5234 = vpack.c.b16 %v5208, %v5207
    %v5235 = vpack.c.b16 %v5210, %v5209
    %v5236 = vpack.c.b16 %v5212, %v5211
    %v5237 = vpack.c.b16 %v5214, %v5213
    %v5238 = vpack.c.b16 %v5216, %v5215
    %v5239 = vpack.c.b16 %v5218, %v5217
    %v5240 = vpack.c.b16 %v5220, %v5219
    %v5241 = vpack.c.b16 %v5222, %v5221
    %v5242 = vpack.c.b16 %v5224, %v5223
    %v5262 = vsel %vm222, %v5095, 0
    %v5265 = vsel %vm222, %v5098, 0
    %v5268 = vsel %vm222, %v5101, 0
    %v5271 = vsel %vm222, %v5104, 0
    %v5274 = vsel %vm222, %v5107, 0
    %v5277 = vsel %vm222, %v5110, 0
    %v5280 = vsel %vm222, %v5113, 0
    %v5283 = vsel %vm222, %v5116, 0
    %5285 = vmatprep.subr.bf16.mxu0 0
    %5286 = vmatpush1.bf16.msra.mxu0 %v5225
    %5287 = vmatprep.subr.bf16.mxu0 0
    %5288 = vmatpush1.bf16.msra.mxu0 %v5226
    %5289 = vmatprep.subr.bf16.mxu0 0
    %5290 = vmatpush1.bf16.msra.mxu0 %v5227
    %5291 = vmatprep.subr.bf16.mxu0 0
    %5292 = vmatpush1.bf16.msra.mxu0 %v5228
    %5293 = vmatprep.subr.bf16.mxu0 0
    %5294 = vmatpush1.bf16.msra.mxu0 %v5229
    %5295 = vmatprep.subr.bf16.mxu0 0
    %5296 = vmatpush1.bf16.msra.mxu0 %v5230
    %5297 = vmatprep.subr.bf16.mxu0 0
    %5298 = vmatpush1.bf16.msra.mxu0 %v5231
    %5299 = vmatprep.subr.bf16.mxu0 0
    %5300 = vmatpush1.bf16.msra.mxu0 %v5232
    %5301 = vmatprep.subr.bf16.mxu0 0
    %5302 = vmatpush1.bf16.msra.mxu0 %v5233
    %5303 = vmatprep.subr.bf16.mxu0 0
    %5304 = vmatpush1.bf16.msra.mxu0 %v5234
    %5305 = vmatprep.subr.bf16.mxu0 0
    %5306 = vmatpush1.bf16.msra.mxu0 %v5235
    %5307 = vmatprep.subr.bf16.mxu0 0
    %5308 = vmatpush1.bf16.msra.mxu0 %v5236
    %5309 = vmatprep.subr.bf16.mxu0 0
    %5310 = vmatpush1.bf16.msra.mxu0 %v5237
    %5311 = vmatprep.subr.bf16.mxu0 0
    %5312 = vmatpush1.bf16.msra.mxu0 %v5238
    %5313 = vmatprep.subr.bf16.mxu0 0
    %5314 = vmatpush1.bf16.msra.mxu0 %v5239
    %5315 = vmatprep.subr.bf16.mxu0 0
    %5316 = vmatpush1.bf16.msra.mxu0 %v5240
    %5317 = vmatprep.mubr.bf16.mxu0 %v5094
    %5318 = vmatmul.mubr.bf16.gmra.mrb[0].mxu0 %v5093
    %v5319 = vpop.f32.mrb[0].mxu0
    %v5320 = vadd.f32 0.0, %v5319
    %v5321 = vpop.f32.mrb[0].mxu0
    %v5322 = vpop.f32.mrb[0].mxu0
    %v5323 = vadd.f32 0.0, %v5322
    %v5324 = vpop.f32.mrb[0].mxu0
    %5325 = vmatprep.mubr.bf16.mxu0 %v5097
    %5326 = vmatmul.mubr.bf16.gmra.mrb[0].mxu0 %v5096
    %v5327 = vpop.f32.mrb[0].mxu0
    %v5328 = vadd.f32 0.0, %v5327
    %v5329 = vpop.f32.mrb[0].mxu0
    %v5330 = vpop.f32.mrb[0].mxu0
    %v5331 = vadd.f32 0.0, %v5330
    %v5332 = vpop.f32.mrb[0].mxu0
    %5333 = vmatprep.mubr.bf16.mxu0 %v5100
    %5334 = vmatmul.mubr.bf16.gmra.mrb[0].mxu0 %v5099
    %v5335 = vpop.f32.mrb[0].mxu0
    %v5336 = vadd.f32 0.0, %v5335
    %v5337 = vpop.f32.mrb[0].mxu0
    %v5338 = vpop.f32.mrb[0].mxu0
    %v5339 = vadd.f32 0.0, %v5338
    %v5340 = vpop.f32.mrb[0].mxu0
    %5341 = vmatprep.mubr.bf16.mxu0 %v5103
    %5342 = vmatmul.mubr.bf16.gmra.mrb[0].mxu0 %v5102
    %v5343 = vpop.f32.mrb[0].mxu0
    %v5344 = vadd.f32 0.0, %v5343
    %v5345 = vpop.f32.mrb[0].mxu0
    %v5346 = vpop.f32.mrb[0].mxu0
    %v5347 = vadd.f32 0.0, %v5346
    %v5348 = vpop.f32.mrb[0].mxu0
    %5349 = vmatprep.mubr.bf16.mxu0 %v5106
    %5350 = vmatmul.mubr.bf16.gmra.mrb[0].mxu0 %v5105
    %v5351 = vpop.f32.mrb[0].mxu0
    %v5352 = vadd.f32 0.0, %v5351
    %v5353 = vpop.f32.mrb[0].mxu0
    %v5354 = vpop.f32.mrb[0].mxu0
    %v5355 = vadd.f32 0.0, %v5354
    %v5356 = vpop.f32.mrb[0].mxu0
    %5357 = vmatprep.mubr.bf16.mxu0 %v5109
    %5358 = vmatmul.mubr.bf16.gmra.mrb[0].mxu0 %v5108
    %v5359 = vpop.f32.mrb[0].mxu0
    %v5360 = vadd.f32 0.0, %v5359
    %v5361 = vpop.f32.mrb[0].mxu0
    %v5362 = vpop.f32.mrb[0].mxu0
    %v5363 = vadd.f32 0.0, %v5362
    %v5364 = vpop.f32.mrb[0].mxu0
    %5365 = vmatprep.mubr.bf16.mxu0 %v5112
    %5366 = vmatmul.mubr.bf16.gmra.mrb[0].mxu0 %v5111
    %v5367 = vpop.f32.mrb[0].mxu0
    %v5368 = vadd.f32 0.0, %v5367
    %v5369 = vpop.f32.mrb[0].mxu0
    %v5370 = vpop.f32.mrb[0].mxu0
    %v5371 = vadd.f32 0.0, %v5370
    %v5372 = vpop.f32.mrb[0].mxu0
    %5373 = vmatprep.mubr.bf16.mxu0 %v5115
    %5374 = vmatmul.mubr.bf16.gmra.mrb[0].mxu0 %v5114
    %v5375 = vpop.f32.mrb[0].mxu0
    %v5376 = vadd.f32 0.0, %v5375
    %v5377 = vpop.f32.mrb[0].mxu0
    %v5378 = vpop.f32.mrb[0].mxu0
    %v5379 = vadd.f32 0.0, %v5378
    %v5380 = vpop.f32.mrb[0].mxu0
    %5381 = vdwg.mxu0
    %5382 = vmatprep.subr.bf16.mxu0 0
    %5383 = vmatpush1.bf16.msra.mxu0 %v5241
    %5384 = vmatprep.subr.bf16.mxu0 0
    %5385 = vmatpush1.bf16.msra.mxu0 %v5242
    %5386 = vmatprep.subr.bf16.mxu0 0
    %5387 = vmatpush1.bf16.msra.mxu0 0
    %5388 = vmatprep.subr.bf16.mxu0 0
    %5389 = vmatpush1.bf16.msra.mxu0 0
    %5390 = vmatprep.subr.bf16.mxu0 0
    %5391 = vmatpush1.bf16.msra.mxu0 0
    %5392 = vmatprep.subr.bf16.mxu0 0
    %5393 = vmatpush1.bf16.msra.mxu0 0
    %5394 = vmatprep.subr.bf16.mxu0 0
    %5395 = vmatpush1.bf16.msra.mxu0 0
    %5396 = vmatprep.subr.bf16.mxu0 0
    %5397 = vmatpush1.bf16.msra.mxu0 0
    %5398 = vmatprep.subr.bf16.mxu0 0
    %5399 = vmatpush1.bf16.msra.mxu0 0
    %5400 = vmatprep.subr.bf16.mxu0 0
    %5401 = vmatpush1.bf16.msra.mxu0 0
    %5402 = vmatprep.subr.bf16.mxu0 0
    %5403 = vmatpush1.bf16.msra.mxu0 0
    %5404 = vmatprep.subr.bf16.mxu0 0
    %5405 = vmatpush1.bf16.msra.mxu0 0
    %5406 = vmatprep.subr.bf16.mxu0 0
    %5407 = vmatpush1.bf16.msra.mxu0 0
    %5408 = vmatprep.subr.bf16.mxu0 0
    %5409 = vmatpush1.bf16.msra.mxu0 0
    %5410 = vmatprep.subr.bf16.mxu0 0
    %5411 = vmatpush1.bf16.msra.mxu0 0
    %5412 = vmatprep.subr.bf16.mxu0 0
    %5413 = vmatpush1.bf16.msra.mxu0 0
    %5414 = vmatprep.mubr.bf16.mxu0 0
    %5415 = vmatmul.mubr.bf16.gmra.mrb[0].mxu0 %v5262
    %v5416 = vpop.f32.mrb[0].mxu0
    %v5417 = vadd.f32 %v5320, %v5416
    %v5418 = vpop.f32.mrb[0].mxu0
    %v5419 = vpop.f32.mrb[0].mxu0
    %v5420 = vadd.f32 %v5323, %v5419
    %v5421 = vpop.f32.mrb[0].mxu0
    %5422 = vmatprep.mubr.bf16.mxu0 0
    %5423 = vmatmul.mubr.bf16.gmra.mrb[0].mxu0 %v5265
    %v5424 = vpop.f32.mrb[0].mxu0
    %v5425 = vadd.f32 %v5328, %v5424
    %v5426 = vpop.f32.mrb[0].mxu0
    %v5427 = vpop.f32.mrb[0].mxu0
    %v5428 = vadd.f32 %v5331, %v5427
    %v5429 = vpop.f32.mrb[0].mxu0
    %5430 = vmatprep.mubr.bf16.mxu0 0
    %5431 = vmatmul.mubr.bf16.gmra.mrb[0].mxu0 %v5268
    %v5432 = vpop.f32.mrb[0].mxu0
    %v5433 = vadd.f32 %v5336, %v5432
    %v5434 = vpop.f32.mrb[0].mxu0
    %v5435 = vpop.f32.mrb[0].mxu0
    %v5436 = vadd.f32 %v5339, %v5435
    %v5437 = vpop.f32.mrb[0].mxu0
    %5438 = vmatprep.mubr.bf16.mxu0 0
    %5439 = vmatmul.mubr.bf16.gmra.mrb[0].mxu0 %v5271
    %v5440 = vpop.f32.mrb[0].mxu0
    %v5441 = vadd.f32 %v5344, %v5440
    %v5442 = vpop.f32.mrb[0].mxu0
    %v5443 = vpop.f32.mrb[0].mxu0
    %v5444 = vadd.f32 %v5347, %v5443
    %v5445 = vpop.f32.mrb[0].mxu0
    %5446 = vmatprep.mubr.bf16.mxu0 0
    %5447 = vmatmul.mubr.bf16.gmra.mrb[0].mxu0 %v5274
    %v5448 = vpop.f32.mrb[0].mxu0
    %v5449 = vadd.f32 %v5352, %v5448
    %v5450 = vpop.f32.mrb[0].mxu0
    %v5451 = vpop.f32.mrb[0].mxu0
    %v5452 = vadd.f32 %v5355, %v5451
    %v5453 = vpop.f32.mrb[0].mxu0
    %5454 = vmatprep.mubr.bf16.mxu0 0
    %5455 = vmatmul.mubr.bf16.gmra.mrb[0].mxu0 %v5277
    %v5456 = vpop.f32.mrb[0].mxu0
    %v5457 = vadd.f32 %v5360, %v5456
    %v5458 = vpop.f32.mrb[0].mxu0
    %v5459 = vpop.f32.mrb[0].mxu0
    %v5460 = vadd.f32 %v5363, %v5459
    %v5461 = vpop.f32.mrb[0].mxu0
    %5462 = vmatprep.mubr.bf16.mxu0 0
    %5463 = vmatmul.mubr.bf16.gmra.mrb[0].mxu0 %v5280
    %v5464 = vpop.f32.mrb[0].mxu0
    %v5465 = vadd.f32 %v5368, %v5464
    %v5466 = vpop.f32.mrb[0].mxu0
    %v5467 = vpop.f32.mrb[0].mxu0
    %v5468 = vadd.f32 %v5371, %v5467
    %v5469 = vpop.f32.mrb[0].mxu0
    %5470 = vmatprep.mubr.bf16.mxu0 0
    %5471 = vmatmul.mubr.bf16.gmra.mrb[0].mxu0 %v5283
    %v5472 = vpop.f32.mrb[0].mxu0
    %v5473 = vadd.f32 %v5376, %v5472
    %v5474 = vpop.f32.mrb[0].mxu0
    %v5475 = vpop.f32.mrb[0].mxu0
    %v5476 = vadd.f32 %v5379, %v5475
    %v5477 = vpop.f32.mrb[0].mxu0
    %5478 = vdwg.mxu0
    %5479 = vst [vmem:[#allocation4] sm:$0xff] 0.0
    %5480 = vst [vmem:[#allocation4 + $0x8] sm:$0xff] 0.0
    %5481 = vst [vmem:[#allocation4 + $0x10] sm:$0xff] 0.0
    %5482 = vst [vmem:[#allocation4 + $0x18] sm:$0xff] 0.0
    %5483 = vst [vmem:[#allocation4 + $0x20] sm:$0xff] 0.0
    %5484 = vst [vmem:[#allocation4 + $0x28] sm:$0xff] 0.0
    %5485 = vst [vmem:[#allocation4 + $0x30] sm:$0xff] 0.0
    %5486 = vst [vmem:[#allocation4 + $0x38] sm:$0xff] 0.0
    %5487 = vst [vmem:[#allocation4 + $0x40] sm:$0xff] 0.0
    %5488 = vst [vmem:[#allocation4 + $0x48] sm:$0xff] 0.0
    %5489 = vst [vmem:[#allocation4 + $0x50] sm:$0xff] 0.0
    %5490 = vst [vmem:[#allocation4 + $0x58] sm:$0xff] 0.0
    %5491 = vst [vmem:[#allocation4 + $0x60] sm:$0xff] 0.0
    %5492 = vst [vmem:[#allocation4 + $0x68] sm:$0xff] 0.0
    %5493 = vst [vmem:[#allocation4 + $0x70] sm:$0xff] 0.0
    %5494 = vst [vmem:[#allocation4 + $0x78] sm:$0xff] 0.0
    %5495 = vst.msk [vmem:[#allocation4] sm:$0xff] %vm291, %v3193
    %5496 = vst.msk [vmem:[#allocation4 + $0x8] sm:$0xff] %vm291, %v3194
    %5497 = vst.msk [vmem:[#allocation4 + $0x10] sm:$0xff] %vm291, %v3195
    %5498 = vst.msk [vmem:[#allocation4 + $0x18] sm:$0xff] %vm291, %v3196
    %5499 = vst.msk [vmem:[#allocation4 + $0x20] sm:$0xff] %vm291, %v3197
    %5500 = vst.msk [vmem:[#allocation4 + $0x28] sm:$0xff] %vm291, %v3198
    %5501 = vst.msk [vmem:[#allocation4 + $0x30] sm:$0xff] %vm291, %v3199
    %5502 = vst.msk [vmem:[#allocation4 + $0x38] sm:$0xff] %vm291, %v3200
    %5503 = vst.msk [vmem:[#allocation4 + $0x40] sm:$0xff] %vm291, %v3201
    %5504 = vst.msk [vmem:[#allocation4 + $0x48] sm:$0xff] %vm291, %v3202
    %5505 = vst.msk [vmem:[#allocation4 + $0x50] sm:$0xff] %vm291, %v3203
    %5506 = vst.msk [vmem:[#allocation4 + $0x58] sm:$0xff] %vm291, %v3204
    %5507 = vst.msk [vmem:[#allocation4 + $0x60] sm:$0xff] %vm291, %v3205
    %5508 = vst.msk [vmem:[#allocation4 + $0x68] sm:$0xff] %vm291, %v3206
    %5509 = vst.msk [vmem:[#allocation4 + $0x70] sm:$0xff] %vm291, %v3207
    %5510 = vst.msk [vmem:[#allocation4 + $0x78] sm:$0xff] %vm291, %v3208
    %5527 = vrot.lane.b32.xlu0 %v5417, 8
    %v5528 = vpop.permute.xlu0 %5527
    %5529 = vrot.lane.b32.xlu0 %v5420, 8
    %v5530 = vpop.permute.xlu0 %5529
    %5531 = vrot.lane.b32.xlu0 %v5425, 8
    %v5532 = vpop.permute.xlu0 %5531
    %5533 = vrot.lane.b32.xlu0 %v5428, 8
    %v5534 = vpop.permute.xlu0 %5533
    %5535 = vrot.lane.b32.xlu0 %v5433, 8
    %v5536 = vpop.permute.xlu0 %5535
    %5537 = vrot.lane.b32.xlu0 %v5436, 8
    %v5538 = vpop.permute.xlu0 %5537
    %5539 = vrot.lane.b32.xlu0 %v5441, 8
    %v5540 = vpop.permute.xlu0 %5539
    %5541 = vrot.lane.b32.xlu0 %v5444, 8
    %v5542 = vpop.permute.xlu0 %5541
    %5543 = vrot.lane.b32.xlu0 %v5449, 8
    %v5544 = vpop.permute.xlu0 %5543
    %5545 = vrot.lane.b32.xlu0 %v5452, 8
    %v5546 = vpop.permute.xlu0 %5545
    %5547 = vrot.lane.b32.xlu0 %v5457, 8
    %v5548 = vpop.permute.xlu0 %5547
    %5549 = vrot.lane.b32.xlu0 %v5460, 8
    %v5550 = vpop.permute.xlu0 %5549
    %5551 = vrot.lane.b32.xlu0 %v5465, 8
    %v5552 = vpop.permute.xlu0 %5551
    %5553 = vrot.lane.b32.xlu0 %v5468, 8
    %v5554 = vpop.permute.xlu0 %5553
    %5555 = vrot.lane.b32.xlu0 %v5473, 8
    %v5556 = vpop.permute.xlu0 %5555
    %5557 = vrot.lane.b32.xlu0 %v5476, 8
    %v5558 = vpop.permute.xlu0 %5557
    %5575 = vst.msk [vmem:[#allocation4] sm:$0xff] %vm420, %v5528
    %5576 = vst.msk [vmem:[#allocation4 + $0x8] sm:$0xff] %vm420, %v5530
    %5577 = vst.msk [vmem:[#allocation4 + $0x10] sm:$0xff] %vm420, %v5532
    %5578 = vst.msk [vmem:[#allocation4 + $0x18] sm:$0xff] %vm420, %v5534
    %5579 = vst.msk [vmem:[#allocation4 + $0x20] sm:$0xff] %vm420, %v5536
    %5580 = vst.msk [vmem:[#allocation4 + $0x28] sm:$0xff] %vm420, %v5538
    %5581 = vst.msk [vmem:[#allocation4 + $0x30] sm:$0xff] %vm420, %v5540
    %5582 = vst.msk [vmem:[#allocation4 + $0x38] sm:$0xff] %vm420, %v5542
    %5583 = vst.msk [vmem:[#allocation4 + $0x40] sm:$0xff] %vm420, %v5544
    %5584 = vst.msk [vmem:[#allocation4 + $0x48] sm:$0xff] %vm420, %v5546
    %5585 = vst.msk [vmem:[#allocation4 + $0x50] sm:$0xff] %vm420, %v5548
    %5586 = vst.msk [vmem:[#allocation4 + $0x58] sm:$0xff] %vm420, %v5550
    %5587 = vst.msk [vmem:[#allocation4 + $0x60] sm:$0xff] %vm420, %v5552
    %5588 = vst.msk [vmem:[#allocation4 + $0x68] sm:$0xff] %vm420, %v5554
    %5589 = vst.msk [vmem:[#allocation4 + $0x70] sm:$0xff] %vm420, %v5556
    %5590 = vst.msk [vmem:[#allocation4 + $0x78] sm:$0xff] %vm420, %v5558
    %v5591 = vld [vmem:[#allocation4] sm:$0xff]
    %v5592 = vld [vmem:[#allocation4 + $0x8] sm:$0xff]
    %v5593 = vld [vmem:[#allocation4 + $0x10] sm:$0xff]
    %v5594 = vld [vmem:[#allocation4 + $0x18] sm:$0xff]
    %v5595 = vld [vmem:[#allocation4 + $0x20] sm:$0xff]
    %v5596 = vld [vmem:[#allocation4 + $0x28] sm:$0xff]
    %v5597 = vld [vmem:[#allocation4 + $0x30] sm:$0xff]
    %v5598 = vld [vmem:[#allocation4 + $0x38] sm:$0xff]
    %v5599 = vld [vmem:[#allocation4 + $0x40] sm:$0xff]
    %v5600 = vld [vmem:[#allocation4 + $0x48] sm:$0xff]
    %v5601 = vld [vmem:[#allocation4 + $0x50] sm:$0xff]
    %v5602 = vld [vmem:[#allocation4 + $0x58] sm:$0xff]
    %v5603 = vld [vmem:[#allocation4 + $0x60] sm:$0xff]
    %v5604 = vld [vmem:[#allocation4 + $0x68] sm:$0xff]
    %v5605 = vld [vmem:[#allocation4 + $0x70] sm:$0xff]
    %v5606 = vld [vmem:[#allocation4 + $0x78] sm:$0xff]
    %5607 = vxpose.xlu0.b32.start [1/16] %v5591, 128
    %5608 = vxpose.xlu0.b32.cont [2/16] %v5592, 128
    %5609 = vxpose.xlu0.b32.cont [3/16] %v5593, 128
    %5610 = vxpose.xlu0.b32.cont [4/16] %v5594, 128
    %5611 = vxpose.xlu0.b32.cont [5/16] %v5595, 128
    %5612 = vxpose.xlu0.b32.cont [6/16] %v5596, 128
    %5613 = vxpose.xlu0.b32.cont [7/16] %v5597, 128
    %5614 = vxpose.xlu0.b32.cont [8/16] %v5598, 128
    %5615 = vxpose.xlu0.b32.cont [9/16] %v5599, 128
    %5616 = vxpose.xlu0.b32.cont [10/16] %v5600, 128
    %5617 = vxpose.xlu0.b32.cont [11/16] %v5601, 128
    %5618 = vxpose.xlu0.b32.cont [12/16] %v5602, 128
    %5619 = vxpose.xlu0.b32.cont [13/16] %v5603, 128
    %5620 = vxpose.xlu0.b32.cont [14/16] %v5604, 128
    %5621 = vxpose.xlu0.b32.cont [15/16] %v5605, 128
    %5622 = vxpose.xlu0.b32.end [16/16] %v5606, 128
    %v5623 = vpop.trf.xlu0
    %v5624 = vpop.trf.xlu0
    %v5625 = vpop.trf.xlu0
    %v5626 = vpop.trf.xlu0
    %v5627 = vpop.trf.xlu0
    %v5628 = vpop.trf.xlu0
    %v5629 = vpop.trf.xlu0
    %v5630 = vpop.trf.xlu0
    %v5631 = vpop.trf.xlu0
    %v5632 = vpop.trf.xlu0
    %v5633 = vpop.trf.xlu0
    %v5634 = vpop.trf.xlu0
    %v5635 = vpop.trf.xlu0
    %v5636 = vpop.trf.xlu0
    %v5637 = vpop.trf.xlu0
    %v5638 = vpop.trf.xlu0
    %vm5639 = vcmask 516096
    %5640 = vst.msk [vmem:[#allocation5] sm:$0x1] %vm5639, %v5623
    %v5643 = vunpack.c.l.s4 1983009808
    %v5644 = vunpack.c.0.s8 %v5643
    %v5645 = vlaneseq
    %v5646 = vshrl.u32 %v5645, 7
    %v5647 = vsub.s32 %v5644, %v5646
    %v5648 = vrot.slane %v5623, %v5647
    %v5649 = vrot.slane %v5648, 7
    %v5650 = vrot.slane %v5649, 2
    %5651 = vrot.lane.b32.xlu0 %v5650, 64
    %v5652 = vpop.permute.xlu0 %5651
    %vm5654 = vcmask 1040896
    %5655 = vst.msk [vmem:[#allocation5] sm:$0x1] %vm5654, %v5652
    %v5656 = vcombine.high %v5648, %v5648
    %5658 = vst.msk [vmem:[#allocation5 + $0x2] sm:$0x1] %vm5639, %v5656
    %v5659 = vrot.slane %v5656, 7
    %v5660 = vrot.slane %v5659, 2
    %5661 = vrot.lane.b32.xlu0 %v5660, 64
    %v5662 = vpop.permute.xlu0 %5661
    %5664 = vst.msk [vmem:[#allocation5 + $0x2] sm:$0x1] %vm5654, %v5662
    %v5665 = vcombine.high %v5623, %v5623
    %v5667 = vunpack.c.l.s4 1983009808
    %v5668 = vunpack.c.0.s8 %v5667
    %v5669 = vlaneseq
    %v5670 = vshrl.u32 %v5669, 7
    %v5671 = vsub.s32 %v5668, %v5670
    %v5672 = vrot.slane %v5665, %v5671
    %5674 = vst.msk [vmem:[#allocation5 + $0x4] sm:$0x1] %vm5639, %v5672
    %v5675 = vrot.slane %v5672, 7
    %v5676 = vrot.slane %v5675, 2
    %5677 = vrot.lane.b32.xlu0 %v5676, 64
    %v5678 = vpop.permute.xlu0 %5677
    %5680 = vst.msk [vmem:[#allocation5 + $0x4] sm:$0x1] %vm5654, %v5678
    %v5681 = vcombine.high %v5672, %v5672
    %5683 = vst.msk [vmem:[#allocation5 + $0x6] sm:$0x1] %vm5639, %v5681
    %v5684 = vrot.slane %v5681, 7
    %v5685 = vrot.slane %v5684, 2
    %5686 = vrot.lane.b32.xlu0 %v5685, 64
    %v5687 = vpop.permute.xlu0 %5686
    %5689 = vst.msk [vmem:[#allocation5 + $0x6] sm:$0x1] %vm5654, %v5687
    %5690 = vst.msk [vmem:[#allocation25] sm:$0x1] %vm5639, %v5624
    %v5693 = vunpack.c.l.s4 1983009808
    %v5694 = vunpack.c.0.s8 %v5693
    %v5695 = vlaneseq
    %v5696 = vshrl.u32 %v5695, 7
    %v5697 = vsub.s32 %v5694, %v5696
    %v5698 = vrot.slane %v5624, %v5697
    %v5699 = vrot.slane %v5698, 7
    %v5700 = vrot.slane %v5699, 2
    %5701 = vrot.lane.b32.xlu0 %v5700, 64
    %v5702 = vpop.permute.xlu0 %5701
    %5704 = vst.msk [vmem:[#allocation25] sm:$0x1] %vm5654, %v5702
    %v5705 = vcombine.high %v5698, %v5698
    %5707 = vst.msk [vmem:[#allocation25 + $0x2] sm:$0x1] %vm5639, %v5705
    %v5708 = vrot.slane %v5705, 7
    %v5709 = vrot.slane %v5708, 2
    %5710 = vrot.lane.b32.xlu0 %v5709, 64
    %v5711 = vpop.permute.xlu0 %5710
    %5713 = vst.msk [vmem:[#allocation25 + $0x2] sm:$0x1] %vm5654, %v5711
    %v5714 = vcombine.high %v5624, %v5624
    %v5716 = vunpack.c.l.s4 1983009808
    %v5717 = vunpack.c.0.s8 %v5716
    %v5718 = vlaneseq
    %v5719 = vshrl.u32 %v5718, 7
    %v5720 = vsub.s32 %v5717, %v5719
    %v5721 = vrot.slane %v5714, %v5720
    %5723 = vst.msk [vmem:[#allocation25 + $0x4] sm:$0x1] %vm5639, %v5721
    %v5724 = vrot.slane %v5721, 7
    %v5725 = vrot.slane %v5724, 2
    %5726 = vrot.lane.b32.xlu0 %v5725, 64
    %v5727 = vpop.permute.xlu0 %5726
    %5729 = vst.msk [vmem:[#allocation25 + $0x4] sm:$0x1] %vm5654, %v5727
    %v5730 = vcombine.high %v5721, %v5721
    %5732 = vst.msk [vmem:[#allocation25 + $0x6] sm:$0x1] %vm5639, %v5730
    %v5733 = vrot.slane %v5730, 7
    %v5734 = vrot.slane %v5733, 2
    %5735 = vrot.lane.b32.xlu0 %v5734, 64
    %v5736 = vpop.permute.xlu0 %5735
    %5738 = vst.msk [vmem:[#allocation25 + $0x6] sm:$0x1] %vm5654, %v5736
    %5739 = vrot.lane.b32.xlu0 %v5648, 64
    %v5740 = vpop.permute.xlu0 %5739
    %5742 = vst.msk [vmem:[#allocation5 + $0x1] sm:$0x1] %vm5639, %v5740
    %5744 = vst.msk [vmem:[#allocation5 + $0x1] sm:$0x1] %vm5654, %v5650
    %5745 = vrot.lane.b32.xlu0 %v5656, 64
    %v5746 = vpop.permute.xlu0 %5745
    %5748 = vst.msk [vmem:[#allocation5 + $0x3] sm:$0x1] %vm5639, %v5746
    %5750 = vst.msk [vmem:[#allocation5 + $0x3] sm:$0x1] %vm5654, %v5660
    %5751 = vrot.lane.b32.xlu0 %v5672, 64
    %v5752 = vpop.permute.xlu0 %5751
    %5754 = vst.msk [vmem:[#allocation5 + $0x5] sm:$0x1] %vm5639, %v5752
    %5756 = vst.msk [vmem:[#allocation5 + $0x5] sm:$0x1] %vm5654, %v5676
    %5757 = vrot.lane.b32.xlu0 %v5681, 64
    %v5758 = vpop.permute.xlu0 %5757
    %5760 = vst.msk [vmem:[#allocation5 + $0x7] sm:$0x1] %vm5639, %v5758
    %5762 = vst.msk [vmem:[#allocation5 + $0x7] sm:$0x1] %vm5654, %v5685
    %5763 = vrot.lane.b32.xlu0 %v5698, 64
    %v5764 = vpop.permute.xlu0 %5763
    %5766 = vst.msk [vmem:[#allocation25 + $0x1] sm:$0x1] %vm5639, %v5764
    %5768 = vst.msk [vmem:[#allocation25 + $0x1] sm:$0x1] %vm5654, %v5700
    %5769 = vrot.lane.b32.xlu0 %v5705, 64
    %v5770 = vpop.permute.xlu0 %5769
    %5772 = vst.msk [vmem:[#allocation25 + $0x3] sm:$0x1] %vm5639, %v5770
    %5774 = vst.msk [vmem:[#allocation25 + $0x3] sm:$0x1] %vm5654, %v5709
    %5775 = vrot.lane.b32.xlu0 %v5721, 64
    %v5776 = vpop.permute.xlu0 %5775
    %5778 = vst.msk [vmem:[#allocation25 + $0x5] sm:$0x1] %vm5639, %v5776
    %5780 = vst.msk [vmem:[#allocation25 + $0x5] sm:$0x1] %vm5654, %v5725
    %5781 = vrot.lane.b32.xlu0 %v5730, 64
    %v5782 = vpop.permute.xlu0 %5781
    %5784 = vst.msk [vmem:[#allocation25 + $0x7] sm:$0x1] %vm5639, %v5782
    %5786 = vst.msk [vmem:[#allocation25 + $0x7] sm:$0x1] %vm5654, %v5734
    %v5787 = vld [vmem:[#allocation5] sm:$0xff]
    %v5789 = vcombine.high %v5787, %v5787
    %v5791 = vunpack.c.l.s4 1983009808
    %v5792 = vunpack.c.0.s8 %v5791
    %v5793 = vlaneseq
    %v5794 = vshrl.u32 %v5793, 7
    %v5795 = vsub.s32 %v5792, %v5794
    %v5796 = vrot.slane %v5787, %v5795
    %v5798 = vunpack.c.l.s4 1983009808
    %v5799 = vunpack.c.0.s8 %v5798
    %v5800 = vlaneseq
    %v5801 = vshrl.u32 %v5800, 7
    %v5802 = vsub.s32 %v5799, %v5801
    %v5803 = vrot.slane %v5789, %v5802
    %v5804 = vcombine.high %v5796, %v5796
    %v5805 = vcombine.high %v5803, %v5803
    %v5810 = vpack.c.bf16 %v5796, %v5796
    %v5811 = vpack.c.bf16 %v5804, %v5804
    %v5812 = vpack.c.bf16 %v5803, %v5803
    %v5813 = vpack.c.bf16 %v5805, %v5805
    %v5814 = vld [vmem:[%s20] sm:$0xf]
    %v5815 = vld [vmem:[%s20 + $0x4] sm:$0xf]
    %v5816 = vld [vmem:[%s20 + $0x8] sm:$0xf]
    %v5817 = vld [vmem:[%s20 + $0xc] sm:$0xf]
    %v5818 = vld [vmem:[%s20 + $0x10] sm:$0xf]
    %v5819 = vld [vmem:[%s20 + $0x14] sm:$0xf]
    %v5820 = vld [vmem:[%s20 + $0x18] sm:$0xf]
    %v5821 = vld [vmem:[%s20 + $0x1c] sm:$0xf]
    %v5822 = vld [vmem:[%s20 + $0x20] sm:$0xf]
    %v5823 = vld [vmem:[%s20 + $0x24] sm:$0xf]
    %v5824 = vld [vmem:[%s20 + $0x28] sm:$0xf]
    %v5825 = vld [vmem:[%s20 + $0x2c] sm:$0xf]
    %v5826 = vld [vmem:[%s20 + $0x30] sm:$0xf]
    %v5827 = vld [vmem:[%s20 + $0x34] sm:$0xf]
    %v5828 = vld [vmem:[%s20 + $0x38] sm:$0xf]
    %v5829 = vld [vmem:[%s20 + $0x3c] sm:$0xf]
    %v5830 = vld [vmem:[%s20 + $0x40] sm:$0xf]
    %v5831 = vld [vmem:[%s20 + $0x44] sm:$0xf]
    %v5832 = vld [vmem:[%s20 + $0x48] sm:$0xf]
    %v5833 = vld [vmem:[%s20 + $0x4c] sm:$0xf]
    %v5834 = vld [vmem:[%s20 + $0x50] sm:$0xf]
    %v5835 = vld [vmem:[%s20 + $0x54] sm:$0xf]
    %v5836 = vld [vmem:[%s20 + $0x58] sm:$0xf]
    %v5837 = vld [vmem:[%s20 + $0x5c] sm:$0xf]
    %v5838 = vld [vmem:[%s20 + $0x60] sm:$0xf]
    %v5839 = vld [vmem:[%s20 + $0x64] sm:$0xf]
    %v5840 = vld [vmem:[%s20 + $0x68] sm:$0xf]
    %v5841 = vld [vmem:[%s20 + $0x6c] sm:$0xf]
    %v5842 = vld [vmem:[%s20 + $0x70] sm:$0xf]
    %v5843 = vld [vmem:[%s20 + $0x74] sm:$0xf]
    %v5844 = vld [vmem:[%s20 + $0x78] sm:$0xf]
    %v5845 = vld [vmem:[%s20 + $0x7c] sm:$0xf]
    %v5846 = vld [vmem:[%s20 + $0x80] sm:$0xf]
    %v5847 = vld [vmem:[%s20 + $0x84] sm:$0xf]
    %v5848 = vld [vmem:[%s20 + $0x88] sm:$0xf]
    %v5849 = vld [vmem:[%s20 + $0x8c] sm:$0xf]
    %v5850 = vld [vmem:[%s20 + $0x90] sm:$0xf]
    %v5851 = vld [vmem:[%s20 + $0x94] sm:$0xf]
    %v5852 = vld [vmem:[%s20 + $0x98] sm:$0xf]
    %v5853 = vld [vmem:[%s20 + $0x9c] sm:$0xf]
    %v5854 = vld [vmem:[%s20 + $0xa0] sm:$0xf]
    %v5855 = vld [vmem:[%s20 + $0xa4] sm:$0xf]
    %v5856 = vld [vmem:[%s20 + $0xa8] sm:$0xf]
    %v5857 = vld [vmem:[%s20 + $0xac] sm:$0xf]
    %v5858 = vld [vmem:[%s20 + $0xb0] sm:$0xf]
    %v5859 = vld [vmem:[%s20 + $0xb4] sm:$0xf]
    %v5860 = vld [vmem:[%s20 + $0xb8] sm:$0xf]
    %v5861 = vld [vmem:[%s20 + $0xbc] sm:$0xf]
    %v5862 = vld [vmem:[%s20 + $0xc0] sm:$0xf]
    %v5863 = vld [vmem:[%s20 + $0xc4] sm:$0xf]
    %v5864 = vld [vmem:[%s20 + $0xc8] sm:$0xf]
    %v5865 = vld [vmem:[%s20 + $0xcc] sm:$0xf]
    %v5866 = vld [vmem:[%s20 + $0xd0] sm:$0xf]
    %v5867 = vld [vmem:[%s20 + $0xd4] sm:$0xf]
    %v5868 = vld [vmem:[%s20 + $0xd8] sm:$0xf]
    %v5869 = vld [vmem:[%s20 + $0xdc] sm:$0xf]
    %v5870 = vld [vmem:[%s20 + $0xe0] sm:$0xf]
    %v5871 = vld [vmem:[%s20 + $0xe4] sm:$0xf]
    %v5872 = vld [vmem:[%s20 + $0xe8] sm:$0xf]
    %v5873 = vld [vmem:[%s20 + $0xec] sm:$0xf]
    %v5874 = vld [vmem:[%s20 + $0xf0] sm:$0xf]
    %v5875 = vld [vmem:[%s20 + $0xf4] sm:$0xf]
    %v5876 = vld [vmem:[%s20 + $0xf8] sm:$0xf]
    %v5877 = vld [vmem:[%s20 + $0xfc] sm:$0xf]
    %v5878 = vld [vmem:[%s21] sm:$0x1]
    %v5880 = vlaneseq
    %v5881 = vshrl.u32 %v5880, 7
    %v5882 = vsub.s32 0, %v5881
    %v5883 = vrot.slane %v5878, %v5882
    %v5949 = vunpack.c.l.b16 %v5814
    %v5950 = vunpack.c.l.b16 %v5815
    %v5951 = vunpack.c.l.b16 %v5816
    %v5952 = vunpack.c.l.b16 %v5817
    %v5953 = vunpack.c.l.b16 %v5818
    %v5954 = vunpack.c.l.b16 %v5819
    %v5955 = vunpack.c.l.b16 %v5820
    %v5956 = vunpack.c.l.b16 %v5821
    %v5957 = vunpack.c.l.b16 %v5822
    %v5958 = vunpack.c.l.b16 %v5823
    %v5959 = vunpack.c.l.b16 %v5824
    %v5960 = vunpack.c.l.b16 %v5825
    %v5961 = vunpack.c.l.b16 %v5826
    %v5962 = vunpack.c.l.b16 %v5827
    %v5963 = vunpack.c.l.b16 %v5828
    %v5964 = vunpack.c.l.b16 %v5829
    %v5965 = vunpack.c.l.b16 %v5830
    %v5966 = vunpack.c.l.b16 %v5831
    %v5967 = vunpack.c.l.b16 %v5832
    %v5968 = vunpack.c.l.b16 %v5833
    %v5969 = vunpack.c.l.b16 %v5834
    %v5970 = vunpack.c.l.b16 %v5835
    %v5971 = vunpack.c.l.b16 %v5836
    %v5972 = vunpack.c.l.b16 %v5837
    %v5973 = vunpack.c.l.b16 %v5838
    %v5974 = vunpack.c.l.b16 %v5839
    %v5975 = vunpack.c.l.b16 %v5840
    %v5976 = vunpack.c.l.b16 %v5841
    %v5977 = vunpack.c.l.b16 %v5842
    %v5978 = vunpack.c.l.b16 %v5843
    %v5979 = vunpack.c.l.b16 %v5844
    %v5980 = vunpack.c.l.b16 %v5845
    %v5981 = vunpack.c.l.b16 %v5846
    %v5982 = vunpack.c.l.b16 %v5847
    %v5983 = vunpack.c.l.b16 %v5848
    %v5984 = vunpack.c.l.b16 %v5849
    %v5985 = vunpack.c.l.b16 %v5850
    %v5986 = vunpack.c.l.b16 %v5851
    %v5987 = vunpack.c.l.b16 %v5852
    %v5988 = vunpack.c.l.b16 %v5853
    %v5989 = vunpack.c.l.b16 %v5854
    %v5990 = vunpack.c.l.b16 %v5855
    %v5991 = vunpack.c.l.b16 %v5856
    %v5992 = vunpack.c.l.b16 %v5857
    %v5993 = vunpack.c.l.b16 %v5858
    %v5994 = vunpack.c.l.b16 %v5859
    %v5995 = vunpack.c.l.b16 %v5860
    %v5996 = vunpack.c.l.b16 %v5861
    %v5997 = vunpack.c.l.b16 %v5862
    %v5998 = vunpack.c.l.b16 %v5863
    %v5999 = vunpack.c.l.b16 %v5864
    %v6000 = vunpack.c.l.b16 %v5865
    %v6001 = vunpack.c.l.b16 %v5866
    %v6002 = vunpack.c.l.b16 %v5867
    %v6003 = vunpack.c.l.b16 %v5868
    %v6004 = vunpack.c.l.b16 %v5869
    %v6005 = vunpack.c.l.b16 %v5870
    %v6006 = vunpack.c.l.b16 %v5871
    %v6007 = vunpack.c.l.b16 %v5872
    %v6008 = vunpack.c.l.b16 %v5873
    %v6009 = vunpack.c.l.b16 %v5874
    %v6010 = vunpack.c.l.b16 %v5875
    %v6011 = vunpack.c.l.b16 %v5876
    %v6012 = vunpack.c.l.b16 %v5877
    %v6013 = vpack.c.b16 %v5950, %v5949
    %v6014 = vpack.c.b16 %v5952, %v5951
    %v6015 = vpack.c.b16 %v5954, %v5953
    %v6016 = vpack.c.b16 %v5956, %v5955
    %v6017 = vpack.c.b16 %v5958, %v5957
    %v6018 = vpack.c.b16 %v5960, %v5959
    %v6019 = vpack.c.b16 %v5962, %v5961
    %v6020 = vpack.c.b16 %v5964, %v5963
    %v6021 = vpack.c.b16 %v5966, %v5965
    %v6022 = vpack.c.b16 %v5968, %v5967
    %v6023 = vpack.c.b16 %v5970, %v5969
    %v6024 = vpack.c.b16 %v5972, %v5971
    %v6025 = vpack.c.b16 %v5974, %v5973
    %v6026 = vpack.c.b16 %v5976, %v5975
    %v6027 = vpack.c.b16 %v5978, %v5977
    %v6028 = vpack.c.b16 %v5980, %v5979
    %v6029 = vpack.c.b16 %v5982, %v5981
    %v6030 = vpack.c.b16 %v5984, %v5983
    %v6031 = vpack.c.b16 %v5986, %v5985
    %v6032 = vpack.c.b16 %v5988, %v5987
    %v6033 = vpack.c.b16 %v5990, %v5989
    %v6034 = vpack.c.b16 %v5992, %v5991
    %v6035 = vpack.c.b16 %v5994, %v5993
    %v6036 = vpack.c.b16 %v5996, %v5995
    %v6037 = vpack.c.b16 %v5998, %v5997
    %v6038 = vpack.c.b16 %v6000, %v5999
    %v6039 = vpack.c.b16 %v6002, %v6001
    %v6040 = vpack.c.b16 %v6004, %v6003
    %v6041 = vpack.c.b16 %v6006, %v6005
    %v6042 = vpack.c.b16 %v6008, %v6007
    %v6043 = vpack.c.b16 %v6010, %v6009
    %v6044 = vpack.c.b16 %v6012, %v6011
    %6077 = vmatprep.subr.bf16.mxu0 0
    %6078 = vmatpush1.bf16.msra.mxu0 %v6013
    %6079 = vmatprep.subr.bf16.mxu0 0
    %6080 = vmatpush1.bf16.msra.mxu0 %v6014
    %6081 = vmatprep.subr.bf16.mxu0 0
    %6082 = vmatpush1.bf16.msra.mxu0 %v6015
    %6083 = vmatprep.subr.bf16.mxu0 0
    %6084 = vmatpush1.bf16.msra.mxu0 %v6016
    %6085 = vmatprep.subr.bf16.mxu0 0
    %6086 = vmatpush1.bf16.msra.mxu0 %v6017
    %6087 = vmatprep.subr.bf16.mxu0 0
    %6088 = vmatpush1.bf16.msra.mxu0 %v6018
    %6089 = vmatprep.subr.bf16.mxu0 0
    %6090 = vmatpush1.bf16.msra.mxu0 %v6019
    %6091 = vmatprep.subr.bf16.mxu0 0
    %6092 = vmatpush1.bf16.msra.mxu0 %v6020
    %6093 = vmatprep.subr.bf16.mxu0 0
    %6094 = vmatpush1.bf16.msra.mxu0 %v6021
    %6095 = vmatprep.subr.bf16.mxu0 0
    %6096 = vmatpush1.bf16.msra.mxu0 %v6022
    %6097 = vmatprep.subr.bf16.mxu0 0
    %6098 = vmatpush1.bf16.msra.mxu0 %v6023
    %6099 = vmatprep.subr.bf16.mxu0 0
    %6100 = vmatpush1.bf16.msra.mxu0 %v6024
    %6101 = vmatprep.subr.bf16.mxu0 0
    %6102 = vmatpush1.bf16.msra.mxu0 %v6025
    %6103 = vmatprep.subr.bf16.mxu0 0
    %6104 = vmatpush1.bf16.msra.mxu0 %v6026
    %6105 = vmatprep.subr.bf16.mxu0 0
    %6106 = vmatpush1.bf16.msra.mxu0 %v6027
    %6107 = vmatprep.subr.bf16.mxu0 0
    %6108 = vmatpush1.bf16.msra.mxu0 %v6028
    %6109 = vmatprep.mubr.bf16.mxu0 %v5811
    %6110 = vmatmul.mubr.bf16.gmra.mrb[0].mxu0 %v5810
    %v6111 = vpop.f32.mrb[0].mxu0
    %v6112 = vadd.f32 %v5883, %v6111
    %v6113 = vpop.f32.mrb[0].mxu0
    %v6114 = vpop.f32.mrb[0].mxu0
    %v6115 = vpop.f32.mrb[0].mxu0
    %6116 = vdwg.mxu0
    %6117 = vmatprep.subr.bf16.mxu0 0
    %6118 = vmatpush1.bf16.msra.mxu0 %v6029
    %6119 = vmatprep.subr.bf16.mxu0 0
    %6120 = vmatpush1.bf16.msra.mxu0 %v6030
    %6121 = vmatprep.subr.bf16.mxu0 0
    %6122 = vmatpush1.bf16.msra.mxu0 %v6031
    %6123 = vmatprep.subr.bf16.mxu0 0
    %6124 = vmatpush1.bf16.msra.mxu0 %v6032
    %6125 = vmatprep.subr.bf16.mxu0 0
    %6126 = vmatpush1.bf16.msra.mxu0 %v6033
    %6127 = vmatprep.subr.bf16.mxu0 0
    %6128 = vmatpush1.bf16.msra.mxu0 %v6034
    %6129 = vmatprep.subr.bf16.mxu0 0
    %6130 = vmatpush1.bf16.msra.mxu0 %v6035
    %6131 = vmatprep.subr.bf16.mxu0 0
    %6132 = vmatpush1.bf16.msra.mxu0 %v6036
    %6133 = vmatprep.subr.bf16.mxu0 0
    %6134 = vmatpush1.bf16.msra.mxu0 %v6037
    %6135 = vmatprep.subr.bf16.mxu0 0
    %6136 = vmatpush1.bf16.msra.mxu0 %v6038
    %6137 = vmatprep.subr.bf16.mxu0 0
    %6138 = vmatpush1.bf16.msra.mxu0 %v6039
    %6139 = vmatprep.subr.bf16.mxu0 0
    %6140 = vmatpush1.bf16.msra.mxu0 %v6040
    %6141 = vmatprep.subr.bf16.mxu0 0
    %6142 = vmatpush1.bf16.msra.mxu0 %v6041
    %6143 = vmatprep.subr.bf16.mxu0 0
    %6144 = vmatpush1.bf16.msra.mxu0 %v6042
    %6145 = vmatprep.subr.bf16.mxu0 0
    %6146 = vmatpush1.bf16.msra.mxu0 %v6043
    %6147 = vmatprep.subr.bf16.mxu0 0
    %6148 = vmatpush1.bf16.msra.mxu0 %v6044
    %6149 = vmatprep.mubr.bf16.mxu0 %v5813
    %6150 = vmatmul.mubr.bf16.gmra.mrb[0].mxu0 %v5812
    %v6151 = vpop.f32.mrb[0].mxu0
    %v6152 = vadd.f32 %v6112, %v6151
    %v6153 = vpop.f32.mrb[0].mxu0
    %v6154 = vpop.f32.mrb[0].mxu0
    %v6155 = vpop.f32.mrb[0].mxu0
    %6156 = vdwg.mxu0
    %v6157 = vmax.f32 %v6152, 0.0
    %v6158 = vld [vmem:[%s22] sm:$0xff]
    %v6159 = vld [vmem:[%s22 + $0x8] sm:$0xff]
    %v6160 = vld [vmem:[%s22 + $0x10] sm:$0xff]
    %v6161 = vld [vmem:[%s22 + $0x18] sm:$0xff]
    %v6162 = vld [vmem:[#allocation6] sm:$0x1]
    %v6164 = vlaneseq
    %v6165 = vshrl.u32 %v6164, 7
    %v6166 = vsub.s32 0, %v6165
    %v6167 = vrot.slane %v6162, %v6166
    %v6170 = vsel %vm222, %v6157, 0
    %6172 = vmatprep.subr.mxu0 0.0
    %6173 = vmatpush1.msra.mxu0 %v6158
    %6174 = vmatprep.subr.mxu0 0.0
    %6175 = vmatpush1.msra.mxu0 %v6159
    %6176 = vmatprep.subr.mxu0 0.0
    %6177 = vmatpush1.msra.mxu0 %v6160
    %6178 = vmatprep.subr.mxu0 0.0
    %6179 = vmatpush1.msra.mxu0 %v6161
    %6180 = vmatprep.subr.mxu0 0.0
    %6181 = vmatpush1.msra.mxu0 0.0
    %6182 = vmatprep.subr.mxu0 0.0
    %6183 = vmatpush1.msra.mxu0 0.0
    %6184 = vmatprep.subr.mxu0 0.0
    %6185 = vmatpush1.msra.mxu0 0.0
    %6186 = vmatprep.subr.mxu0 0.0
    %6187 = vmatpush1.msra.mxu0 0.0
    %6188 = vmatprep.subr.mxu0 0.0
    %6189 = vmatpush1.msra.mxu0 0.0
    %6190 = vmatprep.subr.mxu0 0.0
    %6191 = vmatpush1.msra.mxu0 0.0
    %6192 = vmatprep.subr.mxu0 0.0
    %6193 = vmatpush1.msra.mxu0 0.0
    %6194 = vmatprep.subr.mxu0 0.0
    %6195 = vmatpush1.msra.mxu0 0.0
    %6196 = vmatprep.subr.mxu0 0.0
    %6197 = vmatpush1.msra.mxu0 0.0
    %6198 = vmatprep.subr.mxu0 0.0
    %6199 = vmatpush1.msra.mxu0 0.0
    %6200 = vmatprep.subr.mxu0 0.0
    %6201 = vmatpush1.msra.mxu0 0.0
    %6202 = vmatprep.subr.mxu0 0.0
    %6203 = vmatpush1.msra.mxu0 0.0
    %6204 = vmatprep.subr.mxu0 0.0
    %6205 = vmatpush1.msra.mxu0 0.0
    %6206 = vmatprep.subr.mxu0 0.0
    %6207 = vmatpush1.msra.mxu0 0.0
    %6208 = vmatprep.subr.mxu0 0.0
    %6209 = vmatpush1.msra.mxu0 0.0
    %6210 = vmatprep.subr.mxu0 0.0
    %6211 = vmatpush1.msra.mxu0 0.0
    %6212 = vmatprep.subr.mxu0 0.0
    %6213 = vmatpush1.msra.mxu0 0.0
    %6214 = vmatprep.subr.mxu0 0.0
    %6215 = vmatpush1.msra.mxu0 0.0
    %6216 = vmatprep.subr.mxu0 0.0
    %6217 = vmatpush1.msra.mxu0 0.0
    %6218 = vmatprep.subr.mxu0 0.0
    %6219 = vmatpush1.msra.mxu0 0.0
    %6220 = vmatprep.subr.mxu0 0.0
    %6221 = vmatpush1.msra.mxu0 0.0
    %6222 = vmatprep.subr.mxu0 0.0
    %6223 = vmatpush1.msra.mxu0 0.0
    %6224 = vmatprep.subr.mxu0 0.0
    %6225 = vmatpush1.msra.mxu0 0.0
    %6226 = vmatprep.subr.mxu0 0.0
    %6227 = vmatpush1.msra.mxu0 0.0
    %6228 = vmatprep.subr.mxu0 0.0
    %6229 = vmatpush1.msra.mxu0 0.0
    %6230 = vmatprep.subr.mxu0 0.0
    %6231 = vmatpush1.msra.mxu0 0.0
    %6232 = vmatprep.subr.mxu0 0.0
    %6233 = vmatpush1.msra.mxu0 0.0
    %6234 = vmatprep.subr.mxu0 0.0
    %6235 = vmatpush1.msra.mxu0 0.0
    %6236 = vmatprep.mubr.f32.mxu0 0.0
    %6237 = vmatmul.mubr.f32.gmra.mrb[0].mxu0 %v6170
    %v6238 = vpop.f32.mrb[0].mxu0
    %v6239 = vadd.f32 %v6167, %v6238
    %v6240 = vpop.f32.mrb[0].mxu0
    %6241 = vdwg.mxu0
    %v6242 = vtanh.pop %v6239
    %vm6243 = vcmask 1024
    %6244 = vst.msk [vmem:[%s24] sm:$0x3] %vm6243, %v6242
    // Predicated region
    $region142: #{rise_v3_forward.1} parent=1 // pred_check
      _
    $region143: #{rise_v3_forward.1} parent=1 // pred_check_branch
      %6246 = sbr.rel (0) target = $region145
    $region144: #{rise_v3_forward.1} parent=1 // pred_region
      _
    $region145: #{rise_v3_forward.1} parent=1 // pred_fallthru
      _
    // Predicated region
    $region146: #{rise_v3_forward.1} parent=1 // pred_check
      _
    $region147: #{rise_v3_forward.1} parent=1 // pred_check_branch
      %6248 = sbr.rel (0) target = $region149
    $region148: #{rise_v3_forward.1} parent=1 // pred_region
      %s6250 = ssub.s32 128, 128
      %6251 = vsyncadd [#allocation9], %s6250
      %s6253 = sshll.u32 [#allocation25], 4
      %s6254 = int_to_ptr.vmem [resolvable:$true] %s6253
      %6256 = dma.vmem_to_hbm [thread:$0]  %s6254, 128, %s25, [#allocation9]
    $region149: #{rise_v3_forward.1} parent=1 // pred_fallthru
      _
    // Predicated region
    $region150: #{rise_v3_forward.1} parent=1 // pred_check
      _
    $region151: #{rise_v3_forward.1} parent=1 // pred_check_branch
      %6258 = sbr.rel (0) target = $region153
    $region152: #{rise_v3_forward.1} parent=1 // pred_region
      _
    $region153: #{rise_v3_forward.1} parent=1 // pred_fallthru
      _
    // Predicated region
    $region154: #{rise_v3_forward.1} parent=1 // pred_check
      _
    $region155: #{rise_v3_forward.1} parent=1 // pred_check_branch
      %6260 = sbr.rel (0) target = $region157
    $region156: #{rise_v3_forward.1} parent=1 // pred_region
      %6261 = dma.done [#allocation9], 128
    $region157: #{rise_v3_forward.1} parent=1 // pred_fallthru
      _
    %6262 = vsyncpa [#allocation8], 1
    %6263 = vsyncpa [#allocation11], 1
    %6264 = vsyncpa [#allocation14], 1
    %6265 = vsyncpa [#allocation17], 1
    %6266 = vsyncpa [#allocation20], 1
    %6267 = vsyncpa [#allocation23], 1
    %6268 = vsyncpa [#allocation9], 1

</llo_original>
